<compile_context>
chip_gen: v7x
topology: tpu7x:2x2x1
jax: 0.10.0
libtpu: 0.0.40
codegen_flags: <defaults>
</compile_context>

<pallas_src>
import jax
import jax.numpy as jnp
import numpy as np
from jax.experimental import pallas as pl
from jax.experimental.pallas import tpu as pltpu

LEAK = 0.2
BN_EPS = 1e-5
LANES = 128
C1, C2 = 32, 64            # real channel counts of conv1 / conv2+conv3 outputs

_BN_SINGLE_TILE_MAX = 2048  # M <= this -> single-tile fused BN kernel
_BN_TILE_CAP = 2048         # M tile cap for the tiled (two-call) BN path
_CONV1_TILE_CAP = 4096
_FC_TILE_CAP = 1024


# ----------------------------- Pallas kernels ------------------------------

def _mm_bias_lrelu_kernel(x_ref, w_ref, b_ref, o_ref):
    """bf16 matmul (f32 accum) + bias + LeakyReLU(0.2)."""
    z = jnp.dot(x_ref[...], w_ref[...], preferred_element_type=jnp.float32)
    z = z + b_ref[...]
    o_ref[...] = jnp.where(z > 0, z, LEAK * z).astype(o_ref.dtype)


def _mm_bias_bn_lrelu_single_kernel(x_ref, w_ref, b_ref, g_ref, t_ref, o_ref):
    """Single-tile conv-as-matmul + bias + BatchNorm (batch stats) + LeakyReLU.

    The whole M dimension lives in this one block, so the statistics are the
    true batch statistics.  Centered variance (better numerics than E[x^2])."""
    z = jnp.dot(x_ref[...], w_ref[...], preferred_element_type=jnp.float32)
    z = z + b_ref[...]
    mean = jnp.mean(z, axis=0, keepdims=True)
    zc = z - mean
    var = jnp.mean(zc * zc, axis=0, keepdims=True)
    zn = zc * jax.lax.rsqrt(var + BN_EPS) * g_ref[...] + t_ref[...]
    o_ref[...] = jnp.where(zn > 0, zn, LEAK * zn).astype(o_ref.dtype)


def _mm_bias_stats_kernel(x_ref, w_ref, b_ref, z_ref, s_ref):
    """Tiled-BN pass A: matmul + bias, store z (bf16) and per-tile sum/ssq.

    Each grid step is independent ("parallel"): stats go to a per-tile slot
    (rows 0/1 of an 8-row block); the cross-tile combine is a tiny XLA op."""
    z = jnp.dot(x_ref[...], w_ref[...], preferred_element_type=jnp.float32)
    z = z + b_ref[...]
    z_ref[...] = z.astype(z_ref.dtype)
    s = jnp.sum(z, axis=0, keepdims=True)
    q = jnp.sum(z * z, axis=0, keepdims=True)
    s_ref[...] = jnp.concatenate(
        [s, q, jnp.zeros((6, s.shape[1]), jnp.float32)], axis=0)


def _affine_lrelu_kernel(z_ref, sc_ref, sh_ref, o_ref):
    """Tiled-BN pass B: out = LeakyReLU(z * scale + shift)."""
    zn = z_ref[...].astype(jnp.float32) * sc_ref[...] + sh_ref[...]
    o_ref[...] = jnp.where(zn > 0, zn, LEAK * zn).astype(o_ref.dtype)


def _fc_head_kernel(x_ref, w1_ref, b1_ref, w2_ref, b2_ref, o_ref):
    """fc1 + LeakyReLU + fc2 + Sigmoid fused; fc1 activation stays in VMEM."""
    z1 = jnp.dot(x_ref[...], w1_ref[...], preferred_element_type=jnp.float32)
    z1 = z1 + b1_ref[...]
    h1 = jnp.where(z1 > 0, z1, LEAK * z1)
    z2 = jnp.dot(h1.astype(jnp.bfloat16), w2_ref[...],
                 preferred_element_type=jnp.float32)
    z2 = z2 + b2_ref[...]
    o_ref[...] = 1.0 / (1.0 + jnp.exp(-z2))


# ---------------------------- layer wrappers --------------------------------

def _pick_tile_m(m, cap):
    """Largest M tile <= cap that divides M (big, fat grid steps)."""
    if m <= cap:
        return m
    t = cap
    while t >= 8:
        if m % t == 0:
            return t
        t //= 2
    return m


def _conv_lrelu(x, w, b):
    m, k = x.shape
    nout = w.shape[1]
    tm = _pick_tile_m(m, _CONV1_TILE_CAP)
    return pl.pallas_call(
        _mm_bias_lrelu_kernel,
        out_shape=jax.ShapeDtypeStruct((m, nout), jnp.bfloat16),
        grid=(m // tm,),
        in_specs=[pl.BlockSpec((tm, k), lambda i: (i, 0)),
                  pl.BlockSpec((k, nout), lambda i: (0, 0)),
                  pl.BlockSpec((1, nout), lambda i: (0, 0))],
        out_specs=pl.BlockSpec((tm, nout), lambda i: (i, 0)),
        compiler_params=pltpu.CompilerParams(
            dimension_semantics=("parallel",)),
    )(x, w, b)


def _conv_bn_lrelu(x, w, b, g, t):
    m, k = x.shape
    nout = w.shape[1]

    if m <= _BN_SINGLE_TILE_MAX:
        # Whole layer in one grid step: x read once, output written once,
        # statistics exact, no intermediate z in HBM.
        return pl.pallas_call(
            _mm_bias_bn_lrelu_single_kernel,
            out_shape=jax.ShapeDtypeStruct((m, nout), jnp.bfloat16),
            grid=(1,),
            in_specs=[pl.BlockSpec((m, k), lambda i: (0, 0)),
                      pl.BlockSpec((k, nout), lambda i: (0, 0)),
                      pl.BlockSpec((1, nout), lambda i: (0, 0)),
                      pl.BlockSpec((1, nout), lambda i: (0, 0)),
                      pl.BlockSpec((1, nout), lambda i: (0, 0))],
            out_specs=pl.BlockSpec((m, nout), lambda i: (0, 0)),
            compiler_params=pltpu.CompilerParams(
                dimension_semantics=("arbitrary",)),
        )(x, w, b, g, t)

    # Large-M path: pass A (matmul + per-tile stats), tiny XLA combine,
    # pass B (affine + LeakyReLU).  Both passes are fully parallel over M.
    tm = _pick_tile_m(m, _BN_TILE_CAP)
    nt = m // tm
    z, stats = pl.pallas_call(
        _mm_bias_stats_kernel,
        out_shape=(jax.ShapeDtypeStruct((m, nout), jnp.bfloat16),
                   jax.ShapeDtypeStruct((nt * 8, nout), jnp.float32)),
        grid=(nt,),
        in_specs=[pl.BlockSpec((tm, k), lambda i: (i, 0)),
                  pl.BlockSpec((k, nout), lambda i: (0, 0)),
                  pl.BlockSpec((1, nout), lambda i: (0, 0))],
        out_specs=(pl.BlockSpec((tm, nout), lambda i: (i, 0)),
                   pl.BlockSpec((8, nout), lambda i: (i, 0))),
        compiler_params=pltpu.CompilerParams(
            dimension_semantics=("parallel",)),
    )(x, w, b)

    st = stats.reshape(nt, 8, nout)
    s_tot = jnp.sum(st[:, 0, :], axis=0)                    # (nout,)
    q_tot = jnp.sum(st[:, 1, :], axis=0)
    mean = s_tot / m
    var = jnp.maximum(q_tot / m - mean * mean, 0.0)
    scale = (g * jax.lax.rsqrt(var + BN_EPS)).astype(jnp.float32)   # (1, nout)
    shift = (t - mean * scale).astype(jnp.float32)                  # (1, nout)

    return pl.pallas_call(
        _affine_lrelu_kernel,
        out_shape=jax.ShapeDtypeStruct((m, nout), jnp.bfloat16),
        grid=(nt,),
        in_specs=[pl.BlockSpec((tm, nout), lambda i: (i, 0)),
                  pl.BlockSpec((1, nout), lambda i: (0, 0)),
                  pl.BlockSpec((1, nout), lambda i: (0, 0))],
        out_specs=pl.BlockSpec((tm, nout), lambda i: (i, 0)),
        compiler_params=pltpu.CompilerParams(
            dimension_semantics=("parallel",)),
    )(z, scale, shift)


def _fc_head(x, w1, b1, w2, b2):
    m, k = x.shape
    h = w1.shape[1]
    tm = _pick_tile_m(m, _FC_TILE_CAP)
    return pl.pallas_call(
        _fc_head_kernel,
        out_shape=jax.ShapeDtypeStruct((m, h), jnp.float32),
        grid=(m // tm,),
        in_specs=[pl.BlockSpec((tm, k), lambda i: (i, 0)),
                  pl.BlockSpec((k, h), lambda i: (0, 0)),
                  pl.BlockSpec((1, h), lambda i: (0, 0)),
                  pl.BlockSpec((h, h), lambda i: (0, 0)),
                  pl.BlockSpec((1, h), lambda i: (0, 0))],
        out_specs=pl.BlockSpec((tm, h), lambda i: (i, 0)),
        compiler_params=pltpu.CompilerParams(
            dimension_semantics=("parallel",)),
    )(x, w1, b1, w2, b2)


# --------------------------------- glue -------------------------------------

def _extract_patches(x, ksize=3, stride=2, pad=1):
    """im2col: x (N,H,W,C) -> (N,Ho,Wo,ksize*ksize*C); column order (kh,kw,c).
    # TODO(synk): strided 3x3 taps of a stride-2/4 conv are not expressible
    # with a BlockSpec index_map; moving patch formation into the kernel
    # (halo-row DMA + in-VMEM shifted views) would remove this HBM pass."""
    n, h, w, c = x.shape
    xp = jnp.pad(x, ((0, 0), (pad, pad), (pad, pad), (0, 0)))
    ho = (h + 2 * pad - ksize) // stride + 1
    wo = (w + 2 * pad - ksize) // stride + 1
    cols = []
    for kh in range(ksize):
        for kw in range(ksize):
            cols.append(xp[:, kh:kh + stride * ho:stride,
                           kw:kw + stride * wo:stride, :])
    return jnp.concatenate(cols, axis=-1)


def _spectral_normalize(w):
    """Divide conv weight (Cout,Cin,KH,KW) by its largest singular value
    (power iteration on the (Cout,-1) reshape, like torch spectral_norm)."""
    wm = w.reshape(w.shape[0], -1)
    u = jnp.ones((wm.shape[0],), jnp.float32) / np.sqrt(wm.shape[0])
    for _ in range(30):
        v = wm.T @ u
        v = v / (jnp.linalg.norm(v) + 1e-12)
        u = wm @ v
        u = u / (jnp.linalg.norm(u) + 1e-12)
    sigma = u @ (wm @ v)
    return w / sigma


def _conv_w_to_mat(w):
    """(Cout,Cin,KH,KW) -> (KH*KW*Cin, Cout) matching the patch column order."""
    cout, cin, kh, kw = w.shape
    return jnp.transpose(w, (2, 3, 1, 0)).reshape(kh * kw * cin, cout)


def _pad_cols(m, cols=LANES):
    return jnp.pad(m, ((0, 0), (0, cols - m.shape[1])))


def _row_pad(v, n=LANES):
    v = jnp.asarray(v, jnp.float32).reshape(1, -1)
    return jnp.pad(v, ((0, 0), (0, n - v.shape[1])))


def init_params(key):
    ks = jax.random.split(key, 14)
    w1 = _spectral_normalize(jax.random.normal(ks[0], (32, 4, 3, 3)) * 0.1)
    w2 = _spectral_normalize(jax.random.normal(ks[1], (64, 32, 3, 3)) * 0.1)
    w3 = _spectral_normalize(jax.random.normal(ks[2], (64, 64, 3, 3)) * 0.1)
    b1 = jax.random.normal(ks[3], (32,)) * 0.05
    b2 = jax.random.normal(ks[4], (64,)) * 0.05
    b3 = jax.random.normal(ks[5], (64,)) * 0.05
    g2 = 1.0 + 0.1 * jax.random.normal(ks[6], (64,))
    t2 = 0.1 * jax.random.normal(ks[7], (64,))
    g3 = 1.0 + 0.1 * jax.random.normal(ks[8], (64,))
    t3 = 0.1 * jax.random.normal(ks[9], (64,))
    wf1 = jax.random.normal(ks[10], (128, 1024)) * 0.03   # torch (out, in)
    bf1 = jax.random.normal(ks[11], (128,)) * 0.05
    wf2 = jax.random.normal(ks[12], (1, 128)) * 0.1       # torch (out, in)
    bf2 = jax.random.normal(ks[13], (1,)) * 0.05

    p = {}
    # Conv weights as (K, Cout_padded) matmul matrices.  K keeps its REAL size
    # (36 / 288 / 576); only the output lane dim is zero-padded to 128, so the
    # padded output channels are exactly 0 through the whole chain.
    p["w1"] = _pad_cols(_conv_w_to_mat(w1)).astype(jnp.bfloat16)   # (36, 128)
    p["w2"] = _pad_cols(_conv_w_to_mat(w2)).astype(jnp.bfloat16)   # (288, 128)
    p["w3"] = _pad_cols(_conv_w_to_mat(w3)).astype(jnp.bfloat16)   # (576, 128)
    p["b1"], p["b2"], p["b3"] = _row_pad(b1), _row_pad(b2), _row_pad(b3)
    # BN affine params; zero gamma/beta keeps the padded channels exactly 0.
    p["g2"], p["t2"] = _row_pad(g2), _row_pad(t2)
    p["g3"], p["t3"] = _row_pad(g3), _row_pad(t3)

    # fc1: fold the NCHW flatten permutation into the weight so the kernel
    # consumes the conv3 output in its native (h, w, c) layout (real 64 chans)
    # with no transpose in the hot path.
    wf1_mat = wf1.T                                  # (1024,128), row = c*16+h*4+w
    wf1_chw = wf1_mat.reshape(64, 4, 4, 128)         # (c, h, w, out)
    wf1_hwc = jnp.transpose(wf1_chw, (1, 2, 0, 3))   # (h, w, c, out)
    p["wf1"] = wf1_hwc.reshape(4 * 4 * 64, 128).astype(jnp.bfloat16)
    p["bf1"] = _row_pad(bf1)
    # fc2: lane-pad the single output column to 128; only column 0 is real.
    p["wf2"] = _pad_cols(wf2.T).astype(jnp.bfloat16)                # (128, 128)
    p["bf2"] = _row_pad(bf2)
    return p


def discriminator_forward(x_nchw, params):
    n = x_nchw.shape[0]
    x = jnp.transpose(x_nchw, (0, 2, 3, 1)).astype(jnp.bfloat16)    # (N,64,64,4)

    # conv1 (4->32, stride 2) + LeakyReLU.  K = 36, output lanes padded to 128.
    pch = _extract_patches(x, stride=2).reshape(n * 32 * 32, 9 * 4)
    h = _conv_lrelu(pch, params["w1"], params["b1"])                # (N*1024,128)
    h = h.reshape(n, 32, 32, LANES)[..., :C1]                       # real 32 chans

    # conv2 (32->64, stride 2) + BatchNorm + LeakyReLU.  K = 288.
    pch = _extract_patches(h, stride=2).reshape(n * 16 * 16, 9 * C1)
    h = _conv_bn_lrelu(pch, params["w2"], params["b2"],
                       params["g2"], params["t2"])                  # (N*256,128)
    h = h.reshape(n, 16, 16, LANES)[..., :C2]                       # real 64 chans

    # conv3 (64->64, stride 4) + BatchNorm + LeakyReLU.  K = 576.
    pch = _extract_patches(h, stride=4).reshape(n * 4 * 4, 9 * C2)
    h = _conv_bn_lrelu(pch, params["w3"], params["b3"],
                       params["g3"], params["t3"])                  # (N*16,128)

    # Flatten (NCHW permutation folded into wf1) + fused fc head (K = 1024).
    h = h.reshape(n, 4, 4, LANES)[..., :C2].reshape(n, 4 * 4 * C2)
    out = _fc_head(h, params["wf1"], params["bf1"],
                   params["wf2"], params["bf2"])
    return out[:, :1]                                               # (N, 1)


if __name__ == "__main__":
    key = jax.random.PRNGKey(0)
    pkey, xkey = jax.random.split(key)
    params = init_params(pkey)

    fwd = jax.jit(discriminator_forward)

    # Input must be (N, 4, 64, 64): Flatten feeding Linear(1024, 128) fixes
    # the spatial size at 64x64.  Small batch -> single-tile BatchNorm path.
    x = jax.random.normal(xkey, (2, 4, 64, 64), jnp.float32)
    out = jax.block_until_ready(fwd(x, params))
    assert out.shape == (2, 1), out.shape
    assert bool(jnp.all((out >= 0.0) & (out <= 1.0)))
    assert bool(jnp.all(jnp.isfinite(out)))

    # Larger batch exercises the tiled two-pass BatchNorm path for conv2.
    x_big = jax.random.normal(xkey, (12, 4, 64, 64), jnp.float32)
    out_big = jax.block_until_ready(fwd(x_big, params))
    assert out_big.shape == (12, 1), out_big.shape
    assert bool(jnp.all((out_big >= 0.0) & (out_big <= 1.0)))
    assert bool(jnp.all(jnp.isfinite(out_big)))

    print("KERNEL_OK")
</pallas_src>

<mosaic_0001>
module attributes {stable_mosaic.version = 11 : i64} {
  func.func @_mm_bias_lrelu_kernel(%arg0: i32, %arg1: memref<2048x36xbf16, #tpu.memory_space<vmem>>, %arg2: memref<36x128xbf16, #tpu.memory_space<vmem>>, %arg3: memref<1x128xf32, #tpu.memory_space<vmem>>, %arg4: memref<2048x128xbf16, #tpu.memory_space<vmem>>) attributes {dimension_semantics = [#tpu.dimension_semantics<parallel>], iteration_bounds = array<i64: 1>, scalar_prefetch = 0 : i64, scratch_operands = 0 : i64, tpu.core_type = #tpu.core_type<tc>, window_params = [{transform_indices = @transform_0, window_bounds = array<i64: 2048, 36>}, {pipeline_mode = #tpu.pipeline_mode<synchronous>, transform_indices = @transform_1, window_bounds = array<i64: 36, 128>}, {pipeline_mode = #tpu.pipeline_mode<synchronous>, transform_indices = @transform_2, window_bounds = array<i64: 1, 128>}, {transform_indices = @transform_3, window_bounds = array<i64: 2048, 128>}]} {
    %c0 = arith.constant 0 : index
    %c0_0 = arith.constant 0 : index
    %0 = vector.load %arg1[%c0, %c0_0] : memref<2048x36xbf16, #tpu.memory_space<vmem>>, vector<2048x36xbf16>
    %c0_1 = arith.constant 0 : index
    %c0_2 = arith.constant 0 : index
    %1 = vector.load %arg2[%c0_1, %c0_2] : memref<36x128xbf16, #tpu.memory_space<vmem>>, vector<36x128xbf16>
    %cst = arith.constant dense<0.000000e+00> : vector<2048x128xf32>
    %2 = tpu.matmul %0, %1, %cst {dimension_numbers = #tpu.dot_dimension_numbers<[1], [0], [0], [1], [0, 0, 1, 1], [], []>} : vector<2048x36xbf16>, vector<36x128xbf16>, vector<2048x128xf32> -> vector<2048x128xf32>
    %c0_3 = arith.constant 0 : index
    %c0_4 = arith.constant 0 : index
    %3 = vector.load %arg3[%c0_3, %c0_4] : memref<1x128xf32, #tpu.memory_space<vmem>>, vector<1x128xf32>
    %4 = vector.broadcast %3 : vector<1x128xf32> to vector<2048x128xf32>
    %5 = arith.addf %2, %4 : vector<2048x128xf32>
    %cst_5 = arith.constant 0.000000e+00 : f32
    %6 = vector.broadcast %cst_5 : f32 to vector<2048x128xf32>
    %7 = arith.cmpf ogt, %5, %6 : vector<2048x128xf32>
    %cst_6 = arith.constant 2.000000e-01 : f32
    %8 = vector.broadcast %cst_6 : f32 to vector<2048x128xf32>
    %9 = arith.mulf %8, %5 : vector<2048x128xf32>
    %10 = arith.select %7, %5, %9 : vector<2048x128xi1>, vector<2048x128xf32>
    %11 = arith.truncf %10 : vector<2048x128xf32> to vector<2048x128xbf16>
    %c0_7 = arith.constant 0 : index
    %c0_8 = arith.constant 0 : index
    %12 = vector.load %arg4[%c0_7, %c0_8] : memref<2048x128xbf16, #tpu.memory_space<vmem>>, vector<2048x128xbf16>
    tpu.vector_store %arg4[%c0_7, %c0_8], %11 {strides = array<i32>} : memref<2048x128xbf16, #tpu.memory_space<vmem>>, vector<2048x128xbf16>,
    return
  }
  func.func @transform_0(%arg0: i32) -> (i32, i32) {
    %c0_i32 = arith.constant 0 : i32
    %c0_i32_0 = arith.constant 0 : i32
    return %arg0, %c0_i32 : i32, i32
  }
  func.func @transform_1(%arg0: i32) -> (i32, i32) {
    %c0_i32 = arith.constant 0 : i32
    %c0_i32_0 = arith.constant 0 : i32
    %c0_i32_1 = arith.constant 0 : i32
    return %c0_i32, %c0_i32_0 : i32, i32
  }
  func.func @transform_2(%arg0: i32) -> (i32, i32) {
    %c0_i32 = arith.constant 0 : i32
    %c0_i32_0 = arith.constant 0 : i32
    %c0_i32_1 = arith.constant 0 : i32
    return %c0_i32, %c0_i32_0 : i32, i32
  }
  func.func @transform_3(%arg0: i32) -> (i32, i32) {
    %c0_i32 = arith.constant 0 : i32
    %c0_i32_0 = arith.constant 0 : i32
    return %arg0, %c0_i32 : i32, i32
  }
}

module attributes {stable_mosaic.version = 11 : i64} {
  func.func @_mm_bias_bn_lrelu_single_kernel(%arg0: i32, %arg1: memref<512x288xbf16, #tpu.memory_space<vmem>>, %arg2: memref<288x128xbf16, #tpu.memory_space<vmem>>, %arg3: memref<1x128xf32, #tpu.memory_space<vmem>>, %arg4: memref<1x128xf32, #tpu.memory_space<vmem>>, %arg5: memref<1x128xf32, #tpu.memory_space<vmem>>, %arg6: memref<512x128xbf16, #tpu.memory_space<vmem>>) attributes {dimension_semantics = [#tpu.dimension_semantics<arbitrary>], iteration_bounds = array<i64: 1>, scalar_prefetch = 0 : i64, scratch_operands = 0 : i64, tpu.core_type = #tpu.core_type<tc>, window_params = [{pipeline_mode = #tpu.pipeline_mode<synchronous>, transform_indices = @transform_0, window_bounds = array<i64: 512, 288>}, {pipeline_mode = #tpu.pipeline_mode<synchronous>, transform_indices = @transform_1, window_bounds = array<i64: 288, 128>}, {pipeline_mode = #tpu.pipeline_mode<synchronous>, transform_indices = @transform_2, window_bounds = array<i64: 1, 128>}, {pipeline_mode = #tpu.pipeline_mode<synchronous>, transform_indices = @transform_3, window_bounds = array<i64: 1, 128>}, {pipeline_mode = #tpu.pipeline_mode<synchronous>, transform_indices = @transform_4, window_bounds = array<i64: 1, 128>}, {pipeline_mode = #tpu.pipeline_mode<synchronous>, transform_indices = @transform_5, window_bounds = array<i64: 512, 128>}]} {
    %c0 = arith.constant 0 : index
    %c0_0 = arith.constant 0 : index
    %0 = vector.load %arg1[%c0, %c0_0] : memref<512x288xbf16, #tpu.memory_space<vmem>>, vector<512x288xbf16>
    %c0_1 = arith.constant 0 : index
    %c0_2 = arith.constant 0 : index
    %1 = vector.load %arg2[%c0_1, %c0_2] : memref<288x128xbf16, #tpu.memory_space<vmem>>, vector<288x128xbf16>
    %cst = arith.constant dense<0.000000e+00> : vector<512x128xf32>
    %2 = tpu.matmul %0, %1, %cst {dimension_numbers = #tpu.dot_dimension_numbers<[1], [0], [0], [1], [0, 0, 1, 1], [], []>} : vector<512x288xbf16>, vector<288x128xbf16>, vector<512x128xf32> -> vector<512x128xf32>
    %c0_3 = arith.constant 0 : index
    %c0_4 = arith.constant 0 : index
    %3 = vector.load %arg3[%c0_3, %c0_4] : memref<1x128xf32, #tpu.memory_space<vmem>>, vector<1x128xf32>
    %4 = vector.broadcast %3 : vector<1x128xf32> to vector<512x128xf32>
    %5 = arith.addf %2, %4 : vector<512x128xf32>
    %cst_5 = arith.constant dense<0.000000e+00> : vector<128xf32>
    %6 = vector.multi_reduction <add>, %5, %cst_5 [0] : vector<512x128xf32> to vector<128xf32>
    %7 = vector.shape_cast %6 : vector<128xf32> to vector<1x128xf32>
    %cst_6 = arith.constant 5.120000e+02 : f32
    %8 = vector.broadcast %cst_6 : f32 to vector<1x128xf32>
    %9 = arith.divf %7, %8 : vector<1x128xf32>
    %10 = vector.broadcast %9 : vector<1x128xf32> to vector<512x128xf32>
    %11 = arith.subf %5, %10 : vector<512x128xf32>
    %12 = arith.mulf %11, %11 : vector<512x128xf32>
    %cst_7 = arith.constant dense<0.000000e+00> : vector<128xf32>
    %13 = vector.multi_reduction <add>, %12, %cst_7 [0] : vector<512x128xf32> to vector<128xf32>
    %14 = vector.shape_cast %13 : vector<128xf32> to vector<1x128xf32>
    %cst_8 = arith.constant 5.120000e+02 : f32
    %15 = vector.broadcast %cst_8 : f32 to vector<1x128xf32>
    %16 = arith.divf %14, %15 : vector<1x128xf32>
    %cst_9 = arith.constant 9.99999974E-6 : f32
    %17 = vector.broadcast %cst_9 : f32 to vector<1x128xf32>
    %18 = arith.addf %16, %17 : vector<1x128xf32>
    %19 = math.rsqrt %18 : vector<1x128xf32>
    %20 = vector.broadcast %19 : vector<1x128xf32> to vector<512x128xf32>
    %21 = arith.mulf %11, %20 : vector<512x128xf32>
    %c0_10 = arith.constant 0 : index
    %c0_11 = arith.constant 0 : index
    %22 = vector.load %arg4[%c0_10, %c0_11] : memref<1x128xf32, #tpu.memory_space<vmem>>, vector<1x128xf32>
    %23 = vector.broadcast %22 : vector<1x128xf32> to vector<512x128xf32>
    %24 = arith.mulf %21, %23 : vector<512x128xf32>
    %c0_12 = arith.constant 0 : index
    %c0_13 = arith.constant 0 : index
    %25 = vector.load %arg5[%c0_12, %c0_13] : memref<1x128xf32, #tpu.memory_space<vmem>>, vector<1x128xf32>
    %26 = vector.broadcast %25 : vector<1x128xf32> to vector<512x128xf32>
    %27 = arith.addf %24, %26 : vector<512x128xf32>
    %cst_14 = arith.constant 0.000000e+00 : f32
    %28 = vector.broadcast %cst_14 : f32 to vector<512x128xf32>
    %29 = arith.cmpf ogt, %27, %28 : vector<512x128xf32>
    %cst_15 = arith.constant 2.000000e-01 : f32
    %30 = vector.broadcast %cst_15 : f32 to vector<512x128xf32>
    %31 = arith.mulf %30, %27 : vector<512x128xf32>
    %32 = arith.select %29, %27, %31 : vector<512x128xi1>, vector<512x128xf32>
    %33 = arith.truncf %32 : vector<512x128xf32> to vector<512x128xbf16>
    %c0_16 = arith.constant 0 : index
    %c0_17 = arith.constant 0 : index
    %34 = vector.load %arg6[%c0_16, %c0_17] : memref<512x128xbf16, #tpu.memory_space<vmem>>, vector<512x128xbf16>
    tpu.vector_store %arg6[%c0_16, %c0_17], %33 {strides = array<i32>} : memref<512x128xbf16, #tpu.memory_space<vmem>>, vector<512x128xbf16>,
    return
  }
  func.func @transform_0(%arg0: i32) -> (i32, i32) {
    %c0_i32 = arith.constant 0 : i32
    %c0_i32_0 = arith.constant 0 : i32
    %c0_i32_1 = arith.constant 0 : i32
    return %c0_i32, %c0_i32_0 : i32, i32
  }
  func.func @transform_1(%arg0: i32) -> (i32, i32) {
    %c0_i32 = arith.constant 0 : i32
    %c0_i32_0 = arith.constant 0 : i32
    %c0_i32_1 = arith.constant 0 : i32
    return %c0_i32, %c0_i32_0 : i32, i32
  }
  func.func @transform_2(%arg0: i32) -> (i32, i32) {
    %c0_i32 = arith.constant 0 : i32
    %c0_i32_0 = arith.constant 0 : i32
    %c0_i32_1 = arith.constant 0 : i32
    return %c0_i32, %c0_i32_0 : i32, i32
  }
  func.func @transform_3(%arg0: i32) -> (i32, i32) {
    %c0_i32 = arith.constant 0 : i32
    %c0_i32_0 = arith.constant 0 : i32
    %c0_i32_1 = arith.constant 0 : i32
    return %c0_i32, %c0_i32_0 : i32, i32
  }
  func.func @transform_4(%arg0: i32) -> (i32, i32) {
    %c0_i32 = arith.constant 0 : i32
    %c0_i32_0 = arith.constant 0 : i32
    %c0_i32_1 = arith.constant 0 : i32
    return %c0_i32, %c0_i32_0 : i32, i32
  }
  func.func @transform_5(%arg0: i32) -> (i32, i32) {
    %c0_i32 = arith.constant 0 : i32
    %c0_i32_0 = arith.constant 0 : i32
    %c0_i32_1 = arith.constant 0 : i32
    return %c0_i32, %c0_i32_0 : i32, i32
  }
}

module attributes {stable_mosaic.version = 11 : i64} {
  func.func @_mm_bias_bn_lrelu_single_kernel(%arg0: i32, %arg1: memref<32x576xbf16, #tpu.memory_space<vmem>>, %arg2: memref<576x128xbf16, #tpu.memory_space<vmem>>, %arg3: memref<1x128xf32, #tpu.memory_space<vmem>>, %arg4: memref<1x128xf32, #tpu.memory_space<vmem>>, %arg5: memref<1x128xf32, #tpu.memory_space<vmem>>, %arg6: memref<32x128xbf16, #tpu.memory_space<vmem>>) attributes {dimension_semantics = [#tpu.dimension_semantics<arbitrary>], iteration_bounds = array<i64: 1>, scalar_prefetch = 0 : i64, scratch_operands = 0 : i64, tpu.core_type = #tpu.core_type<tc>, window_params = [{pipeline_mode = #tpu.pipeline_mode<synchronous>, transform_indices = @transform_0, window_bounds = array<i64: 32, 576>}, {pipeline_mode = #tpu.pipeline_mode<synchronous>, transform_indices = @transform_1, window_bounds = array<i64: 576, 128>}, {pipeline_mode = #tpu.pipeline_mode<synchronous>, transform_indices = @transform_2, window_bounds = array<i64: 1, 128>}, {pipeline_mode = #tpu.pipeline_mode<synchronous>, transform_indices = @transform_3, window_bounds = array<i64: 1, 128>}, {pipeline_mode = #tpu.pipeline_mode<synchronous>, transform_indices = @transform_4, window_bounds = array<i64: 1, 128>}, {pipeline_mode = #tpu.pipeline_mode<synchronous>, transform_indices = @transform_5, window_bounds = array<i64: 32, 128>}]} {
    %c0 = arith.constant 0 : index
    %c0_0 = arith.constant 0 : index
    %0 = vector.load %arg1[%c0, %c0_0] : memref<32x576xbf16, #tpu.memory_space<vmem>>, vector<32x576xbf16>
    %c0_1 = arith.constant 0 : index
    %c0_2 = arith.constant 0 : index
    %1 = vector.load %arg2[%c0_1, %c0_2] : memref<576x128xbf16, #tpu.memory_space<vmem>>, vector<576x128xbf16>
    %cst = arith.constant dense<0.000000e+00> : vector<32x128xf32>
    %2 = tpu.matmul %0, %1, %cst {dimension_numbers = #tpu.dot_dimension_numbers<[1], [0], [0], [1], [0, 0, 1, 1], [], []>} : vector<32x576xbf16>, vector<576x128xbf16>, vector<32x128xf32> -> vector<32x128xf32>
    %c0_3 = arith.constant 0 : index
    %c0_4 = arith.constant 0 : index
    %3 = vector.load %arg3[%c0_3, %c0_4] : memref<1x128xf32, #tpu.memory_space<vmem>>, vector<1x128xf32>
    %4 = vector.broadcast %3 : vector<1x128xf32> to vector<32x128xf32>
    %5 = arith.addf %2, %4 : vector<32x128xf32>
    %cst_5 = arith.constant dense<0.000000e+00> : vector<128xf32>
    %6 = vector.multi_reduction <add>, %5, %cst_5 [0] : vector<32x128xf32> to vector<128xf32>
    %7 = vector.shape_cast %6 : vector<128xf32> to vector<1x128xf32>
    %cst_6 = arith.constant 3.200000e+01 : f32
    %8 = vector.broadcast %cst_6 : f32 to vector<1x128xf32>
    %9 = arith.divf %7, %8 : vector<1x128xf32>
    %10 = vector.broadcast %9 : vector<1x128xf32> to vector<32x128xf32>
    %11 = arith.subf %5, %10 : vector<32x128xf32>
    %12 = arith.mulf %11, %11 : vector<32x128xf32>
    %cst_7 = arith.constant dense<0.000000e+00> : vector<128xf32>
    %13 = vector.multi_reduction <add>, %12, %cst_7 [0] : vector<32x128xf32> to vector<128xf32>
    %14 = vector.shape_cast %13 : vector<128xf32> to vector<1x128xf32>
    %cst_8 = arith.constant 3.200000e+01 : f32
    %15 = vector.broadcast %cst_8 : f32 to vector<1x128xf32>
    %16 = arith.divf %14, %15 : vector<1x128xf32>
    %cst_9 = arith.constant 9.99999974E-6 : f32
    %17 = vector.broadcast %cst_9 : f32 to vector<1x128xf32>
    %18 = arith.addf %16, %17 : vector<1x128xf32>
    %19 = math.rsqrt %18 : vector<1x128xf32>
    %20 = vector.broadcast %19 : vector<1x128xf32> to vector<32x128xf32>
    %21 = arith.mulf %11, %20 : vector<32x128xf32>
    %c0_10 = arith.constant 0 : index
    %c0_11 = arith.constant 0 : index
    %22 = vector.load %arg4[%c0_10, %c0_11] : memref<1x128xf32, #tpu.memory_space<vmem>>, vector<1x128xf32>
    %23 = vector.broadcast %22 : vector<1x128xf32> to vector<32x128xf32>
    %24 = arith.mulf %21, %23 : vector<32x128xf32>
    %c0_12 = arith.constant 0 : index
    %c0_13 = arith.constant 0 : index
    %25 = vector.load %arg5[%c0_12, %c0_13] : memref<1x128xf32, #tpu.memory_space<vmem>>, vector<1x128xf32>
    %26 = vector.broadcast %25 : vector<1x128xf32> to vector<32x128xf32>
    %27 = arith.addf %24, %26 : vector<32x128xf32>
    %cst_14 = arith.constant 0.000000e+00 : f32
    %28 = vector.broadcast %cst_14 : f32 to vector<32x128xf32>
    %29 = arith.cmpf ogt, %27, %28 : vector<32x128xf32>
    %cst_15 = arith.constant 2.000000e-01 : f32
    %30 = vector.broadcast %cst_15 : f32 to vector<32x128xf32>
    %31 = arith.mulf %30, %27 : vector<32x128xf32>
    %32 = arith.select %29, %27, %31 : vector<32x128xi1>, vector<32x128xf32>
    %33 = arith.truncf %32 : vector<32x128xf32> to vector<32x128xbf16>
    %c0_16 = arith.constant 0 : index
    %c0_17 = arith.constant 0 : index
    %34 = vector.load %arg6[%c0_16, %c0_17] : memref<32x128xbf16, #tpu.memory_space<vmem>>, vector<32x128xbf16>
    tpu.vector_store %arg6[%c0_16, %c0_17], %33 {strides = array<i32>} : memref<32x128xbf16, #tpu.memory_space<vmem>>, vector<32x128xbf16>,
    return
  }
  func.func @transform_0(%arg0: i32) -> (i32, i32) {
    %c0_i32 = arith.constant 0 : i32
    %c0_i32_0 = arith.constant 0 : i32
    %c0_i32_1 = arith.constant 0 : i32
    return %c0_i32, %c0_i32_0 : i32, i32
  }
  func.func @transform_1(%arg0: i32) -> (i32, i32) {
    %c0_i32 = arith.constant 0 : i32
    %c0_i32_0 = arith.constant 0 : i32
    %c0_i32_1 = arith.constant 0 : i32
    return %c0_i32, %c0_i32_0 : i32, i32
  }
  func.func @transform_2(%arg0: i32) -> (i32, i32) {
    %c0_i32 = arith.constant 0 : i32
    %c0_i32_0 = arith.constant 0 : i32
    %c0_i32_1 = arith.constant 0 : i32
    return %c0_i32, %c0_i32_0 : i32, i32
  }
  func.func @transform_3(%arg0: i32) -> (i32, i32) {
    %c0_i32 = arith.constant 0 : i32
    %c0_i32_0 = arith.constant 0 : i32
    %c0_i32_1 = arith.constant 0 : i32
    return %c0_i32, %c0_i32_0 : i32, i32
  }
  func.func @transform_4(%arg0: i32) -> (i32, i32) {
    %c0_i32 = arith.constant 0 : i32
    %c0_i32_0 = arith.constant 0 : i32
    %c0_i32_1 = arith.constant 0 : i32
    return %c0_i32, %c0_i32_0 : i32, i32
  }
  func.func @transform_5(%arg0: i32) -> (i32, i32) {
    %c0_i32 = arith.constant 0 : i32
    %c0_i32_0 = arith.constant 0 : i32
    %c0_i32_1 = arith.constant 0 : i32
    return %c0_i32, %c0_i32_0 : i32, i32
  }
}

module attributes {stable_mosaic.version = 11 : i64} {
  func.func @_fc_head_kernel(%arg0: i32, %arg1: memref<2x1024xbf16, #tpu.memory_space<vmem>>, %arg2: memref<1024x128xbf16, #tpu.memory_space<vmem>>, %arg3: memref<1x128xf32, #tpu.memory_space<vmem>>, %arg4: memref<128x128xbf16, #tpu.memory_space<vmem>>, %arg5: memref<1x128xf32, #tpu.memory_space<vmem>>, %arg6: memref<2x128xf32, #tpu.memory_space<vmem>>) attributes {dimension_semantics = [#tpu.dimension_semantics<parallel>], iteration_bounds = array<i64: 1>, scalar_prefetch = 0 : i64, scratch_operands = 0 : i64, tpu.core_type = #tpu.core_type<tc>, window_params = [{transform_indices = @transform_0, window_bounds = array<i64: 2, 1024>}, {pipeline_mode = #tpu.pipeline_mode<synchronous>, transform_indices = @transform_1, window_bounds = array<i64: 1024, 128>}, {pipeline_mode = #tpu.pipeline_mode<synchronous>, transform_indices = @transform_2, window_bounds = array<i64: 1, 128>}, {pipeline_mode = #tpu.pipeline_mode<synchronous>, transform_indices = @transform_3, window_bounds = array<i64: 128, 128>}, {pipeline_mode = #tpu.pipeline_mode<synchronous>, transform_indices = @transform_4, window_bounds = array<i64: 1, 128>}, {transform_indices = @transform_5, window_bounds = array<i64: 2, 128>}]} {
    %c0 = arith.constant 0 : index
    %c0_0 = arith.constant 0 : index
    %0 = vector.load %arg1[%c0, %c0_0] : memref<2x1024xbf16, #tpu.memory_space<vmem>>, vector<2x1024xbf16>
    %c0_1 = arith.constant 0 : index
    %c0_2 = arith.constant 0 : index
    %1 = vector.load %arg2[%c0_1, %c0_2] : memref<1024x128xbf16, #tpu.memory_space<vmem>>, vector<1024x128xbf16>
    %cst = arith.constant dense<0.000000e+00> : vector<2x128xf32>
    %2 = tpu.matmul %0, %1, %cst {dimension_numbers = #tpu.dot_dimension_numbers<[1], [0], [0], [1], [0, 0, 1, 1], [], []>} : vector<2x1024xbf16>, vector<1024x128xbf16>, vector<2x128xf32> -> vector<2x128xf32>
    %c0_3 = arith.constant 0 : index
    %c0_4 = arith.constant 0 : index
    %3 = vector.load %arg3[%c0_3, %c0_4] : memref<1x128xf32, #tpu.memory_space<vmem>>, vector<1x128xf32>
    %4 = vector.broadcast %3 : vector<1x128xf32> to vector<2x128xf32>
    %5 = arith.addf %2, %4 : vector<2x128xf32>
    %cst_5 = arith.constant 0.000000e+00 : f32
    %6 = vector.broadcast %cst_5 : f32 to vector<2x128xf32>
    %7 = arith.cmpf ogt, %5, %6 : vector<2x128xf32>
    %cst_6 = arith.constant 2.000000e-01 : f32
    %8 = vector.broadcast %cst_6 : f32 to vector<2x128xf32>
    %9 = arith.mulf %8, %5 : vector<2x128xf32>
    %10 = arith.select %7, %5, %9 : vector<2x128xi1>, vector<2x128xf32>
    %11 = arith.truncf %10 : vector<2x128xf32> to vector<2x128xbf16>
    %c0_7 = arith.constant 0 : index
    %c0_8 = arith.constant 0 : index
    %12 = vector.load %arg4[%c0_7, %c0_8] : memref<128x128xbf16, #tpu.memory_space<vmem>>, vector<128x128xbf16>
    %cst_9 = arith.constant dense<0.000000e+00> : vector<2x128xf32>
    %13 = tpu.matmul %11, %12, %cst_9 {dimension_numbers = #tpu.dot_dimension_numbers<[1], [0], [0], [1], [0, 0, 1, 1], [], []>} : vector<2x128xbf16>, vector<128x128xbf16>, vector<2x128xf32> -> vector<2x128xf32>
    %c0_10 = arith.constant 0 : index
    %c0_11 = arith.constant 0 : index
    %14 = vector.load %arg5[%c0_10, %c0_11] : memref<1x128xf32, #tpu.memory_space<vmem>>, vector<1x128xf32>
    %15 = vector.broadcast %14 : vector<1x128xf32> to vector<2x128xf32>
    %16 = arith.addf %13, %15 : vector<2x128xf32>
    %cst_12 = arith.constant 0.000000e+00 : f32
    %17 = vector.broadcast %cst_12 : f32 to vector<2x128xf32>
    %18 = arith.subf %17, %16 : vector<2x128xf32>
    %19 = math.exp %18 : vector<2x128xf32>
    %cst_13 = arith.constant 1.000000e+00 : f32
    %20 = vector.broadcast %cst_13 : f32 to vector<2x128xf32>
    %21 = arith.addf %20, %19 : vector<2x128xf32>
    %cst_14 = arith.constant 1.000000e+00 : f32
    %22 = vector.broadcast %cst_14 : f32 to vector<2x128xf32>
    %23 = arith.divf %22, %21 : vector<2x128xf32>
    %c0_15 = arith.constant 0 : index
    %c0_16 = arith.constant 0 : index
    %24 = vector.load %arg6[%c0_15, %c0_16] : memref<2x128xf32, #tpu.memory_space<vmem>>, vector<2x128xf32>
    tpu.vector_store %arg6[%c0_15, %c0_16], %23 {strides = array<i32>} : memref<2x128xf32, #tpu.memory_space<vmem>>, vector<2x128xf32>,
    return
  }
  func.func @transform_0(%arg0: i32) -> (i32, i32) {
    %c0_i32 = arith.constant 0 : i32
    %c0_i32_0 = arith.constant 0 : i32
    return %arg0, %c0_i32 : i32, i32
  }
  func.func @transform_1(%arg0: i32) -> (i32, i32) {
    %c0_i32 = arith.constant 0 : i32
    %c0_i32_0 = arith.constant 0 : i32
    %c0_i32_1 = arith.constant 0 : i32
    return %c0_i32, %c0_i32_0 : i32, i32
  }
  func.func @transform_2(%arg0: i32) -> (i32, i32) {
    %c0_i32 = arith.constant 0 : i32
    %c0_i32_0 = arith.constant 0 : i32
    %c0_i32_1 = arith.constant 0 : i32
    return %c0_i32, %c0_i32_0 : i32, i32
  }
  func.func @transform_3(%arg0: i32) -> (i32, i32) {
    %c0_i32 = arith.constant 0 : i32
    %c0_i32_0 = arith.constant 0 : i32
    %c0_i32_1 = arith.constant 0 : i32
    return %c0_i32, %c0_i32_0 : i32, i32
  }
  func.func @transform_4(%arg0: i32) -> (i32, i32) {
    %c0_i32 = arith.constant 0 : i32
    %c0_i32_0 = arith.constant 0 : i32
    %c0_i32_1 = arith.constant 0 : i32
    return %c0_i32, %c0_i32_0 : i32, i32
  }
  func.func @transform_5(%arg0: i32) -> (i32, i32) {
    %c0_i32 = arith.constant 0 : i32
    %c0_i32_0 = arith.constant 0 : i32
    return %arg0, %c0_i32 : i32, i32
  }
}

</mosaic_0001>

<llo_original>
// kernel: discriminator_forward.4
$region0: #{discriminator_forward.4}
  #allocation0 [shape = 'u32[]', space=smem, size = 0x4, offset = 0x4, fixed_abs, tag = 'smem constant byte address 0x4 - core index']
  #allocation1 [shape = 'u32[144,128]{1,0:T(1,128)}', space=vmem, size = 0x12000, scoped, tag = 'internal scratch']
  %s0 = inlined_call_operand.vmem [shape: bf16[2048,36], index: 0, kind: input, shape index: {}]
  %s1 = inlined_call_operand.vmem [shape: bf16[36,128], index: 1, kind: input, shape index: {}]
  %s2 = inlined_call_operand.vmem [shape: f32[1,128], index: 2, kind: input, shape index: {}]
  %s3 = inlined_call_operand.vmem [shape: bf16[2048,128], index: 3, kind: output, shape index: {}]
  %s4 = sld [smem:[#allocation0]]
  $region22: #{discriminator_forward.4} parent=0
    _
  %s6 = ssub.s32 1, %s4
  %s7 = scalar_select 0, %s6, %s4
  // Predicated region
  $region2: #{discriminator_forward.4} parent=0 // pred_check
    _
  $region3: #{discriminator_forward.4} parent=0 // pred_check_branch
    %9 = sbr.rel (0) target = $region5
  $region4: #{discriminator_forward.4} parent=0 // pred_region
    _
  $region5: #{discriminator_forward.4} parent=0 // pred_fallthru
    _
  // Predicated region
  $region6: #{discriminator_forward.4} parent=0 // pred_check
    _
  $region7: #{discriminator_forward.4} parent=0 // pred_check_branch
    %11 = sbr.rel (0) target = $region9
  $region8: #{discriminator_forward.4} parent=0 // pred_region
    _
  $region9: #{discriminator_forward.4} parent=0 // pred_fallthru
    _
  // Predicated region
  $region10: #{discriminator_forward.4} parent=0 // pred_check
    _
  $region11: #{discriminator_forward.4} parent=0 // pred_check_branch
    %13 = sbr.rel (0) target = $region13
  $region12: #{discriminator_forward.4} parent=0 // pred_region
    _
  $region13: #{discriminator_forward.4} parent=0 // pred_fallthru
    _
  %v15 = vld [vmem:[%s0] sm:$0xf]
  %v16 = vld [vmem:[%s0 + $0x4] sm:$0xf]
  %v17 = vld [vmem:[%s0 + $0x8] sm:$0xf]
  %v18 = vld [vmem:[%s0 + $0xc] sm:$0xf]
  %v19 = vld [vmem:[%s0 + $0x10] sm:$0xf]
  %v20 = vld [vmem:[%s0 + $0x14] sm:$0xf]
  %v21 = vld [vmem:[%s0 + $0x18] sm:$0xf]
  %v22 = vld [vmem:[%s0 + $0x1c] sm:$0xf]
  %v23 = vld [vmem:[%s0 + $0x20] sm:$0xf]
  %v24 = vld [vmem:[%s0 + $0x24] sm:$0xf]
  %v25 = vld [vmem:[%s0 + $0x28] sm:$0xf]
  %v26 = vld [vmem:[%s0 + $0x2c] sm:$0xf]
  %v27 = vld [vmem:[%s0 + $0x30] sm:$0xf]
  %v28 = vld [vmem:[%s0 + $0x34] sm:$0xf]
  %v29 = vld [vmem:[%s0 + $0x38] sm:$0xf]
  %v30 = vld [vmem:[%s0 + $0x3c] sm:$0xf]
  %v31 = vld [vmem:[%s0 + $0x40] sm:$0xf]
  %v32 = vld [vmem:[%s0 + $0x44] sm:$0xf]
  %v33 = vld [vmem:[%s0 + $0x48] sm:$0xf]
  %v34 = vld [vmem:[%s0 + $0x4c] sm:$0xf]
  %v35 = vld [vmem:[%s0 + $0x50] sm:$0xf]
  %v36 = vld [vmem:[%s0 + $0x54] sm:$0xf]
  %v37 = vld [vmem:[%s0 + $0x58] sm:$0xf]
  %v38 = vld [vmem:[%s0 + $0x5c] sm:$0xf]
  %v39 = vld [vmem:[%s0 + $0x60] sm:$0xf]
  %v40 = vld [vmem:[%s0 + $0x64] sm:$0xf]
  %v41 = vld [vmem:[%s0 + $0x68] sm:$0xf]
  %v42 = vld [vmem:[%s0 + $0x6c] sm:$0xf]
  %v43 = vld [vmem:[%s0 + $0x70] sm:$0xf]
  %v44 = vld [vmem:[%s0 + $0x74] sm:$0xf]
  %v45 = vld [vmem:[%s0 + $0x78] sm:$0xf]
  %v46 = vld [vmem:[%s0 + $0x7c] sm:$0xf]
  %v47 = vld [vmem:[%s0 + $0x80] sm:$0xf]
  %v48 = vld [vmem:[%s0 + $0x84] sm:$0xf]
  %v49 = vld [vmem:[%s0 + $0x88] sm:$0xf]
  %v50 = vld [vmem:[%s0 + $0x8c] sm:$0xf]
  %v51 = vld [vmem:[%s0 + $0x90] sm:$0xf]
  %v52 = vld [vmem:[%s0 + $0x94] sm:$0xf]
  %v53 = vld [vmem:[%s0 + $0x98] sm:$0xf]
  %v54 = vld [vmem:[%s0 + $0x9c] sm:$0xf]
  %v55 = vld [vmem:[%s0 + $0xa0] sm:$0xf]
  %v56 = vld [vmem:[%s0 + $0xa4] sm:$0xf]
  %v57 = vld [vmem:[%s0 + $0xa8] sm:$0xf]
  %v58 = vld [vmem:[%s0 + $0xac] sm:$0xf]
  %v59 = vld [vmem:[%s0 + $0xb0] sm:$0xf]
  %v60 = vld [vmem:[%s0 + $0xb4] sm:$0xf]
  %v61 = vld [vmem:[%s0 + $0xb8] sm:$0xf]
  %v62 = vld [vmem:[%s0 + $0xbc] sm:$0xf]
  %v63 = vld [vmem:[%s0 + $0xc0] sm:$0xf]
  %v64 = vld [vmem:[%s0 + $0xc4] sm:$0xf]
  %v65 = vld [vmem:[%s0 + $0xc8] sm:$0xf]
  %v66 = vld [vmem:[%s0 + $0xcc] sm:$0xf]
  %v67 = vld [vmem:[%s0 + $0xd0] sm:$0xf]
  %v68 = vld [vmem:[%s0 + $0xd4] sm:$0xf]
  %v69 = vld [vmem:[%s0 + $0xd8] sm:$0xf]
  %v70 = vld [vmem:[%s0 + $0xdc] sm:$0xf]
  %v71 = vld [vmem:[%s0 + $0xe0] sm:$0xf]
  %v72 = vld [vmem:[%s0 + $0xe4] sm:$0xf]
  %v73 = vld [vmem:[%s0 + $0xe8] sm:$0xf]
  %v74 = vld [vmem:[%s0 + $0xec] sm:$0xf]
  %v75 = vld [vmem:[%s0 + $0xf0] sm:$0xf]
  %v76 = vld [vmem:[%s0 + $0xf4] sm:$0xf]
  %v77 = vld [vmem:[%s0 + $0xf8] sm:$0xf]
  %v78 = vld [vmem:[%s0 + $0xfc] sm:$0xf]
  %v79 = vld [vmem:[%s0 + $0x100] sm:$0xf]
  %v80 = vld [vmem:[%s0 + $0x104] sm:$0xf]
  %v81 = vld [vmem:[%s0 + $0x108] sm:$0xf]
  %v82 = vld [vmem:[%s0 + $0x10c] sm:$0xf]
  %v83 = vld [vmem:[%s0 + $0x110] sm:$0xf]
  %v84 = vld [vmem:[%s0 + $0x114] sm:$0xf]
  %v85 = vld [vmem:[%s0 + $0x118] sm:$0xf]
  %v86 = vld [vmem:[%s0 + $0x11c] sm:$0xf]
  %v87 = vld [vmem:[%s0 + $0x120] sm:$0xf]
  %v88 = vld [vmem:[%s0 + $0x124] sm:$0xf]
  %v89 = vld [vmem:[%s0 + $0x128] sm:$0xf]
  %v90 = vld [vmem:[%s0 + $0x12c] sm:$0xf]
  %v91 = vld [vmem:[%s0 + $0x130] sm:$0xf]
  %v92 = vld [vmem:[%s0 + $0x134] sm:$0xf]
  %v93 = vld [vmem:[%s0 + $0x138] sm:$0xf]
  %v94 = vld [vmem:[%s0 + $0x13c] sm:$0xf]
  %v95 = vld [vmem:[%s0 + $0x140] sm:$0xf]
  %v96 = vld [vmem:[%s0 + $0x144] sm:$0xf]
  %v97 = vld [vmem:[%s0 + $0x148] sm:$0xf]
  %v98 = vld [vmem:[%s0 + $0x14c] sm:$0xf]
  %v99 = vld [vmem:[%s0 + $0x150] sm:$0xf]
  %v100 = vld [vmem:[%s0 + $0x154] sm:$0xf]
  %v101 = vld [vmem:[%s0 + $0x158] sm:$0xf]
  %v102 = vld [vmem:[%s0 + $0x15c] sm:$0xf]
  %v103 = vld [vmem:[%s0 + $0x160] sm:$0xf]
  %v104 = vld [vmem:[%s0 + $0x164] sm:$0xf]
  %v105 = vld [vmem:[%s0 + $0x168] sm:$0xf]
  %v106 = vld [vmem:[%s0 + $0x16c] sm:$0xf]
  %v107 = vld [vmem:[%s0 + $0x170] sm:$0xf]
  %v108 = vld [vmem:[%s0 + $0x174] sm:$0xf]
  %v109 = vld [vmem:[%s0 + $0x178] sm:$0xf]
  %v110 = vld [vmem:[%s0 + $0x17c] sm:$0xf]
  %v111 = vld [vmem:[%s0 + $0x180] sm:$0xf]
  %v112 = vld [vmem:[%s0 + $0x184] sm:$0xf]
  %v113 = vld [vmem:[%s0 + $0x188] sm:$0xf]
  %v114 = vld [vmem:[%s0 + $0x18c] sm:$0xf]
  %v115 = vld [vmem:[%s0 + $0x190] sm:$0xf]
  %v116 = vld [vmem:[%s0 + $0x194] sm:$0xf]
  %v117 = vld [vmem:[%s0 + $0x198] sm:$0xf]
  %v118 = vld [vmem:[%s0 + $0x19c] sm:$0xf]
  %v119 = vld [vmem:[%s0 + $0x1a0] sm:$0xf]
  %v120 = vld [vmem:[%s0 + $0x1a4] sm:$0xf]
  %v121 = vld [vmem:[%s0 + $0x1a8] sm:$0xf]
  %v122 = vld [vmem:[%s0 + $0x1ac] sm:$0xf]
  %v123 = vld [vmem:[%s0 + $0x1b0] sm:$0xf]
  %v124 = vld [vmem:[%s0 + $0x1b4] sm:$0xf]
  %v125 = vld [vmem:[%s0 + $0x1b8] sm:$0xf]
  %v126 = vld [vmem:[%s0 + $0x1bc] sm:$0xf]
  %v127 = vld [vmem:[%s0 + $0x1c0] sm:$0xf]
  %v128 = vld [vmem:[%s0 + $0x1c4] sm:$0xf]
  %v129 = vld [vmem:[%s0 + $0x1c8] sm:$0xf]
  %v130 = vld [vmem:[%s0 + $0x1cc] sm:$0xf]
  %v131 = vld [vmem:[%s0 + $0x1d0] sm:$0xf]
  %v132 = vld [vmem:[%s0 + $0x1d4] sm:$0xf]
  %v133 = vld [vmem:[%s0 + $0x1d8] sm:$0xf]
  %v134 = vld [vmem:[%s0 + $0x1dc] sm:$0xf]
  %v135 = vld [vmem:[%s0 + $0x1e0] sm:$0xf]
  %v136 = vld [vmem:[%s0 + $0x1e4] sm:$0xf]
  %v137 = vld [vmem:[%s0 + $0x1e8] sm:$0xf]
  %v138 = vld [vmem:[%s0 + $0x1ec] sm:$0xf]
  %v139 = vld [vmem:[%s0 + $0x1f0] sm:$0xf]
  %v140 = vld [vmem:[%s0 + $0x1f4] sm:$0xf]
  %v141 = vld [vmem:[%s0 + $0x1f8] sm:$0xf]
  %v142 = vld [vmem:[%s0 + $0x1fc] sm:$0xf]
  %v143 = vld [vmem:[%s0 + $0x200] sm:$0xf]
  %v144 = vld [vmem:[%s0 + $0x204] sm:$0xf]
  %v145 = vld [vmem:[%s0 + $0x208] sm:$0xf]
  %v146 = vld [vmem:[%s0 + $0x20c] sm:$0xf]
  %v147 = vld [vmem:[%s0 + $0x210] sm:$0xf]
  %v148 = vld [vmem:[%s0 + $0x214] sm:$0xf]
  %v149 = vld [vmem:[%s0 + $0x218] sm:$0xf]
  %v150 = vld [vmem:[%s0 + $0x21c] sm:$0xf]
  %v151 = vld [vmem:[%s0 + $0x220] sm:$0xf]
  %v152 = vld [vmem:[%s0 + $0x224] sm:$0xf]
  %v153 = vld [vmem:[%s0 + $0x228] sm:$0xf]
  %v154 = vld [vmem:[%s0 + $0x22c] sm:$0xf]
  %v155 = vld [vmem:[%s0 + $0x230] sm:$0xf]
  %v156 = vld [vmem:[%s0 + $0x234] sm:$0xf]
  %v157 = vld [vmem:[%s0 + $0x238] sm:$0xf]
  %v158 = vld [vmem:[%s0 + $0x23c] sm:$0xf]
  %v159 = vld [vmem:[%s0 + $0x240] sm:$0xf]
  %v160 = vld [vmem:[%s0 + $0x244] sm:$0xf]
  %v161 = vld [vmem:[%s0 + $0x248] sm:$0xf]
  %v162 = vld [vmem:[%s0 + $0x24c] sm:$0xf]
  %v163 = vld [vmem:[%s0 + $0x250] sm:$0xf]
  %v164 = vld [vmem:[%s0 + $0x254] sm:$0xf]
  %v165 = vld [vmem:[%s0 + $0x258] sm:$0xf]
  %v166 = vld [vmem:[%s0 + $0x25c] sm:$0xf]
  %v167 = vld [vmem:[%s0 + $0x260] sm:$0xf]
  %v168 = vld [vmem:[%s0 + $0x264] sm:$0xf]
  %v169 = vld [vmem:[%s0 + $0x268] sm:$0xf]
  %v170 = vld [vmem:[%s0 + $0x26c] sm:$0xf]
  %v171 = vld [vmem:[%s0 + $0x270] sm:$0xf]
  %v172 = vld [vmem:[%s0 + $0x274] sm:$0xf]
  %v173 = vld [vmem:[%s0 + $0x278] sm:$0xf]
  %v174 = vld [vmem:[%s0 + $0x27c] sm:$0xf]
  %v175 = vld [vmem:[%s0 + $0x280] sm:$0xf]
  %v176 = vld [vmem:[%s0 + $0x284] sm:$0xf]
  %v177 = vld [vmem:[%s0 + $0x288] sm:$0xf]
  %v178 = vld [vmem:[%s0 + $0x28c] sm:$0xf]
  %v179 = vld [vmem:[%s0 + $0x290] sm:$0xf]
  %v180 = vld [vmem:[%s0 + $0x294] sm:$0xf]
  %v181 = vld [vmem:[%s0 + $0x298] sm:$0xf]
  %v182 = vld [vmem:[%s0 + $0x29c] sm:$0xf]
  %v183 = vld [vmem:[%s0 + $0x2a0] sm:$0xf]
  %v184 = vld [vmem:[%s0 + $0x2a4] sm:$0xf]
  %v185 = vld [vmem:[%s0 + $0x2a8] sm:$0xf]
  %v186 = vld [vmem:[%s0 + $0x2ac] sm:$0xf]
  %v187 = vld [vmem:[%s0 + $0x2b0] sm:$0xf]
  %v188 = vld [vmem:[%s0 + $0x2b4] sm:$0xf]
  %v189 = vld [vmem:[%s0 + $0x2b8] sm:$0xf]
  %v190 = vld [vmem:[%s0 + $0x2bc] sm:$0xf]
  %v191 = vld [vmem:[%s0 + $0x2c0] sm:$0xf]
  %v192 = vld [vmem:[%s0 + $0x2c4] sm:$0xf]
  %v193 = vld [vmem:[%s0 + $0x2c8] sm:$0xf]
  %v194 = vld [vmem:[%s0 + $0x2cc] sm:$0xf]
  %v195 = vld [vmem:[%s0 + $0x2d0] sm:$0xf]
  %v196 = vld [vmem:[%s0 + $0x2d4] sm:$0xf]
  %v197 = vld [vmem:[%s0 + $0x2d8] sm:$0xf]
  %v198 = vld [vmem:[%s0 + $0x2dc] sm:$0xf]
  %v199 = vld [vmem:[%s0 + $0x2e0] sm:$0xf]
  %v200 = vld [vmem:[%s0 + $0x2e4] sm:$0xf]
  %v201 = vld [vmem:[%s0 + $0x2e8] sm:$0xf]
  %v202 = vld [vmem:[%s0 + $0x2ec] sm:$0xf]
  %v203 = vld [vmem:[%s0 + $0x2f0] sm:$0xf]
  %v204 = vld [vmem:[%s0 + $0x2f4] sm:$0xf]
  %v205 = vld [vmem:[%s0 + $0x2f8] sm:$0xf]
  %v206 = vld [vmem:[%s0 + $0x2fc] sm:$0xf]
  %v207 = vld [vmem:[%s0 + $0x300] sm:$0xf]
  %v208 = vld [vmem:[%s0 + $0x304] sm:$0xf]
  %v209 = vld [vmem:[%s0 + $0x308] sm:$0xf]
  %v210 = vld [vmem:[%s0 + $0x30c] sm:$0xf]
  %v211 = vld [vmem:[%s0 + $0x310] sm:$0xf]
  %v212 = vld [vmem:[%s0 + $0x314] sm:$0xf]
  %v213 = vld [vmem:[%s0 + $0x318] sm:$0xf]
  %v214 = vld [vmem:[%s0 + $0x31c] sm:$0xf]
  %v215 = vld [vmem:[%s0 + $0x320] sm:$0xf]
  %v216 = vld [vmem:[%s0 + $0x324] sm:$0xf]
  %v217 = vld [vmem:[%s0 + $0x328] sm:$0xf]
  %v218 = vld [vmem:[%s0 + $0x32c] sm:$0xf]
  %v219 = vld [vmem:[%s0 + $0x330] sm:$0xf]
  %v220 = vld [vmem:[%s0 + $0x334] sm:$0xf]
  %v221 = vld [vmem:[%s0 + $0x338] sm:$0xf]
  %v222 = vld [vmem:[%s0 + $0x33c] sm:$0xf]
  %v223 = vld [vmem:[%s0 + $0x340] sm:$0xf]
  %v224 = vld [vmem:[%s0 + $0x344] sm:$0xf]
  %v225 = vld [vmem:[%s0 + $0x348] sm:$0xf]
  %v226 = vld [vmem:[%s0 + $0x34c] sm:$0xf]
  %v227 = vld [vmem:[%s0 + $0x350] sm:$0xf]
  %v228 = vld [vmem:[%s0 + $0x354] sm:$0xf]
  %v229 = vld [vmem:[%s0 + $0x358] sm:$0xf]
  %v230 = vld [vmem:[%s0 + $0x35c] sm:$0xf]
  %v231 = vld [vmem:[%s0 + $0x360] sm:$0xf]
  %v232 = vld [vmem:[%s0 + $0x364] sm:$0xf]
  %v233 = vld [vmem:[%s0 + $0x368] sm:$0xf]
  %v234 = vld [vmem:[%s0 + $0x36c] sm:$0xf]
  %v235 = vld [vmem:[%s0 + $0x370] sm:$0xf]
  %v236 = vld [vmem:[%s0 + $0x374] sm:$0xf]
  %v237 = vld [vmem:[%s0 + $0x378] sm:$0xf]
  %v238 = vld [vmem:[%s0 + $0x37c] sm:$0xf]
  %v239 = vld [vmem:[%s0 + $0x380] sm:$0xf]
  %v240 = vld [vmem:[%s0 + $0x384] sm:$0xf]
  %v241 = vld [vmem:[%s0 + $0x388] sm:$0xf]
  %v242 = vld [vmem:[%s0 + $0x38c] sm:$0xf]
  %v243 = vld [vmem:[%s0 + $0x390] sm:$0xf]
  %v244 = vld [vmem:[%s0 + $0x394] sm:$0xf]
  %v245 = vld [vmem:[%s0 + $0x398] sm:$0xf]
  %v246 = vld [vmem:[%s0 + $0x39c] sm:$0xf]
  %v247 = vld [vmem:[%s0 + $0x3a0] sm:$0xf]
  %v248 = vld [vmem:[%s0 + $0x3a4] sm:$0xf]
  %v249 = vld [vmem:[%s0 + $0x3a8] sm:$0xf]
  %v250 = vld [vmem:[%s0 + $0x3ac] sm:$0xf]
  %v251 = vld [vmem:[%s0 + $0x3b0] sm:$0xf]
  %v252 = vld [vmem:[%s0 + $0x3b4] sm:$0xf]
  %v253 = vld [vmem:[%s0 + $0x3b8] sm:$0xf]
  %v254 = vld [vmem:[%s0 + $0x3bc] sm:$0xf]
  %v255 = vld [vmem:[%s0 + $0x3c0] sm:$0xf]
  %v256 = vld [vmem:[%s0 + $0x3c4] sm:$0xf]
  %v257 = vld [vmem:[%s0 + $0x3c8] sm:$0xf]
  %v258 = vld [vmem:[%s0 + $0x3cc] sm:$0xf]
  %v259 = vld [vmem:[%s0 + $0x3d0] sm:$0xf]
  %v260 = vld [vmem:[%s0 + $0x3d4] sm:$0xf]
  %v261 = vld [vmem:[%s0 + $0x3d8] sm:$0xf]
  %v262 = vld [vmem:[%s0 + $0x3dc] sm:$0xf]
  %v263 = vld [vmem:[%s0 + $0x3e0] sm:$0xf]
  %v264 = vld [vmem:[%s0 + $0x3e4] sm:$0xf]
  %v265 = vld [vmem:[%s0 + $0x3e8] sm:$0xf]
  %v266 = vld [vmem:[%s0 + $0x3ec] sm:$0xf]
  %v267 = vld [vmem:[%s0 + $0x3f0] sm:$0xf]
  %v268 = vld [vmem:[%s0 + $0x3f4] sm:$0xf]
  %v269 = vld [vmem:[%s0 + $0x3f8] sm:$0xf]
  %v270 = vld [vmem:[%s0 + $0x3fc] sm:$0xf]
  %v271 = vld [vmem:[%s1] sm:$0xf]
  %v272 = vld [vmem:[%s1 + $0x4] sm:$0xf]
  %v273 = vld [vmem:[%s1 + $0x8] sm:$0xf]
  %v274 = vld [vmem:[%s1 + $0xc] sm:$0xf]
  %v275 = vld [vmem:[%s1 + $0x10] sm:$0x3]
  %v276 = vld [vmem:[%s2] sm:$0x1]
  %v278 = vlaneseq
  %v279 = vshrl.u32 %v278, 7
  %v280 = vsub.s32 0, %v279
  %v281 = vrot.slane %v276, %v280
  %v539 = vunpack.c.l.b16 %v15
  %v540 = vunpack.c.l.b16 %v16
  %v541 = vunpack.c.l.b16 %v17
  %v542 = vunpack.c.l.b16 %v18
  %v543 = vunpack.c.l.b16 %v19
  %v544 = vunpack.c.l.b16 %v20
  %v545 = vunpack.c.l.b16 %v21
  %v546 = vunpack.c.l.b16 %v22
  %v547 = vunpack.c.l.b16 %v23
  %v548 = vunpack.c.l.b16 %v24
  %v549 = vunpack.c.l.b16 %v25
  %v550 = vunpack.c.l.b16 %v26
  %v551 = vunpack.c.l.b16 %v27
  %v552 = vunpack.c.l.b16 %v28
  %v553 = vunpack.c.l.b16 %v29
  %v554 = vunpack.c.l.b16 %v30
  %v555 = vunpack.c.l.b16 %v31
  %v556 = vunpack.c.l.b16 %v32
  %v557 = vunpack.c.l.b16 %v33
  %v558 = vunpack.c.l.b16 %v34
  %v559 = vunpack.c.l.b16 %v35
  %v560 = vunpack.c.l.b16 %v36
  %v561 = vunpack.c.l.b16 %v37
  %v562 = vunpack.c.l.b16 %v38
  %v563 = vunpack.c.l.b16 %v39
  %v564 = vunpack.c.l.b16 %v40
  %v565 = vunpack.c.l.b16 %v41
  %v566 = vunpack.c.l.b16 %v42
  %v567 = vunpack.c.l.b16 %v43
  %v568 = vunpack.c.l.b16 %v44
  %v569 = vunpack.c.l.b16 %v45
  %v570 = vunpack.c.l.b16 %v46
  %v571 = vunpack.c.l.b16 %v47
  %v572 = vunpack.c.l.b16 %v48
  %v573 = vunpack.c.l.b16 %v49
  %v574 = vunpack.c.l.b16 %v50
  %v575 = vunpack.c.l.b16 %v51
  %v576 = vunpack.c.l.b16 %v52
  %v577 = vunpack.c.l.b16 %v53
  %v578 = vunpack.c.l.b16 %v54
  %v579 = vunpack.c.l.b16 %v55
  %v580 = vunpack.c.l.b16 %v56
  %v581 = vunpack.c.l.b16 %v57
  %v582 = vunpack.c.l.b16 %v58
  %v583 = vunpack.c.l.b16 %v59
  %v584 = vunpack.c.l.b16 %v60
  %v585 = vunpack.c.l.b16 %v61
  %v586 = vunpack.c.l.b16 %v62
  %v587 = vunpack.c.l.b16 %v63
  %v588 = vunpack.c.l.b16 %v64
  %v589 = vunpack.c.l.b16 %v65
  %v590 = vunpack.c.l.b16 %v66
  %v591 = vunpack.c.l.b16 %v67
  %v592 = vunpack.c.l.b16 %v68
  %v593 = vunpack.c.l.b16 %v69
  %v594 = vunpack.c.l.b16 %v70
  %v595 = vunpack.c.l.b16 %v71
  %v596 = vunpack.c.l.b16 %v72
  %v597 = vunpack.c.l.b16 %v73
  %v598 = vunpack.c.l.b16 %v74
  %v599 = vunpack.c.l.b16 %v75
  %v600 = vunpack.c.l.b16 %v76
  %v601 = vunpack.c.l.b16 %v77
  %v602 = vunpack.c.l.b16 %v78
  %v603 = vunpack.c.l.b16 %v79
  %v604 = vunpack.c.l.b16 %v80
  %v605 = vunpack.c.l.b16 %v81
  %v606 = vunpack.c.l.b16 %v82
  %v607 = vunpack.c.l.b16 %v83
  %v608 = vunpack.c.l.b16 %v84
  %v609 = vunpack.c.l.b16 %v85
  %v610 = vunpack.c.l.b16 %v86
  %v611 = vunpack.c.l.b16 %v87
  %v612 = vunpack.c.l.b16 %v88
  %v613 = vunpack.c.l.b16 %v89
  %v614 = vunpack.c.l.b16 %v90
  %v615 = vunpack.c.l.b16 %v91
  %v616 = vunpack.c.l.b16 %v92
  %v617 = vunpack.c.l.b16 %v93
  %v618 = vunpack.c.l.b16 %v94
  %v619 = vunpack.c.l.b16 %v95
  %v620 = vunpack.c.l.b16 %v96
  %v621 = vunpack.c.l.b16 %v97
  %v622 = vunpack.c.l.b16 %v98
  %v623 = vunpack.c.l.b16 %v99
  %v624 = vunpack.c.l.b16 %v100
  %v625 = vunpack.c.l.b16 %v101
  %v626 = vunpack.c.l.b16 %v102
  %v627 = vunpack.c.l.b16 %v103
  %v628 = vunpack.c.l.b16 %v104
  %v629 = vunpack.c.l.b16 %v105
  %v630 = vunpack.c.l.b16 %v106
  %v631 = vunpack.c.l.b16 %v107
  %v632 = vunpack.c.l.b16 %v108
  %v633 = vunpack.c.l.b16 %v109
  %v634 = vunpack.c.l.b16 %v110
  %v635 = vunpack.c.l.b16 %v111
  %v636 = vunpack.c.l.b16 %v112
  %v637 = vunpack.c.l.b16 %v113
  %v638 = vunpack.c.l.b16 %v114
  %v639 = vunpack.c.l.b16 %v115
  %v640 = vunpack.c.l.b16 %v116
  %v641 = vunpack.c.l.b16 %v117
  %v642 = vunpack.c.l.b16 %v118
  %v643 = vunpack.c.l.b16 %v119
  %v644 = vunpack.c.l.b16 %v120
  %v645 = vunpack.c.l.b16 %v121
  %v646 = vunpack.c.l.b16 %v122
  %v647 = vunpack.c.l.b16 %v123
  %v648 = vunpack.c.l.b16 %v124
  %v649 = vunpack.c.l.b16 %v125
  %v650 = vunpack.c.l.b16 %v126
  %v651 = vunpack.c.l.b16 %v127
  %v652 = vunpack.c.l.b16 %v128
  %v653 = vunpack.c.l.b16 %v129
  %v654 = vunpack.c.l.b16 %v130
  %v655 = vunpack.c.l.b16 %v131
  %v656 = vunpack.c.l.b16 %v132
  %v657 = vunpack.c.l.b16 %v133
  %v658 = vunpack.c.l.b16 %v134
  %v659 = vunpack.c.l.b16 %v135
  %v660 = vunpack.c.l.b16 %v136
  %v661 = vunpack.c.l.b16 %v137
  %v662 = vunpack.c.l.b16 %v138
  %v663 = vunpack.c.l.b16 %v139
  %v664 = vunpack.c.l.b16 %v140
  %v665 = vunpack.c.l.b16 %v141
  %v666 = vunpack.c.l.b16 %v142
  %v667 = vunpack.c.l.b16 %v143
  %v668 = vunpack.c.l.b16 %v144
  %v669 = vunpack.c.l.b16 %v145
  %v670 = vunpack.c.l.b16 %v146
  %v671 = vunpack.c.l.b16 %v147
  %v672 = vunpack.c.l.b16 %v148
  %v673 = vunpack.c.l.b16 %v149
  %v674 = vunpack.c.l.b16 %v150
  %v675 = vunpack.c.l.b16 %v151
  %v676 = vunpack.c.l.b16 %v152
  %v677 = vunpack.c.l.b16 %v153
  %v678 = vunpack.c.l.b16 %v154
  %v679 = vunpack.c.l.b16 %v155
  %v680 = vunpack.c.l.b16 %v156
  %v681 = vunpack.c.l.b16 %v157
  %v682 = vunpack.c.l.b16 %v158
  %v683 = vunpack.c.l.b16 %v159
  %v684 = vunpack.c.l.b16 %v160
  %v685 = vunpack.c.l.b16 %v161
  %v686 = vunpack.c.l.b16 %v162
  %v687 = vunpack.c.l.b16 %v163
  %v688 = vunpack.c.l.b16 %v164
  %v689 = vunpack.c.l.b16 %v165
  %v690 = vunpack.c.l.b16 %v166
  %v691 = vunpack.c.l.b16 %v167
  %v692 = vunpack.c.l.b16 %v168
  %v693 = vunpack.c.l.b16 %v169
  %v694 = vunpack.c.l.b16 %v170
  %v695 = vunpack.c.l.b16 %v171
  %v696 = vunpack.c.l.b16 %v172
  %v697 = vunpack.c.l.b16 %v173
  %v698 = vunpack.c.l.b16 %v174
  %v699 = vunpack.c.l.b16 %v175
  %v700 = vunpack.c.l.b16 %v176
  %v701 = vunpack.c.l.b16 %v177
  %v702 = vunpack.c.l.b16 %v178
  %v703 = vunpack.c.l.b16 %v179
  %v704 = vunpack.c.l.b16 %v180
  %v705 = vunpack.c.l.b16 %v181
  %v706 = vunpack.c.l.b16 %v182
  %v707 = vunpack.c.l.b16 %v183
  %v708 = vunpack.c.l.b16 %v184
  %v709 = vunpack.c.l.b16 %v185
  %v710 = vunpack.c.l.b16 %v186
  %v711 = vunpack.c.l.b16 %v187
  %v712 = vunpack.c.l.b16 %v188
  %v713 = vunpack.c.l.b16 %v189
  %v714 = vunpack.c.l.b16 %v190
  %v715 = vunpack.c.l.b16 %v191
  %v716 = vunpack.c.l.b16 %v192
  %v717 = vunpack.c.l.b16 %v193
  %v718 = vunpack.c.l.b16 %v194
  %v719 = vunpack.c.l.b16 %v195
  %v720 = vunpack.c.l.b16 %v196
  %v721 = vunpack.c.l.b16 %v197
  %v722 = vunpack.c.l.b16 %v198
  %v723 = vunpack.c.l.b16 %v199
  %v724 = vunpack.c.l.b16 %v200
  %v725 = vunpack.c.l.b16 %v201
  %v726 = vunpack.c.l.b16 %v202
  %v727 = vunpack.c.l.b16 %v203
  %v728 = vunpack.c.l.b16 %v204
  %v729 = vunpack.c.l.b16 %v205
  %v730 = vunpack.c.l.b16 %v206
  %v731 = vunpack.c.l.b16 %v207
  %v732 = vunpack.c.l.b16 %v208
  %v733 = vunpack.c.l.b16 %v209
  %v734 = vunpack.c.l.b16 %v210
  %v735 = vunpack.c.l.b16 %v211
  %v736 = vunpack.c.l.b16 %v212
  %v737 = vunpack.c.l.b16 %v213
  %v738 = vunpack.c.l.b16 %v214
  %v739 = vunpack.c.l.b16 %v215
  %v740 = vunpack.c.l.b16 %v216
  %v741 = vunpack.c.l.b16 %v217
  %v742 = vunpack.c.l.b16 %v218
  %v743 = vunpack.c.l.b16 %v219
  %v744 = vunpack.c.l.b16 %v220
  %v745 = vunpack.c.l.b16 %v221
  %v746 = vunpack.c.l.b16 %v222
  %v747 = vunpack.c.l.b16 %v223
  %v748 = vunpack.c.l.b16 %v224
  %v749 = vunpack.c.l.b16 %v225
  %v750 = vunpack.c.l.b16 %v226
  %v751 = vunpack.c.l.b16 %v227
  %v752 = vunpack.c.l.b16 %v228
  %v753 = vunpack.c.l.b16 %v229
  %v754 = vunpack.c.l.b16 %v230
  %v755 = vunpack.c.l.b16 %v231
  %v756 = vunpack.c.l.b16 %v232
  %v757 = vunpack.c.l.b16 %v233
  %v758 = vunpack.c.l.b16 %v234
  %v759 = vunpack.c.l.b16 %v235
  %v760 = vunpack.c.l.b16 %v236
  %v761 = vunpack.c.l.b16 %v237
  %v762 = vunpack.c.l.b16 %v238
  %v763 = vunpack.c.l.b16 %v239
  %v764 = vunpack.c.l.b16 %v240
  %v765 = vunpack.c.l.b16 %v241
  %v766 = vunpack.c.l.b16 %v242
  %v767 = vunpack.c.l.b16 %v243
  %v768 = vunpack.c.l.b16 %v244
  %v769 = vunpack.c.l.b16 %v245
  %v770 = vunpack.c.l.b16 %v246
  %v771 = vunpack.c.l.b16 %v247
  %v772 = vunpack.c.l.b16 %v248
  %v773 = vunpack.c.l.b16 %v249
  %v774 = vunpack.c.l.b16 %v250
  %v775 = vunpack.c.l.b16 %v251
  %v776 = vunpack.c.l.b16 %v252
  %v777 = vunpack.c.l.b16 %v253
  %v778 = vunpack.c.l.b16 %v254
  %v779 = vunpack.c.l.b16 %v255
  %v780 = vunpack.c.l.b16 %v256
  %v781 = vunpack.c.l.b16 %v257
  %v782 = vunpack.c.l.b16 %v258
  %v783 = vunpack.c.l.b16 %v259
  %v784 = vunpack.c.l.b16 %v260
  %v785 = vunpack.c.l.b16 %v261
  %v786 = vunpack.c.l.b16 %v262
  %v787 = vunpack.c.l.b16 %v263
  %v788 = vunpack.c.l.b16 %v264
  %v789 = vunpack.c.l.b16 %v265
  %v790 = vunpack.c.l.b16 %v266
  %v791 = vunpack.c.l.b16 %v267
  %v792 = vunpack.c.l.b16 %v268
  %v793 = vunpack.c.l.b16 %v269
  %v794 = vunpack.c.l.b16 %v270
  %v795 = vpack.c.b16 %v540, %v539
  %v796 = vpack.c.b16 %v542, %v541
  %v797 = vpack.c.b16 %v544, %v543
  %v798 = vpack.c.b16 %v546, %v545
  %v799 = vpack.c.b16 %v548, %v547
  %v800 = vpack.c.b16 %v550, %v549
  %v801 = vpack.c.b16 %v552, %v551
  %v802 = vpack.c.b16 %v554, %v553
  %v803 = vpack.c.b16 %v556, %v555
  %v804 = vpack.c.b16 %v558, %v557
  %v805 = vpack.c.b16 %v560, %v559
  %v806 = vpack.c.b16 %v562, %v561
  %v807 = vpack.c.b16 %v564, %v563
  %v808 = vpack.c.b16 %v566, %v565
  %v809 = vpack.c.b16 %v568, %v567
  %v810 = vpack.c.b16 %v570, %v569
  %v811 = vpack.c.b16 %v572, %v571
  %v812 = vpack.c.b16 %v574, %v573
  %v813 = vpack.c.b16 %v576, %v575
  %v814 = vpack.c.b16 %v578, %v577
  %v815 = vpack.c.b16 %v580, %v579
  %v816 = vpack.c.b16 %v582, %v581
  %v817 = vpack.c.b16 %v584, %v583
  %v818 = vpack.c.b16 %v586, %v585
  %v819 = vpack.c.b16 %v588, %v587
  %v820 = vpack.c.b16 %v590, %v589
  %v821 = vpack.c.b16 %v592, %v591
  %v822 = vpack.c.b16 %v594, %v593
  %v823 = vpack.c.b16 %v596, %v595
  %v824 = vpack.c.b16 %v598, %v597
  %v825 = vpack.c.b16 %v600, %v599
  %v826 = vpack.c.b16 %v602, %v601
  %v827 = vpack.c.b16 %v604, %v603
  %v828 = vpack.c.b16 %v606, %v605
  %v829 = vpack.c.b16 %v608, %v607
  %v830 = vpack.c.b16 %v610, %v609
  %v831 = vpack.c.b16 %v612, %v611
  %v832 = vpack.c.b16 %v614, %v613
  %v833 = vpack.c.b16 %v616, %v615
  %v834 = vpack.c.b16 %v618, %v617
  %v835 = vpack.c.b16 %v620, %v619
  %v836 = vpack.c.b16 %v622, %v621
  %v837 = vpack.c.b16 %v624, %v623
  %v838 = vpack.c.b16 %v626, %v625
  %v839 = vpack.c.b16 %v628, %v627
  %v840 = vpack.c.b16 %v630, %v629
  %v841 = vpack.c.b16 %v632, %v631
  %v842 = vpack.c.b16 %v634, %v633
  %v843 = vpack.c.b16 %v636, %v635
  %v844 = vpack.c.b16 %v638, %v637
  %v845 = vpack.c.b16 %v640, %v639
  %v846 = vpack.c.b16 %v642, %v641
  %v847 = vpack.c.b16 %v644, %v643
  %v848 = vpack.c.b16 %v646, %v645
  %v849 = vpack.c.b16 %v648, %v647
  %v850 = vpack.c.b16 %v650, %v649
  %v851 = vpack.c.b16 %v652, %v651
  %v852 = vpack.c.b16 %v654, %v653
  %v853 = vpack.c.b16 %v656, %v655
  %v854 = vpack.c.b16 %v658, %v657
  %v855 = vpack.c.b16 %v660, %v659
  %v856 = vpack.c.b16 %v662, %v661
  %v857 = vpack.c.b16 %v664, %v663
  %v858 = vpack.c.b16 %v666, %v665
  %v859 = vpack.c.b16 %v668, %v667
  %v860 = vpack.c.b16 %v670, %v669
  %v861 = vpack.c.b16 %v672, %v671
  %v862 = vpack.c.b16 %v674, %v673
  %v863 = vpack.c.b16 %v676, %v675
  %v864 = vpack.c.b16 %v678, %v677
  %v865 = vpack.c.b16 %v680, %v679
  %v866 = vpack.c.b16 %v682, %v681
  %v867 = vpack.c.b16 %v684, %v683
  %v868 = vpack.c.b16 %v686, %v685
  %v869 = vpack.c.b16 %v688, %v687
  %v870 = vpack.c.b16 %v690, %v689
  %v871 = vpack.c.b16 %v692, %v691
  %v872 = vpack.c.b16 %v694, %v693
  %v873 = vpack.c.b16 %v696, %v695
  %v874 = vpack.c.b16 %v698, %v697
  %v875 = vpack.c.b16 %v700, %v699
  %v876 = vpack.c.b16 %v702, %v701
  %v877 = vpack.c.b16 %v704, %v703
  %v878 = vpack.c.b16 %v706, %v705
  %v879 = vpack.c.b16 %v708, %v707
  %v880 = vpack.c.b16 %v710, %v709
  %v881 = vpack.c.b16 %v712, %v711
  %v882 = vpack.c.b16 %v714, %v713
  %v883 = vpack.c.b16 %v716, %v715
  %v884 = vpack.c.b16 %v718, %v717
  %v885 = vpack.c.b16 %v720, %v719
  %v886 = vpack.c.b16 %v722, %v721
  %v887 = vpack.c.b16 %v724, %v723
  %v888 = vpack.c.b16 %v726, %v725
  %v889 = vpack.c.b16 %v728, %v727
  %v890 = vpack.c.b16 %v730, %v729
  %v891 = vpack.c.b16 %v732, %v731
  %v892 = vpack.c.b16 %v734, %v733
  %v893 = vpack.c.b16 %v736, %v735
  %v894 = vpack.c.b16 %v738, %v737
  %v895 = vpack.c.b16 %v740, %v739
  %v896 = vpack.c.b16 %v742, %v741
  %v897 = vpack.c.b16 %v744, %v743
  %v898 = vpack.c.b16 %v746, %v745
  %v899 = vpack.c.b16 %v748, %v747
  %v900 = vpack.c.b16 %v750, %v749
  %v901 = vpack.c.b16 %v752, %v751
  %v902 = vpack.c.b16 %v754, %v753
  %v903 = vpack.c.b16 %v756, %v755
  %v904 = vpack.c.b16 %v758, %v757
  %v905 = vpack.c.b16 %v760, %v759
  %v906 = vpack.c.b16 %v762, %v761
  %v907 = vpack.c.b16 %v764, %v763
  %v908 = vpack.c.b16 %v766, %v765
  %v909 = vpack.c.b16 %v768, %v767
  %v910 = vpack.c.b16 %v770, %v769
  %v911 = vpack.c.b16 %v772, %v771
  %v912 = vpack.c.b16 %v774, %v773
  %v913 = vpack.c.b16 %v776, %v775
  %v914 = vpack.c.b16 %v778, %v777
  %v915 = vpack.c.b16 %v780, %v779
  %v916 = vpack.c.b16 %v782, %v781
  %v917 = vpack.c.b16 %v784, %v783
  %v918 = vpack.c.b16 %v786, %v785
  %v919 = vpack.c.b16 %v788, %v787
  %v920 = vpack.c.b16 %v790, %v789
  %v921 = vpack.c.b16 %v792, %v791
  %v922 = vpack.c.b16 %v794, %v793
  %v928 = vunpack.c.l.b16 %v271
  %v929 = vunpack.c.l.b16 %v272
  %v930 = vunpack.c.l.b16 %v273
  %v931 = vunpack.c.l.b16 %v274
  %v932 = vunpack.c.l.b16 %v275
  %v933 = vpack.c.b16 %v929, %v928
  %v934 = vpack.c.b16 %v931, %v930
  %v935 = vpack.c.b16 %v932, %v932
  %vm938 = vcmask 293888
  %v940 = vsel %vm938, %v795, 0
  %v943 = vsel %vm938, %v796, 0
  %v946 = vsel %vm938, %v797, 0
  %v949 = vsel %vm938, %v798, 0
  %v952 = vsel %vm938, %v799, 0
  %v955 = vsel %vm938, %v800, 0
  %v958 = vsel %vm938, %v801, 0
  %v961 = vsel %vm938, %v802, 0
  %v964 = vsel %vm938, %v803, 0
  %v967 = vsel %vm938, %v804, 0
  %v970 = vsel %vm938, %v805, 0
  %v973 = vsel %vm938, %v806, 0
  %v976 = vsel %vm938, %v807, 0
  %v979 = vsel %vm938, %v808, 0
  %v982 = vsel %vm938, %v809, 0
  %v985 = vsel %vm938, %v810, 0
  %v988 = vsel %vm938, %v811, 0
  %v991 = vsel %vm938, %v812, 0
  %v994 = vsel %vm938, %v813, 0
  %v997 = vsel %vm938, %v814, 0
  %v1000 = vsel %vm938, %v815, 0
  %v1003 = vsel %vm938, %v816, 0
  %v1006 = vsel %vm938, %v817, 0
  %v1009 = vsel %vm938, %v818, 0
  %v1012 = vsel %vm938, %v819, 0
  %v1015 = vsel %vm938, %v820, 0
  %v1018 = vsel %vm938, %v821, 0
  %v1021 = vsel %vm938, %v822, 0
  %v1024 = vsel %vm938, %v823, 0
  %v1027 = vsel %vm938, %v824, 0
  %v1030 = vsel %vm938, %v825, 0
  %v1033 = vsel %vm938, %v826, 0
  %v1036 = vsel %vm938, %v827, 0
  %v1039 = vsel %vm938, %v828, 0
  %v1042 = vsel %vm938, %v829, 0
  %v1045 = vsel %vm938, %v830, 0
  %v1048 = vsel %vm938, %v831, 0
  %v1051 = vsel %vm938, %v832, 0
  %v1054 = vsel %vm938, %v833, 0
  %v1057 = vsel %vm938, %v834, 0
  %v1060 = vsel %vm938, %v835, 0
  %v1063 = vsel %vm938, %v836, 0
  %v1066 = vsel %vm938, %v837, 0
  %v1069 = vsel %vm938, %v838, 0
  %v1072 = vsel %vm938, %v839, 0
  %v1075 = vsel %vm938, %v840, 0
  %v1078 = vsel %vm938, %v841, 0
  %v1081 = vsel %vm938, %v842, 0
  %v1084 = vsel %vm938, %v843, 0
  %v1087 = vsel %vm938, %v844, 0
  %v1090 = vsel %vm938, %v845, 0
  %v1093 = vsel %vm938, %v846, 0
  %v1096 = vsel %vm938, %v847, 0
  %v1099 = vsel %vm938, %v848, 0
  %v1102 = vsel %vm938, %v849, 0
  %v1105 = vsel %vm938, %v850, 0
  %v1108 = vsel %vm938, %v851, 0
  %v1111 = vsel %vm938, %v852, 0
  %v1114 = vsel %vm938, %v853, 0
  %v1117 = vsel %vm938, %v854, 0
  %v1120 = vsel %vm938, %v855, 0
  %v1123 = vsel %vm938, %v856, 0
  %v1126 = vsel %vm938, %v857, 0
  %v1129 = vsel %vm938, %v858, 0
  %v1132 = vsel %vm938, %v859, 0
  %v1135 = vsel %vm938, %v860, 0
  %v1138 = vsel %vm938, %v861, 0
  %v1141 = vsel %vm938, %v862, 0
  %v1144 = vsel %vm938, %v863, 0
  %v1147 = vsel %vm938, %v864, 0
  %v1150 = vsel %vm938, %v865, 0
  %v1153 = vsel %vm938, %v866, 0
  %v1156 = vsel %vm938, %v867, 0
  %v1159 = vsel %vm938, %v868, 0
  %v1162 = vsel %vm938, %v869, 0
  %v1165 = vsel %vm938, %v870, 0
  %v1168 = vsel %vm938, %v871, 0
  %v1171 = vsel %vm938, %v872, 0
  %v1174 = vsel %vm938, %v873, 0
  %v1177 = vsel %vm938, %v874, 0
  %v1180 = vsel %vm938, %v875, 0
  %v1183 = vsel %vm938, %v876, 0
  %v1186 = vsel %vm938, %v877, 0
  %v1189 = vsel %vm938, %v878, 0
  %v1192 = vsel %vm938, %v879, 0
  %v1195 = vsel %vm938, %v880, 0
  %v1198 = vsel %vm938, %v881, 0
  %v1201 = vsel %vm938, %v882, 0
  %v1204 = vsel %vm938, %v883, 0
  %v1207 = vsel %vm938, %v884, 0
  %v1210 = vsel %vm938, %v885, 0
  %v1213 = vsel %vm938, %v886, 0
  %v1216 = vsel %vm938, %v887, 0
  %v1219 = vsel %vm938, %v888, 0
  %v1222 = vsel %vm938, %v889, 0
  %v1225 = vsel %vm938, %v890, 0
  %v1228 = vsel %vm938, %v891, 0
  %v1231 = vsel %vm938, %v892, 0
  %v1234 = vsel %vm938, %v893, 0
  %v1237 = vsel %vm938, %v894, 0
  %v1240 = vsel %vm938, %v895, 0
  %v1243 = vsel %vm938, %v896, 0
  %v1246 = vsel %vm938, %v897, 0
  %v1249 = vsel %vm938, %v898, 0
  %v1252 = vsel %vm938, %v899, 0
  %v1255 = vsel %vm938, %v900, 0
  %v1258 = vsel %vm938, %v901, 0
  %v1261 = vsel %vm938, %v902, 0
  %v1264 = vsel %vm938, %v903, 0
  %v1267 = vsel %vm938, %v904, 0
  %v1270 = vsel %vm938, %v905, 0
  %v1273 = vsel %vm938, %v906, 0
  %v1276 = vsel %vm938, %v907, 0
  %v1279 = vsel %vm938, %v908, 0
  %v1282 = vsel %vm938, %v909, 0
  %v1285 = vsel %vm938, %v910, 0
  %v1288 = vsel %vm938, %v911, 0
  %v1291 = vsel %vm938, %v912, 0
  %v1294 = vsel %vm938, %v913, 0
  %v1297 = vsel %vm938, %v914, 0
  %v1300 = vsel %vm938, %v915, 0
  %v1303 = vsel %vm938, %v916, 0
  %v1306 = vsel %vm938, %v917, 0
  %v1309 = vsel %vm938, %v918, 0
  %v1312 = vsel %vm938, %v919, 0
  %v1315 = vsel %vm938, %v920, 0
  %v1318 = vsel %vm938, %v921, 0
  %v1321 = vsel %vm938, %v922, 0
  %vm1323 = vcmask 1041408
  %v1325 = vsel %vm1323, %v935, 0
  %1327 = vmatprep.subr.bf16.mxu0 0
  %1328 = vmatpush1.bf16.msra.mxu0 %v933
  %1329 = vmatprep.subr.bf16.mxu0 0
  %1330 = vmatpush1.bf16.msra.mxu0 %v934
  %1331 = vmatprep.subr.bf16.mxu0 0
  %1332 = vmatpush1.bf16.msra.mxu0 %v1325
  %1333 = vmatprep.subr.bf16.mxu0 0
  %1334 = vmatpush1.bf16.msra.mxu0 0
  %1335 = vmatprep.subr.bf16.mxu0 0
  %1336 = vmatpush1.bf16.msra.mxu0 0
  %1337 = vmatprep.subr.bf16.mxu0 0
  %1338 = vmatpush1.bf16.msra.mxu0 0
  %1339 = vmatprep.subr.bf16.mxu0 0
  %1340 = vmatpush1.bf16.msra.mxu0 0
  %1341 = vmatprep.subr.bf16.mxu0 0
  %1342 = vmatpush1.bf16.msra.mxu0 0
  %1343 = vmatprep.subr.bf16.mxu0 0
  %1344 = vmatpush1.bf16.msra.mxu0 0
  %1345 = vmatprep.subr.bf16.mxu0 0
  %1346 = vmatpush1.bf16.msra.mxu0 0
  %1347 = vmatprep.subr.bf16.mxu0 0
  %1348 = vmatpush1.bf16.msra.mxu0 0
  %1349 = vmatprep.subr.bf16.mxu0 0
  %1350 = vmatpush1.bf16.msra.mxu0 0
  %1351 = vmatprep.subr.bf16.mxu0 0
  %1352 = vmatpush1.bf16.msra.mxu0 0
  %1353 = vmatprep.subr.bf16.mxu0 0
  %1354 = vmatpush1.bf16.msra.mxu0 0
  %1355 = vmatprep.subr.bf16.mxu0 0
  %1356 = vmatpush1.bf16.msra.mxu0 0
  %1357 = vmatprep.subr.bf16.mxu0 0
  %1358 = vmatpush1.bf16.msra.mxu0 0
  %1359 = vmatprep.mubr.bf16.mxu0 0
  %1360 = vmatmul.mubr.bf16.gmra.mrb[0].mxu0 %v940
  %v1361 = vpop.f32.mrb[0].mxu0
  %v1362 = vadd.f32 %v281, %v1361
  %v1363 = vpop.f32.mrb[0].mxu0
  %v1364 = vpop.f32.mrb[0].mxu0
  %v1365 = vadd.f32 %v281, %v1364
  %v1366 = vpop.f32.mrb[0].mxu0
  %1367 = vmatprep.mubr.bf16.mxu0 0
  %1368 = vmatmul.mubr.bf16.gmra.mrb[0].mxu0 %v943
  %v1369 = vpop.f32.mrb[0].mxu0
  %v1370 = vadd.f32 %v281, %v1369
  %v1371 = vpop.f32.mrb[0].mxu0
  %v1372 = vpop.f32.mrb[0].mxu0
  %v1373 = vadd.f32 %v281, %v1372
  %v1374 = vpop.f32.mrb[0].mxu0
  %1375 = vmatprep.mubr.bf16.mxu0 0
  %1376 = vmatmul.mubr.bf16.gmra.mrb[0].mxu0 %v946
  %v1377 = vpop.f32.mrb[0].mxu0
  %v1378 = vadd.f32 %v281, %v1377
  %v1379 = vpop.f32.mrb[0].mxu0
  %v1380 = vpop.f32.mrb[0].mxu0
  %v1381 = vadd.f32 %v281, %v1380
  %v1382 = vpop.f32.mrb[0].mxu0
  %1383 = vmatprep.mubr.bf16.mxu0 0
  %1384 = vmatmul.mubr.bf16.gmra.mrb[0].mxu0 %v949
  %v1385 = vpop.f32.mrb[0].mxu0
  %v1386 = vadd.f32 %v281, %v1385
  %v1387 = vpop.f32.mrb[0].mxu0
  %v1388 = vpop.f32.mrb[0].mxu0
  %v1389 = vadd.f32 %v281, %v1388
  %v1390 = vpop.f32.mrb[0].mxu0
  %1391 = vmatprep.mubr.bf16.mxu0 0
  %1392 = vmatmul.mubr.bf16.gmra.mrb[0].mxu0 %v952
  %v1393 = vpop.f32.mrb[0].mxu0
  %v1394 = vadd.f32 %v281, %v1393
  %v1395 = vpop.f32.mrb[0].mxu0
  %v1396 = vpop.f32.mrb[0].mxu0
  %v1397 = vadd.f32 %v281, %v1396
  %v1398 = vpop.f32.mrb[0].mxu0
  %1399 = vmatprep.mubr.bf16.mxu0 0
  %1400 = vmatmul.mubr.bf16.gmra.mrb[0].mxu0 %v955
  %v1401 = vpop.f32.mrb[0].mxu0
  %v1402 = vadd.f32 %v281, %v1401
  %v1403 = vpop.f32.mrb[0].mxu0
  %v1404 = vpop.f32.mrb[0].mxu0
  %v1405 = vadd.f32 %v281, %v1404
  %v1406 = vpop.f32.mrb[0].mxu0
  %1407 = vmatprep.mubr.bf16.mxu0 0
  %1408 = vmatmul.mubr.bf16.gmra.mrb[0].mxu0 %v958
  %v1409 = vpop.f32.mrb[0].mxu0
  %v1410 = vadd.f32 %v281, %v1409
  %v1411 = vpop.f32.mrb[0].mxu0
  %v1412 = vpop.f32.mrb[0].mxu0
  %v1413 = vadd.f32 %v281, %v1412
  %v1414 = vpop.f32.mrb[0].mxu0
  %1415 = vmatprep.mubr.bf16.mxu0 0
  %1416 = vmatmul.mubr.bf16.gmra.mrb[0].mxu0 %v961
  %v1417 = vpop.f32.mrb[0].mxu0
  %v1418 = vadd.f32 %v281, %v1417
  %v1419 = vpop.f32.mrb[0].mxu0
  %v1420 = vpop.f32.mrb[0].mxu0
  %v1421 = vadd.f32 %v281, %v1420
  %v1422 = vpop.f32.mrb[0].mxu0
  %1423 = vmatprep.mubr.bf16.mxu0 0
  %1424 = vmatmul.mubr.bf16.gmra.mrb[0].mxu0 %v964
  %v1425 = vpop.f32.mrb[0].mxu0
  %v1426 = vadd.f32 %v281, %v1425
  %v1427 = vpop.f32.mrb[0].mxu0
  %v1428 = vpop.f32.mrb[0].mxu0
  %v1429 = vadd.f32 %v281, %v1428
  %v1430 = vpop.f32.mrb[0].mxu0
  %1431 = vmatprep.mubr.bf16.mxu0 0
  %1432 = vmatmul.mubr.bf16.gmra.mrb[0].mxu0 %v967
  %v1433 = vpop.f32.mrb[0].mxu0
  %v1434 = vadd.f32 %v281, %v1433
  %v1435 = vpop.f32.mrb[0].mxu0
  %v1436 = vpop.f32.mrb[0].mxu0
  %v1437 = vadd.f32 %v281, %v1436
  %v1438 = vpop.f32.mrb[0].mxu0
  %1439 = vmatprep.mubr.bf16.mxu0 0
  %1440 = vmatmul.mubr.bf16.gmra.mrb[0].mxu0 %v970
  %v1441 = vpop.f32.mrb[0].mxu0
  %v1442 = vadd.f32 %v281, %v1441
  %v1443 = vpop.f32.mrb[0].mxu0
  %v1444 = vpop.f32.mrb[0].mxu0
  %v1445 = vadd.f32 %v281, %v1444
  %v1446 = vpop.f32.mrb[0].mxu0
  %1447 = vmatprep.mubr.bf16.mxu0 0
  %1448 = vmatmul.mubr.bf16.gmra.mrb[0].mxu0 %v973
  %v1449 = vpop.f32.mrb[0].mxu0
  %v1450 = vadd.f32 %v281, %v1449
  %v1451 = vpop.f32.mrb[0].mxu0
  %v1452 = vpop.f32.mrb[0].mxu0
  %v1453 = vadd.f32 %v281, %v1452
  %v1454 = vpop.f32.mrb[0].mxu0
  %1455 = vmatprep.mubr.bf16.mxu0 0
  %1456 = vmatmul.mubr.bf16.gmra.mrb[0].mxu0 %v976
  %v1457 = vpop.f32.mrb[0].mxu0
  %v1458 = vadd.f32 %v281, %v1457
  %v1459 = vpop.f32.mrb[0].mxu0
  %v1460 = vpop.f32.mrb[0].mxu0
  %v1461 = vadd.f32 %v281, %v1460
  %v1462 = vpop.f32.mrb[0].mxu0
  %1463 = vmatprep.mubr.bf16.mxu0 0
  %1464 = vmatmul.mubr.bf16.gmra.mrb[0].mxu0 %v979
  %v1465 = vpop.f32.mrb[0].mxu0
  %v1466 = vadd.f32 %v281, %v1465
  %v1467 = vpop.f32.mrb[0].mxu0
  %v1468 = vpop.f32.mrb[0].mxu0
  %v1469 = vadd.f32 %v281, %v1468
  %v1470 = vpop.f32.mrb[0].mxu0
  %1471 = vmatprep.mubr.bf16.mxu0 0
  %1472 = vmatmul.mubr.bf16.gmra.mrb[0].mxu0 %v982
  %v1473 = vpop.f32.mrb[0].mxu0
  %v1474 = vadd.f32 %v281, %v1473
  %v1475 = vpop.f32.mrb[0].mxu0
  %v1476 = vpop.f32.mrb[0].mxu0
  %v1477 = vadd.f32 %v281, %v1476
  %v1478 = vpop.f32.mrb[0].mxu0
  %1479 = vmatprep.mubr.bf16.mxu0 0
  %1480 = vmatmul.mubr.bf16.gmra.mrb[0].mxu0 %v985
  %v1481 = vpop.f32.mrb[0].mxu0
  %v1482 = vadd.f32 %v281, %v1481
  %v1483 = vpop.f32.mrb[0].mxu0
  %v1484 = vpop.f32.mrb[0].mxu0
  %v1485 = vadd.f32 %v281, %v1484
  %v1486 = vpop.f32.mrb[0].mxu0
  %1487 = vmatprep.mubr.bf16.mxu0 0
  %1488 = vmatmul.mubr.bf16.gmra.mrb[0].mxu0 %v988
  %v1489 = vpop.f32.mrb[0].mxu0
  %v1490 = vadd.f32 %v281, %v1489
  %v1491 = vpop.f32.mrb[0].mxu0
  %v1492 = vpop.f32.mrb[0].mxu0
  %v1493 = vadd.f32 %v281, %v1492
  %v1494 = vpop.f32.mrb[0].mxu0
  %1495 = vmatprep.mubr.bf16.mxu0 0
  %1496 = vmatmul.mubr.bf16.gmra.mrb[0].mxu0 %v991
  %v1497 = vpop.f32.mrb[0].mxu0
  %v1498 = vadd.f32 %v281, %v1497
  %v1499 = vpop.f32.mrb[0].mxu0
  %v1500 = vpop.f32.mrb[0].mxu0
  %v1501 = vadd.f32 %v281, %v1500
  %v1502 = vpop.f32.mrb[0].mxu0
  %1503 = vmatprep.mubr.bf16.mxu0 0
  %1504 = vmatmul.mubr.bf16.gmra.mrb[0].mxu0 %v994
  %v1505 = vpop.f32.mrb[0].mxu0
  %v1506 = vadd.f32 %v281, %v1505
  %v1507 = vpop.f32.mrb[0].mxu0
  %v1508 = vpop.f32.mrb[0].mxu0
  %v1509 = vadd.f32 %v281, %v1508
  %v1510 = vpop.f32.mrb[0].mxu0
  %1511 = vmatprep.mubr.bf16.mxu0 0
  %1512 = vmatmul.mubr.bf16.gmra.mrb[0].mxu0 %v997
  %v1513 = vpop.f32.mrb[0].mxu0
  %v1514 = vadd.f32 %v281, %v1513
  %v1515 = vpop.f32.mrb[0].mxu0
  %v1516 = vpop.f32.mrb[0].mxu0
  %v1517 = vadd.f32 %v281, %v1516
  %v1518 = vpop.f32.mrb[0].mxu0
  %1519 = vmatprep.mubr.bf16.mxu0 0
  %1520 = vmatmul.mubr.bf16.gmra.mrb[0].mxu0 %v1000
  %v1521 = vpop.f32.mrb[0].mxu0
  %v1522 = vadd.f32 %v281, %v1521
  %v1523 = vpop.f32.mrb[0].mxu0
  %v1524 = vpop.f32.mrb[0].mxu0
  %v1525 = vadd.f32 %v281, %v1524
  %v1526 = vpop.f32.mrb[0].mxu0
  %1527 = vmatprep.mubr.bf16.mxu0 0
  %1528 = vmatmul.mubr.bf16.gmra.mrb[0].mxu0 %v1003
  %v1529 = vpop.f32.mrb[0].mxu0
  %v1530 = vadd.f32 %v281, %v1529
  %v1531 = vpop.f32.mrb[0].mxu0
  %v1532 = vpop.f32.mrb[0].mxu0
  %v1533 = vadd.f32 %v281, %v1532
  %v1534 = vpop.f32.mrb[0].mxu0
  %1535 = vmatprep.mubr.bf16.mxu0 0
  %1536 = vmatmul.mubr.bf16.gmra.mrb[0].mxu0 %v1006
  %v1537 = vpop.f32.mrb[0].mxu0
  %v1538 = vadd.f32 %v281, %v1537
  %v1539 = vpop.f32.mrb[0].mxu0
  %v1540 = vpop.f32.mrb[0].mxu0
  %v1541 = vadd.f32 %v281, %v1540
  %v1542 = vpop.f32.mrb[0].mxu0
  %1543 = vmatprep.mubr.bf16.mxu0 0
  %1544 = vmatmul.mubr.bf16.gmra.mrb[0].mxu0 %v1009
  %v1545 = vpop.f32.mrb[0].mxu0
  %v1546 = vadd.f32 %v281, %v1545
  %v1547 = vpop.f32.mrb[0].mxu0
  %v1548 = vpop.f32.mrb[0].mxu0
  %v1549 = vadd.f32 %v281, %v1548
  %v1550 = vpop.f32.mrb[0].mxu0
  %1551 = vmatprep.mubr.bf16.mxu0 0
  %1552 = vmatmul.mubr.bf16.gmra.mrb[0].mxu0 %v1012
  %v1553 = vpop.f32.mrb[0].mxu0
  %v1554 = vadd.f32 %v281, %v1553
  %v1555 = vpop.f32.mrb[0].mxu0
  %v1556 = vpop.f32.mrb[0].mxu0
  %v1557 = vadd.f32 %v281, %v1556
  %v1558 = vpop.f32.mrb[0].mxu0
  %1559 = vmatprep.mubr.bf16.mxu0 0
  %1560 = vmatmul.mubr.bf16.gmra.mrb[0].mxu0 %v1015
  %v1561 = vpop.f32.mrb[0].mxu0
  %v1562 = vadd.f32 %v281, %v1561
  %v1563 = vpop.f32.mrb[0].mxu0
  %v1564 = vpop.f32.mrb[0].mxu0
  %v1565 = vadd.f32 %v281, %v1564
  %v1566 = vpop.f32.mrb[0].mxu0
  %1567 = vmatprep.mubr.bf16.mxu0 0
  %1568 = vmatmul.mubr.bf16.gmra.mrb[0].mxu0 %v1018
  %v1569 = vpop.f32.mrb[0].mxu0
  %v1570 = vadd.f32 %v281, %v1569
  %v1571 = vpop.f32.mrb[0].mxu0
  %v1572 = vpop.f32.mrb[0].mxu0
  %v1573 = vadd.f32 %v281, %v1572
  %v1574 = vpop.f32.mrb[0].mxu0
  %1575 = vmatprep.mubr.bf16.mxu0 0
  %1576 = vmatmul.mubr.bf16.gmra.mrb[0].mxu0 %v1021
  %v1577 = vpop.f32.mrb[0].mxu0
  %v1578 = vadd.f32 %v281, %v1577
  %v1579 = vpop.f32.mrb[0].mxu0
  %v1580 = vpop.f32.mrb[0].mxu0
  %v1581 = vadd.f32 %v281, %v1580
  %v1582 = vpop.f32.mrb[0].mxu0
  %1583 = vmatprep.mubr.bf16.mxu0 0
  %1584 = vmatmul.mubr.bf16.gmra.mrb[0].mxu0 %v1024
  %v1585 = vpop.f32.mrb[0].mxu0
  %v1586 = vadd.f32 %v281, %v1585
  %v1587 = vpop.f32.mrb[0].mxu0
  %v1588 = vpop.f32.mrb[0].mxu0
  %v1589 = vadd.f32 %v281, %v1588
  %v1590 = vpop.f32.mrb[0].mxu0
  %1591 = vmatprep.mubr.bf16.mxu0 0
  %1592 = vmatmul.mubr.bf16.gmra.mrb[0].mxu0 %v1027
  %v1593 = vpop.f32.mrb[0].mxu0
  %v1594 = vadd.f32 %v281, %v1593
  %v1595 = vpop.f32.mrb[0].mxu0
  %v1596 = vpop.f32.mrb[0].mxu0
  %v1597 = vadd.f32 %v281, %v1596
  %v1598 = vpop.f32.mrb[0].mxu0
  %1599 = vmatprep.mubr.bf16.mxu0 0
  %1600 = vmatmul.mubr.bf16.gmra.mrb[0].mxu0 %v1030
  %v1601 = vpop.f32.mrb[0].mxu0
  %v1602 = vadd.f32 %v281, %v1601
  %v1603 = vpop.f32.mrb[0].mxu0
  %v1604 = vpop.f32.mrb[0].mxu0
  %v1605 = vadd.f32 %v281, %v1604
  %v1606 = vpop.f32.mrb[0].mxu0
  %1607 = vmatprep.mubr.bf16.mxu0 0
  %1608 = vmatmul.mubr.bf16.gmra.mrb[0].mxu0 %v1033
  %v1609 = vpop.f32.mrb[0].mxu0
  %v1610 = vadd.f32 %v281, %v1609
  %v1611 = vpop.f32.mrb[0].mxu0
  %v1612 = vpop.f32.mrb[0].mxu0
  %v1613 = vadd.f32 %v281, %v1612
  %v1614 = vpop.f32.mrb[0].mxu0
  %1615 = vmatprep.mubr.bf16.mxu0 0
  %1616 = vmatmul.mubr.bf16.gmra.mrb[0].mxu0 %v1036
  %v1617 = vpop.f32.mrb[0].mxu0
  %v1618 = vadd.f32 %v281, %v1617
  %v1619 = vpop.f32.mrb[0].mxu0
  %v1620 = vpop.f32.mrb[0].mxu0
  %v1621 = vadd.f32 %v281, %v1620
  %v1622 = vpop.f32.mrb[0].mxu0
  %1623 = vmatprep.mubr.bf16.mxu0 0
  %1624 = vmatmul.mubr.bf16.gmra.mrb[0].mxu0 %v1039
  %v1625 = vpop.f32.mrb[0].mxu0
  %v1626 = vadd.f32 %v281, %v1625
  %v1627 = vpop.f32.mrb[0].mxu0
  %v1628 = vpop.f32.mrb[0].mxu0
  %v1629 = vadd.f32 %v281, %v1628
  %v1630 = vpop.f32.mrb[0].mxu0
  %1631 = vmatprep.mubr.bf16.mxu0 0
  %1632 = vmatmul.mubr.bf16.gmra.mrb[0].mxu0 %v1042
  %v1633 = vpop.f32.mrb[0].mxu0
  %v1634 = vadd.f32 %v281, %v1633
  %v1635 = vpop.f32.mrb[0].mxu0
  %v1636 = vpop.f32.mrb[0].mxu0
  %v1637 = vadd.f32 %v281, %v1636
  %v1638 = vpop.f32.mrb[0].mxu0
  %1639 = vmatprep.mubr.bf16.mxu0 0
  %1640 = vmatmul.mubr.bf16.gmra.mrb[0].mxu0 %v1045
  %v1641 = vpop.f32.mrb[0].mxu0
  %v1642 = vadd.f32 %v281, %v1641
  %v1643 = vpop.f32.mrb[0].mxu0
  %v1644 = vpop.f32.mrb[0].mxu0
  %v1645 = vadd.f32 %v281, %v1644
  %v1646 = vpop.f32.mrb[0].mxu0
  %1647 = vmatprep.mubr.bf16.mxu0 0
  %1648 = vmatmul.mubr.bf16.gmra.mrb[0].mxu0 %v1048
  %v1649 = vpop.f32.mrb[0].mxu0
  %v1650 = vadd.f32 %v281, %v1649
  %v1651 = vpop.f32.mrb[0].mxu0
  %v1652 = vpop.f32.mrb[0].mxu0
  %v1653 = vadd.f32 %v281, %v1652
  %v1654 = vpop.f32.mrb[0].mxu0
  %1655 = vmatprep.mubr.bf16.mxu0 0
  %1656 = vmatmul.mubr.bf16.gmra.mrb[0].mxu0 %v1051
  %v1657 = vpop.f32.mrb[0].mxu0
  %v1658 = vadd.f32 %v281, %v1657
  %v1659 = vpop.f32.mrb[0].mxu0
  %v1660 = vpop.f32.mrb[0].mxu0
  %v1661 = vadd.f32 %v281, %v1660
  %v1662 = vpop.f32.mrb[0].mxu0
  %1663 = vmatprep.mubr.bf16.mxu0 0
  %1664 = vmatmul.mubr.bf16.gmra.mrb[0].mxu0 %v1054
  %v1665 = vpop.f32.mrb[0].mxu0
  %v1666 = vadd.f32 %v281, %v1665
  %v1667 = vpop.f32.mrb[0].mxu0
  %v1668 = vpop.f32.mrb[0].mxu0
  %v1669 = vadd.f32 %v281, %v1668
  %v1670 = vpop.f32.mrb[0].mxu0
  %1671 = vmatprep.mubr.bf16.mxu0 0
  %1672 = vmatmul.mubr.bf16.gmra.mrb[0].mxu0 %v1057
  %v1673 = vpop.f32.mrb[0].mxu0
  %v1674 = vadd.f32 %v281, %v1673
  %v1675 = vpop.f32.mrb[0].mxu0
  %v1676 = vpop.f32.mrb[0].mxu0
  %v1677 = vadd.f32 %v281, %v1676
  %v1678 = vpop.f32.mrb[0].mxu0
  %1679 = vmatprep.mubr.bf16.mxu0 0
  %1680 = vmatmul.mubr.bf16.gmra.mrb[0].mxu0 %v1060
  %v1681 = vpop.f32.mrb[0].mxu0
  %v1682 = vadd.f32 %v281, %v1681
  %v1683 = vpop.f32.mrb[0].mxu0
  %v1684 = vpop.f32.mrb[0].mxu0
  %v1685 = vadd.f32 %v281, %v1684
  %v1686 = vpop.f32.mrb[0].mxu0
  %1687 = vmatprep.mubr.bf16.mxu0 0
  %1688 = vmatmul.mubr.bf16.gmra.mrb[0].mxu0 %v1063
  %v1689 = vpop.f32.mrb[0].mxu0
  %v1690 = vadd.f32 %v281, %v1689
  %v1691 = vpop.f32.mrb[0].mxu0
  %v1692 = vpop.f32.mrb[0].mxu0
  %v1693 = vadd.f32 %v281, %v1692
  %v1694 = vpop.f32.mrb[0].mxu0
  %1695 = vmatprep.mubr.bf16.mxu0 0
  %1696 = vmatmul.mubr.bf16.gmra.mrb[0].mxu0 %v1066
  %v1697 = vpop.f32.mrb[0].mxu0
  %v1698 = vadd.f32 %v281, %v1697
  %v1699 = vpop.f32.mrb[0].mxu0
  %v1700 = vpop.f32.mrb[0].mxu0
  %v1701 = vadd.f32 %v281, %v1700
  %v1702 = vpop.f32.mrb[0].mxu0
  %1703 = vmatprep.mubr.bf16.mxu0 0
  %1704 = vmatmul.mubr.bf16.gmra.mrb[0].mxu0 %v1069
  %v1705 = vpop.f32.mrb[0].mxu0
  %v1706 = vadd.f32 %v281, %v1705
  %v1707 = vpop.f32.mrb[0].mxu0
  %v1708 = vpop.f32.mrb[0].mxu0
  %v1709 = vadd.f32 %v281, %v1708
  %v1710 = vpop.f32.mrb[0].mxu0
  %1711 = vmatprep.mubr.bf16.mxu0 0
  %1712 = vmatmul.mubr.bf16.gmra.mrb[0].mxu0 %v1072
  %v1713 = vpop.f32.mrb[0].mxu0
  %v1714 = vadd.f32 %v281, %v1713
  %v1715 = vpop.f32.mrb[0].mxu0
  %v1716 = vpop.f32.mrb[0].mxu0
  %v1717 = vadd.f32 %v281, %v1716
  %v1718 = vpop.f32.mrb[0].mxu0
  %1719 = vmatprep.mubr.bf16.mxu0 0
  %1720 = vmatmul.mubr.bf16.gmra.mrb[0].mxu0 %v1075
  %v1721 = vpop.f32.mrb[0].mxu0
  %v1722 = vadd.f32 %v281, %v1721
  %v1723 = vpop.f32.mrb[0].mxu0
  %v1724 = vpop.f32.mrb[0].mxu0
  %v1725 = vadd.f32 %v281, %v1724
  %v1726 = vpop.f32.mrb[0].mxu0
  %1727 = vmatprep.mubr.bf16.mxu0 0
  %1728 = vmatmul.mubr.bf16.gmra.mrb[0].mxu0 %v1078
  %v1729 = vpop.f32.mrb[0].mxu0
  %v1730 = vadd.f32 %v281, %v1729
  %v1731 = vpop.f32.mrb[0].mxu0
  %v1732 = vpop.f32.mrb[0].mxu0
  %v1733 = vadd.f32 %v281, %v1732
  %v1734 = vpop.f32.mrb[0].mxu0
  %1735 = vmatprep.mubr.bf16.mxu0 0
  %1736 = vmatmul.mubr.bf16.gmra.mrb[0].mxu0 %v1081
  %v1737 = vpop.f32.mrb[0].mxu0
  %v1738 = vadd.f32 %v281, %v1737
  %v1739 = vpop.f32.mrb[0].mxu0
  %v1740 = vpop.f32.mrb[0].mxu0
  %v1741 = vadd.f32 %v281, %v1740
  %v1742 = vpop.f32.mrb[0].mxu0
  %1743 = vmatprep.mubr.bf16.mxu0 0
  %1744 = vmatmul.mubr.bf16.gmra.mrb[0].mxu0 %v1084
  %v1745 = vpop.f32.mrb[0].mxu0
  %v1746 = vadd.f32 %v281, %v1745
  %v1747 = vpop.f32.mrb[0].mxu0
  %v1748 = vpop.f32.mrb[0].mxu0
  %v1749 = vadd.f32 %v281, %v1748
  %v1750 = vpop.f32.mrb[0].mxu0
  %1751 = vmatprep.mubr.bf16.mxu0 0
  %1752 = vmatmul.mubr.bf16.gmra.mrb[0].mxu0 %v1087
  %v1753 = vpop.f32.mrb[0].mxu0
  %v1754 = vadd.f32 %v281, %v1753
  %v1755 = vpop.f32.mrb[0].mxu0
  %v1756 = vpop.f32.mrb[0].mxu0
  %v1757 = vadd.f32 %v281, %v1756
  %v1758 = vpop.f32.mrb[0].mxu0
  %1759 = vmatprep.mubr.bf16.mxu0 0
  %1760 = vmatmul.mubr.bf16.gmra.mrb[0].mxu0 %v1090
  %v1761 = vpop.f32.mrb[0].mxu0
  %v1762 = vadd.f32 %v281, %v1761
  %v1763 = vpop.f32.mrb[0].mxu0
  %v1764 = vpop.f32.mrb[0].mxu0
  %v1765 = vadd.f32 %v281, %v1764
  %v1766 = vpop.f32.mrb[0].mxu0
  %1767 = vmatprep.mubr.bf16.mxu0 0
  %1768 = vmatmul.mubr.bf16.gmra.mrb[0].mxu0 %v1093
  %v1769 = vpop.f32.mrb[0].mxu0
  %v1770 = vadd.f32 %v281, %v1769
  %v1771 = vpop.f32.mrb[0].mxu0
  %v1772 = vpop.f32.mrb[0].mxu0
  %v1773 = vadd.f32 %v281, %v1772
  %v1774 = vpop.f32.mrb[0].mxu0
  %1775 = vmatprep.mubr.bf16.mxu0 0
  %1776 = vmatmul.mubr.bf16.gmra.mrb[0].mxu0 %v1096
  %v1777 = vpop.f32.mrb[0].mxu0
  %v1778 = vadd.f32 %v281, %v1777
  %v1779 = vpop.f32.mrb[0].mxu0
  %v1780 = vpop.f32.mrb[0].mxu0
  %v1781 = vadd.f32 %v281, %v1780
  %v1782 = vpop.f32.mrb[0].mxu0
  %1783 = vmatprep.mubr.bf16.mxu0 0
  %1784 = vmatmul.mubr.bf16.gmra.mrb[0].mxu0 %v1099
  %v1785 = vpop.f32.mrb[0].mxu0
  %v1786 = vadd.f32 %v281, %v1785
  %v1787 = vpop.f32.mrb[0].mxu0
  %v1788 = vpop.f32.mrb[0].mxu0
  %v1789 = vadd.f32 %v281, %v1788
  %v1790 = vpop.f32.mrb[0].mxu0
  %1791 = vmatprep.mubr.bf16.mxu0 0
  %1792 = vmatmul.mubr.bf16.gmra.mrb[0].mxu0 %v1102
  %v1793 = vpop.f32.mrb[0].mxu0
  %v1794 = vadd.f32 %v281, %v1793
  %v1795 = vpop.f32.mrb[0].mxu0
  %v1796 = vpop.f32.mrb[0].mxu0
  %v1797 = vadd.f32 %v281, %v1796
  %v1798 = vpop.f32.mrb[0].mxu0
  %1799 = vmatprep.mubr.bf16.mxu0 0
  %1800 = vmatmul.mubr.bf16.gmra.mrb[0].mxu0 %v1105
  %v1801 = vpop.f32.mrb[0].mxu0
  %v1802 = vadd.f32 %v281, %v1801
  %v1803 = vpop.f32.mrb[0].mxu0
  %v1804 = vpop.f32.mrb[0].mxu0
  %v1805 = vadd.f32 %v281, %v1804
  %v1806 = vpop.f32.mrb[0].mxu0
  %1807 = vmatprep.mubr.bf16.mxu0 0
  %1808 = vmatmul.mubr.bf16.gmra.mrb[0].mxu0 %v1108
  %v1809 = vpop.f32.mrb[0].mxu0
  %v1810 = vadd.f32 %v281, %v1809
  %v1811 = vpop.f32.mrb[0].mxu0
  %v1812 = vpop.f32.mrb[0].mxu0
  %v1813 = vadd.f32 %v281, %v1812
  %v1814 = vpop.f32.mrb[0].mxu0
  %1815 = vmatprep.mubr.bf16.mxu0 0
  %1816 = vmatmul.mubr.bf16.gmra.mrb[0].mxu0 %v1111
  %v1817 = vpop.f32.mrb[0].mxu0
  %v1818 = vadd.f32 %v281, %v1817
  %v1819 = vpop.f32.mrb[0].mxu0
  %v1820 = vpop.f32.mrb[0].mxu0
  %v1821 = vadd.f32 %v281, %v1820
  %v1822 = vpop.f32.mrb[0].mxu0
  %1823 = vmatprep.mubr.bf16.mxu0 0
  %1824 = vmatmul.mubr.bf16.gmra.mrb[0].mxu0 %v1114
  %v1825 = vpop.f32.mrb[0].mxu0
  %v1826 = vadd.f32 %v281, %v1825
  %v1827 = vpop.f32.mrb[0].mxu0
  %v1828 = vpop.f32.mrb[0].mxu0
  %v1829 = vadd.f32 %v281, %v1828
  %v1830 = vpop.f32.mrb[0].mxu0
  %1831 = vmatprep.mubr.bf16.mxu0 0
  %1832 = vmatmul.mubr.bf16.gmra.mrb[0].mxu0 %v1117
  %v1833 = vpop.f32.mrb[0].mxu0
  %v1834 = vadd.f32 %v281, %v1833
  %v1835 = vpop.f32.mrb[0].mxu0
  %v1836 = vpop.f32.mrb[0].mxu0
  %v1837 = vadd.f32 %v281, %v1836
  %v1838 = vpop.f32.mrb[0].mxu0
  %1839 = vmatprep.mubr.bf16.mxu0 0
  %1840 = vmatmul.mubr.bf16.gmra.mrb[0].mxu0 %v1120
  %v1841 = vpop.f32.mrb[0].mxu0
  %v1842 = vadd.f32 %v281, %v1841
  %v1843 = vpop.f32.mrb[0].mxu0
  %v1844 = vpop.f32.mrb[0].mxu0
  %v1845 = vadd.f32 %v281, %v1844
  %v1846 = vpop.f32.mrb[0].mxu0
  %1847 = vmatprep.mubr.bf16.mxu0 0
  %1848 = vmatmul.mubr.bf16.gmra.mrb[0].mxu0 %v1123
  %v1849 = vpop.f32.mrb[0].mxu0
  %v1850 = vadd.f32 %v281, %v1849
  %v1851 = vpop.f32.mrb[0].mxu0
  %v1852 = vpop.f32.mrb[0].mxu0
  %v1853 = vadd.f32 %v281, %v1852
  %v1854 = vpop.f32.mrb[0].mxu0
  %1855 = vmatprep.mubr.bf16.mxu0 0
  %1856 = vmatmul.mubr.bf16.gmra.mrb[0].mxu0 %v1126
  %v1857 = vpop.f32.mrb[0].mxu0
  %v1858 = vadd.f32 %v281, %v1857
  %v1859 = vpop.f32.mrb[0].mxu0
  %v1860 = vpop.f32.mrb[0].mxu0
  %v1861 = vadd.f32 %v281, %v1860
  %v1862 = vpop.f32.mrb[0].mxu0
  %1863 = vmatprep.mubr.bf16.mxu0 0
  %1864 = vmatmul.mubr.bf16.gmra.mrb[0].mxu0 %v1129
  %v1865 = vpop.f32.mrb[0].mxu0
  %v1866 = vadd.f32 %v281, %v1865
  %v1867 = vpop.f32.mrb[0].mxu0
  %v1868 = vpop.f32.mrb[0].mxu0
  %v1869 = vadd.f32 %v281, %v1868
  %v1870 = vpop.f32.mrb[0].mxu0
  %1871 = vmatprep.mubr.bf16.mxu0 0
  %1872 = vmatmul.mubr.bf16.gmra.mrb[0].mxu0 %v1132
  %v1873 = vpop.f32.mrb[0].mxu0
  %v1874 = vadd.f32 %v281, %v1873
  %v1875 = vpop.f32.mrb[0].mxu0
  %v1876 = vpop.f32.mrb[0].mxu0
  %v1877 = vadd.f32 %v281, %v1876
  %v1878 = vpop.f32.mrb[0].mxu0
  %1879 = vmatprep.mubr.bf16.mxu0 0
  %1880 = vmatmul.mubr.bf16.gmra.mrb[0].mxu0 %v1135
  %v1881 = vpop.f32.mrb[0].mxu0
  %v1882 = vadd.f32 %v281, %v1881
  %v1883 = vpop.f32.mrb[0].mxu0
  %v1884 = vpop.f32.mrb[0].mxu0
  %v1885 = vadd.f32 %v281, %v1884
  %v1886 = vpop.f32.mrb[0].mxu0
  %1887 = vmatprep.mubr.bf16.mxu0 0
  %1888 = vmatmul.mubr.bf16.gmra.mrb[0].mxu0 %v1138
  %v1889 = vpop.f32.mrb[0].mxu0
  %v1890 = vadd.f32 %v281, %v1889
  %v1891 = vpop.f32.mrb[0].mxu0
  %v1892 = vpop.f32.mrb[0].mxu0
  %v1893 = vadd.f32 %v281, %v1892
  %v1894 = vpop.f32.mrb[0].mxu0
  %1895 = vmatprep.mubr.bf16.mxu0 0
  %1896 = vmatmul.mubr.bf16.gmra.mrb[0].mxu0 %v1141
  %v1897 = vpop.f32.mrb[0].mxu0
  %v1898 = vadd.f32 %v281, %v1897
  %v1899 = vpop.f32.mrb[0].mxu0
  %v1900 = vpop.f32.mrb[0].mxu0
  %v1901 = vadd.f32 %v281, %v1900
  %v1902 = vpop.f32.mrb[0].mxu0
  %1903 = vmatprep.mubr.bf16.mxu0 0
  %1904 = vmatmul.mubr.bf16.gmra.mrb[0].mxu0 %v1144
  %v1905 = vpop.f32.mrb[0].mxu0
  %v1906 = vadd.f32 %v281, %v1905
  %v1907 = vpop.f32.mrb[0].mxu0
  %v1908 = vpop.f32.mrb[0].mxu0
  %v1909 = vadd.f32 %v281, %v1908
  %v1910 = vpop.f32.mrb[0].mxu0
  %1911 = vmatprep.mubr.bf16.mxu0 0
  %1912 = vmatmul.mubr.bf16.gmra.mrb[0].mxu0 %v1147
  %v1913 = vpop.f32.mrb[0].mxu0
  %v1914 = vadd.f32 %v281, %v1913
  %v1915 = vpop.f32.mrb[0].mxu0
  %v1916 = vpop.f32.mrb[0].mxu0
  %v1917 = vadd.f32 %v281, %v1916
  %v1918 = vpop.f32.mrb[0].mxu0
  %1919 = vmatprep.mubr.bf16.mxu0 0
  %1920 = vmatmul.mubr.bf16.gmra.mrb[0].mxu0 %v1150
  %v1921 = vpop.f32.mrb[0].mxu0
  %v1922 = vadd.f32 %v281, %v1921
  %v1923 = vpop.f32.mrb[0].mxu0
  %v1924 = vpop.f32.mrb[0].mxu0
  %v1925 = vadd.f32 %v281, %v1924
  %v1926 = vpop.f32.mrb[0].mxu0
  %1927 = vmatprep.mubr.bf16.mxu0 0
  %1928 = vmatmul.mubr.bf16.gmra.mrb[0].mxu0 %v1153
  %v1929 = vpop.f32.mrb[0].mxu0
  %v1930 = vadd.f32 %v281, %v1929
  %v1931 = vpop.f32.mrb[0].mxu0
  %v1932 = vpop.f32.mrb[0].mxu0
  %v1933 = vadd.f32 %v281, %v1932
  %v1934 = vpop.f32.mrb[0].mxu0
  %1935 = vmatprep.mubr.bf16.mxu0 0
  %1936 = vmatmul.mubr.bf16.gmra.mrb[0].mxu0 %v1156
  %v1937 = vpop.f32.mrb[0].mxu0
  %v1938 = vadd.f32 %v281, %v1937
  %v1939 = vpop.f32.mrb[0].mxu0
  %v1940 = vpop.f32.mrb[0].mxu0
  %v1941 = vadd.f32 %v281, %v1940
  %v1942 = vpop.f32.mrb[0].mxu0
  %1943 = vmatprep.mubr.bf16.mxu0 0
  %1944 = vmatmul.mubr.bf16.gmra.mrb[0].mxu0 %v1159
  %v1945 = vpop.f32.mrb[0].mxu0
  %v1946 = vadd.f32 %v281, %v1945
  %v1947 = vpop.f32.mrb[0].mxu0
  %v1948 = vpop.f32.mrb[0].mxu0
  %v1949 = vadd.f32 %v281, %v1948
  %v1950 = vpop.f32.mrb[0].mxu0
  %1951 = vmatprep.mubr.bf16.mxu0 0
  %1952 = vmatmul.mubr.bf16.gmra.mrb[0].mxu0 %v1162
  %v1953 = vpop.f32.mrb[0].mxu0
  %v1954 = vadd.f32 %v281, %v1953
  %v1955 = vpop.f32.mrb[0].mxu0
  %v1956 = vpop.f32.mrb[0].mxu0
  %v1957 = vadd.f32 %v281, %v1956
  %v1958 = vpop.f32.mrb[0].mxu0
  %1959 = vmatprep.mubr.bf16.mxu0 0
  %1960 = vmatmul.mubr.bf16.gmra.mrb[0].mxu0 %v1165
  %v1961 = vpop.f32.mrb[0].mxu0
  %v1962 = vadd.f32 %v281, %v1961
  %v1963 = vpop.f32.mrb[0].mxu0
  %v1964 = vpop.f32.mrb[0].mxu0
  %v1965 = vadd.f32 %v281, %v1964
  %v1966 = vpop.f32.mrb[0].mxu0
  %1967 = vmatprep.mubr.bf16.mxu0 0
  %1968 = vmatmul.mubr.bf16.gmra.mrb[0].mxu0 %v1168
  %v1969 = vpop.f32.mrb[0].mxu0
  %v1970 = vadd.f32 %v281, %v1969
  %v1971 = vpop.f32.mrb[0].mxu0
  %v1972 = vpop.f32.mrb[0].mxu0
  %v1973 = vadd.f32 %v281, %v1972
  %v1974 = vpop.f32.mrb[0].mxu0
  %1975 = vmatprep.mubr.bf16.mxu0 0
  %1976 = vmatmul.mubr.bf16.gmra.mrb[0].mxu0 %v1171
  %v1977 = vpop.f32.mrb[0].mxu0
  %v1978 = vadd.f32 %v281, %v1977
  %v1979 = vpop.f32.mrb[0].mxu0
  %v1980 = vpop.f32.mrb[0].mxu0
  %v1981 = vadd.f32 %v281, %v1980
  %v1982 = vpop.f32.mrb[0].mxu0
  %1983 = vmatprep.mubr.bf16.mxu0 0
  %1984 = vmatmul.mubr.bf16.gmra.mrb[0].mxu0 %v1174
  %v1985 = vpop.f32.mrb[0].mxu0
  %v1986 = vadd.f32 %v281, %v1985
  %v1987 = vpop.f32.mrb[0].mxu0
  %v1988 = vpop.f32.mrb[0].mxu0
  %v1989 = vadd.f32 %v281, %v1988
  %v1990 = vpop.f32.mrb[0].mxu0
  %1991 = vmatprep.mubr.bf16.mxu0 0
  %1992 = vmatmul.mubr.bf16.gmra.mrb[0].mxu0 %v1177
  %v1993 = vpop.f32.mrb[0].mxu0
  %v1994 = vadd.f32 %v281, %v1993
  %v1995 = vpop.f32.mrb[0].mxu0
  %v1996 = vpop.f32.mrb[0].mxu0
  %v1997 = vadd.f32 %v281, %v1996
  %v1998 = vpop.f32.mrb[0].mxu0
  %1999 = vmatprep.mubr.bf16.mxu0 0
  %2000 = vmatmul.mubr.bf16.gmra.mrb[0].mxu0 %v1180
  %v2001 = vpop.f32.mrb[0].mxu0
  %v2002 = vadd.f32 %v281, %v2001
  %v2003 = vpop.f32.mrb[0].mxu0
  %v2004 = vpop.f32.mrb[0].mxu0
  %v2005 = vadd.f32 %v281, %v2004
  %v2006 = vpop.f32.mrb[0].mxu0
  %2007 = vmatprep.mubr.bf16.mxu0 0
  %2008 = vmatmul.mubr.bf16.gmra.mrb[0].mxu0 %v1183
  %v2009 = vpop.f32.mrb[0].mxu0
  %v2010 = vadd.f32 %v281, %v2009
  %v2011 = vpop.f32.mrb[0].mxu0
  %v2012 = vpop.f32.mrb[0].mxu0
  %v2013 = vadd.f32 %v281, %v2012
  %v2014 = vpop.f32.mrb[0].mxu0
  %2015 = vmatprep.mubr.bf16.mxu0 0
  %2016 = vmatmul.mubr.bf16.gmra.mrb[0].mxu0 %v1186
  %v2017 = vpop.f32.mrb[0].mxu0
  %v2018 = vadd.f32 %v281, %v2017
  %v2019 = vpop.f32.mrb[0].mxu0
  %v2020 = vpop.f32.mrb[0].mxu0
  %v2021 = vadd.f32 %v281, %v2020
  %v2022 = vpop.f32.mrb[0].mxu0
  %2023 = vmatprep.mubr.bf16.mxu0 0
  %2024 = vmatmul.mubr.bf16.gmra.mrb[0].mxu0 %v1189
  %v2025 = vpop.f32.mrb[0].mxu0
  %v2026 = vadd.f32 %v281, %v2025
  %v2027 = vpop.f32.mrb[0].mxu0
  %v2028 = vpop.f32.mrb[0].mxu0
  %v2029 = vadd.f32 %v281, %v2028
  %v2030 = vpop.f32.mrb[0].mxu0
  %2031 = vmatprep.mubr.bf16.mxu0 0
  %2032 = vmatmul.mubr.bf16.gmra.mrb[0].mxu0 %v1192
  %v2033 = vpop.f32.mrb[0].mxu0
  %v2034 = vadd.f32 %v281, %v2033
  %v2035 = vpop.f32.mrb[0].mxu0
  %v2036 = vpop.f32.mrb[0].mxu0
  %v2037 = vadd.f32 %v281, %v2036
  %v2038 = vpop.f32.mrb[0].mxu0
  %2039 = vmatprep.mubr.bf16.mxu0 0
  %2040 = vmatmul.mubr.bf16.gmra.mrb[0].mxu0 %v1195
  %v2041 = vpop.f32.mrb[0].mxu0
  %v2042 = vadd.f32 %v281, %v2041
  %v2043 = vpop.f32.mrb[0].mxu0
  %v2044 = vpop.f32.mrb[0].mxu0
  %v2045 = vadd.f32 %v281, %v2044
  %v2046 = vpop.f32.mrb[0].mxu0
  %2047 = vmatprep.mubr.bf16.mxu0 0
  %2048 = vmatmul.mubr.bf16.gmra.mrb[0].mxu0 %v1198
  %v2049 = vpop.f32.mrb[0].mxu0
  %v2050 = vadd.f32 %v281, %v2049
  %v2051 = vpop.f32.mrb[0].mxu0
  %v2052 = vpop.f32.mrb[0].mxu0
  %v2053 = vadd.f32 %v281, %v2052
  %v2054 = vpop.f32.mrb[0].mxu0
  %2055 = vmatprep.mubr.bf16.mxu0 0
  %2056 = vmatmul.mubr.bf16.gmra.mrb[0].mxu0 %v1201
  %v2057 = vpop.f32.mrb[0].mxu0
  %v2058 = vadd.f32 %v281, %v2057
  %v2059 = vpop.f32.mrb[0].mxu0
  %v2060 = vpop.f32.mrb[0].mxu0
  %v2061 = vadd.f32 %v281, %v2060
  %v2062 = vpop.f32.mrb[0].mxu0
  %2063 = vmatprep.mubr.bf16.mxu0 0
  %2064 = vmatmul.mubr.bf16.gmra.mrb[0].mxu0 %v1204
  %v2065 = vpop.f32.mrb[0].mxu0
  %v2066 = vadd.f32 %v281, %v2065
  %v2067 = vpop.f32.mrb[0].mxu0
  %v2068 = vpop.f32.mrb[0].mxu0
  %v2069 = vadd.f32 %v281, %v2068
  %v2070 = vpop.f32.mrb[0].mxu0
  %2071 = vmatprep.mubr.bf16.mxu0 0
  %2072 = vmatmul.mubr.bf16.gmra.mrb[0].mxu0 %v1207
  %v2073 = vpop.f32.mrb[0].mxu0
  %v2074 = vadd.f32 %v281, %v2073
  %v2075 = vpop.f32.mrb[0].mxu0
  %v2076 = vpop.f32.mrb[0].mxu0
  %v2077 = vadd.f32 %v281, %v2076
  %v2078 = vpop.f32.mrb[0].mxu0
  %2079 = vmatprep.mubr.bf16.mxu0 0
  %2080 = vmatmul.mubr.bf16.gmra.mrb[0].mxu0 %v1210
  %v2081 = vpop.f32.mrb[0].mxu0
  %v2082 = vadd.f32 %v281, %v2081
  %v2083 = vpop.f32.mrb[0].mxu0
  %v2084 = vpop.f32.mrb[0].mxu0
  %v2085 = vadd.f32 %v281, %v2084
  %v2086 = vpop.f32.mrb[0].mxu0
  %2087 = vmatprep.mubr.bf16.mxu0 0
  %2088 = vmatmul.mubr.bf16.gmra.mrb[0].mxu0 %v1213
  %v2089 = vpop.f32.mrb[0].mxu0
  %v2090 = vadd.f32 %v281, %v2089
  %v2091 = vpop.f32.mrb[0].mxu0
  %v2092 = vpop.f32.mrb[0].mxu0
  %v2093 = vadd.f32 %v281, %v2092
  %v2094 = vpop.f32.mrb[0].mxu0
  %2095 = vmatprep.mubr.bf16.mxu0 0
  %2096 = vmatmul.mubr.bf16.gmra.mrb[0].mxu0 %v1216
  %v2097 = vpop.f32.mrb[0].mxu0
  %v2098 = vadd.f32 %v281, %v2097
  %v2099 = vpop.f32.mrb[0].mxu0
  %v2100 = vpop.f32.mrb[0].mxu0
  %v2101 = vadd.f32 %v281, %v2100
  %v2102 = vpop.f32.mrb[0].mxu0
  %2103 = vmatprep.mubr.bf16.mxu0 0
  %2104 = vmatmul.mubr.bf16.gmra.mrb[0].mxu0 %v1219
  %v2105 = vpop.f32.mrb[0].mxu0
  %v2106 = vadd.f32 %v281, %v2105
  %v2107 = vpop.f32.mrb[0].mxu0
  %v2108 = vpop.f32.mrb[0].mxu0
  %v2109 = vadd.f32 %v281, %v2108
  %v2110 = vpop.f32.mrb[0].mxu0
  %2111 = vmatprep.mubr.bf16.mxu0 0
  %2112 = vmatmul.mubr.bf16.gmra.mrb[0].mxu0 %v1222
  %v2113 = vpop.f32.mrb[0].mxu0
  %v2114 = vadd.f32 %v281, %v2113
  %v2115 = vpop.f32.mrb[0].mxu0
  %v2116 = vpop.f32.mrb[0].mxu0
  %v2117 = vadd.f32 %v281, %v2116
  %v2118 = vpop.f32.mrb[0].mxu0
  %2119 = vmatprep.mubr.bf16.mxu0 0
  %2120 = vmatmul.mubr.bf16.gmra.mrb[0].mxu0 %v1225
  %v2121 = vpop.f32.mrb[0].mxu0
  %v2122 = vadd.f32 %v281, %v2121
  %v2123 = vpop.f32.mrb[0].mxu0
  %v2124 = vpop.f32.mrb[0].mxu0
  %v2125 = vadd.f32 %v281, %v2124
  %v2126 = vpop.f32.mrb[0].mxu0
  %2127 = vmatprep.mubr.bf16.mxu0 0
  %2128 = vmatmul.mubr.bf16.gmra.mrb[0].mxu0 %v1228
  %v2129 = vpop.f32.mrb[0].mxu0
  %v2130 = vadd.f32 %v281, %v2129
  %v2131 = vpop.f32.mrb[0].mxu0
  %v2132 = vpop.f32.mrb[0].mxu0
  %v2133 = vadd.f32 %v281, %v2132
  %v2134 = vpop.f32.mrb[0].mxu0
  %2135 = vmatprep.mubr.bf16.mxu0 0
  %2136 = vmatmul.mubr.bf16.gmra.mrb[0].mxu0 %v1231
  %v2137 = vpop.f32.mrb[0].mxu0
  %v2138 = vadd.f32 %v281, %v2137
  %v2139 = vpop.f32.mrb[0].mxu0
  %v2140 = vpop.f32.mrb[0].mxu0
  %v2141 = vadd.f32 %v281, %v2140
  %v2142 = vpop.f32.mrb[0].mxu0
  %2143 = vmatprep.mubr.bf16.mxu0 0
  %2144 = vmatmul.mubr.bf16.gmra.mrb[0].mxu0 %v1234
  %v2145 = vpop.f32.mrb[0].mxu0
  %v2146 = vadd.f32 %v281, %v2145
  %v2147 = vpop.f32.mrb[0].mxu0
  %v2148 = vpop.f32.mrb[0].mxu0
  %v2149 = vadd.f32 %v281, %v2148
  %v2150 = vpop.f32.mrb[0].mxu0
  %2151 = vmatprep.mubr.bf16.mxu0 0
  %2152 = vmatmul.mubr.bf16.gmra.mrb[0].mxu0 %v1237
  %v2153 = vpop.f32.mrb[0].mxu0
  %v2154 = vadd.f32 %v281, %v2153
  %v2155 = vpop.f32.mrb[0].mxu0
  %v2156 = vpop.f32.mrb[0].mxu0
  %v2157 = vadd.f32 %v281, %v2156
  %v2158 = vpop.f32.mrb[0].mxu0
  %2159 = vmatprep.mubr.bf16.mxu0 0
  %2160 = vmatmul.mubr.bf16.gmra.mrb[0].mxu0 %v1240
  %v2161 = vpop.f32.mrb[0].mxu0
  %v2162 = vadd.f32 %v281, %v2161
  %v2163 = vpop.f32.mrb[0].mxu0
  %v2164 = vpop.f32.mrb[0].mxu0
  %v2165 = vadd.f32 %v281, %v2164
  %v2166 = vpop.f32.mrb[0].mxu0
  %2167 = vmatprep.mubr.bf16.mxu0 0
  %2168 = vmatmul.mubr.bf16.gmra.mrb[0].mxu0 %v1243
  %v2169 = vpop.f32.mrb[0].mxu0
  %v2170 = vadd.f32 %v281, %v2169
  %v2171 = vpop.f32.mrb[0].mxu0
  %v2172 = vpop.f32.mrb[0].mxu0
  %v2173 = vadd.f32 %v281, %v2172
  %v2174 = vpop.f32.mrb[0].mxu0
  %2175 = vmatprep.mubr.bf16.mxu0 0
  %2176 = vmatmul.mubr.bf16.gmra.mrb[0].mxu0 %v1246
  %v2177 = vpop.f32.mrb[0].mxu0
  %v2178 = vadd.f32 %v281, %v2177
  %v2179 = vpop.f32.mrb[0].mxu0
  %v2180 = vpop.f32.mrb[0].mxu0
  %v2181 = vadd.f32 %v281, %v2180
  %v2182 = vpop.f32.mrb[0].mxu0
  %2183 = vmatprep.mubr.bf16.mxu0 0
  %2184 = vmatmul.mubr.bf16.gmra.mrb[0].mxu0 %v1249
  %v2185 = vpop.f32.mrb[0].mxu0
  %v2186 = vadd.f32 %v281, %v2185
  %v2187 = vpop.f32.mrb[0].mxu0
  %v2188 = vpop.f32.mrb[0].mxu0
  %v2189 = vadd.f32 %v281, %v2188
  %v2190 = vpop.f32.mrb[0].mxu0
  %2191 = vmatprep.mubr.bf16.mxu0 0
  %2192 = vmatmul.mubr.bf16.gmra.mrb[0].mxu0 %v1252
  %v2193 = vpop.f32.mrb[0].mxu0
  %v2194 = vadd.f32 %v281, %v2193
  %v2195 = vpop.f32.mrb[0].mxu0
  %v2196 = vpop.f32.mrb[0].mxu0
  %v2197 = vadd.f32 %v281, %v2196
  %v2198 = vpop.f32.mrb[0].mxu0
  %2199 = vmatprep.mubr.bf16.mxu0 0
  %2200 = vmatmul.mubr.bf16.gmra.mrb[0].mxu0 %v1255
  %v2201 = vpop.f32.mrb[0].mxu0
  %v2202 = vadd.f32 %v281, %v2201
  %v2203 = vpop.f32.mrb[0].mxu0
  %v2204 = vpop.f32.mrb[0].mxu0
  %v2205 = vadd.f32 %v281, %v2204
  %v2206 = vpop.f32.mrb[0].mxu0
  %2207 = vmatprep.mubr.bf16.mxu0 0
  %2208 = vmatmul.mubr.bf16.gmra.mrb[0].mxu0 %v1258
  %v2209 = vpop.f32.mrb[0].mxu0
  %v2210 = vadd.f32 %v281, %v2209
  %v2211 = vpop.f32.mrb[0].mxu0
  %v2212 = vpop.f32.mrb[0].mxu0
  %v2213 = vadd.f32 %v281, %v2212
  %v2214 = vpop.f32.mrb[0].mxu0
  %2215 = vmatprep.mubr.bf16.mxu0 0
  %2216 = vmatmul.mubr.bf16.gmra.mrb[0].mxu0 %v1261
  %v2217 = vpop.f32.mrb[0].mxu0
  %v2218 = vadd.f32 %v281, %v2217
  %v2219 = vpop.f32.mrb[0].mxu0
  %v2220 = vpop.f32.mrb[0].mxu0
  %v2221 = vadd.f32 %v281, %v2220
  %v2222 = vpop.f32.mrb[0].mxu0
  %2223 = vmatprep.mubr.bf16.mxu0 0
  %2224 = vmatmul.mubr.bf16.gmra.mrb[0].mxu0 %v1264
  %v2225 = vpop.f32.mrb[0].mxu0
  %v2226 = vadd.f32 %v281, %v2225
  %v2227 = vpop.f32.mrb[0].mxu0
  %v2228 = vpop.f32.mrb[0].mxu0
  %v2229 = vadd.f32 %v281, %v2228
  %v2230 = vpop.f32.mrb[0].mxu0
  %2231 = vmatprep.mubr.bf16.mxu0 0
  %2232 = vmatmul.mubr.bf16.gmra.mrb[0].mxu0 %v1267
  %v2233 = vpop.f32.mrb[0].mxu0
  %v2234 = vadd.f32 %v281, %v2233
  %v2235 = vpop.f32.mrb[0].mxu0
  %v2236 = vpop.f32.mrb[0].mxu0
  %v2237 = vadd.f32 %v281, %v2236
  %v2238 = vpop.f32.mrb[0].mxu0
  %2239 = vmatprep.mubr.bf16.mxu0 0
  %2240 = vmatmul.mubr.bf16.gmra.mrb[0].mxu0 %v1270
  %v2241 = vpop.f32.mrb[0].mxu0
  %v2242 = vadd.f32 %v281, %v2241
  %v2243 = vpop.f32.mrb[0].mxu0
  %v2244 = vpop.f32.mrb[0].mxu0
  %v2245 = vadd.f32 %v281, %v2244
  %v2246 = vpop.f32.mrb[0].mxu0
  %2247 = vmatprep.mubr.bf16.mxu0 0
  %2248 = vmatmul.mubr.bf16.gmra.mrb[0].mxu0 %v1273
  %v2249 = vpop.f32.mrb[0].mxu0
  %v2250 = vadd.f32 %v281, %v2249
  %v2251 = vpop.f32.mrb[0].mxu0
  %v2252 = vpop.f32.mrb[0].mxu0
  %v2253 = vadd.f32 %v281, %v2252
  %v2254 = vpop.f32.mrb[0].mxu0
  %2255 = vmatprep.mubr.bf16.mxu0 0
  %2256 = vmatmul.mubr.bf16.gmra.mrb[0].mxu0 %v1276
  %v2257 = vpop.f32.mrb[0].mxu0
  %v2258 = vadd.f32 %v281, %v2257
  %v2259 = vpop.f32.mrb[0].mxu0
  %v2260 = vpop.f32.mrb[0].mxu0
  %v2261 = vadd.f32 %v281, %v2260
  %v2262 = vpop.f32.mrb[0].mxu0
  %2263 = vmatprep.mubr.bf16.mxu0 0
  %2264 = vmatmul.mubr.bf16.gmra.mrb[0].mxu0 %v1279
  %v2265 = vpop.f32.mrb[0].mxu0
  %v2266 = vadd.f32 %v281, %v2265
  %v2267 = vpop.f32.mrb[0].mxu0
  %v2268 = vpop.f32.mrb[0].mxu0
  %v2269 = vadd.f32 %v281, %v2268
  %v2270 = vpop.f32.mrb[0].mxu0
  %2271 = vmatprep.mubr.bf16.mxu0 0
  %2272 = vmatmul.mubr.bf16.gmra.mrb[0].mxu0 %v1282
  %v2273 = vpop.f32.mrb[0].mxu0
  %v2274 = vadd.f32 %v281, %v2273
  %v2275 = vpop.f32.mrb[0].mxu0
  %v2276 = vpop.f32.mrb[0].mxu0
  %v2277 = vadd.f32 %v281, %v2276
  %v2278 = vpop.f32.mrb[0].mxu0
  %2279 = vmatprep.mubr.bf16.mxu0 0
  %2280 = vmatmul.mubr.bf16.gmra.mrb[0].mxu0 %v1285
  %v2281 = vpop.f32.mrb[0].mxu0
  %v2282 = vadd.f32 %v281, %v2281
  %v2283 = vpop.f32.mrb[0].mxu0
  %v2284 = vpop.f32.mrb[0].mxu0
  %v2285 = vadd.f32 %v281, %v2284
  %v2286 = vpop.f32.mrb[0].mxu0
  %2287 = vmatprep.mubr.bf16.mxu0 0
  %2288 = vmatmul.mubr.bf16.gmra.mrb[0].mxu0 %v1288
  %v2289 = vpop.f32.mrb[0].mxu0
  %v2290 = vadd.f32 %v281, %v2289
  %v2291 = vpop.f32.mrb[0].mxu0
  %v2292 = vpop.f32.mrb[0].mxu0
  %v2293 = vadd.f32 %v281, %v2292
  %v2294 = vpop.f32.mrb[0].mxu0
  %2295 = vmatprep.mubr.bf16.mxu0 0
  %2296 = vmatmul.mubr.bf16.gmra.mrb[0].mxu0 %v1291
  %v2297 = vpop.f32.mrb[0].mxu0
  %v2298 = vadd.f32 %v281, %v2297
  %v2299 = vpop.f32.mrb[0].mxu0
  %v2300 = vpop.f32.mrb[0].mxu0
  %v2301 = vadd.f32 %v281, %v2300
  %v2302 = vpop.f32.mrb[0].mxu0
  %2303 = vmatprep.mubr.bf16.mxu0 0
  %2304 = vmatmul.mubr.bf16.gmra.mrb[0].mxu0 %v1294
  %v2305 = vpop.f32.mrb[0].mxu0
  %v2306 = vadd.f32 %v281, %v2305
  %v2307 = vpop.f32.mrb[0].mxu0
  %v2308 = vpop.f32.mrb[0].mxu0
  %v2309 = vadd.f32 %v281, %v2308
  %v2310 = vpop.f32.mrb[0].mxu0
  %2311 = vmatprep.mubr.bf16.mxu0 0
  %2312 = vmatmul.mubr.bf16.gmra.mrb[0].mxu0 %v1297
  %v2313 = vpop.f32.mrb[0].mxu0
  %v2314 = vadd.f32 %v281, %v2313
  %v2315 = vpop.f32.mrb[0].mxu0
  %v2316 = vpop.f32.mrb[0].mxu0
  %v2317 = vadd.f32 %v281, %v2316
  %v2318 = vpop.f32.mrb[0].mxu0
  %2319 = vmatprep.mubr.bf16.mxu0 0
  %2320 = vmatmul.mubr.bf16.gmra.mrb[0].mxu0 %v1300
  %v2321 = vpop.f32.mrb[0].mxu0
  %v2322 = vadd.f32 %v281, %v2321
  %v2323 = vpop.f32.mrb[0].mxu0
  %v2324 = vpop.f32.mrb[0].mxu0
  %v2325 = vadd.f32 %v281, %v2324
  %v2326 = vpop.f32.mrb[0].mxu0
  %2327 = vmatprep.mubr.bf16.mxu0 0
  %2328 = vmatmul.mubr.bf16.gmra.mrb[0].mxu0 %v1303
  %v2329 = vpop.f32.mrb[0].mxu0
  %v2330 = vadd.f32 %v281, %v2329
  %v2331 = vpop.f32.mrb[0].mxu0
  %v2332 = vpop.f32.mrb[0].mxu0
  %v2333 = vadd.f32 %v281, %v2332
  %v2334 = vpop.f32.mrb[0].mxu0
  %2335 = vmatprep.mubr.bf16.mxu0 0
  %2336 = vmatmul.mubr.bf16.gmra.mrb[0].mxu0 %v1306
  %v2337 = vpop.f32.mrb[0].mxu0
  %v2338 = vadd.f32 %v281, %v2337
  %v2339 = vpop.f32.mrb[0].mxu0
  %v2340 = vpop.f32.mrb[0].mxu0
  %v2341 = vadd.f32 %v281, %v2340
  %v2342 = vpop.f32.mrb[0].mxu0
  %2343 = vmatprep.mubr.bf16.mxu0 0
  %2344 = vmatmul.mubr.bf16.gmra.mrb[0].mxu0 %v1309
  %v2345 = vpop.f32.mrb[0].mxu0
  %v2346 = vadd.f32 %v281, %v2345
  %v2347 = vpop.f32.mrb[0].mxu0
  %v2348 = vpop.f32.mrb[0].mxu0
  %v2349 = vadd.f32 %v281, %v2348
  %v2350 = vpop.f32.mrb[0].mxu0
  %2351 = vmatprep.mubr.bf16.mxu0 0
  %2352 = vmatmul.mubr.bf16.gmra.mrb[0].mxu0 %v1312
  %v2353 = vpop.f32.mrb[0].mxu0
  %v2354 = vadd.f32 %v281, %v2353
  %v2355 = vpop.f32.mrb[0].mxu0
  %v2356 = vpop.f32.mrb[0].mxu0
  %v2357 = vadd.f32 %v281, %v2356
  %v2358 = vpop.f32.mrb[0].mxu0
  %2359 = vmatprep.mubr.bf16.mxu0 0
  %2360 = vmatmul.mubr.bf16.gmra.mrb[0].mxu0 %v1315
  %v2361 = vpop.f32.mrb[0].mxu0
  %v2362 = vadd.f32 %v281, %v2361
  %v2363 = vpop.f32.mrb[0].mxu0
  %v2364 = vpop.f32.mrb[0].mxu0
  %v2365 = vadd.f32 %v281, %v2364
  %v2366 = vpop.f32.mrb[0].mxu0
  %2367 = vmatprep.mubr.bf16.mxu0 0
  %2368 = vmatmul.mubr.bf16.gmra.mrb[0].mxu0 %v1318
  %v2369 = vpop.f32.mrb[0].mxu0
  %v2370 = vadd.f32 %v281, %v2369
  %v2371 = vpop.f32.mrb[0].mxu0
  %v2372 = vpop.f32.mrb[0].mxu0
  %v2373 = vadd.f32 %v281, %v2372
  %v2374 = vpop.f32.mrb[0].mxu0
  %2375 = vmatprep.mubr.bf16.mxu0 0
  %2376 = vmatmul.mubr.bf16.gmra.mrb[0].mxu0 %v1321
  %v2377 = vpop.f32.mrb[0].mxu0
  %v2378 = vadd.f32 %v281, %v2377
  %v2379 = vpop.f32.mrb[0].mxu0
  %v2380 = vpop.f32.mrb[0].mxu0
  %v2381 = vadd.f32 %v281, %v2380
  %v2382 = vpop.f32.mrb[0].mxu0
  %2383 = vdwg.mxu0
  %vm2384 = vcmp.gt.f32.partialorder %v1362, 0.0
  %vm2385 = vcmp.gt.f32.partialorder %v1365, 0.0
  %vm2386 = vcmp.gt.f32.partialorder %v1370, 0.0
  %vm2387 = vcmp.gt.f32.partialorder %v1373, 0.0
  %vm2388 = vcmp.gt.f32.partialorder %v1378, 0.0
  %vm2389 = vcmp.gt.f32.partialorder %v1381, 0.0
  %vm2390 = vcmp.gt.f32.partialorder %v1386, 0.0
  %vm2391 = vcmp.gt.f32.partialorder %v1389, 0.0
  %vm2392 = vcmp.gt.f32.partialorder %v1394, 0.0
  %vm2393 = vcmp.gt.f32.partialorder %v1397, 0.0
  %vm2394 = vcmp.gt.f32.partialorder %v1402, 0.0
  %vm2395 = vcmp.gt.f32.partialorder %v1405, 0.0
  %vm2396 = vcmp.gt.f32.partialorder %v1410, 0.0
  %vm2397 = vcmp.gt.f32.partialorder %v1413, 0.0
  %vm2398 = vcmp.gt.f32.partialorder %v1418, 0.0
  %vm2399 = vcmp.gt.f32.partialorder %v1421, 0.0
  %vm2400 = vcmp.gt.f32.partialorder %v1426, 0.0
  %vm2401 = vcmp.gt.f32.partialorder %v1429, 0.0
  %vm2402 = vcmp.gt.f32.partialorder %v1434, 0.0
  %vm2403 = vcmp.gt.f32.partialorder %v1437, 0.0
  %vm2404 = vcmp.gt.f32.partialorder %v1442, 0.0
  %vm2405 = vcmp.gt.f32.partialorder %v1445, 0.0
  %vm2406 = vcmp.gt.f32.partialorder %v1450, 0.0
  %vm2407 = vcmp.gt.f32.partialorder %v1453, 0.0
  %vm2408 = vcmp.gt.f32.partialorder %v1458, 0.0
  %vm2409 = vcmp.gt.f32.partialorder %v1461, 0.0
  %vm2410 = vcmp.gt.f32.partialorder %v1466, 0.0
  %vm2411 = vcmp.gt.f32.partialorder %v1469, 0.0
  %vm2412 = vcmp.gt.f32.partialorder %v1474, 0.0
  %vm2413 = vcmp.gt.f32.partialorder %v1477, 0.0
  %vm2414 = vcmp.gt.f32.partialorder %v1482, 0.0
  %vm2415 = vcmp.gt.f32.partialorder %v1485, 0.0
  %vm2416 = vcmp.gt.f32.partialorder %v1490, 0.0
  %vm2417 = vcmp.gt.f32.partialorder %v1493, 0.0
  %vm2418 = vcmp.gt.f32.partialorder %v1498, 0.0
  %vm2419 = vcmp.gt.f32.partialorder %v1501, 0.0
  %vm2420 = vcmp.gt.f32.partialorder %v1506, 0.0
  %vm2421 = vcmp.gt.f32.partialorder %v1509, 0.0
  %vm2422 = vcmp.gt.f32.partialorder %v1514, 0.0
  %vm2423 = vcmp.gt.f32.partialorder %v1517, 0.0
  %vm2424 = vcmp.gt.f32.partialorder %v1522, 0.0
  %vm2425 = vcmp.gt.f32.partialorder %v1525, 0.0
  %vm2426 = vcmp.gt.f32.partialorder %v1530, 0.0
  %vm2427 = vcmp.gt.f32.partialorder %v1533, 0.0
  %vm2428 = vcmp.gt.f32.partialorder %v1538, 0.0
  %vm2429 = vcmp.gt.f32.partialorder %v1541, 0.0
  %vm2430 = vcmp.gt.f32.partialorder %v1546, 0.0
  %vm2431 = vcmp.gt.f32.partialorder %v1549, 0.0
  %vm2432 = vcmp.gt.f32.partialorder %v1554, 0.0
  %vm2433 = vcmp.gt.f32.partialorder %v1557, 0.0
  %vm2434 = vcmp.gt.f32.partialorder %v1562, 0.0
  %vm2435 = vcmp.gt.f32.partialorder %v1565, 0.0
  %vm2436 = vcmp.gt.f32.partialorder %v1570, 0.0
  %vm2437 = vcmp.gt.f32.partialorder %v1573, 0.0
  %vm2438 = vcmp.gt.f32.partialorder %v1578, 0.0
  %vm2439 = vcmp.gt.f32.partialorder %v1581, 0.0
  %vm2440 = vcmp.gt.f32.partialorder %v1586, 0.0
  %vm2441 = vcmp.gt.f32.partialorder %v1589, 0.0
  %vm2442 = vcmp.gt.f32.partialorder %v1594, 0.0
  %vm2443 = vcmp.gt.f32.partialorder %v1597, 0.0
  %vm2444 = vcmp.gt.f32.partialorder %v1602, 0.0
  %vm2445 = vcmp.gt.f32.partialorder %v1605, 0.0
  %vm2446 = vcmp.gt.f32.partialorder %v1610, 0.0
  %vm2447 = vcmp.gt.f32.partialorder %v1613, 0.0
  %vm2448 = vcmp.gt.f32.partialorder %v1618, 0.0
  %vm2449 = vcmp.gt.f32.partialorder %v1621, 0.0
  %vm2450 = vcmp.gt.f32.partialorder %v1626, 0.0
  %vm2451 = vcmp.gt.f32.partialorder %v1629, 0.0
  %vm2452 = vcmp.gt.f32.partialorder %v1634, 0.0
  %vm2453 = vcmp.gt.f32.partialorder %v1637, 0.0
  %vm2454 = vcmp.gt.f32.partialorder %v1642, 0.0
  %vm2455 = vcmp.gt.f32.partialorder %v1645, 0.0
  %vm2456 = vcmp.gt.f32.partialorder %v1650, 0.0
  %vm2457 = vcmp.gt.f32.partialorder %v1653, 0.0
  %vm2458 = vcmp.gt.f32.partialorder %v1658, 0.0
  %vm2459 = vcmp.gt.f32.partialorder %v1661, 0.0
  %vm2460 = vcmp.gt.f32.partialorder %v1666, 0.0
  %vm2461 = vcmp.gt.f32.partialorder %v1669, 0.0
  %vm2462 = vcmp.gt.f32.partialorder %v1674, 0.0
  %vm2463 = vcmp.gt.f32.partialorder %v1677, 0.0
  %vm2464 = vcmp.gt.f32.partialorder %v1682, 0.0
  %vm2465 = vcmp.gt.f32.partialorder %v1685, 0.0
  %vm2466 = vcmp.gt.f32.partialorder %v1690, 0.0
  %vm2467 = vcmp.gt.f32.partialorder %v1693, 0.0
  %vm2468 = vcmp.gt.f32.partialorder %v1698, 0.0
  %vm2469 = vcmp.gt.f32.partialorder %v1701, 0.0
  %vm2470 = vcmp.gt.f32.partialorder %v1706, 0.0
  %vm2471 = vcmp.gt.f32.partialorder %v1709, 0.0
  %vm2472 = vcmp.gt.f32.partialorder %v1714, 0.0
  %vm2473 = vcmp.gt.f32.partialorder %v1717, 0.0
  %vm2474 = vcmp.gt.f32.partialorder %v1722, 0.0
  %vm2475 = vcmp.gt.f32.partialorder %v1725, 0.0
  %vm2476 = vcmp.gt.f32.partialorder %v1730, 0.0
  %vm2477 = vcmp.gt.f32.partialorder %v1733, 0.0
  %vm2478 = vcmp.gt.f32.partialorder %v1738, 0.0
  %vm2479 = vcmp.gt.f32.partialorder %v1741, 0.0
  %vm2480 = vcmp.gt.f32.partialorder %v1746, 0.0
  %vm2481 = vcmp.gt.f32.partialorder %v1749, 0.0
  %vm2482 = vcmp.gt.f32.partialorder %v1754, 0.0
  %vm2483 = vcmp.gt.f32.partialorder %v1757, 0.0
  %vm2484 = vcmp.gt.f32.partialorder %v1762, 0.0
  %vm2485 = vcmp.gt.f32.partialorder %v1765, 0.0
  %vm2486 = vcmp.gt.f32.partialorder %v1770, 0.0
  %vm2487 = vcmp.gt.f32.partialorder %v1773, 0.0
  %vm2488 = vcmp.gt.f32.partialorder %v1778, 0.0
  %vm2489 = vcmp.gt.f32.partialorder %v1781, 0.0
  %vm2490 = vcmp.gt.f32.partialorder %v1786, 0.0
  %vm2491 = vcmp.gt.f32.partialorder %v1789, 0.0
  %vm2492 = vcmp.gt.f32.partialorder %v1794, 0.0
  %vm2493 = vcmp.gt.f32.partialorder %v1797, 0.0
  %vm2494 = vcmp.gt.f32.partialorder %v1802, 0.0
  %vm2495 = vcmp.gt.f32.partialorder %v1805, 0.0
  %vm2496 = vcmp.gt.f32.partialorder %v1810, 0.0
  %vm2497 = vcmp.gt.f32.partialorder %v1813, 0.0
  %vm2498 = vcmp.gt.f32.partialorder %v1818, 0.0
  %vm2499 = vcmp.gt.f32.partialorder %v1821, 0.0
  %vm2500 = vcmp.gt.f32.partialorder %v1826, 0.0
  %vm2501 = vcmp.gt.f32.partialorder %v1829, 0.0
  %vm2502 = vcmp.gt.f32.partialorder %v1834, 0.0
  %vm2503 = vcmp.gt.f32.partialorder %v1837, 0.0
  %vm2504 = vcmp.gt.f32.partialorder %v1842, 0.0
  %vm2505 = vcmp.gt.f32.partialorder %v1845, 0.0
  %vm2506 = vcmp.gt.f32.partialorder %v1850, 0.0
  %vm2507 = vcmp.gt.f32.partialorder %v1853, 0.0
  %vm2508 = vcmp.gt.f32.partialorder %v1858, 0.0
  %vm2509 = vcmp.gt.f32.partialorder %v1861, 0.0
  %vm2510 = vcmp.gt.f32.partialorder %v1866, 0.0
  %vm2511 = vcmp.gt.f32.partialorder %v1869, 0.0
  %vm2512 = vcmp.gt.f32.partialorder %v1874, 0.0
  %vm2513 = vcmp.gt.f32.partialorder %v1877, 0.0
  %vm2514 = vcmp.gt.f32.partialorder %v1882, 0.0
  %vm2515 = vcmp.gt.f32.partialorder %v1885, 0.0
  %vm2516 = vcmp.gt.f32.partialorder %v1890, 0.0
  %vm2517 = vcmp.gt.f32.partialorder %v1893, 0.0
  %vm2518 = vcmp.gt.f32.partialorder %v1898, 0.0
  %vm2519 = vcmp.gt.f32.partialorder %v1901, 0.0
  %vm2520 = vcmp.gt.f32.partialorder %v1906, 0.0
  %vm2521 = vcmp.gt.f32.partialorder %v1909, 0.0
  %vm2522 = vcmp.gt.f32.partialorder %v1914, 0.0
  %vm2523 = vcmp.gt.f32.partialorder %v1917, 0.0
  %vm2524 = vcmp.gt.f32.partialorder %v1922, 0.0
  %vm2525 = vcmp.gt.f32.partialorder %v1925, 0.0
  %vm2526 = vcmp.gt.f32.partialorder %v1930, 0.0
  %vm2527 = vcmp.gt.f32.partialorder %v1933, 0.0
  %vm2528 = vcmp.gt.f32.partialorder %v1938, 0.0
  %vm2529 = vcmp.gt.f32.partialorder %v1941, 0.0
  %vm2530 = vcmp.gt.f32.partialorder %v1946, 0.0
  %vm2531 = vcmp.gt.f32.partialorder %v1949, 0.0
  %vm2532 = vcmp.gt.f32.partialorder %v1954, 0.0
  %vm2533 = vcmp.gt.f32.partialorder %v1957, 0.0
  %vm2534 = vcmp.gt.f32.partialorder %v1962, 0.0
  %vm2535 = vcmp.gt.f32.partialorder %v1965, 0.0
  %vm2536 = vcmp.gt.f32.partialorder %v1970, 0.0
  %vm2537 = vcmp.gt.f32.partialorder %v1973, 0.0
  %vm2538 = vcmp.gt.f32.partialorder %v1978, 0.0
  %vm2539 = vcmp.gt.f32.partialorder %v1981, 0.0
  %vm2540 = vcmp.gt.f32.partialorder %v1986, 0.0
  %vm2541 = vcmp.gt.f32.partialorder %v1989, 0.0
  %vm2542 = vcmp.gt.f32.partialorder %v1994, 0.0
  %vm2543 = vcmp.gt.f32.partialorder %v1997, 0.0
  %vm2544 = vcmp.gt.f32.partialorder %v2002, 0.0
  %vm2545 = vcmp.gt.f32.partialorder %v2005, 0.0
  %vm2546 = vcmp.gt.f32.partialorder %v2010, 0.0
  %vm2547 = vcmp.gt.f32.partialorder %v2013, 0.0
  %vm2548 = vcmp.gt.f32.partialorder %v2018, 0.0
  %vm2549 = vcmp.gt.f32.partialorder %v2021, 0.0
  %vm2550 = vcmp.gt.f32.partialorder %v2026, 0.0
  %vm2551 = vcmp.gt.f32.partialorder %v2029, 0.0
  %vm2552 = vcmp.gt.f32.partialorder %v2034, 0.0
  %vm2553 = vcmp.gt.f32.partialorder %v2037, 0.0
  %vm2554 = vcmp.gt.f32.partialorder %v2042, 0.0
  %vm2555 = vcmp.gt.f32.partialorder %v2045, 0.0
  %vm2556 = vcmp.gt.f32.partialorder %v2050, 0.0
  %vm2557 = vcmp.gt.f32.partialorder %v2053, 0.0
  %vm2558 = vcmp.gt.f32.partialorder %v2058, 0.0
  %vm2559 = vcmp.gt.f32.partialorder %v2061, 0.0
  %vm2560 = vcmp.gt.f32.partialorder %v2066, 0.0
  %vm2561 = vcmp.gt.f32.partialorder %v2069, 0.0
  %vm2562 = vcmp.gt.f32.partialorder %v2074, 0.0
  %vm2563 = vcmp.gt.f32.partialorder %v2077, 0.0
  %vm2564 = vcmp.gt.f32.partialorder %v2082, 0.0
  %vm2565 = vcmp.gt.f32.partialorder %v2085, 0.0
  %vm2566 = vcmp.gt.f32.partialorder %v2090, 0.0
  %vm2567 = vcmp.gt.f32.partialorder %v2093, 0.0
  %vm2568 = vcmp.gt.f32.partialorder %v2098, 0.0
  %vm2569 = vcmp.gt.f32.partialorder %v2101, 0.0
  %vm2570 = vcmp.gt.f32.partialorder %v2106, 0.0
  %vm2571 = vcmp.gt.f32.partialorder %v2109, 0.0
  %vm2572 = vcmp.gt.f32.partialorder %v2114, 0.0
  %vm2573 = vcmp.gt.f32.partialorder %v2117, 0.0
  %vm2574 = vcmp.gt.f32.partialorder %v2122, 0.0
  %vm2575 = vcmp.gt.f32.partialorder %v2125, 0.0
  %vm2576 = vcmp.gt.f32.partialorder %v2130, 0.0
  %vm2577 = vcmp.gt.f32.partialorder %v2133, 0.0
  %vm2578 = vcmp.gt.f32.partialorder %v2138, 0.0
  %vm2579 = vcmp.gt.f32.partialorder %v2141, 0.0
  %vm2580 = vcmp.gt.f32.partialorder %v2146, 0.0
  %vm2581 = vcmp.gt.f32.partialorder %v2149, 0.0
  %vm2582 = vcmp.gt.f32.partialorder %v2154, 0.0
  %vm2583 = vcmp.gt.f32.partialorder %v2157, 0.0
  %vm2584 = vcmp.gt.f32.partialorder %v2162, 0.0
  %vm2585 = vcmp.gt.f32.partialorder %v2165, 0.0
  %vm2586 = vcmp.gt.f32.partialorder %v2170, 0.0
  %vm2587 = vcmp.gt.f32.partialorder %v2173, 0.0
  %vm2588 = vcmp.gt.f32.partialorder %v2178, 0.0
  %vm2589 = vcmp.gt.f32.partialorder %v2181, 0.0
  %vm2590 = vcmp.gt.f32.partialorder %v2186, 0.0
  %vm2591 = vcmp.gt.f32.partialorder %v2189, 0.0
  %vm2592 = vcmp.gt.f32.partialorder %v2194, 0.0
  %vm2593 = vcmp.gt.f32.partialorder %v2197, 0.0
  %vm2594 = vcmp.gt.f32.partialorder %v2202, 0.0
  %vm2595 = vcmp.gt.f32.partialorder %v2205, 0.0
  %vm2596 = vcmp.gt.f32.partialorder %v2210, 0.0
  %vm2597 = vcmp.gt.f32.partialorder %v2213, 0.0
  %vm2598 = vcmp.gt.f32.partialorder %v2218, 0.0
  %vm2599 = vcmp.gt.f32.partialorder %v2221, 0.0
  %vm2600 = vcmp.gt.f32.partialorder %v2226, 0.0
  %vm2601 = vcmp.gt.f32.partialorder %v2229, 0.0
  %vm2602 = vcmp.gt.f32.partialorder %v2234, 0.0
  %vm2603 = vcmp.gt.f32.partialorder %v2237, 0.0
  %vm2604 = vcmp.gt.f32.partialorder %v2242, 0.0
  %vm2605 = vcmp.gt.f32.partialorder %v2245, 0.0
  %vm2606 = vcmp.gt.f32.partialorder %v2250, 0.0
  %vm2607 = vcmp.gt.f32.partialorder %v2253, 0.0
  %vm2608 = vcmp.gt.f32.partialorder %v2258, 0.0
  %vm2609 = vcmp.gt.f32.partialorder %v2261, 0.0
  %vm2610 = vcmp.gt.f32.partialorder %v2266, 0.0
  %vm2611 = vcmp.gt.f32.partialorder %v2269, 0.0
  %vm2612 = vcmp.gt.f32.partialorder %v2274, 0.0
  %vm2613 = vcmp.gt.f32.partialorder %v2277, 0.0
  %vm2614 = vcmp.gt.f32.partialorder %v2282, 0.0
  %vm2615 = vcmp.gt.f32.partialorder %v2285, 0.0
  %vm2616 = vcmp.gt.f32.partialorder %v2290, 0.0
  %vm2617 = vcmp.gt.f32.partialorder %v2293, 0.0
  %vm2618 = vcmp.gt.f32.partialorder %v2298, 0.0
  %vm2619 = vcmp.gt.f32.partialorder %v2301, 0.0
  %vm2620 = vcmp.gt.f32.partialorder %v2306, 0.0
  %vm2621 = vcmp.gt.f32.partialorder %v2309, 0.0
  %vm2622 = vcmp.gt.f32.partialorder %v2314, 0.0
  %vm2623 = vcmp.gt.f32.partialorder %v2317, 0.0
  %vm2624 = vcmp.gt.f32.partialorder %v2322, 0.0
  %vm2625 = vcmp.gt.f32.partialorder %v2325, 0.0
  %vm2626 = vcmp.gt.f32.partialorder %v2330, 0.0
  %vm2627 = vcmp.gt.f32.partialorder %v2333, 0.0
  %vm2628 = vcmp.gt.f32.partialorder %v2338, 0.0
  %vm2629 = vcmp.gt.f32.partialorder %v2341, 0.0
  %vm2630 = vcmp.gt.f32.partialorder %v2346, 0.0
  %vm2631 = vcmp.gt.f32.partialorder %v2349, 0.0
  %vm2632 = vcmp.gt.f32.partialorder %v2354, 0.0
  %vm2633 = vcmp.gt.f32.partialorder %v2357, 0.0
  %vm2634 = vcmp.gt.f32.partialorder %v2362, 0.0
  %vm2635 = vcmp.gt.f32.partialorder %v2365, 0.0
  %vm2636 = vcmp.gt.f32.partialorder %v2370, 0.0
  %vm2637 = vcmp.gt.f32.partialorder %v2373, 0.0
  %vm2638 = vcmp.gt.f32.partialorder %v2378, 0.0
  %vm2639 = vcmp.gt.f32.partialorder %v2381, 0.0
  %v2640 = vmul.f32 %v1362, 0.2
  %v2641 = vmul.f32 %v1365, 0.2
  %v2642 = vmul.f32 %v1370, 0.2
  %v2643 = vmul.f32 %v1373, 0.2
  %v2644 = vmul.f32 %v1378, 0.2
  %v2645 = vmul.f32 %v1381, 0.2
  %v2646 = vmul.f32 %v1386, 0.2
  %v2647 = vmul.f32 %v1389, 0.2
  %v2648 = vmul.f32 %v1394, 0.2
  %v2649 = vmul.f32 %v1397, 0.2
  %v2650 = vmul.f32 %v1402, 0.2
  %v2651 = vmul.f32 %v1405, 0.2
  %v2652 = vmul.f32 %v1410, 0.2
  %v2653 = vmul.f32 %v1413, 0.2
  %v2654 = vmul.f32 %v1418, 0.2
  %v2655 = vmul.f32 %v1421, 0.2
  %v2656 = vmul.f32 %v1426, 0.2
  %v2657 = vmul.f32 %v1429, 0.2
  %v2658 = vmul.f32 %v1434, 0.2
  %v2659 = vmul.f32 %v1437, 0.2
  %v2660 = vmul.f32 %v1442, 0.2
  %v2661 = vmul.f32 %v1445, 0.2
  %v2662 = vmul.f32 %v1450, 0.2
  %v2663 = vmul.f32 %v1453, 0.2
  %v2664 = vmul.f32 %v1458, 0.2
  %v2665 = vmul.f32 %v1461, 0.2
  %v2666 = vmul.f32 %v1466, 0.2
  %v2667 = vmul.f32 %v1469, 0.2
  %v2668 = vmul.f32 %v1474, 0.2
  %v2669 = vmul.f32 %v1477, 0.2
  %v2670 = vmul.f32 %v1482, 0.2
  %v2671 = vmul.f32 %v1485, 0.2
  %v2672 = vmul.f32 %v1490, 0.2
  %v2673 = vmul.f32 %v1493, 0.2
  %v2674 = vmul.f32 %v1498, 0.2
  %v2675 = vmul.f32 %v1501, 0.2
  %v2676 = vmul.f32 %v1506, 0.2
  %v2677 = vmul.f32 %v1509, 0.2
  %v2678 = vmul.f32 %v1514, 0.2
  %v2679 = vmul.f32 %v1517, 0.2
  %v2680 = vmul.f32 %v1522, 0.2
  %v2681 = vmul.f32 %v1525, 0.2
  %v2682 = vmul.f32 %v1530, 0.2
  %v2683 = vmul.f32 %v1533, 0.2
  %v2684 = vmul.f32 %v1538, 0.2
  %v2685 = vmul.f32 %v1541, 0.2
  %v2686 = vmul.f32 %v1546, 0.2
  %v2687 = vmul.f32 %v1549, 0.2
  %v2688 = vmul.f32 %v1554, 0.2
  %v2689 = vmul.f32 %v1557, 0.2
  %v2690 = vmul.f32 %v1562, 0.2
  %v2691 = vmul.f32 %v1565, 0.2
  %v2692 = vmul.f32 %v1570, 0.2
  %v2693 = vmul.f32 %v1573, 0.2
  %v2694 = vmul.f32 %v1578, 0.2
  %v2695 = vmul.f32 %v1581, 0.2
  %v2696 = vmul.f32 %v1586, 0.2
  %v2697 = vmul.f32 %v1589, 0.2
  %v2698 = vmul.f32 %v1594, 0.2
  %v2699 = vmul.f32 %v1597, 0.2
  %v2700 = vmul.f32 %v1602, 0.2
  %v2701 = vmul.f32 %v1605, 0.2
  %v2702 = vmul.f32 %v1610, 0.2
  %v2703 = vmul.f32 %v1613, 0.2
  %v2704 = vmul.f32 %v1618, 0.2
  %v2705 = vmul.f32 %v1621, 0.2
  %v2706 = vmul.f32 %v1626, 0.2
  %v2707 = vmul.f32 %v1629, 0.2
  %v2708 = vmul.f32 %v1634, 0.2
  %v2709 = vmul.f32 %v1637, 0.2
  %v2710 = vmul.f32 %v1642, 0.2
  %v2711 = vmul.f32 %v1645, 0.2
  %v2712 = vmul.f32 %v1650, 0.2
  %v2713 = vmul.f32 %v1653, 0.2
  %v2714 = vmul.f32 %v1658, 0.2
  %v2715 = vmul.f32 %v1661, 0.2
  %v2716 = vmul.f32 %v1666, 0.2
  %v2717 = vmul.f32 %v1669, 0.2
  %v2718 = vmul.f32 %v1674, 0.2
  %v2719 = vmul.f32 %v1677, 0.2
  %v2720 = vmul.f32 %v1682, 0.2
  %v2721 = vmul.f32 %v1685, 0.2
  %v2722 = vmul.f32 %v1690, 0.2
  %v2723 = vmul.f32 %v1693, 0.2
  %v2724 = vmul.f32 %v1698, 0.2
  %v2725 = vmul.f32 %v1701, 0.2
  %v2726 = vmul.f32 %v1706, 0.2
  %v2727 = vmul.f32 %v1709, 0.2
  %v2728 = vmul.f32 %v1714, 0.2
  %v2729 = vmul.f32 %v1717, 0.2
  %v2730 = vmul.f32 %v1722, 0.2
  %v2731 = vmul.f32 %v1725, 0.2
  %v2732 = vmul.f32 %v1730, 0.2
  %v2733 = vmul.f32 %v1733, 0.2
  %v2734 = vmul.f32 %v1738, 0.2
  %v2735 = vmul.f32 %v1741, 0.2
  %v2736 = vmul.f32 %v1746, 0.2
  %v2737 = vmul.f32 %v1749, 0.2
  %v2738 = vmul.f32 %v1754, 0.2
  %v2739 = vmul.f32 %v1757, 0.2
  %v2740 = vmul.f32 %v1762, 0.2
  %v2741 = vmul.f32 %v1765, 0.2
  %v2742 = vmul.f32 %v1770, 0.2
  %v2743 = vmul.f32 %v1773, 0.2
  %v2744 = vmul.f32 %v1778, 0.2
  %v2745 = vmul.f32 %v1781, 0.2
  %v2746 = vmul.f32 %v1786, 0.2
  %v2747 = vmul.f32 %v1789, 0.2
  %v2748 = vmul.f32 %v1794, 0.2
  %v2749 = vmul.f32 %v1797, 0.2
  %v2750 = vmul.f32 %v1802, 0.2
  %v2751 = vmul.f32 %v1805, 0.2
  %v2752 = vmul.f32 %v1810, 0.2
  %v2753 = vmul.f32 %v1813, 0.2
  %v2754 = vmul.f32 %v1818, 0.2
  %v2755 = vmul.f32 %v1821, 0.2
  %v2756 = vmul.f32 %v1826, 0.2
  %v2757 = vmul.f32 %v1829, 0.2
  %v2758 = vmul.f32 %v1834, 0.2
  %v2759 = vmul.f32 %v1837, 0.2
  %v2760 = vmul.f32 %v1842, 0.2
  %v2761 = vmul.f32 %v1845, 0.2
  %v2762 = vmul.f32 %v1850, 0.2
  %v2763 = vmul.f32 %v1853, 0.2
  %v2764 = vmul.f32 %v1858, 0.2
  %v2765 = vmul.f32 %v1861, 0.2
  %v2766 = vmul.f32 %v1866, 0.2
  %v2767 = vmul.f32 %v1869, 0.2
  %v2768 = vmul.f32 %v1874, 0.2
  %v2769 = vmul.f32 %v1877, 0.2
  %v2770 = vmul.f32 %v1882, 0.2
  %v2771 = vmul.f32 %v1885, 0.2
  %v2772 = vmul.f32 %v1890, 0.2
  %v2773 = vmul.f32 %v1893, 0.2
  %v2774 = vmul.f32 %v1898, 0.2
  %v2775 = vmul.f32 %v1901, 0.2
  %v2776 = vmul.f32 %v1906, 0.2
  %v2777 = vmul.f32 %v1909, 0.2
  %v2778 = vmul.f32 %v1914, 0.2
  %v2779 = vmul.f32 %v1917, 0.2
  %v2780 = vmul.f32 %v1922, 0.2
  %v2781 = vmul.f32 %v1925, 0.2
  %v2782 = vmul.f32 %v1930, 0.2
  %v2783 = vmul.f32 %v1933, 0.2
  %v2784 = vmul.f32 %v1938, 0.2
  %v2785 = vmul.f32 %v1941, 0.2
  %v2786 = vmul.f32 %v1946, 0.2
  %v2787 = vmul.f32 %v1949, 0.2
  %v2788 = vmul.f32 %v1954, 0.2
  %v2789 = vmul.f32 %v1957, 0.2
  %v2790 = vmul.f32 %v1962, 0.2
  %v2791 = vmul.f32 %v1965, 0.2
  %v2792 = vmul.f32 %v1970, 0.2
  %v2793 = vmul.f32 %v1973, 0.2
  %v2794 = vmul.f32 %v1978, 0.2
  %v2795 = vmul.f32 %v1981, 0.2
  %v2796 = vmul.f32 %v1986, 0.2
  %v2797 = vmul.f32 %v1989, 0.2
  %v2798 = vmul.f32 %v1994, 0.2
  %v2799 = vmul.f32 %v1997, 0.2
  %v2800 = vmul.f32 %v2002, 0.2
  %v2801 = vmul.f32 %v2005, 0.2
  %v2802 = vmul.f32 %v2010, 0.2
  %v2803 = vmul.f32 %v2013, 0.2
  %v2804 = vmul.f32 %v2018, 0.2
  %v2805 = vmul.f32 %v2021, 0.2
  %v2806 = vmul.f32 %v2026, 0.2
  %v2807 = vmul.f32 %v2029, 0.2
  %v2808 = vmul.f32 %v2034, 0.2
  %v2809 = vmul.f32 %v2037, 0.2
  %v2810 = vmul.f32 %v2042, 0.2
  %v2811 = vmul.f32 %v2045, 0.2
  %v2812 = vmul.f32 %v2050, 0.2
  %v2813 = vmul.f32 %v2053, 0.2
  %v2814 = vmul.f32 %v2058, 0.2
  %v2815 = vmul.f32 %v2061, 0.2
  %v2816 = vmul.f32 %v2066, 0.2
  %v2817 = vmul.f32 %v2069, 0.2
  %v2818 = vmul.f32 %v2074, 0.2
  %v2819 = vmul.f32 %v2077, 0.2
  %v2820 = vmul.f32 %v2082, 0.2
  %v2821 = vmul.f32 %v2085, 0.2
  %v2822 = vmul.f32 %v2090, 0.2
  %v2823 = vmul.f32 %v2093, 0.2
  %v2824 = vmul.f32 %v2098, 0.2
  %v2825 = vmul.f32 %v2101, 0.2
  %v2826 = vmul.f32 %v2106, 0.2
  %v2827 = vmul.f32 %v2109, 0.2
  %v2828 = vmul.f32 %v2114, 0.2
  %v2829 = vmul.f32 %v2117, 0.2
  %v2830 = vmul.f32 %v2122, 0.2
  %v2831 = vmul.f32 %v2125, 0.2
  %v2832 = vmul.f32 %v2130, 0.2
  %v2833 = vmul.f32 %v2133, 0.2
  %v2834 = vmul.f32 %v2138, 0.2
  %v2835 = vmul.f32 %v2141, 0.2
  %v2836 = vmul.f32 %v2146, 0.2
  %v2837 = vmul.f32 %v2149, 0.2
  %v2838 = vmul.f32 %v2154, 0.2
  %v2839 = vmul.f32 %v2157, 0.2
  %v2840 = vmul.f32 %v2162, 0.2
  %v2841 = vmul.f32 %v2165, 0.2
  %v2842 = vmul.f32 %v2170, 0.2
  %v2843 = vmul.f32 %v2173, 0.2
  %v2844 = vmul.f32 %v2178, 0.2
  %v2845 = vmul.f32 %v2181, 0.2
  %v2846 = vmul.f32 %v2186, 0.2
  %v2847 = vmul.f32 %v2189, 0.2
  %v2848 = vmul.f32 %v2194, 0.2
  %v2849 = vmul.f32 %v2197, 0.2
  %v2850 = vmul.f32 %v2202, 0.2
  %v2851 = vmul.f32 %v2205, 0.2
  %v2852 = vmul.f32 %v2210, 0.2
  %v2853 = vmul.f32 %v2213, 0.2
  %v2854 = vmul.f32 %v2218, 0.2
  %v2855 = vmul.f32 %v2221, 0.2
  %v2856 = vmul.f32 %v2226, 0.2
  %v2857 = vmul.f32 %v2229, 0.2
  %v2858 = vmul.f32 %v2234, 0.2
  %v2859 = vmul.f32 %v2237, 0.2
  %v2860 = vmul.f32 %v2242, 0.2
  %v2861 = vmul.f32 %v2245, 0.2
  %v2862 = vmul.f32 %v2250, 0.2
  %v2863 = vmul.f32 %v2253, 0.2
  %v2864 = vmul.f32 %v2258, 0.2
  %v2865 = vmul.f32 %v2261, 0.2
  %v2866 = vmul.f32 %v2266, 0.2
  %v2867 = vmul.f32 %v2269, 0.2
  %v2868 = vmul.f32 %v2274, 0.2
  %v2869 = vmul.f32 %v2277, 0.2
  %v2870 = vmul.f32 %v2282, 0.2
  %v2871 = vmul.f32 %v2285, 0.2
  %v2872 = vmul.f32 %v2290, 0.2
  %v2873 = vmul.f32 %v2293, 0.2
  %v2874 = vmul.f32 %v2298, 0.2
  %v2875 = vmul.f32 %v2301, 0.2
  %v2876 = vmul.f32 %v2306, 0.2
  %v2877 = vmul.f32 %v2309, 0.2
  %v2878 = vmul.f32 %v2314, 0.2
  %v2879 = vmul.f32 %v2317, 0.2
  %v2880 = vmul.f32 %v2322, 0.2
  %v2881 = vmul.f32 %v2325, 0.2
  %v2882 = vmul.f32 %v2330, 0.2
  %v2883 = vmul.f32 %v2333, 0.2
  %v2884 = vmul.f32 %v2338, 0.2
  %v2885 = vmul.f32 %v2341, 0.2
  %v2886 = vmul.f32 %v2346, 0.2
  %v2887 = vmul.f32 %v2349, 0.2
  %v2888 = vmul.f32 %v2354, 0.2
  %v2889 = vmul.f32 %v2357, 0.2
  %v2890 = vmul.f32 %v2362, 0.2
  %v2891 = vmul.f32 %v2365, 0.2
  %v2892 = vmul.f32 %v2370, 0.2
  %v2893 = vmul.f32 %v2373, 0.2
  %v2894 = vmul.f32 %v2378, 0.2
  %v2895 = vmul.f32 %v2381, 0.2
  %v2896 = vsel %vm2384, %v1362, %v2640
  %v2897 = vsel %vm2385, %v1365, %v2641
  %v2898 = vsel %vm2386, %v1370, %v2642
  %v2899 = vsel %vm2387, %v1373, %v2643
  %v2900 = vsel %vm2388, %v1378, %v2644
  %v2901 = vsel %vm2389, %v1381, %v2645
  %v2902 = vsel %vm2390, %v1386, %v2646
  %v2903 = vsel %vm2391, %v1389, %v2647
  %v2904 = vsel %vm2392, %v1394, %v2648
  %v2905 = vsel %vm2393, %v1397, %v2649
  %v2906 = vsel %vm2394, %v1402, %v2650
  %v2907 = vsel %vm2395, %v1405, %v2651
  %v2908 = vsel %vm2396, %v1410, %v2652
  %v2909 = vsel %vm2397, %v1413, %v2653
  %v2910 = vsel %vm2398, %v1418, %v2654
  %v2911 = vsel %vm2399, %v1421, %v2655
  %v2912 = vsel %vm2400, %v1426, %v2656
  %v2913 = vsel %vm2401, %v1429, %v2657
  %v2914 = vsel %vm2402, %v1434, %v2658
  %v2915 = vsel %vm2403, %v1437, %v2659
  %v2916 = vsel %vm2404, %v1442, %v2660
  %v2917 = vsel %vm2405, %v1445, %v2661
  %v2918 = vsel %vm2406, %v1450, %v2662
  %v2919 = vsel %vm2407, %v1453, %v2663
  %v2920 = vsel %vm2408, %v1458, %v2664
  %v2921 = vsel %vm2409, %v1461, %v2665
  %v2922 = vsel %vm2410, %v1466, %v2666
  %v2923 = vsel %vm2411, %v1469, %v2667
  %v2924 = vsel %vm2412, %v1474, %v2668
  %v2925 = vsel %vm2413, %v1477, %v2669
  %v2926 = vsel %vm2414, %v1482, %v2670
  %v2927 = vsel %vm2415, %v1485, %v2671
  %v2928 = vsel %vm2416, %v1490, %v2672
  %v2929 = vsel %vm2417, %v1493, %v2673
  %v2930 = vsel %vm2418, %v1498, %v2674
  %v2931 = vsel %vm2419, %v1501, %v2675
  %v2932 = vsel %vm2420, %v1506, %v2676
  %v2933 = vsel %vm2421, %v1509, %v2677
  %v2934 = vsel %vm2422, %v1514, %v2678
  %v2935 = vsel %vm2423, %v1517, %v2679
  %v2936 = vsel %vm2424, %v1522, %v2680
  %v2937 = vsel %vm2425, %v1525, %v2681
  %v2938 = vsel %vm2426, %v1530, %v2682
  %v2939 = vsel %vm2427, %v1533, %v2683
  %v2940 = vsel %vm2428, %v1538, %v2684
  %v2941 = vsel %vm2429, %v1541, %v2685
  %v2942 = vsel %vm2430, %v1546, %v2686
  %v2943 = vsel %vm2431, %v1549, %v2687
  %v2944 = vsel %vm2432, %v1554, %v2688
  %v2945 = vsel %vm2433, %v1557, %v2689
  %v2946 = vsel %vm2434, %v1562, %v2690
  %v2947 = vsel %vm2435, %v1565, %v2691
  %v2948 = vsel %vm2436, %v1570, %v2692
  %v2949 = vsel %vm2437, %v1573, %v2693
  %v2950 = vsel %vm2438, %v1578, %v2694
  %v2951 = vsel %vm2439, %v1581, %v2695
  %v2952 = vsel %vm2440, %v1586, %v2696
  %v2953 = vsel %vm2441, %v1589, %v2697
  %v2954 = vsel %vm2442, %v1594, %v2698
  %v2955 = vsel %vm2443, %v1597, %v2699
  %v2956 = vsel %vm2444, %v1602, %v2700
  %v2957 = vsel %vm2445, %v1605, %v2701
  %v2958 = vsel %vm2446, %v1610, %v2702
  %v2959 = vsel %vm2447, %v1613, %v2703
  %v2960 = vsel %vm2448, %v1618, %v2704
  %v2961 = vsel %vm2449, %v1621, %v2705
  %v2962 = vsel %vm2450, %v1626, %v2706
  %v2963 = vsel %vm2451, %v1629, %v2707
  %v2964 = vsel %vm2452, %v1634, %v2708
  %v2965 = vsel %vm2453, %v1637, %v2709
  %v2966 = vsel %vm2454, %v1642, %v2710
  %v2967 = vsel %vm2455, %v1645, %v2711
  %v2968 = vsel %vm2456, %v1650, %v2712
  %v2969 = vsel %vm2457, %v1653, %v2713
  %v2970 = vsel %vm2458, %v1658, %v2714
  %v2971 = vsel %vm2459, %v1661, %v2715
  %v2972 = vsel %vm2460, %v1666, %v2716
  %v2973 = vsel %vm2461, %v1669, %v2717
  %v2974 = vsel %vm2462, %v1674, %v2718
  %v2975 = vsel %vm2463, %v1677, %v2719
  %v2976 = vsel %vm2464, %v1682, %v2720
  %v2977 = vsel %vm2465, %v1685, %v2721
  %v2978 = vsel %vm2466, %v1690, %v2722
  %v2979 = vsel %vm2467, %v1693, %v2723
  %v2980 = vsel %vm2468, %v1698, %v2724
  %v2981 = vsel %vm2469, %v1701, %v2725
  %v2982 = vsel %vm2470, %v1706, %v2726
  %v2983 = vsel %vm2471, %v1709, %v2727
  %v2984 = vsel %vm2472, %v1714, %v2728
  %v2985 = vsel %vm2473, %v1717, %v2729
  %v2986 = vsel %vm2474, %v1722, %v2730
  %v2987 = vsel %vm2475, %v1725, %v2731
  %v2988 = vsel %vm2476, %v1730, %v2732
  %v2989 = vsel %vm2477, %v1733, %v2733
  %v2990 = vsel %vm2478, %v1738, %v2734
  %v2991 = vsel %vm2479, %v1741, %v2735
  %v2992 = vsel %vm2480, %v1746, %v2736
  %v2993 = vsel %vm2481, %v1749, %v2737
  %v2994 = vsel %vm2482, %v1754, %v2738
  %v2995 = vsel %vm2483, %v1757, %v2739
  %v2996 = vsel %vm2484, %v1762, %v2740
  %v2997 = vsel %vm2485, %v1765, %v2741
  %v2998 = vsel %vm2486, %v1770, %v2742
  %v2999 = vsel %vm2487, %v1773, %v2743
  %v3000 = vsel %vm2488, %v1778, %v2744
  %v3001 = vsel %vm2489, %v1781, %v2745
  %v3002 = vsel %vm2490, %v1786, %v2746
  %v3003 = vsel %vm2491, %v1789, %v2747
  %v3004 = vsel %vm2492, %v1794, %v2748
  %v3005 = vsel %vm2493, %v1797, %v2749
  %v3006 = vsel %vm2494, %v1802, %v2750
  %v3007 = vsel %vm2495, %v1805, %v2751
  %v3008 = vsel %vm2496, %v1810, %v2752
  %v3009 = vsel %vm2497, %v1813, %v2753
  %v3010 = vsel %vm2498, %v1818, %v2754
  %v3011 = vsel %vm2499, %v1821, %v2755
  %v3012 = vsel %vm2500, %v1826, %v2756
  %v3013 = vsel %vm2501, %v1829, %v2757
  %v3014 = vsel %vm2502, %v1834, %v2758
  %v3015 = vsel %vm2503, %v1837, %v2759
  %v3016 = vsel %vm2504, %v1842, %v2760
  %v3017 = vsel %vm2505, %v1845, %v2761
  %v3018 = vsel %vm2506, %v1850, %v2762
  %v3019 = vsel %vm2507, %v1853, %v2763
  %v3020 = vsel %vm2508, %v1858, %v2764
  %v3021 = vsel %vm2509, %v1861, %v2765
  %v3022 = vsel %vm2510, %v1866, %v2766
  %v3023 = vsel %vm2511, %v1869, %v2767
  %v3024 = vsel %vm2512, %v1874, %v2768
  %v3025 = vsel %vm2513, %v1877, %v2769
  %v3026 = vsel %vm2514, %v1882, %v2770
  %v3027 = vsel %vm2515, %v1885, %v2771
  %v3028 = vsel %vm2516, %v1890, %v2772
  %v3029 = vsel %vm2517, %v1893, %v2773
  %v3030 = vsel %vm2518, %v1898, %v2774
  %v3031 = vsel %vm2519, %v1901, %v2775
  %v3032 = vsel %vm2520, %v1906, %v2776
  %v3033 = vsel %vm2521, %v1909, %v2777
  %v3034 = vsel %vm2522, %v1914, %v2778
  %v3035 = vsel %vm2523, %v1917, %v2779
  %v3036 = vsel %vm2524, %v1922, %v2780
  %v3037 = vsel %vm2525, %v1925, %v2781
  %v3038 = vsel %vm2526, %v1930, %v2782
  %v3039 = vsel %vm2527, %v1933, %v2783
  %v3040 = vsel %vm2528, %v1938, %v2784
  %v3041 = vsel %vm2529, %v1941, %v2785
  %v3042 = vsel %vm2530, %v1946, %v2786
  %v3043 = vsel %vm2531, %v1949, %v2787
  %v3044 = vsel %vm2532, %v1954, %v2788
  %v3045 = vsel %vm2533, %v1957, %v2789
  %v3046 = vsel %vm2534, %v1962, %v2790
  %v3047 = vsel %vm2535, %v1965, %v2791
  %v3048 = vsel %vm2536, %v1970, %v2792
  %v3049 = vsel %vm2537, %v1973, %v2793
  %v3050 = vsel %vm2538, %v1978, %v2794
  %v3051 = vsel %vm2539, %v1981, %v2795
  %v3052 = vsel %vm2540, %v1986, %v2796
  %v3053 = vsel %vm2541, %v1989, %v2797
  %v3054 = vsel %vm2542, %v1994, %v2798
  %v3055 = vsel %vm2543, %v1997, %v2799
  %v3056 = vsel %vm2544, %v2002, %v2800
  %v3057 = vsel %vm2545, %v2005, %v2801
  %v3058 = vsel %vm2546, %v2010, %v2802
  %v3059 = vsel %vm2547, %v2013, %v2803
  %v3060 = vsel %vm2548, %v2018, %v2804
  %v3061 = vsel %vm2549, %v2021, %v2805
  %v3062 = vsel %vm2550, %v2026, %v2806
  %v3063 = vsel %vm2551, %v2029, %v2807
  %v3064 = vsel %vm2552, %v2034, %v2808
  %v3065 = vsel %vm2553, %v2037, %v2809
  %v3066 = vsel %vm2554, %v2042, %v2810
  %v3067 = vsel %vm2555, %v2045, %v2811
  %v3068 = vsel %vm2556, %v2050, %v2812
  %v3069 = vsel %vm2557, %v2053, %v2813
  %v3070 = vsel %vm2558, %v2058, %v2814
  %v3071 = vsel %vm2559, %v2061, %v2815
  %v3072 = vsel %vm2560, %v2066, %v2816
  %v3073 = vsel %vm2561, %v2069, %v2817
  %v3074 = vsel %vm2562, %v2074, %v2818
  %v3075 = vsel %vm2563, %v2077, %v2819
  %v3076 = vsel %vm2564, %v2082, %v2820
  %v3077 = vsel %vm2565, %v2085, %v2821
  %v3078 = vsel %vm2566, %v2090, %v2822
  %v3079 = vsel %vm2567, %v2093, %v2823
  %v3080 = vsel %vm2568, %v2098, %v2824
  %v3081 = vsel %vm2569, %v2101, %v2825
  %v3082 = vsel %vm2570, %v2106, %v2826
  %v3083 = vsel %vm2571, %v2109, %v2827
  %v3084 = vsel %vm2572, %v2114, %v2828
  %v3085 = vsel %vm2573, %v2117, %v2829
  %v3086 = vsel %vm2574, %v2122, %v2830
  %v3087 = vsel %vm2575, %v2125, %v2831
  %v3088 = vsel %vm2576, %v2130, %v2832
  %v3089 = vsel %vm2577, %v2133, %v2833
  %v3090 = vsel %vm2578, %v2138, %v2834
  %v3091 = vsel %vm2579, %v2141, %v2835
  %v3092 = vsel %vm2580, %v2146, %v2836
  %v3093 = vsel %vm2581, %v2149, %v2837
  %v3094 = vsel %vm2582, %v2154, %v2838
  %v3095 = vsel %vm2583, %v2157, %v2839
  %v3096 = vsel %vm2584, %v2162, %v2840
  %v3097 = vsel %vm2585, %v2165, %v2841
  %v3098 = vsel %vm2586, %v2170, %v2842
  %v3099 = vsel %vm2587, %v2173, %v2843
  %v3100 = vsel %vm2588, %v2178, %v2844
  %v3101 = vsel %vm2589, %v2181, %v2845
  %v3102 = vsel %vm2590, %v2186, %v2846
  %v3103 = vsel %vm2591, %v2189, %v2847
  %v3104 = vsel %vm2592, %v2194, %v2848
  %v3105 = vsel %vm2593, %v2197, %v2849
  %v3106 = vsel %vm2594, %v2202, %v2850
  %v3107 = vsel %vm2595, %v2205, %v2851
  %v3108 = vsel %vm2596, %v2210, %v2852
  %v3109 = vsel %vm2597, %v2213, %v2853
  %v3110 = vsel %vm2598, %v2218, %v2854
  %v3111 = vsel %vm2599, %v2221, %v2855
  %v3112 = vsel %vm2600, %v2226, %v2856
  %v3113 = vsel %vm2601, %v2229, %v2857
  %v3114 = vsel %vm2602, %v2234, %v2858
  %v3115 = vsel %vm2603, %v2237, %v2859
  %v3116 = vsel %vm2604, %v2242, %v2860
  %v3117 = vsel %vm2605, %v2245, %v2861
  %v3118 = vsel %vm2606, %v2250, %v2862
  %v3119 = vsel %vm2607, %v2253, %v2863
  %v3120 = vsel %vm2608, %v2258, %v2864
  %v3121 = vsel %vm2609, %v2261, %v2865
  %v3122 = vsel %vm2610, %v2266, %v2866
  %v3123 = vsel %vm2611, %v2269, %v2867
  %v3124 = vsel %vm2612, %v2274, %v2868
  %v3125 = vsel %vm2613, %v2277, %v2869
  %v3126 = vsel %vm2614, %v2282, %v2870
  %v3127 = vsel %vm2615, %v2285, %v2871
  %v3128 = vsel %vm2616, %v2290, %v2872
  %v3129 = vsel %vm2617, %v2293, %v2873
  %v3130 = vsel %vm2618, %v2298, %v2874
  %v3131 = vsel %vm2619, %v2301, %v2875
  %v3132 = vsel %vm2620, %v2306, %v2876
  %v3133 = vsel %vm2621, %v2309, %v2877
  %v3134 = vsel %vm2622, %v2314, %v2878
  %v3135 = vsel %vm2623, %v2317, %v2879
  %v3136 = vsel %vm2624, %v2322, %v2880
  %v3137 = vsel %vm2625, %v2325, %v2881
  %v3138 = vsel %vm2626, %v2330, %v2882
  %v3139 = vsel %vm2627, %v2333, %v2883
  %v3140 = vsel %vm2628, %v2338, %v2884
  %v3141 = vsel %vm2629, %v2341, %v2885
  %v3142 = vsel %vm2630, %v2346, %v2886
  %v3143 = vsel %vm2631, %v2349, %v2887
  %v3144 = vsel %vm2632, %v2354, %v2888
  %v3145 = vsel %vm2633, %v2357, %v2889
  %v3146 = vsel %vm2634, %v2362, %v2890
  %v3147 = vsel %vm2635, %v2365, %v2891
  %v3148 = vsel %vm2636, %v2370, %v2892
  %v3149 = vsel %vm2637, %v2373, %v2893
  %v3150 = vsel %vm2638, %v2378, %v2894
  %v3151 = vsel %vm2639, %v2381, %v2895
  %v3152 = vpack.c.bf16 %v2897, %v2896
  %v3153 = vpack.c.bf16 %v2899, %v2898
  %v3154 = vpack.c.bf16 %v2901, %v2900
  %v3155 = vpack.c.bf16 %v2903, %v2902
  %v3156 = vpack.c.bf16 %v2905, %v2904
  %v3157 = vpack.c.bf16 %v2907, %v2906
  %v3158 = vpack.c.bf16 %v2909, %v2908
  %v3159 = vpack.c.bf16 %v2911, %v2910
  %v3160 = vpack.c.bf16 %v2913, %v2912
  %v3161 = vpack.c.bf16 %v2915, %v2914
  %v3162 = vpack.c.bf16 %v2917, %v2916
  %v3163 = vpack.c.bf16 %v2919, %v2918
  %v3164 = vpack.c.bf16 %v2921, %v2920
  %v3165 = vpack.c.bf16 %v2923, %v2922
  %v3166 = vpack.c.bf16 %v2925, %v2924
  %v3167 = vpack.c.bf16 %v2927, %v2926
  %v3168 = vpack.c.bf16 %v2929, %v2928
  %v3169 = vpack.c.bf16 %v2931, %v2930
  %v3170 = vpack.c.bf16 %v2933, %v2932
  %v3171 = vpack.c.bf16 %v2935, %v2934
  %v3172 = vpack.c.bf16 %v2937, %v2936
  %v3173 = vpack.c.bf16 %v2939, %v2938
  %v3174 = vpack.c.bf16 %v2941, %v2940
  %v3175 = vpack.c.bf16 %v2943, %v2942
  %v3176 = vpack.c.bf16 %v2945, %v2944
  %v3177 = vpack.c.bf16 %v2947, %v2946
  %v3178 = vpack.c.bf16 %v2949, %v2948
  %v3179 = vpack.c.bf16 %v2951, %v2950
  %v3180 = vpack.c.bf16 %v2953, %v2952
  %v3181 = vpack.c.bf16 %v2955, %v2954
  %v3182 = vpack.c.bf16 %v2957, %v2956
  %v3183 = vpack.c.bf16 %v2959, %v2958
  %v3184 = vpack.c.bf16 %v2961, %v2960
  %v3185 = vpack.c.bf16 %v2963, %v2962
  %v3186 = vpack.c.bf16 %v2965, %v2964
  %v3187 = vpack.c.bf16 %v2967, %v2966
  %v3188 = vpack.c.bf16 %v2969, %v2968
  %v3189 = vpack.c.bf16 %v2971, %v2970
  %v3190 = vpack.c.bf16 %v2973, %v2972
  %v3191 = vpack.c.bf16 %v2975, %v2974
  %v3192 = vpack.c.bf16 %v2977, %v2976
  %v3193 = vpack.c.bf16 %v2979, %v2978
  %v3194 = vpack.c.bf16 %v2981, %v2980
  %v3195 = vpack.c.bf16 %v2983, %v2982
  %v3196 = vpack.c.bf16 %v2985, %v2984
  %v3197 = vpack.c.bf16 %v2987, %v2986
  %v3198 = vpack.c.bf16 %v2989, %v2988
  %v3199 = vpack.c.bf16 %v2991, %v2990
  %v3200 = vpack.c.bf16 %v2993, %v2992
  %v3201 = vpack.c.bf16 %v2995, %v2994
  %v3202 = vpack.c.bf16 %v2997, %v2996
  %v3203 = vpack.c.bf16 %v2999, %v2998
  %v3204 = vpack.c.bf16 %v3001, %v3000
  %v3205 = vpack.c.bf16 %v3003, %v3002
  %v3206 = vpack.c.bf16 %v3005, %v3004
  %v3207 = vpack.c.bf16 %v3007, %v3006
  %v3208 = vpack.c.bf16 %v3009, %v3008
  %v3209 = vpack.c.bf16 %v3011, %v3010
  %v3210 = vpack.c.bf16 %v3013, %v3012
  %v3211 = vpack.c.bf16 %v3015, %v3014
  %v3212 = vpack.c.bf16 %v3017, %v3016
  %v3213 = vpack.c.bf16 %v3019, %v3018
  %v3214 = vpack.c.bf16 %v3021, %v3020
  %v3215 = vpack.c.bf16 %v3023, %v3022
  %v3216 = vpack.c.bf16 %v3025, %v3024
  %v3217 = vpack.c.bf16 %v3027, %v3026
  %v3218 = vpack.c.bf16 %v3029, %v3028
  %v3219 = vpack.c.bf16 %v3031, %v3030
  %v3220 = vpack.c.bf16 %v3033, %v3032
  %v3221 = vpack.c.bf16 %v3035, %v3034
  %v3222 = vpack.c.bf16 %v3037, %v3036
  %v3223 = vpack.c.bf16 %v3039, %v3038
  %v3224 = vpack.c.bf16 %v3041, %v3040
  %v3225 = vpack.c.bf16 %v3043, %v3042
  %v3226 = vpack.c.bf16 %v3045, %v3044
  %v3227 = vpack.c.bf16 %v3047, %v3046
  %v3228 = vpack.c.bf16 %v3049, %v3048
  %v3229 = vpack.c.bf16 %v3051, %v3050
  %v3230 = vpack.c.bf16 %v3053, %v3052
  %v3231 = vpack.c.bf16 %v3055, %v3054
  %v3232 = vpack.c.bf16 %v3057, %v3056
  %v3233 = vpack.c.bf16 %v3059, %v3058
  %v3234 = vpack.c.bf16 %v3061, %v3060
  %v3235 = vpack.c.bf16 %v3063, %v3062
  %v3236 = vpack.c.bf16 %v3065, %v3064
  %v3237 = vpack.c.bf16 %v3067, %v3066
  %v3238 = vpack.c.bf16 %v3069, %v3068
  %v3239 = vpack.c.bf16 %v3071, %v3070
  %v3240 = vpack.c.bf16 %v3073, %v3072
  %v3241 = vpack.c.bf16 %v3075, %v3074
  %v3242 = vpack.c.bf16 %v3077, %v3076
  %v3243 = vpack.c.bf16 %v3079, %v3078
  %v3244 = vpack.c.bf16 %v3081, %v3080
  %v3245 = vpack.c.bf16 %v3083, %v3082
  %v3246 = vpack.c.bf16 %v3085, %v3084
  %v3247 = vpack.c.bf16 %v3087, %v3086
  %v3248 = vpack.c.bf16 %v3089, %v3088
  %v3249 = vpack.c.bf16 %v3091, %v3090
  %v3250 = vpack.c.bf16 %v3093, %v3092
  %v3251 = vpack.c.bf16 %v3095, %v3094
  %v3252 = vpack.c.bf16 %v3097, %v3096
  %v3253 = vpack.c.bf16 %v3099, %v3098
  %v3254 = vpack.c.bf16 %v3101, %v3100
  %v3255 = vpack.c.bf16 %v3103, %v3102
  %v3256 = vpack.c.bf16 %v3105, %v3104
  %v3257 = vpack.c.bf16 %v3107, %v3106
  %v3258 = vpack.c.bf16 %v3109, %v3108
  %v3259 = vpack.c.bf16 %v3111, %v3110
  %v3260 = vpack.c.bf16 %v3113, %v3112
  %v3261 = vpack.c.bf16 %v3115, %v3114
  %v3262 = vpack.c.bf16 %v3117, %v3116
  %v3263 = vpack.c.bf16 %v3119, %v3118
  %v3264 = vpack.c.bf16 %v3121, %v3120
  %v3265 = vpack.c.bf16 %v3123, %v3122
  %v3266 = vpack.c.bf16 %v3125, %v3124
  %v3267 = vpack.c.bf16 %v3127, %v3126
  %v3268 = vpack.c.bf16 %v3129, %v3128
  %v3269 = vpack.c.bf16 %v3131, %v3130
  %v3270 = vpack.c.bf16 %v3133, %v3132
  %v3271 = vpack.c.bf16 %v3135, %v3134
  %v3272 = vpack.c.bf16 %v3137, %v3136
  %v3273 = vpack.c.bf16 %v3139, %v3138
  %v3274 = vpack.c.bf16 %v3141, %v3140
  %v3275 = vpack.c.bf16 %v3143, %v3142
  %v3276 = vpack.c.bf16 %v3145, %v3144
  %v3277 = vpack.c.bf16 %v3147, %v3146
  %v3278 = vpack.c.bf16 %v3149, %v3148
  %v3279 = vpack.c.bf16 %v3151, %v3150
  %v3408 = vunpack.c.l.b16 %v3152
  %v3409 = vunpack.c.h.b16 %v3152
  %v3410 = vunpack.c.l.b16 %v3153
  %v3411 = vunpack.c.h.b16 %v3153
  %v3412 = vunpack.c.l.b16 %v3154
  %v3413 = vunpack.c.h.b16 %v3154
  %v3414 = vunpack.c.l.b16 %v3155
  %v3415 = vunpack.c.h.b16 %v3155
  %v3416 = vunpack.c.l.b16 %v3156
  %v3417 = vunpack.c.h.b16 %v3156
  %v3418 = vunpack.c.l.b16 %v3157
  %v3419 = vunpack.c.h.b16 %v3157
  %v3420 = vunpack.c.l.b16 %v3158
  %v3421 = vunpack.c.h.b16 %v3158
  %v3422 = vunpack.c.l.b16 %v3159
  %v3423 = vunpack.c.h.b16 %v3159
  %v3424 = vunpack.c.l.b16 %v3160
  %v3425 = vunpack.c.h.b16 %v3160
  %v3426 = vunpack.c.l.b16 %v3161
  %v3427 = vunpack.c.h.b16 %v3161
  %v3428 = vunpack.c.l.b16 %v3162
  %v3429 = vunpack.c.h.b16 %v3162
  %v3430 = vunpack.c.l.b16 %v3163
  %v3431 = vunpack.c.h.b16 %v3163
  %v3432 = vunpack.c.l.b16 %v3164
  %v3433 = vunpack.c.h.b16 %v3164
  %v3434 = vunpack.c.l.b16 %v3165
  %v3435 = vunpack.c.h.b16 %v3165
  %v3436 = vunpack.c.l.b16 %v3166
  %v3437 = vunpack.c.h.b16 %v3166
  %v3438 = vunpack.c.l.b16 %v3167
  %v3439 = vunpack.c.h.b16 %v3167
  %v3440 = vunpack.c.l.b16 %v3168
  %v3441 = vunpack.c.h.b16 %v3168
  %v3442 = vunpack.c.l.b16 %v3169
  %v3443 = vunpack.c.h.b16 %v3169
  %v3444 = vunpack.c.l.b16 %v3170
  %v3445 = vunpack.c.h.b16 %v3170
  %v3446 = vunpack.c.l.b16 %v3171
  %v3447 = vunpack.c.h.b16 %v3171
  %v3448 = vunpack.c.l.b16 %v3172
  %v3449 = vunpack.c.h.b16 %v3172
  %v3450 = vunpack.c.l.b16 %v3173
  %v3451 = vunpack.c.h.b16 %v3173
  %v3452 = vunpack.c.l.b16 %v3174
  %v3453 = vunpack.c.h.b16 %v3174
  %v3454 = vunpack.c.l.b16 %v3175
  %v3455 = vunpack.c.h.b16 %v3175
  %v3456 = vunpack.c.l.b16 %v3176
  %v3457 = vunpack.c.h.b16 %v3176
  %v3458 = vunpack.c.l.b16 %v3177
  %v3459 = vunpack.c.h.b16 %v3177
  %v3460 = vunpack.c.l.b16 %v3178
  %v3461 = vunpack.c.h.b16 %v3178
  %v3462 = vunpack.c.l.b16 %v3179
  %v3463 = vunpack.c.h.b16 %v3179
  %v3464 = vunpack.c.l.b16 %v3180
  %v3465 = vunpack.c.h.b16 %v3180
  %v3466 = vunpack.c.l.b16 %v3181
  %v3467 = vunpack.c.h.b16 %v3181
  %v3468 = vunpack.c.l.b16 %v3182
  %v3469 = vunpack.c.h.b16 %v3182
  %v3470 = vunpack.c.l.b16 %v3183
  %v3471 = vunpack.c.h.b16 %v3183
  %v3472 = vunpack.c.l.b16 %v3184
  %v3473 = vunpack.c.h.b16 %v3184
  %v3474 = vunpack.c.l.b16 %v3185
  %v3475 = vunpack.c.h.b16 %v3185
  %v3476 = vunpack.c.l.b16 %v3186
  %v3477 = vunpack.c.h.b16 %v3186
  %v3478 = vunpack.c.l.b16 %v3187
  %v3479 = vunpack.c.h.b16 %v3187
  %v3480 = vunpack.c.l.b16 %v3188
  %v3481 = vunpack.c.h.b16 %v3188
  %v3482 = vunpack.c.l.b16 %v3189
  %v3483 = vunpack.c.h.b16 %v3189
  %v3484 = vunpack.c.l.b16 %v3190
  %v3485 = vunpack.c.h.b16 %v3190
  %v3486 = vunpack.c.l.b16 %v3191
  %v3487 = vunpack.c.h.b16 %v3191
  %v3488 = vunpack.c.l.b16 %v3192
  %v3489 = vunpack.c.h.b16 %v3192
  %v3490 = vunpack.c.l.b16 %v3193
  %v3491 = vunpack.c.h.b16 %v3193
  %v3492 = vunpack.c.l.b16 %v3194
  %v3493 = vunpack.c.h.b16 %v3194
  %v3494 = vunpack.c.l.b16 %v3195
  %v3495 = vunpack.c.h.b16 %v3195
  %v3496 = vunpack.c.l.b16 %v3196
  %v3497 = vunpack.c.h.b16 %v3196
  %v3498 = vunpack.c.l.b16 %v3197
  %v3499 = vunpack.c.h.b16 %v3197
  %v3500 = vunpack.c.l.b16 %v3198
  %v3501 = vunpack.c.h.b16 %v3198
  %v3502 = vunpack.c.l.b16 %v3199
  %v3503 = vunpack.c.h.b16 %v3199
  %v3504 = vunpack.c.l.b16 %v3200
  %v3505 = vunpack.c.h.b16 %v3200
  %v3506 = vunpack.c.l.b16 %v3201
  %v3507 = vunpack.c.h.b16 %v3201
  %v3508 = vunpack.c.l.b16 %v3202
  %v3509 = vunpack.c.h.b16 %v3202
  %v3510 = vunpack.c.l.b16 %v3203
  %v3511 = vunpack.c.h.b16 %v3203
  %v3512 = vunpack.c.l.b16 %v3204
  %v3513 = vunpack.c.h.b16 %v3204
  %v3514 = vunpack.c.l.b16 %v3205
  %v3515 = vunpack.c.h.b16 %v3205
  %v3516 = vunpack.c.l.b16 %v3206
  %v3517 = vunpack.c.h.b16 %v3206
  %v3518 = vunpack.c.l.b16 %v3207
  %v3519 = vunpack.c.h.b16 %v3207
  %v3520 = vunpack.c.l.b16 %v3208
  %v3521 = vunpack.c.h.b16 %v3208
  %v3522 = vunpack.c.l.b16 %v3209
  %v3523 = vunpack.c.h.b16 %v3209
  %v3524 = vunpack.c.l.b16 %v3210
  %v3525 = vunpack.c.h.b16 %v3210
  %v3526 = vunpack.c.l.b16 %v3211
  %v3527 = vunpack.c.h.b16 %v3211
  %v3528 = vunpack.c.l.b16 %v3212
  %v3529 = vunpack.c.h.b16 %v3212
  %v3530 = vunpack.c.l.b16 %v3213
  %v3531 = vunpack.c.h.b16 %v3213
  %v3532 = vunpack.c.l.b16 %v3214
  %v3533 = vunpack.c.h.b16 %v3214
  %v3534 = vunpack.c.l.b16 %v3215
  %v3535 = vunpack.c.h.b16 %v3215
  %v3536 = vunpack.c.l.b16 %v3216
  %v3537 = vunpack.c.h.b16 %v3216
  %v3538 = vunpack.c.l.b16 %v3217
  %v3539 = vunpack.c.h.b16 %v3217
  %v3540 = vunpack.c.l.b16 %v3218
  %v3541 = vunpack.c.h.b16 %v3218
  %v3542 = vunpack.c.l.b16 %v3219
  %v3543 = vunpack.c.h.b16 %v3219
  %v3544 = vunpack.c.l.b16 %v3220
  %v3545 = vunpack.c.h.b16 %v3220
  %v3546 = vunpack.c.l.b16 %v3221
  %v3547 = vunpack.c.h.b16 %v3221
  %v3548 = vunpack.c.l.b16 %v3222
  %v3549 = vunpack.c.h.b16 %v3222
  %v3550 = vunpack.c.l.b16 %v3223
  %v3551 = vunpack.c.h.b16 %v3223
  %v3552 = vunpack.c.l.b16 %v3224
  %v3553 = vunpack.c.h.b16 %v3224
  %v3554 = vunpack.c.l.b16 %v3225
  %v3555 = vunpack.c.h.b16 %v3225
  %v3556 = vunpack.c.l.b16 %v3226
  %v3557 = vunpack.c.h.b16 %v3226
  %v3558 = vunpack.c.l.b16 %v3227
  %v3559 = vunpack.c.h.b16 %v3227
  %v3560 = vunpack.c.l.b16 %v3228
  %v3561 = vunpack.c.h.b16 %v3228
  %v3562 = vunpack.c.l.b16 %v3229
  %v3563 = vunpack.c.h.b16 %v3229
  %v3564 = vunpack.c.l.b16 %v3230
  %v3565 = vunpack.c.h.b16 %v3230
  %v3566 = vunpack.c.l.b16 %v3231
  %v3567 = vunpack.c.h.b16 %v3231
  %v3568 = vunpack.c.l.b16 %v3232
  %v3569 = vunpack.c.h.b16 %v3232
  %v3570 = vunpack.c.l.b16 %v3233
  %v3571 = vunpack.c.h.b16 %v3233
  %v3572 = vunpack.c.l.b16 %v3234
  %v3573 = vunpack.c.h.b16 %v3234
  %v3574 = vunpack.c.l.b16 %v3235
  %v3575 = vunpack.c.h.b16 %v3235
  %v3576 = vunpack.c.l.b16 %v3236
  %v3577 = vunpack.c.h.b16 %v3236
  %v3578 = vunpack.c.l.b16 %v3237
  %v3579 = vunpack.c.h.b16 %v3237
  %v3580 = vunpack.c.l.b16 %v3238
  %v3581 = vunpack.c.h.b16 %v3238
  %v3582 = vunpack.c.l.b16 %v3239
  %v3583 = vunpack.c.h.b16 %v3239
  %v3584 = vunpack.c.l.b16 %v3240
  %v3585 = vunpack.c.h.b16 %v3240
  %v3586 = vunpack.c.l.b16 %v3241
  %v3587 = vunpack.c.h.b16 %v3241
  %v3588 = vunpack.c.l.b16 %v3242
  %v3589 = vunpack.c.h.b16 %v3242
  %v3590 = vunpack.c.l.b16 %v3243
  %v3591 = vunpack.c.h.b16 %v3243
  %v3592 = vunpack.c.l.b16 %v3244
  %v3593 = vunpack.c.h.b16 %v3244
  %v3594 = vunpack.c.l.b16 %v3245
  %v3595 = vunpack.c.h.b16 %v3245
  %v3596 = vunpack.c.l.b16 %v3246
  %v3597 = vunpack.c.h.b16 %v3246
  %v3598 = vunpack.c.l.b16 %v3247
  %v3599 = vunpack.c.h.b16 %v3247
  %v3600 = vunpack.c.l.b16 %v3248
  %v3601 = vunpack.c.h.b16 %v3248
  %v3602 = vunpack.c.l.b16 %v3249
  %v3603 = vunpack.c.h.b16 %v3249
  %v3604 = vunpack.c.l.b16 %v3250
  %v3605 = vunpack.c.h.b16 %v3250
  %v3606 = vunpack.c.l.b16 %v3251
  %v3607 = vunpack.c.h.b16 %v3251
  %v3608 = vunpack.c.l.b16 %v3252
  %v3609 = vunpack.c.h.b16 %v3252
  %v3610 = vunpack.c.l.b16 %v3253
  %v3611 = vunpack.c.h.b16 %v3253
  %v3612 = vunpack.c.l.b16 %v3254
  %v3613 = vunpack.c.h.b16 %v3254
  %v3614 = vunpack.c.l.b16 %v3255
  %v3615 = vunpack.c.h.b16 %v3255
  %v3616 = vunpack.c.l.b16 %v3256
  %v3617 = vunpack.c.h.b16 %v3256
  %v3618 = vunpack.c.l.b16 %v3257
  %v3619 = vunpack.c.h.b16 %v3257
  %v3620 = vunpack.c.l.b16 %v3258
  %v3621 = vunpack.c.h.b16 %v3258
  %v3622 = vunpack.c.l.b16 %v3259
  %v3623 = vunpack.c.h.b16 %v3259
  %v3624 = vunpack.c.l.b16 %v3260
  %v3625 = vunpack.c.h.b16 %v3260
  %v3626 = vunpack.c.l.b16 %v3261
  %v3627 = vunpack.c.h.b16 %v3261
  %v3628 = vunpack.c.l.b16 %v3262
  %v3629 = vunpack.c.h.b16 %v3262
  %v3630 = vunpack.c.l.b16 %v3263
  %v3631 = vunpack.c.h.b16 %v3263
  %v3632 = vunpack.c.l.b16 %v3264
  %v3633 = vunpack.c.h.b16 %v3264
  %v3634 = vunpack.c.l.b16 %v3265
  %v3635 = vunpack.c.h.b16 %v3265
  %v3636 = vunpack.c.l.b16 %v3266
  %v3637 = vunpack.c.h.b16 %v3266
  %v3638 = vunpack.c.l.b16 %v3267
  %v3639 = vunpack.c.h.b16 %v3267
  %v3640 = vunpack.c.l.b16 %v3268
  %v3641 = vunpack.c.h.b16 %v3268
  %v3642 = vunpack.c.l.b16 %v3269
  %v3643 = vunpack.c.h.b16 %v3269
  %v3644 = vunpack.c.l.b16 %v3270
  %v3645 = vunpack.c.h.b16 %v3270
  %v3646 = vunpack.c.l.b16 %v3271
  %v3647 = vunpack.c.h.b16 %v3271
  %v3648 = vunpack.c.l.b16 %v3272
  %v3649 = vunpack.c.h.b16 %v3272
  %v3650 = vunpack.c.l.b16 %v3273
  %v3651 = vunpack.c.h.b16 %v3273
  %v3652 = vunpack.c.l.b16 %v3274
  %v3653 = vunpack.c.h.b16 %v3274
  %v3654 = vunpack.c.l.b16 %v3275
  %v3655 = vunpack.c.h.b16 %v3275
  %v3656 = vunpack.c.l.b16 %v3276
  %v3657 = vunpack.c.h.b16 %v3276
  %v3658 = vunpack.c.l.b16 %v3277
  %v3659 = vunpack.c.h.b16 %v3277
  %v3660 = vunpack.c.l.b16 %v3278
  %v3661 = vunpack.c.h.b16 %v3278
  %v3662 = vunpack.c.l.b16 %v3279
  %v3663 = vunpack.c.h.b16 %v3279
  %v3664 = vpack.c.b16 %v3408, %v3408
  %v3665 = vpack.c.b16 %v3409, %v3409
  %v3666 = vpack.c.b16 %v3410, %v3410
  %v3667 = vpack.c.b16 %v3411, %v3411
  %v3668 = vpack.c.b16 %v3412, %v3412
  %v3669 = vpack.c.b16 %v3413, %v3413
  %v3670 = vpack.c.b16 %v3414, %v3414
  %v3671 = vpack.c.b16 %v3415, %v3415
  %v3672 = vpack.c.b16 %v3416, %v3416
  %v3673 = vpack.c.b16 %v3417, %v3417
  %v3674 = vpack.c.b16 %v3418, %v3418
  %v3675 = vpack.c.b16 %v3419, %v3419
  %v3676 = vpack.c.b16 %v3420, %v3420
  %v3677 = vpack.c.b16 %v3421, %v3421
  %v3678 = vpack.c.b16 %v3422, %v3422
  %v3679 = vpack.c.b16 %v3423, %v3423
  %v3680 = vpack.c.b16 %v3424, %v3424
  %v3681 = vpack.c.b16 %v3425, %v3425
  %v3682 = vpack.c.b16 %v3426, %v3426
  %v3683 = vpack.c.b16 %v3427, %v3427
  %v3684 = vpack.c.b16 %v3428, %v3428
  %v3685 = vpack.c.b16 %v3429, %v3429
  %v3686 = vpack.c.b16 %v3430, %v3430
  %v3687 = vpack.c.b16 %v3431, %v3431
  %v3688 = vpack.c.b16 %v3432, %v3432
  %v3689 = vpack.c.b16 %v3433, %v3433
  %v3690 = vpack.c.b16 %v3434, %v3434
  %v3691 = vpack.c.b16 %v3435, %v3435
  %v3692 = vpack.c.b16 %v3436, %v3436
  %v3693 = vpack.c.b16 %v3437, %v3437
  %v3694 = vpack.c.b16 %v3438, %v3438
  %v3695 = vpack.c.b16 %v3439, %v3439
  %v3696 = vpack.c.b16 %v3440, %v3440
  %v3697 = vpack.c.b16 %v3441, %v3441
  %v3698 = vpack.c.b16 %v3442, %v3442
  %v3699 = vpack.c.b16 %v3443, %v3443
  %v3700 = vpack.c.b16 %v3444, %v3444
  %v3701 = vpack.c.b16 %v3445, %v3445
  %v3702 = vpack.c.b16 %v3446, %v3446
  %v3703 = vpack.c.b16 %v3447, %v3447
  %v3704 = vpack.c.b16 %v3448, %v3448
  %v3705 = vpack.c.b16 %v3449, %v3449
  %v3706 = vpack.c.b16 %v3450, %v3450
  %v3707 = vpack.c.b16 %v3451, %v3451
  %v3708 = vpack.c.b16 %v3452, %v3452
  %v3709 = vpack.c.b16 %v3453, %v3453
  %v3710 = vpack.c.b16 %v3454, %v3454
  %v3711 = vpack.c.b16 %v3455, %v3455
  %v3712 = vpack.c.b16 %v3456, %v3456
  %v3713 = vpack.c.b16 %v3457, %v3457
  %v3714 = vpack.c.b16 %v3458, %v3458
  %v3715 = vpack.c.b16 %v3459, %v3459
  %v3716 = vpack.c.b16 %v3460, %v3460
  %v3717 = vpack.c.b16 %v3461, %v3461
  %v3718 = vpack.c.b16 %v3462, %v3462
  %v3719 = vpack.c.b16 %v3463, %v3463
  %v3720 = vpack.c.b16 %v3464, %v3464
  %v3721 = vpack.c.b16 %v3465, %v3465
  %v3722 = vpack.c.b16 %v3466, %v3466
  %v3723 = vpack.c.b16 %v3467, %v3467
  %v3724 = vpack.c.b16 %v3468, %v3468
  %v3725 = vpack.c.b16 %v3469, %v3469
  %v3726 = vpack.c.b16 %v3470, %v3470
  %v3727 = vpack.c.b16 %v3471, %v3471
  %v3728 = vpack.c.b16 %v3472, %v3472
  %v3729 = vpack.c.b16 %v3473, %v3473
  %v3730 = vpack.c.b16 %v3474, %v3474
  %v3731 = vpack.c.b16 %v3475, %v3475
  %v3732 = vpack.c.b16 %v3476, %v3476
  %v3733 = vpack.c.b16 %v3477, %v3477
  %v3734 = vpack.c.b16 %v3478, %v3478
  %v3735 = vpack.c.b16 %v3479, %v3479
  %v3736 = vpack.c.b16 %v3480, %v3480
  %v3737 = vpack.c.b16 %v3481, %v3481
  %v3738 = vpack.c.b16 %v3482, %v3482
  %v3739 = vpack.c.b16 %v3483, %v3483
  %v3740 = vpack.c.b16 %v3484, %v3484
  %v3741 = vpack.c.b16 %v3485, %v3485
  %v3742 = vpack.c.b16 %v3486, %v3486
  %v3743 = vpack.c.b16 %v3487, %v3487
  %v3744 = vpack.c.b16 %v3488, %v3488
  %v3745 = vpack.c.b16 %v3489, %v3489
  %v3746 = vpack.c.b16 %v3490, %v3490
  %v3747 = vpack.c.b16 %v3491, %v3491
  %v3748 = vpack.c.b16 %v3492, %v3492
  %v3749 = vpack.c.b16 %v3493, %v3493
  %v3750 = vpack.c.b16 %v3494, %v3494
  %v3751 = vpack.c.b16 %v3495, %v3495
  %v3752 = vpack.c.b16 %v3496, %v3496
  %v3753 = vpack.c.b16 %v3497, %v3497
  %v3754 = vpack.c.b16 %v3498, %v3498
  %v3755 = vpack.c.b16 %v3499, %v3499
  %v3756 = vpack.c.b16 %v3500, %v3500
  %v3757 = vpack.c.b16 %v3501, %v3501
  %v3758 = vpack.c.b16 %v3502, %v3502
  %v3759 = vpack.c.b16 %v3503, %v3503
  %v3760 = vpack.c.b16 %v3504, %v3504
  %v3761 = vpack.c.b16 %v3505, %v3505
  %v3762 = vpack.c.b16 %v3506, %v3506
  %v3763 = vpack.c.b16 %v3507, %v3507
  %v3764 = vpack.c.b16 %v3508, %v3508
  %v3765 = vpack.c.b16 %v3509, %v3509
  %v3766 = vpack.c.b16 %v3510, %v3510
  %v3767 = vpack.c.b16 %v3511, %v3511
  %v3768 = vpack.c.b16 %v3512, %v3512
  %v3769 = vpack.c.b16 %v3513, %v3513
  %v3770 = vpack.c.b16 %v3514, %v3514
  %v3771 = vpack.c.b16 %v3515, %v3515
  %v3772 = vpack.c.b16 %v3516, %v3516
  %v3773 = vpack.c.b16 %v3517, %v3517
  %v3774 = vpack.c.b16 %v3518, %v3518
  %v3775 = vpack.c.b16 %v3519, %v3519
  %v3776 = vpack.c.b16 %v3520, %v3520
  %v3777 = vpack.c.b16 %v3521, %v3521
  %v3778 = vpack.c.b16 %v3522, %v3522
  %v3779 = vpack.c.b16 %v3523, %v3523
  %v3780 = vpack.c.b16 %v3524, %v3524
  %v3781 = vpack.c.b16 %v3525, %v3525
  %v3782 = vpack.c.b16 %v3526, %v3526
  %v3783 = vpack.c.b16 %v3527, %v3527
  %v3784 = vpack.c.b16 %v3528, %v3528
  %v3785 = vpack.c.b16 %v3529, %v3529
  %v3786 = vpack.c.b16 %v3530, %v3530
  %v3787 = vpack.c.b16 %v3531, %v3531
  %v3788 = vpack.c.b16 %v3532, %v3532
  %v3789 = vpack.c.b16 %v3533, %v3533
  %v3790 = vpack.c.b16 %v3534, %v3534
  %v3791 = vpack.c.b16 %v3535, %v3535
  %v3792 = vpack.c.b16 %v3536, %v3536
  %v3793 = vpack.c.b16 %v3537, %v3537
  %v3794 = vpack.c.b16 %v3538, %v3538
  %v3795 = vpack.c.b16 %v3539, %v3539
  %v3796 = vpack.c.b16 %v3540, %v3540
  %v3797 = vpack.c.b16 %v3541, %v3541
  %v3798 = vpack.c.b16 %v3542, %v3542
  %v3799 = vpack.c.b16 %v3543, %v3543
  %v3800 = vpack.c.b16 %v3544, %v3544
  %v3801 = vpack.c.b16 %v3545, %v3545
  %v3802 = vpack.c.b16 %v3546, %v3546
  %v3803 = vpack.c.b16 %v3547, %v3547
  %v3804 = vpack.c.b16 %v3548, %v3548
  %v3805 = vpack.c.b16 %v3549, %v3549
  %v3806 = vpack.c.b16 %v3550, %v3550
  %v3807 = vpack.c.b16 %v3551, %v3551
  %v3808 = vpack.c.b16 %v3552, %v3552
  %v3809 = vpack.c.b16 %v3553, %v3553
  %v3810 = vpack.c.b16 %v3554, %v3554
  %v3811 = vpack.c.b16 %v3555, %v3555
  %v3812 = vpack.c.b16 %v3556, %v3556
  %v3813 = vpack.c.b16 %v3557, %v3557
  %v3814 = vpack.c.b16 %v3558, %v3558
  %v3815 = vpack.c.b16 %v3559, %v3559
  %v3816 = vpack.c.b16 %v3560, %v3560
  %v3817 = vpack.c.b16 %v3561, %v3561
  %v3818 = vpack.c.b16 %v3562, %v3562
  %v3819 = vpack.c.b16 %v3563, %v3563
  %v3820 = vpack.c.b16 %v3564, %v3564
  %v3821 = vpack.c.b16 %v3565, %v3565
  %v3822 = vpack.c.b16 %v3566, %v3566
  %v3823 = vpack.c.b16 %v3567, %v3567
  %v3824 = vpack.c.b16 %v3568, %v3568
  %v3825 = vpack.c.b16 %v3569, %v3569
  %v3826 = vpack.c.b16 %v3570, %v3570
  %v3827 = vpack.c.b16 %v3571, %v3571
  %v3828 = vpack.c.b16 %v3572, %v3572
  %v3829 = vpack.c.b16 %v3573, %v3573
  %v3830 = vpack.c.b16 %v3574, %v3574
  %v3831 = vpack.c.b16 %v3575, %v3575
  %v3832 = vpack.c.b16 %v3576, %v3576
  %v3833 = vpack.c.b16 %v3577, %v3577
  %v3834 = vpack.c.b16 %v3578, %v3578
  %v3835 = vpack.c.b16 %v3579, %v3579
  %v3836 = vpack.c.b16 %v3580, %v3580
  %v3837 = vpack.c.b16 %v3581, %v3581
  %v3838 = vpack.c.b16 %v3582, %v3582
  %v3839 = vpack.c.b16 %v3583, %v3583
  %v3840 = vpack.c.b16 %v3584, %v3584
  %v3841 = vpack.c.b16 %v3585, %v3585
  %v3842 = vpack.c.b16 %v3586, %v3586
  %v3843 = vpack.c.b16 %v3587, %v3587
  %v3844 = vpack.c.b16 %v3588, %v3588
  %v3845 = vpack.c.b16 %v3589, %v3589
  %v3846 = vpack.c.b16 %v3590, %v3590
  %v3847 = vpack.c.b16 %v3591, %v3591
  %v3848 = vpack.c.b16 %v3592, %v3592
  %v3849 = vpack.c.b16 %v3593, %v3593
  %v3850 = vpack.c.b16 %v3594, %v3594
  %v3851 = vpack.c.b16 %v3595, %v3595
  %v3852 = vpack.c.b16 %v3596, %v3596
  %v3853 = vpack.c.b16 %v3597, %v3597
  %v3854 = vpack.c.b16 %v3598, %v3598
  %v3855 = vpack.c.b16 %v3599, %v3599
  %v3856 = vpack.c.b16 %v3600, %v3600
  %v3857 = vpack.c.b16 %v3601, %v3601
  %v3858 = vpack.c.b16 %v3602, %v3602
  %v3859 = vpack.c.b16 %v3603, %v3603
  %v3860 = vpack.c.b16 %v3604, %v3604
  %v3861 = vpack.c.b16 %v3605, %v3605
  %v3862 = vpack.c.b16 %v3606, %v3606
  %v3863 = vpack.c.b16 %v3607, %v3607
  %v3864 = vpack.c.b16 %v3608, %v3608
  %v3865 = vpack.c.b16 %v3609, %v3609
  %v3866 = vpack.c.b16 %v3610, %v3610
  %v3867 = vpack.c.b16 %v3611, %v3611
  %v3868 = vpack.c.b16 %v3612, %v3612
  %v3869 = vpack.c.b16 %v3613, %v3613
  %v3870 = vpack.c.b16 %v3614, %v3614
  %v3871 = vpack.c.b16 %v3615, %v3615
  %v3872 = vpack.c.b16 %v3616, %v3616
  %v3873 = vpack.c.b16 %v3617, %v3617
  %v3874 = vpack.c.b16 %v3618, %v3618
  %v3875 = vpack.c.b16 %v3619, %v3619
  %v3876 = vpack.c.b16 %v3620, %v3620
  %v3877 = vpack.c.b16 %v3621, %v3621
  %v3878 = vpack.c.b16 %v3622, %v3622
  %v3879 = vpack.c.b16 %v3623, %v3623
  %v3880 = vpack.c.b16 %v3624, %v3624
  %v3881 = vpack.c.b16 %v3625, %v3625
  %v3882 = vpack.c.b16 %v3626, %v3626
  %v3883 = vpack.c.b16 %v3627, %v3627
  %v3884 = vpack.c.b16 %v3628, %v3628
  %v3885 = vpack.c.b16 %v3629, %v3629
  %v3886 = vpack.c.b16 %v3630, %v3630
  %v3887 = vpack.c.b16 %v3631, %v3631
  %v3888 = vpack.c.b16 %v3632, %v3632
  %v3889 = vpack.c.b16 %v3633, %v3633
  %v3890 = vpack.c.b16 %v3634, %v3634
  %v3891 = vpack.c.b16 %v3635, %v3635
  %v3892 = vpack.c.b16 %v3636, %v3636
  %v3893 = vpack.c.b16 %v3637, %v3637
  %v3894 = vpack.c.b16 %v3638, %v3638
  %v3895 = vpack.c.b16 %v3639, %v3639
  %v3896 = vpack.c.b16 %v3640, %v3640
  %v3897 = vpack.c.b16 %v3641, %v3641
  %v3898 = vpack.c.b16 %v3642, %v3642
  %v3899 = vpack.c.b16 %v3643, %v3643
  %v3900 = vpack.c.b16 %v3644, %v3644
  %v3901 = vpack.c.b16 %v3645, %v3645
  %v3902 = vpack.c.b16 %v3646, %v3646
  %v3903 = vpack.c.b16 %v3647, %v3647
  %v3904 = vpack.c.b16 %v3648, %v3648
  %v3905 = vpack.c.b16 %v3649, %v3649
  %v3906 = vpack.c.b16 %v3650, %v3650
  %v3907 = vpack.c.b16 %v3651, %v3651
  %v3908 = vpack.c.b16 %v3652, %v3652
  %v3909 = vpack.c.b16 %v3653, %v3653
  %v3910 = vpack.c.b16 %v3654, %v3654
  %v3911 = vpack.c.b16 %v3655, %v3655
  %v3912 = vpack.c.b16 %v3656, %v3656
  %v3913 = vpack.c.b16 %v3657, %v3657
  %v3914 = vpack.c.b16 %v3658, %v3658
  %v3915 = vpack.c.b16 %v3659, %v3659
  %v3916 = vpack.c.b16 %v3660, %v3660
  %v3917 = vpack.c.b16 %v3661, %v3661
  %v3918 = vpack.c.b16 %v3662, %v3662
  %v3919 = vpack.c.b16 %v3663, %v3663
  %4176 = vst [vmem:[%s3] sm:$0xf] %v3664
  %4177 = vst [vmem:[%s3 + $0x4] sm:$0xf] %v3665
  %4178 = vst [vmem:[%s3 + $0x8] sm:$0xf] %v3666
  %4179 = vst [vmem:[%s3 + $0xc] sm:$0xf] %v3667
  %4180 = vst [vmem:[%s3 + $0x10] sm:$0xf] %v3668
  %4181 = vst [vmem:[%s3 + $0x14] sm:$0xf] %v3669
  %4182 = vst [vmem:[%s3 + $0x18] sm:$0xf] %v3670
  %4183 = vst [vmem:[%s3 + $0x1c] sm:$0xf] %v3671
  %4184 = vst [vmem:[%s3 + $0x20] sm:$0xf] %v3672
  %4185 = vst [vmem:[%s3 + $0x24] sm:$0xf] %v3673
  %4186 = vst [vmem:[%s3 + $0x28] sm:$0xf] %v3674
  %4187 = vst [vmem:[%s3 + $0x2c] sm:$0xf] %v3675
  %4188 = vst [vmem:[%s3 + $0x30] sm:$0xf] %v3676
  %4189 = vst [vmem:[%s3 + $0x34] sm:$0xf] %v3677
  %4190 = vst [vmem:[%s3 + $0x38] sm:$0xf] %v3678
  %4191 = vst [vmem:[%s3 + $0x3c] sm:$0xf] %v3679
  %4192 = vst [vmem:[%s3 + $0x40] sm:$0xf] %v3680
  %4193 = vst [vmem:[%s3 + $0x44] sm:$0xf] %v3681
  %4194 = vst [vmem:[%s3 + $0x48] sm:$0xf] %v3682
  %4195 = vst [vmem:[%s3 + $0x4c] sm:$0xf] %v3683
  %4196 = vst [vmem:[%s3 + $0x50] sm:$0xf] %v3684
  %4197 = vst [vmem:[%s3 + $0x54] sm:$0xf] %v3685
  %4198 = vst [vmem:[%s3 + $0x58] sm:$0xf] %v3686
  %4199 = vst [vmem:[%s3 + $0x5c] sm:$0xf] %v3687
  %4200 = vst [vmem:[%s3 + $0x60] sm:$0xf] %v3688
  %4201 = vst [vmem:[%s3 + $0x64] sm:$0xf] %v3689
  %4202 = vst [vmem:[%s3 + $0x68] sm:$0xf] %v3690
  %4203 = vst [vmem:[%s3 + $0x6c] sm:$0xf] %v3691
  %4204 = vst [vmem:[%s3 + $0x70] sm:$0xf] %v3692
  %4205 = vst [vmem:[%s3 + $0x74] sm:$0xf] %v3693
  %4206 = vst [vmem:[%s3 + $0x78] sm:$0xf] %v3694
  %4207 = vst [vmem:[%s3 + $0x7c] sm:$0xf] %v3695
  %4208 = vst [vmem:[%s3 + $0x80] sm:$0xf] %v3696
  %4209 = vst [vmem:[%s3 + $0x84] sm:$0xf] %v3697
  %4210 = vst [vmem:[%s3 + $0x88] sm:$0xf] %v3698
  %4211 = vst [vmem:[%s3 + $0x8c] sm:$0xf] %v3699
  %4212 = vst [vmem:[%s3 + $0x90] sm:$0xf] %v3700
  %4213 = vst [vmem:[%s3 + $0x94] sm:$0xf] %v3701
  %4214 = vst [vmem:[%s3 + $0x98] sm:$0xf] %v3702
  %4215 = vst [vmem:[%s3 + $0x9c] sm:$0xf] %v3703
  %4216 = vst [vmem:[%s3 + $0xa0] sm:$0xf] %v3704
  %4217 = vst [vmem:[%s3 + $0xa4] sm:$0xf] %v3705
  %4218 = vst [vmem:[%s3 + $0xa8] sm:$0xf] %v3706
  %4219 = vst [vmem:[%s3 + $0xac] sm:$0xf] %v3707
  %4220 = vst [vmem:[%s3 + $0xb0] sm:$0xf] %v3708
  %4221 = vst [vmem:[%s3 + $0xb4] sm:$0xf] %v3709
  %4222 = vst [vmem:[%s3 + $0xb8] sm:$0xf] %v3710
  %4223 = vst [vmem:[%s3 + $0xbc] sm:$0xf] %v3711
  %4224 = vst [vmem:[%s3 + $0xc0] sm:$0xf] %v3712
  %4225 = vst [vmem:[%s3 + $0xc4] sm:$0xf] %v3713
  %4226 = vst [vmem:[%s3 + $0xc8] sm:$0xf] %v3714
  %4227 = vst [vmem:[%s3 + $0xcc] sm:$0xf] %v3715
  %4228 = vst [vmem:[%s3 + $0xd0] sm:$0xf] %v3716
  %4229 = vst [vmem:[%s3 + $0xd4] sm:$0xf] %v3717
  %4230 = vst [vmem:[%s3 + $0xd8] sm:$0xf] %v3718
  %4231 = vst [vmem:[%s3 + $0xdc] sm:$0xf] %v3719
  %4232 = vst [vmem:[%s3 + $0xe0] sm:$0xf] %v3720
  %4233 = vst [vmem:[%s3 + $0xe4] sm:$0xf] %v3721
  %4234 = vst [vmem:[%s3 + $0xe8] sm:$0xf] %v3722
  %4235 = vst [vmem:[%s3 + $0xec] sm:$0xf] %v3723
  %4236 = vst [vmem:[%s3 + $0xf0] sm:$0xf] %v3724
  %4237 = vst [vmem:[%s3 + $0xf4] sm:$0xf] %v3725
  %4238 = vst [vmem:[%s3 + $0xf8] sm:$0xf] %v3726
  %4239 = vst [vmem:[%s3 + $0xfc] sm:$0xf] %v3727
  %4240 = vst [vmem:[%s3 + $0x100] sm:$0xf] %v3728
  %4241 = vst [vmem:[%s3 + $0x104] sm:$0xf] %v3729
  %4242 = vst [vmem:[%s3 + $0x108] sm:$0xf] %v3730
  %4243 = vst [vmem:[%s3 + $0x10c] sm:$0xf] %v3731
  %4244 = vst [vmem:[%s3 + $0x110] sm:$0xf] %v3732
  %4245 = vst [vmem:[%s3 + $0x114] sm:$0xf] %v3733
  %4246 = vst [vmem:[%s3 + $0x118] sm:$0xf] %v3734
  %4247 = vst [vmem:[%s3 + $0x11c] sm:$0xf] %v3735
  %4248 = vst [vmem:[%s3 + $0x120] sm:$0xf] %v3736
  %4249 = vst [vmem:[%s3 + $0x124] sm:$0xf] %v3737
  %4250 = vst [vmem:[%s3 + $0x128] sm:$0xf] %v3738
  %4251 = vst [vmem:[%s3 + $0x12c] sm:$0xf] %v3739
  %4252 = vst [vmem:[%s3 + $0x130] sm:$0xf] %v3740
  %4253 = vst [vmem:[%s3 + $0x134] sm:$0xf] %v3741
  %4254 = vst [vmem:[%s3 + $0x138] sm:$0xf] %v3742
  %4255 = vst [vmem:[%s3 + $0x13c] sm:$0xf] %v3743
  %4256 = vst [vmem:[%s3 + $0x140] sm:$0xf] %v3744
  %4257 = vst [vmem:[%s3 + $0x144] sm:$0xf] %v3745
  %4258 = vst [vmem:[%s3 + $0x148] sm:$0xf] %v3746
  %4259 = vst [vmem:[%s3 + $0x14c] sm:$0xf] %v3747
  %4260 = vst [vmem:[%s3 + $0x150] sm:$0xf] %v3748
  %4261 = vst [vmem:[%s3 + $0x154] sm:$0xf] %v3749
  %4262 = vst [vmem:[%s3 + $0x158] sm:$0xf] %v3750
  %4263 = vst [vmem:[%s3 + $0x15c] sm:$0xf] %v3751
  %4264 = vst [vmem:[%s3 + $0x160] sm:$0xf] %v3752
  %4265 = vst [vmem:[%s3 + $0x164] sm:$0xf] %v3753
  %4266 = vst [vmem:[%s3 + $0x168] sm:$0xf] %v3754
  %4267 = vst [vmem:[%s3 + $0x16c] sm:$0xf] %v3755
  %4268 = vst [vmem:[%s3 + $0x170] sm:$0xf] %v3756
  %4269 = vst [vmem:[%s3 + $0x174] sm:$0xf] %v3757
  %4270 = vst [vmem:[%s3 + $0x178] sm:$0xf] %v3758
  %4271 = vst [vmem:[%s3 + $0x17c] sm:$0xf] %v3759
  %4272 = vst [vmem:[%s3 + $0x180] sm:$0xf] %v3760
  %4273 = vst [vmem:[%s3 + $0x184] sm:$0xf] %v3761
  %4274 = vst [vmem:[%s3 + $0x188] sm:$0xf] %v3762
  %4275 = vst [vmem:[%s3 + $0x18c] sm:$0xf] %v3763
  %4276 = vst [vmem:[%s3 + $0x190] sm:$0xf] %v3764
  %4277 = vst [vmem:[%s3 + $0x194] sm:$0xf] %v3765
  %4278 = vst [vmem:[%s3 + $0x198] sm:$0xf] %v3766
  %4279 = vst [vmem:[%s3 + $0x19c] sm:$0xf] %v3767
  %4280 = vst [vmem:[%s3 + $0x1a0] sm:$0xf] %v3768
  %4281 = vst [vmem:[%s3 + $0x1a4] sm:$0xf] %v3769
  %4282 = vst [vmem:[%s3 + $0x1a8] sm:$0xf] %v3770
  %4283 = vst [vmem:[%s3 + $0x1ac] sm:$0xf] %v3771
  %4284 = vst [vmem:[%s3 + $0x1b0] sm:$0xf] %v3772
  %4285 = vst [vmem:[%s3 + $0x1b4] sm:$0xf] %v3773
  %4286 = vst [vmem:[%s3 + $0x1b8] sm:$0xf] %v3774
  %4287 = vst [vmem:[%s3 + $0x1bc] sm:$0xf] %v3775
  %4288 = vst [vmem:[%s3 + $0x1c0] sm:$0xf] %v3776
  %4289 = vst [vmem:[%s3 + $0x1c4] sm:$0xf] %v3777
  %4290 = vst [vmem:[%s3 + $0x1c8] sm:$0xf] %v3778
  %4291 = vst [vmem:[%s3 + $0x1cc] sm:$0xf] %v3779
  %4292 = vst [vmem:[%s3 + $0x1d0] sm:$0xf] %v3780
  %4293 = vst [vmem:[%s3 + $0x1d4] sm:$0xf] %v3781
  %4294 = vst [vmem:[%s3 + $0x1d8] sm:$0xf] %v3782
  %4295 = vst [vmem:[%s3 + $0x1dc] sm:$0xf] %v3783
  %4296 = vst [vmem:[%s3 + $0x1e0] sm:$0xf] %v3784
  %4297 = vst [vmem:[%s3 + $0x1e4] sm:$0xf] %v3785
  %4298 = vst [vmem:[%s3 + $0x1e8] sm:$0xf] %v3786
  %4299 = vst [vmem:[%s3 + $0x1ec] sm:$0xf] %v3787
  %4300 = vst [vmem:[%s3 + $0x1f0] sm:$0xf] %v3788
  %4301 = vst [vmem:[%s3 + $0x1f4] sm:$0xf] %v3789
  %4302 = vst [vmem:[%s3 + $0x1f8] sm:$0xf] %v3790
  %4303 = vst [vmem:[%s3 + $0x1fc] sm:$0xf] %v3791
  %4304 = vst [vmem:[%s3 + $0x200] sm:$0xf] %v3792
  %4305 = vst [vmem:[%s3 + $0x204] sm:$0xf] %v3793
  %4306 = vst [vmem:[%s3 + $0x208] sm:$0xf] %v3794
  %4307 = vst [vmem:[%s3 + $0x20c] sm:$0xf] %v3795
  %4308 = vst [vmem:[%s3 + $0x210] sm:$0xf] %v3796
  %4309 = vst [vmem:[%s3 + $0x214] sm:$0xf] %v3797
  %4310 = vst [vmem:[%s3 + $0x218] sm:$0xf] %v3798
  %4311 = vst [vmem:[%s3 + $0x21c] sm:$0xf] %v3799
  %4312 = vst [vmem:[%s3 + $0x220] sm:$0xf] %v3800
  %4313 = vst [vmem:[%s3 + $0x224] sm:$0xf] %v3801
  %4314 = vst [vmem:[%s3 + $0x228] sm:$0xf] %v3802
  %4315 = vst [vmem:[%s3 + $0x22c] sm:$0xf] %v3803
  %4316 = vst [vmem:[%s3 + $0x230] sm:$0xf] %v3804
  %4317 = vst [vmem:[%s3 + $0x234] sm:$0xf] %v3805
  %4318 = vst [vmem:[%s3 + $0x238] sm:$0xf] %v3806
  %4319 = vst [vmem:[%s3 + $0x23c] sm:$0xf] %v3807
  %4320 = vst [vmem:[%s3 + $0x240] sm:$0xf] %v3808
  %4321 = vst [vmem:[%s3 + $0x244] sm:$0xf] %v3809
  %4322 = vst [vmem:[%s3 + $0x248] sm:$0xf] %v3810
  %4323 = vst [vmem:[%s3 + $0x24c] sm:$0xf] %v3811
  %4324 = vst [vmem:[%s3 + $0x250] sm:$0xf] %v3812
  %4325 = vst [vmem:[%s3 + $0x254] sm:$0xf] %v3813
  %4326 = vst [vmem:[%s3 + $0x258] sm:$0xf] %v3814
  %4327 = vst [vmem:[%s3 + $0x25c] sm:$0xf] %v3815
  %4328 = vst [vmem:[%s3 + $0x260] sm:$0xf] %v3816
  %4329 = vst [vmem:[%s3 + $0x264] sm:$0xf] %v3817
  %4330 = vst [vmem:[%s3 + $0x268] sm:$0xf] %v3818
  %4331 = vst [vmem:[%s3 + $0x26c] sm:$0xf] %v3819
  %4332 = vst [vmem:[%s3 + $0x270] sm:$0xf] %v3820
  %4333 = vst [vmem:[%s3 + $0x274] sm:$0xf] %v3821
  %4334 = vst [vmem:[%s3 + $0x278] sm:$0xf] %v3822
  %4335 = vst [vmem:[%s3 + $0x27c] sm:$0xf] %v3823
  %4336 = vst [vmem:[%s3 + $0x280] sm:$0xf] %v3824
  %4337 = vst [vmem:[%s3 + $0x284] sm:$0xf] %v3825
  %4338 = vst [vmem:[%s3 + $0x288] sm:$0xf] %v3826
  %4339 = vst [vmem:[%s3 + $0x28c] sm:$0xf] %v3827
  %4340 = vst [vmem:[%s3 + $0x290] sm:$0xf] %v3828
  %4341 = vst [vmem:[%s3 + $0x294] sm:$0xf] %v3829
  %4342 = vst [vmem:[%s3 + $0x298] sm:$0xf] %v3830
  %4343 = vst [vmem:[%s3 + $0x29c] sm:$0xf] %v3831
  %4344 = vst [vmem:[%s3 + $0x2a0] sm:$0xf] %v3832
  %4345 = vst [vmem:[%s3 + $0x2a4] sm:$0xf] %v3833
  %4346 = vst [vmem:[%s3 + $0x2a8] sm:$0xf] %v3834
  %4347 = vst [vmem:[%s3 + $0x2ac] sm:$0xf] %v3835
  %4348 = vst [vmem:[%s3 + $0x2b0] sm:$0xf] %v3836
  %4349 = vst [vmem:[%s3 + $0x2b4] sm:$0xf] %v3837
  %4350 = vst [vmem:[%s3 + $0x2b8] sm:$0xf] %v3838
  %4351 = vst [vmem:[%s3 + $0x2bc] sm:$0xf] %v3839
  %4352 = vst [vmem:[%s3 + $0x2c0] sm:$0xf] %v3840
  %4353 = vst [vmem:[%s3 + $0x2c4] sm:$0xf] %v3841
  %4354 = vst [vmem:[%s3 + $0x2c8] sm:$0xf] %v3842
  %4355 = vst [vmem:[%s3 + $0x2cc] sm:$0xf] %v3843
  %4356 = vst [vmem:[%s3 + $0x2d0] sm:$0xf] %v3844
  %4357 = vst [vmem:[%s3 + $0x2d4] sm:$0xf] %v3845
  %4358 = vst [vmem:[%s3 + $0x2d8] sm:$0xf] %v3846
  %4359 = vst [vmem:[%s3 + $0x2dc] sm:$0xf] %v3847
  %4360 = vst [vmem:[%s3 + $0x2e0] sm:$0xf] %v3848
  %4361 = vst [vmem:[%s3 + $0x2e4] sm:$0xf] %v3849
  %4362 = vst [vmem:[%s3 + $0x2e8] sm:$0xf] %v3850
  %4363 = vst [vmem:[%s3 + $0x2ec] sm:$0xf] %v3851
  %4364 = vst [vmem:[%s3 + $0x2f0] sm:$0xf] %v3852
  %4365 = vst [vmem:[%s3 + $0x2f4] sm:$0xf] %v3853
  %4366 = vst [vmem:[%s3 + $0x2f8] sm:$0xf] %v3854
  %4367 = vst [vmem:[%s3 + $0x2fc] sm:$0xf] %v3855
  %4368 = vst [vmem:[%s3 + $0x300] sm:$0xf] %v3856
  %4369 = vst [vmem:[%s3 + $0x304] sm:$0xf] %v3857
  %4370 = vst [vmem:[%s3 + $0x308] sm:$0xf] %v3858
  %4371 = vst [vmem:[%s3 + $0x30c] sm:$0xf] %v3859
  %4372 = vst [vmem:[%s3 + $0x310] sm:$0xf] %v3860
  %4373 = vst [vmem:[%s3 + $0x314] sm:$0xf] %v3861
  %4374 = vst [vmem:[%s3 + $0x318] sm:$0xf] %v3862
  %4375 = vst [vmem:[%s3 + $0x31c] sm:$0xf] %v3863
  %4376 = vst [vmem:[%s3 + $0x320] sm:$0xf] %v3864
  %4377 = vst [vmem:[%s3 + $0x324] sm:$0xf] %v3865
  %4378 = vst [vmem:[%s3 + $0x328] sm:$0xf] %v3866
  %4379 = vst [vmem:[%s3 + $0x32c] sm:$0xf] %v3867
  %4380 = vst [vmem:[%s3 + $0x330] sm:$0xf] %v3868
  %4381 = vst [vmem:[%s3 + $0x334] sm:$0xf] %v3869
  %4382 = vst [vmem:[%s3 + $0x338] sm:$0xf] %v3870
  %4383 = vst [vmem:[%s3 + $0x33c] sm:$0xf] %v3871
  %4384 = vst [vmem:[%s3 + $0x340] sm:$0xf] %v3872
  %4385 = vst [vmem:[%s3 + $0x344] sm:$0xf] %v3873
  %4386 = vst [vmem:[%s3 + $0x348] sm:$0xf] %v3874
  %4387 = vst [vmem:[%s3 + $0x34c] sm:$0xf] %v3875
  %4388 = vst [vmem:[%s3 + $0x350] sm:$0xf] %v3876
  %4389 = vst [vmem:[%s3 + $0x354] sm:$0xf] %v3877
  %4390 = vst [vmem:[%s3 + $0x358] sm:$0xf] %v3878
  %4391 = vst [vmem:[%s3 + $0x35c] sm:$0xf] %v3879
  %4392 = vst [vmem:[%s3 + $0x360] sm:$0xf] %v3880
  %4393 = vst [vmem:[%s3 + $0x364] sm:$0xf] %v3881
  %4394 = vst [vmem:[%s3 + $0x368] sm:$0xf] %v3882
  %4395 = vst [vmem:[%s3 + $0x36c] sm:$0xf] %v3883
  %4396 = vst [vmem:[%s3 + $0x370] sm:$0xf] %v3884
  %4397 = vst [vmem:[%s3 + $0x374] sm:$0xf] %v3885
  %4398 = vst [vmem:[%s3 + $0x378] sm:$0xf] %v3886
  %4399 = vst [vmem:[%s3 + $0x37c] sm:$0xf] %v3887
  %4400 = vst [vmem:[%s3 + $0x380] sm:$0xf] %v3888
  %4401 = vst [vmem:[%s3 + $0x384] sm:$0xf] %v3889
  %4402 = vst [vmem:[%s3 + $0x388] sm:$0xf] %v3890
  %4403 = vst [vmem:[%s3 + $0x38c] sm:$0xf] %v3891
  %4404 = vst [vmem:[%s3 + $0x390] sm:$0xf] %v3892
  %4405 = vst [vmem:[%s3 + $0x394] sm:$0xf] %v3893
  %4406 = vst [vmem:[%s3 + $0x398] sm:$0xf] %v3894
  %4407 = vst [vmem:[%s3 + $0x39c] sm:$0xf] %v3895
  %4408 = vst [vmem:[%s3 + $0x3a0] sm:$0xf] %v3896
  %4409 = vst [vmem:[%s3 + $0x3a4] sm:$0xf] %v3897
  %4410 = vst [vmem:[%s3 + $0x3a8] sm:$0xf] %v3898
  %4411 = vst [vmem:[%s3 + $0x3ac] sm:$0xf] %v3899
  %4412 = vst [vmem:[%s3 + $0x3b0] sm:$0xf] %v3900
  %4413 = vst [vmem:[%s3 + $0x3b4] sm:$0xf] %v3901
  %4414 = vst [vmem:[%s3 + $0x3b8] sm:$0xf] %v3902
  %4415 = vst [vmem:[%s3 + $0x3bc] sm:$0xf] %v3903
  %4416 = vst [vmem:[%s3 + $0x3c0] sm:$0xf] %v3904
  %4417 = vst [vmem:[%s3 + $0x3c4] sm:$0xf] %v3905
  %4418 = vst [vmem:[%s3 + $0x3c8] sm:$0xf] %v3906
  %4419 = vst [vmem:[%s3 + $0x3cc] sm:$0xf] %v3907
  %4420 = vst [vmem:[%s3 + $0x3d0] sm:$0xf] %v3908
  %4421 = vst [vmem:[%s3 + $0x3d4] sm:$0xf] %v3909
  %4422 = vst [vmem:[%s3 + $0x3d8] sm:$0xf] %v3910
  %4423 = vst [vmem:[%s3 + $0x3dc] sm:$0xf] %v3911
  %4424 = vst [vmem:[%s3 + $0x3e0] sm:$0xf] %v3912
  %4425 = vst [vmem:[%s3 + $0x3e4] sm:$0xf] %v3913
  %4426 = vst [vmem:[%s3 + $0x3e8] sm:$0xf] %v3914
  %4427 = vst [vmem:[%s3 + $0x3ec] sm:$0xf] %v3915
  %4428 = vst [vmem:[%s3 + $0x3f0] sm:$0xf] %v3916
  %4429 = vst [vmem:[%s3 + $0x3f4] sm:$0xf] %v3917
  %4430 = vst [vmem:[%s3 + $0x3f8] sm:$0xf] %v3918
  %4431 = vst [vmem:[%s3 + $0x3fc] sm:$0xf] %v3919
  // Predicated region
  $region14: #{discriminator_forward.4} parent=0 // pred_check
    _
  $region15: #{discriminator_forward.4} parent=0 // pred_check_branch
    %4433 = sbr.rel (0) target = $region17
  $region16: #{discriminator_forward.4} parent=0 // pred_region
    _
  $region17: #{discriminator_forward.4} parent=0 // pred_fallthru
    _
  // Predicated region
  $region18: #{discriminator_forward.4} parent=0 // pred_check
    _
  $region19: #{discriminator_forward.4} parent=0 // pred_check_branch
    %4435 = sbr.rel (0) target = $region21
  $region20: #{discriminator_forward.4} parent=0 // pred_region
    _
  $region21: #{discriminator_forward.4} parent=0 // pred_fallthru
    _

// kernel: discriminator_forward.5
$region0: #{discriminator_forward.5}
  #allocation0 [shape = 'u32[]', space=smem, size = 0x4, offset = 0x4, fixed_abs, tag = 'smem constant byte address 0x4 - core index']
  #allocation1 [shape = 'u32[144,128]{1,0:T(1,128)}', space=vmem, size = 0x12000, scoped, tag = 'internal scratch']
  %s0 = inlined_call_operand.vmem [shape: bf16[512,288], index: 0, kind: input, shape index: {}]
  %s1 = inlined_call_operand.vmem [shape: bf16[288,128], index: 1, kind: input, shape index: {}]
  %s2 = inlined_call_operand.vmem [shape: f32[1,128], index: 2, kind: input, shape index: {}]
  %s3 = inlined_call_operand.vmem [shape: f32[1,128], index: 3, kind: input, shape index: {}]
  %s4 = inlined_call_operand.vmem [shape: f32[1,128], index: 4, kind: input, shape index: {}]
  %s5 = inlined_call_operand.vmem [shape: bf16[512,128], index: 5, kind: output, shape index: {}]
  %s6 = sld [smem:[#allocation0]]
  $region30: #{discriminator_forward.5} parent=0
    _
  %s8 = ssub.s32 1, %s6
  %s9 = scalar_select 0, %s8, %s6
  // Predicated region
  $region2: #{discriminator_forward.5} parent=0 // pred_check
    _
  $region3: #{discriminator_forward.5} parent=0 // pred_check_branch
    %11 = sbr.rel (0) target = $region5
  $region4: #{discriminator_forward.5} parent=0 // pred_region
    _
  $region5: #{discriminator_forward.5} parent=0 // pred_fallthru
    _
  // Predicated region
  $region6: #{discriminator_forward.5} parent=0 // pred_check
    _
  $region7: #{discriminator_forward.5} parent=0 // pred_check_branch
    %13 = sbr.rel (0) target = $region9
  $region8: #{discriminator_forward.5} parent=0 // pred_region
    _
  $region9: #{discriminator_forward.5} parent=0 // pred_fallthru
    _
  // Predicated region
  $region10: #{discriminator_forward.5} parent=0 // pred_check
    _
  $region11: #{discriminator_forward.5} parent=0 // pred_check_branch
    %15 = sbr.rel (0) target = $region13
  $region12: #{discriminator_forward.5} parent=0 // pred_region
    _
  $region13: #{discriminator_forward.5} parent=0 // pred_fallthru
    _
  // Predicated region
  $region14: #{discriminator_forward.5} parent=0 // pred_check
    _
  $region15: #{discriminator_forward.5} parent=0 // pred_check_branch
    %17 = sbr.rel (0) target = $region17
  $region16: #{discriminator_forward.5} parent=0 // pred_region
    _
  $region17: #{discriminator_forward.5} parent=0 // pred_fallthru
    _
  // Predicated region
  $region18: #{discriminator_forward.5} parent=0 // pred_check
    _
  $region19: #{discriminator_forward.5} parent=0 // pred_check_branch
    %19 = sbr.rel (0) target = $region21
  $region20: #{discriminator_forward.5} parent=0 // pred_region
    _
  $region21: #{discriminator_forward.5} parent=0 // pred_fallthru
    _
  %v21 = vld [vmem:[%s0] sm:$0xff]
  %v22 = vld [vmem:[%s0 + $0x8] sm:$0xf]
  %v23 = vld [vmem:[%s0 + $0xc] sm:$0xff]
  %v24 = vld [vmem:[%s0 + $0x14] sm:$0xf]
  %v25 = vld [vmem:[%s0 + $0x18] sm:$0xff]
  %v26 = vld [vmem:[%s0 + $0x20] sm:$0xf]
  %v27 = vld [vmem:[%s0 + $0x24] sm:$0xff]
  %v28 = vld [vmem:[%s0 + $0x2c] sm:$0xf]
  %v29 = vld [vmem:[%s0 + $0x30] sm:$0xff]
  %v30 = vld [vmem:[%s0 + $0x38] sm:$0xf]
  %v31 = vld [vmem:[%s0 + $0x3c] sm:$0xff]
  %v32 = vld [vmem:[%s0 + $0x44] sm:$0xf]
  %v33 = vld [vmem:[%s0 + $0x48] sm:$0xff]
  %v34 = vld [vmem:[%s0 + $0x50] sm:$0xf]
  %v35 = vld [vmem:[%s0 + $0x54] sm:$0xff]
  %v36 = vld [vmem:[%s0 + $0x5c] sm:$0xf]
  %v37 = vld [vmem:[%s0 + $0x60] sm:$0xff]
  %v38 = vld [vmem:[%s0 + $0x68] sm:$0xf]
  %v39 = vld [vmem:[%s0 + $0x6c] sm:$0xff]
  %v40 = vld [vmem:[%s0 + $0x74] sm:$0xf]
  %v41 = vld [vmem:[%s0 + $0x78] sm:$0xff]
  %v42 = vld [vmem:[%s0 + $0x80] sm:$0xf]
  %v43 = vld [vmem:[%s0 + $0x84] sm:$0xff]
  %v44 = vld [vmem:[%s0 + $0x8c] sm:$0xf]
  %v45 = vld [vmem:[%s0 + $0x90] sm:$0xff]
  %v46 = vld [vmem:[%s0 + $0x98] sm:$0xf]
  %v47 = vld [vmem:[%s0 + $0x9c] sm:$0xff]
  %v48 = vld [vmem:[%s0 + $0xa4] sm:$0xf]
  %v49 = vld [vmem:[%s0 + $0xa8] sm:$0xff]
  %v50 = vld [vmem:[%s0 + $0xb0] sm:$0xf]
  %v51 = vld [vmem:[%s0 + $0xb4] sm:$0xff]
  %v52 = vld [vmem:[%s0 + $0xbc] sm:$0xf]
  %v53 = vld [vmem:[%s0 + $0xc0] sm:$0xff]
  %v54 = vld [vmem:[%s0 + $0xc8] sm:$0xf]
  %v55 = vld [vmem:[%s0 + $0xcc] sm:$0xff]
  %v56 = vld [vmem:[%s0 + $0xd4] sm:$0xf]
  %v57 = vld [vmem:[%s0 + $0xd8] sm:$0xff]
  %v58 = vld [vmem:[%s0 + $0xe0] sm:$0xf]
  %v59 = vld [vmem:[%s0 + $0xe4] sm:$0xff]
  %v60 = vld [vmem:[%s0 + $0xec] sm:$0xf]
  %v61 = vld [vmem:[%s0 + $0xf0] sm:$0xff]
  %v62 = vld [vmem:[%s0 + $0xf8] sm:$0xf]
  %v63 = vld [vmem:[%s0 + $0xfc] sm:$0xff]
  %v64 = vld [vmem:[%s0 + $0x104] sm:$0xf]
  %v65 = vld [vmem:[%s0 + $0x108] sm:$0xff]
  %v66 = vld [vmem:[%s0 + $0x110] sm:$0xf]
  %v67 = vld [vmem:[%s0 + $0x114] sm:$0xff]
  %v68 = vld [vmem:[%s0 + $0x11c] sm:$0xf]
  %v69 = vld [vmem:[%s0 + $0x120] sm:$0xff]
  %v70 = vld [vmem:[%s0 + $0x128] sm:$0xf]
  %v71 = vld [vmem:[%s0 + $0x12c] sm:$0xff]
  %v72 = vld [vmem:[%s0 + $0x134] sm:$0xf]
  %v73 = vld [vmem:[%s0 + $0x138] sm:$0xff]
  %v74 = vld [vmem:[%s0 + $0x140] sm:$0xf]
  %v75 = vld [vmem:[%s0 + $0x144] sm:$0xff]
  %v76 = vld [vmem:[%s0 + $0x14c] sm:$0xf]
  %v77 = vld [vmem:[%s0 + $0x150] sm:$0xff]
  %v78 = vld [vmem:[%s0 + $0x158] sm:$0xf]
  %v79 = vld [vmem:[%s0 + $0x15c] sm:$0xff]
  %v80 = vld [vmem:[%s0 + $0x164] sm:$0xf]
  %v81 = vld [vmem:[%s0 + $0x168] sm:$0xff]
  %v82 = vld [vmem:[%s0 + $0x170] sm:$0xf]
  %v83 = vld [vmem:[%s0 + $0x174] sm:$0xff]
  %v84 = vld [vmem:[%s0 + $0x17c] sm:$0xf]
  %v85 = vld [vmem:[%s0 + $0x180] sm:$0xff]
  %v86 = vld [vmem:[%s0 + $0x188] sm:$0xf]
  %v87 = vld [vmem:[%s0 + $0x18c] sm:$0xff]
  %v88 = vld [vmem:[%s0 + $0x194] sm:$0xf]
  %v89 = vld [vmem:[%s0 + $0x198] sm:$0xff]
  %v90 = vld [vmem:[%s0 + $0x1a0] sm:$0xf]
  %v91 = vld [vmem:[%s0 + $0x1a4] sm:$0xff]
  %v92 = vld [vmem:[%s0 + $0x1ac] sm:$0xf]
  %v93 = vld [vmem:[%s0 + $0x1b0] sm:$0xff]
  %v94 = vld [vmem:[%s0 + $0x1b8] sm:$0xf]
  %v95 = vld [vmem:[%s0 + $0x1bc] sm:$0xff]
  %v96 = vld [vmem:[%s0 + $0x1c4] sm:$0xf]
  %v97 = vld [vmem:[%s0 + $0x1c8] sm:$0xff]
  %v98 = vld [vmem:[%s0 + $0x1d0] sm:$0xf]
  %v99 = vld [vmem:[%s0 + $0x1d4] sm:$0xff]
  %v100 = vld [vmem:[%s0 + $0x1dc] sm:$0xf]
  %v101 = vld [vmem:[%s0 + $0x1e0] sm:$0xff]
  %v102 = vld [vmem:[%s0 + $0x1e8] sm:$0xf]
  %v103 = vld [vmem:[%s0 + $0x1ec] sm:$0xff]
  %v104 = vld [vmem:[%s0 + $0x1f4] sm:$0xf]
  %v105 = vld [vmem:[%s0 + $0x1f8] sm:$0xff]
  %v106 = vld [vmem:[%s0 + $0x200] sm:$0xf]
  %v107 = vld [vmem:[%s0 + $0x204] sm:$0xff]
  %v108 = vld [vmem:[%s0 + $0x20c] sm:$0xf]
  %v109 = vld [vmem:[%s0 + $0x210] sm:$0xff]
  %v110 = vld [vmem:[%s0 + $0x218] sm:$0xf]
  %v111 = vld [vmem:[%s0 + $0x21c] sm:$0xff]
  %v112 = vld [vmem:[%s0 + $0x224] sm:$0xf]
  %v113 = vld [vmem:[%s0 + $0x228] sm:$0xff]
  %v114 = vld [vmem:[%s0 + $0x230] sm:$0xf]
  %v115 = vld [vmem:[%s0 + $0x234] sm:$0xff]
  %v116 = vld [vmem:[%s0 + $0x23c] sm:$0xf]
  %v117 = vld [vmem:[%s0 + $0x240] sm:$0xff]
  %v118 = vld [vmem:[%s0 + $0x248] sm:$0xf]
  %v119 = vld [vmem:[%s0 + $0x24c] sm:$0xff]
  %v120 = vld [vmem:[%s0 + $0x254] sm:$0xf]
  %v121 = vld [vmem:[%s0 + $0x258] sm:$0xff]
  %v122 = vld [vmem:[%s0 + $0x260] sm:$0xf]
  %v123 = vld [vmem:[%s0 + $0x264] sm:$0xff]
  %v124 = vld [vmem:[%s0 + $0x26c] sm:$0xf]
  %v125 = vld [vmem:[%s0 + $0x270] sm:$0xff]
  %v126 = vld [vmem:[%s0 + $0x278] sm:$0xf]
  %v127 = vld [vmem:[%s0 + $0x27c] sm:$0xff]
  %v128 = vld [vmem:[%s0 + $0x284] sm:$0xf]
  %v129 = vld [vmem:[%s0 + $0x288] sm:$0xff]
  %v130 = vld [vmem:[%s0 + $0x290] sm:$0xf]
  %v131 = vld [vmem:[%s0 + $0x294] sm:$0xff]
  %v132 = vld [vmem:[%s0 + $0x29c] sm:$0xf]
  %v133 = vld [vmem:[%s0 + $0x2a0] sm:$0xff]
  %v134 = vld [vmem:[%s0 + $0x2a8] sm:$0xf]
  %v135 = vld [vmem:[%s0 + $0x2ac] sm:$0xff]
  %v136 = vld [vmem:[%s0 + $0x2b4] sm:$0xf]
  %v137 = vld [vmem:[%s0 + $0x2b8] sm:$0xff]
  %v138 = vld [vmem:[%s0 + $0x2c0] sm:$0xf]
  %v139 = vld [vmem:[%s0 + $0x2c4] sm:$0xff]
  %v140 = vld [vmem:[%s0 + $0x2cc] sm:$0xf]
  %v141 = vld [vmem:[%s0 + $0x2d0] sm:$0xff]
  %v142 = vld [vmem:[%s0 + $0x2d8] sm:$0xf]
  %v143 = vld [vmem:[%s0 + $0x2dc] sm:$0xff]
  %v144 = vld [vmem:[%s0 + $0x2e4] sm:$0xf]
  %v145 = vld [vmem:[%s0 + $0x2e8] sm:$0xff]
  %v146 = vld [vmem:[%s0 + $0x2f0] sm:$0xf]
  %v147 = vld [vmem:[%s0 + $0x2f4] sm:$0xff]
  %v148 = vld [vmem:[%s0 + $0x2fc] sm:$0xf]
  %v149 = vld [vmem:[%s1] sm:$0xf]
  %v150 = vld [vmem:[%s1 + $0x4] sm:$0xf]
  %v151 = vld [vmem:[%s1 + $0x8] sm:$0xf]
  %v152 = vld [vmem:[%s1 + $0xc] sm:$0xf]
  %v153 = vld [vmem:[%s1 + $0x10] sm:$0xf]
  %v154 = vld [vmem:[%s1 + $0x14] sm:$0xf]
  %v155 = vld [vmem:[%s1 + $0x18] sm:$0xf]
  %v156 = vld [vmem:[%s1 + $0x1c] sm:$0xf]
  %v157 = vld [vmem:[%s1 + $0x20] sm:$0xf]
  %v158 = vld [vmem:[%s1 + $0x24] sm:$0xf]
  %v159 = vld [vmem:[%s1 + $0x28] sm:$0xf]
  %v160 = vld [vmem:[%s1 + $0x2c] sm:$0xf]
  %v161 = vld [vmem:[%s1 + $0x30] sm:$0xf]
  %v162 = vld [vmem:[%s1 + $0x34] sm:$0xf]
  %v163 = vld [vmem:[%s1 + $0x38] sm:$0xf]
  %v164 = vld [vmem:[%s1 + $0x3c] sm:$0xf]
  %v165 = vld [vmem:[%s1 + $0x40] sm:$0xf]
  %v166 = vld [vmem:[%s1 + $0x44] sm:$0xf]
  %v167 = vld [vmem:[%s1 + $0x48] sm:$0xf]
  %v168 = vld [vmem:[%s1 + $0x4c] sm:$0xf]
  %v169 = vld [vmem:[%s1 + $0x50] sm:$0xf]
  %v170 = vld [vmem:[%s1 + $0x54] sm:$0xf]
  %v171 = vld [vmem:[%s1 + $0x58] sm:$0xf]
  %v172 = vld [vmem:[%s1 + $0x5c] sm:$0xf]
  %v173 = vld [vmem:[%s1 + $0x60] sm:$0xf]
  %v174 = vld [vmem:[%s1 + $0x64] sm:$0xf]
  %v175 = vld [vmem:[%s1 + $0x68] sm:$0xf]
  %v176 = vld [vmem:[%s1 + $0x6c] sm:$0xf]
  %v177 = vld [vmem:[%s1 + $0x70] sm:$0xf]
  %v178 = vld [vmem:[%s1 + $0x74] sm:$0xf]
  %v179 = vld [vmem:[%s1 + $0x78] sm:$0xf]
  %v180 = vld [vmem:[%s1 + $0x7c] sm:$0xf]
  %v181 = vld [vmem:[%s1 + $0x80] sm:$0xf]
  %v182 = vld [vmem:[%s1 + $0x84] sm:$0xf]
  %v183 = vld [vmem:[%s1 + $0x88] sm:$0xf]
  %v184 = vld [vmem:[%s1 + $0x8c] sm:$0xf]
  %v185 = vld [vmem:[%s2] sm:$0x1]
  %v187 = vlaneseq
  %v188 = vshrl.u32 %v187, 7
  %v189 = vsub.s32 0, %v188
  %v190 = vrot.slane %v185, %v189
  %v320 = vunpack.c.l.b16 %v21
  %v321 = vunpack.c.h.b16 %v21
  %v322 = vunpack.c.l.b16 %v22
  %v323 = vunpack.c.l.b16 %v23
  %v324 = vunpack.c.h.b16 %v23
  %v325 = vunpack.c.l.b16 %v24
  %v326 = vunpack.c.l.b16 %v25
  %v327 = vunpack.c.h.b16 %v25
  %v328 = vunpack.c.l.b16 %v26
  %v329 = vunpack.c.l.b16 %v27
  %v330 = vunpack.c.h.b16 %v27
  %v331 = vunpack.c.l.b16 %v28
  %v332 = vunpack.c.l.b16 %v29
  %v333 = vunpack.c.h.b16 %v29
  %v334 = vunpack.c.l.b16 %v30
  %v335 = vunpack.c.l.b16 %v31
  %v336 = vunpack.c.h.b16 %v31
  %v337 = vunpack.c.l.b16 %v32
  %v338 = vunpack.c.l.b16 %v33
  %v339 = vunpack.c.h.b16 %v33
  %v340 = vunpack.c.l.b16 %v34
  %v341 = vunpack.c.l.b16 %v35
  %v342 = vunpack.c.h.b16 %v35
  %v343 = vunpack.c.l.b16 %v36
  %v344 = vunpack.c.l.b16 %v37
  %v345 = vunpack.c.h.b16 %v37
  %v346 = vunpack.c.l.b16 %v38
  %v347 = vunpack.c.l.b16 %v39
  %v348 = vunpack.c.h.b16 %v39
  %v349 = vunpack.c.l.b16 %v40
  %v350 = vunpack.c.l.b16 %v41
  %v351 = vunpack.c.h.b16 %v41
  %v352 = vunpack.c.l.b16 %v42
  %v353 = vunpack.c.l.b16 %v43
  %v354 = vunpack.c.h.b16 %v43
  %v355 = vunpack.c.l.b16 %v44
  %v356 = vunpack.c.l.b16 %v45
  %v357 = vunpack.c.h.b16 %v45
  %v358 = vunpack.c.l.b16 %v46
  %v359 = vunpack.c.l.b16 %v47
  %v360 = vunpack.c.h.b16 %v47
  %v361 = vunpack.c.l.b16 %v48
  %v362 = vunpack.c.l.b16 %v49
  %v363 = vunpack.c.h.b16 %v49
  %v364 = vunpack.c.l.b16 %v50
  %v365 = vunpack.c.l.b16 %v51
  %v366 = vunpack.c.h.b16 %v51
  %v367 = vunpack.c.l.b16 %v52
  %v368 = vunpack.c.l.b16 %v53
  %v369 = vunpack.c.h.b16 %v53
  %v370 = vunpack.c.l.b16 %v54
  %v371 = vunpack.c.l.b16 %v55
  %v372 = vunpack.c.h.b16 %v55
  %v373 = vunpack.c.l.b16 %v56
  %v374 = vunpack.c.l.b16 %v57
  %v375 = vunpack.c.h.b16 %v57
  %v376 = vunpack.c.l.b16 %v58
  %v377 = vunpack.c.l.b16 %v59
  %v378 = vunpack.c.h.b16 %v59
  %v379 = vunpack.c.l.b16 %v60
  %v380 = vunpack.c.l.b16 %v61
  %v381 = vunpack.c.h.b16 %v61
  %v382 = vunpack.c.l.b16 %v62
  %v383 = vunpack.c.l.b16 %v63
  %v384 = vunpack.c.h.b16 %v63
  %v385 = vunpack.c.l.b16 %v64
  %v386 = vunpack.c.l.b16 %v65
  %v387 = vunpack.c.h.b16 %v65
  %v388 = vunpack.c.l.b16 %v66
  %v389 = vunpack.c.l.b16 %v67
  %v390 = vunpack.c.h.b16 %v67
  %v391 = vunpack.c.l.b16 %v68
  %v392 = vunpack.c.l.b16 %v69
  %v393 = vunpack.c.h.b16 %v69
  %v394 = vunpack.c.l.b16 %v70
  %v395 = vunpack.c.l.b16 %v71
  %v396 = vunpack.c.h.b16 %v71
  %v397 = vunpack.c.l.b16 %v72
  %v398 = vunpack.c.l.b16 %v73
  %v399 = vunpack.c.h.b16 %v73
  %v400 = vunpack.c.l.b16 %v74
  %v401 = vunpack.c.l.b16 %v75
  %v402 = vunpack.c.h.b16 %v75
  %v403 = vunpack.c.l.b16 %v76
  %v404 = vunpack.c.l.b16 %v77
  %v405 = vunpack.c.h.b16 %v77
  %v406 = vunpack.c.l.b16 %v78
  %v407 = vunpack.c.l.b16 %v79
  %v408 = vunpack.c.h.b16 %v79
  %v409 = vunpack.c.l.b16 %v80
  %v410 = vunpack.c.l.b16 %v81
  %v411 = vunpack.c.h.b16 %v81
  %v412 = vunpack.c.l.b16 %v82
  %v413 = vunpack.c.l.b16 %v83
  %v414 = vunpack.c.h.b16 %v83
  %v415 = vunpack.c.l.b16 %v84
  %v416 = vunpack.c.l.b16 %v85
  %v417 = vunpack.c.h.b16 %v85
  %v418 = vunpack.c.l.b16 %v86
  %v419 = vunpack.c.l.b16 %v87
  %v420 = vunpack.c.h.b16 %v87
  %v421 = vunpack.c.l.b16 %v88
  %v422 = vunpack.c.l.b16 %v89
  %v423 = vunpack.c.h.b16 %v89
  %v424 = vunpack.c.l.b16 %v90
  %v425 = vunpack.c.l.b16 %v91
  %v426 = vunpack.c.h.b16 %v91
  %v427 = vunpack.c.l.b16 %v92
  %v428 = vunpack.c.l.b16 %v93
  %v429 = vunpack.c.h.b16 %v93
  %v430 = vunpack.c.l.b16 %v94
  %v431 = vunpack.c.l.b16 %v95
  %v432 = vunpack.c.h.b16 %v95
  %v433 = vunpack.c.l.b16 %v96
  %v434 = vunpack.c.l.b16 %v97
  %v435 = vunpack.c.h.b16 %v97
  %v436 = vunpack.c.l.b16 %v98
  %v437 = vunpack.c.l.b16 %v99
  %v438 = vunpack.c.h.b16 %v99
  %v439 = vunpack.c.l.b16 %v100
  %v440 = vunpack.c.l.b16 %v101
  %v441 = vunpack.c.h.b16 %v101
  %v442 = vunpack.c.l.b16 %v102
  %v443 = vunpack.c.l.b16 %v103
  %v444 = vunpack.c.h.b16 %v103
  %v445 = vunpack.c.l.b16 %v104
  %v446 = vunpack.c.l.b16 %v105
  %v447 = vunpack.c.h.b16 %v105
  %v448 = vunpack.c.l.b16 %v106
  %v449 = vunpack.c.l.b16 %v107
  %v450 = vunpack.c.h.b16 %v107
  %v451 = vunpack.c.l.b16 %v108
  %v452 = vunpack.c.l.b16 %v109
  %v453 = vunpack.c.h.b16 %v109
  %v454 = vunpack.c.l.b16 %v110
  %v455 = vunpack.c.l.b16 %v111
  %v456 = vunpack.c.h.b16 %v111
  %v457 = vunpack.c.l.b16 %v112
  %v458 = vunpack.c.l.b16 %v113
  %v459 = vunpack.c.h.b16 %v113
  %v460 = vunpack.c.l.b16 %v114
  %v461 = vunpack.c.l.b16 %v115
  %v462 = vunpack.c.h.b16 %v115
  %v463 = vunpack.c.l.b16 %v116
  %v464 = vunpack.c.l.b16 %v117
  %v465 = vunpack.c.h.b16 %v117
  %v466 = vunpack.c.l.b16 %v118
  %v467 = vunpack.c.l.b16 %v119
  %v468 = vunpack.c.h.b16 %v119
  %v469 = vunpack.c.l.b16 %v120
  %v470 = vunpack.c.l.b16 %v121
  %v471 = vunpack.c.h.b16 %v121
  %v472 = vunpack.c.l.b16 %v122
  %v473 = vunpack.c.l.b16 %v123
  %v474 = vunpack.c.h.b16 %v123
  %v475 = vunpack.c.l.b16 %v124
  %v476 = vunpack.c.l.b16 %v125
  %v477 = vunpack.c.h.b16 %v125
  %v478 = vunpack.c.l.b16 %v126
  %v479 = vunpack.c.l.b16 %v127
  %v480 = vunpack.c.h.b16 %v127
  %v481 = vunpack.c.l.b16 %v128
  %v482 = vunpack.c.l.b16 %v129
  %v483 = vunpack.c.h.b16 %v129
  %v484 = vunpack.c.l.b16 %v130
  %v485 = vunpack.c.l.b16 %v131
  %v486 = vunpack.c.h.b16 %v131
  %v487 = vunpack.c.l.b16 %v132
  %v488 = vunpack.c.l.b16 %v133
  %v489 = vunpack.c.h.b16 %v133
  %v490 = vunpack.c.l.b16 %v134
  %v491 = vunpack.c.l.b16 %v135
  %v492 = vunpack.c.h.b16 %v135
  %v493 = vunpack.c.l.b16 %v136
  %v494 = vunpack.c.l.b16 %v137
  %v495 = vunpack.c.h.b16 %v137
  %v496 = vunpack.c.l.b16 %v138
  %v497 = vunpack.c.l.b16 %v139
  %v498 = vunpack.c.h.b16 %v139
  %v499 = vunpack.c.l.b16 %v140
  %v500 = vunpack.c.l.b16 %v141
  %v501 = vunpack.c.h.b16 %v141
  %v502 = vunpack.c.l.b16 %v142
  %v503 = vunpack.c.l.b16 %v143
  %v504 = vunpack.c.h.b16 %v143
  %v505 = vunpack.c.l.b16 %v144
  %v506 = vunpack.c.l.b16 %v145
  %v507 = vunpack.c.h.b16 %v145
  %v508 = vunpack.c.l.b16 %v146
  %v509 = vunpack.c.l.b16 %v147
  %v510 = vunpack.c.h.b16 %v147
  %v511 = vunpack.c.l.b16 %v148
  %v512 = vpack.c.b16 %v323, %v320
  %v513 = vpack.c.b16 %v324, %v321
  %v514 = vpack.c.b16 %v325, %v322
  %v515 = vpack.c.b16 %v329, %v326
  %v516 = vpack.c.b16 %v330, %v327
  %v517 = vpack.c.b16 %v331, %v328
  %v518 = vpack.c.b16 %v335, %v332
  %v519 = vpack.c.b16 %v336, %v333
  %v520 = vpack.c.b16 %v337, %v334
  %v521 = vpack.c.b16 %v341, %v338
  %v522 = vpack.c.b16 %v342, %v339
  %v523 = vpack.c.b16 %v343, %v340
  %v524 = vpack.c.b16 %v347, %v344
  %v525 = vpack.c.b16 %v348, %v345
  %v526 = vpack.c.b16 %v349, %v346
  %v527 = vpack.c.b16 %v353, %v350
  %v528 = vpack.c.b16 %v354, %v351
  %v529 = vpack.c.b16 %v355, %v352
  %v530 = vpack.c.b16 %v359, %v356
  %v531 = vpack.c.b16 %v360, %v357
  %v532 = vpack.c.b16 %v361, %v358
  %v533 = vpack.c.b16 %v365, %v362
  %v534 = vpack.c.b16 %v366, %v363
  %v535 = vpack.c.b16 %v367, %v364
  %v536 = vpack.c.b16 %v371, %v368
  %v537 = vpack.c.b16 %v372, %v369
  %v538 = vpack.c.b16 %v373, %v370
  %v539 = vpack.c.b16 %v377, %v374
  %v540 = vpack.c.b16 %v378, %v375
  %v541 = vpack.c.b16 %v379, %v376
  %v542 = vpack.c.b16 %v383, %v380
  %v543 = vpack.c.b16 %v384, %v381
  %v544 = vpack.c.b16 %v385, %v382
  %v545 = vpack.c.b16 %v389, %v386
  %v546 = vpack.c.b16 %v390, %v387
  %v547 = vpack.c.b16 %v391, %v388
  %v548 = vpack.c.b16 %v395, %v392
  %v549 = vpack.c.b16 %v396, %v393
  %v550 = vpack.c.b16 %v397, %v394
  %v551 = vpack.c.b16 %v401, %v398
  %v552 = vpack.c.b16 %v402, %v399
  %v553 = vpack.c.b16 %v403, %v400
  %v554 = vpack.c.b16 %v407, %v404
  %v555 = vpack.c.b16 %v408, %v405
  %v556 = vpack.c.b16 %v409, %v406
  %v557 = vpack.c.b16 %v413, %v410
  %v558 = vpack.c.b16 %v414, %v411
  %v559 = vpack.c.b16 %v415, %v412
  %v560 = vpack.c.b16 %v419, %v416
  %v561 = vpack.c.b16 %v420, %v417
  %v562 = vpack.c.b16 %v421, %v418
  %v563 = vpack.c.b16 %v425, %v422
  %v564 = vpack.c.b16 %v426, %v423
  %v565 = vpack.c.b16 %v427, %v424
  %v566 = vpack.c.b16 %v431, %v428
  %v567 = vpack.c.b16 %v432, %v429
  %v568 = vpack.c.b16 %v433, %v430
  %v569 = vpack.c.b16 %v437, %v434
  %v570 = vpack.c.b16 %v438, %v435
  %v571 = vpack.c.b16 %v439, %v436
  %v572 = vpack.c.b16 %v443, %v440
  %v573 = vpack.c.b16 %v444, %v441
  %v574 = vpack.c.b16 %v445, %v442
  %v575 = vpack.c.b16 %v449, %v446
  %v576 = vpack.c.b16 %v450, %v447
  %v577 = vpack.c.b16 %v451, %v448
  %v578 = vpack.c.b16 %v455, %v452
  %v579 = vpack.c.b16 %v456, %v453
  %v580 = vpack.c.b16 %v457, %v454
  %v581 = vpack.c.b16 %v461, %v458
  %v582 = vpack.c.b16 %v462, %v459
  %v583 = vpack.c.b16 %v463, %v460
  %v584 = vpack.c.b16 %v467, %v464
  %v585 = vpack.c.b16 %v468, %v465
  %v586 = vpack.c.b16 %v469, %v466
  %v587 = vpack.c.b16 %v473, %v470
  %v588 = vpack.c.b16 %v474, %v471
  %v589 = vpack.c.b16 %v475, %v472
  %v590 = vpack.c.b16 %v479, %v476
  %v591 = vpack.c.b16 %v480, %v477
  %v592 = vpack.c.b16 %v481, %v478
  %v593 = vpack.c.b16 %v485, %v482
  %v594 = vpack.c.b16 %v486, %v483
  %v595 = vpack.c.b16 %v487, %v484
  %v596 = vpack.c.b16 %v491, %v488
  %v597 = vpack.c.b16 %v492, %v489
  %v598 = vpack.c.b16 %v493, %v490
  %v599 = vpack.c.b16 %v497, %v494
  %v600 = vpack.c.b16 %v498, %v495
  %v601 = vpack.c.b16 %v499, %v496
  %v602 = vpack.c.b16 %v503, %v500
  %v603 = vpack.c.b16 %v504, %v501
  %v604 = vpack.c.b16 %v505, %v502
  %v605 = vpack.c.b16 %v509, %v506
  %v606 = vpack.c.b16 %v510, %v507
  %v607 = vpack.c.b16 %v511, %v508
  %v708 = vunpack.c.l.b16 %v149
  %v709 = vunpack.c.l.b16 %v150
  %v710 = vunpack.c.l.b16 %v151
  %v711 = vunpack.c.l.b16 %v152
  %v712 = vunpack.c.l.b16 %v153
  %v713 = vunpack.c.l.b16 %v154
  %v714 = vunpack.c.l.b16 %v155
  %v715 = vunpack.c.l.b16 %v156
  %v716 = vunpack.c.l.b16 %v157
  %v717 = vunpack.c.l.b16 %v158
  %v718 = vunpack.c.l.b16 %v159
  %v719 = vunpack.c.l.b16 %v160
  %v720 = vunpack.c.l.b16 %v161
  %v721 = vunpack.c.l.b16 %v162
  %v722 = vunpack.c.l.b16 %v163
  %v723 = vunpack.c.l.b16 %v164
  %v724 = vunpack.c.l.b16 %v165
  %v725 = vunpack.c.l.b16 %v166
  %v726 = vunpack.c.l.b16 %v167
  %v727 = vunpack.c.l.b16 %v168
  %v728 = vunpack.c.l.b16 %v169
  %v729 = vunpack.c.l.b16 %v170
  %v730 = vunpack.c.l.b16 %v171
  %v731 = vunpack.c.l.b16 %v172
  %v732 = vunpack.c.l.b16 %v173
  %v733 = vunpack.c.l.b16 %v174
  %v734 = vunpack.c.l.b16 %v175
  %v735 = vunpack.c.l.b16 %v176
  %v736 = vunpack.c.l.b16 %v177
  %v737 = vunpack.c.l.b16 %v178
  %v738 = vunpack.c.l.b16 %v179
  %v739 = vunpack.c.l.b16 %v180
  %v740 = vunpack.c.l.b16 %v181
  %v741 = vunpack.c.l.b16 %v182
  %v742 = vunpack.c.l.b16 %v183
  %v743 = vunpack.c.l.b16 %v184
  %v744 = vpack.c.b16 %v709, %v708
  %v745 = vpack.c.b16 %v711, %v710
  %v746 = vpack.c.b16 %v713, %v712
  %v747 = vpack.c.b16 %v715, %v714
  %v748 = vpack.c.b16 %v717, %v716
  %v749 = vpack.c.b16 %v719, %v718
  %v750 = vpack.c.b16 %v721, %v720
  %v751 = vpack.c.b16 %v723, %v722
  %v752 = vpack.c.b16 %v725, %v724
  %v753 = vpack.c.b16 %v727, %v726
  %v754 = vpack.c.b16 %v729, %v728
  %v755 = vpack.c.b16 %v731, %v730
  %v756 = vpack.c.b16 %v733, %v732
  %v757 = vpack.c.b16 %v735, %v734
  %v758 = vpack.c.b16 %v737, %v736
  %v759 = vpack.c.b16 %v739, %v738
  %v760 = vpack.c.b16 %v741, %v740
  %v761 = vpack.c.b16 %v743, %v742
  %vm780 = vcmask 261120
  %v782 = vsel %vm780, %v514, 0
  %v785 = vsel %vm780, %v517, 0
  %v788 = vsel %vm780, %v520, 0
  %v791 = vsel %vm780, %v523, 0
  %v794 = vsel %vm780, %v526, 0
  %v797 = vsel %vm780, %v529, 0
  %v800 = vsel %vm780, %v532, 0
  %v803 = vsel %vm780, %v535, 0
  %v806 = vsel %vm780, %v538, 0
  %v809 = vsel %vm780, %v541, 0
  %v812 = vsel %vm780, %v544, 0
  %v815 = vsel %vm780, %v547, 0
  %v818 = vsel %vm780, %v550, 0
  %v821 = vsel %vm780, %v553, 0
  %v824 = vsel %vm780, %v556, 0
  %v827 = vsel %vm780, %v559, 0
  %v830 = vsel %vm780, %v562, 0
  %v833 = vsel %vm780, %v565, 0
  %v836 = vsel %vm780, %v568, 0
  %v839 = vsel %vm780, %v571, 0
  %v842 = vsel %vm780, %v574, 0
  %v845 = vsel %vm780, %v577, 0
  %v848 = vsel %vm780, %v580, 0
  %v851 = vsel %vm780, %v583, 0
  %v854 = vsel %vm780, %v586, 0
  %v857 = vsel %vm780, %v589, 0
  %v860 = vsel %vm780, %v592, 0
  %v863 = vsel %vm780, %v595, 0
  %v866 = vsel %vm780, %v598, 0
  %v869 = vsel %vm780, %v601, 0
  %v872 = vsel %vm780, %v604, 0
  %v875 = vsel %vm780, %v607, 0
  %877 = vmatprep.subr.bf16.mxu0 0
  %878 = vmatpush1.bf16.msra.mxu0 %v744
  %879 = vmatprep.subr.bf16.mxu0 0
  %880 = vmatpush1.bf16.msra.mxu0 %v745
  %881 = vmatprep.subr.bf16.mxu0 0
  %882 = vmatpush1.bf16.msra.mxu0 %v746
  %883 = vmatprep.subr.bf16.mxu0 0
  %884 = vmatpush1.bf16.msra.mxu0 %v747
  %885 = vmatprep.subr.bf16.mxu0 0
  %886 = vmatpush1.bf16.msra.mxu0 %v748
  %887 = vmatprep.subr.bf16.mxu0 0
  %888 = vmatpush1.bf16.msra.mxu0 %v749
  %889 = vmatprep.subr.bf16.mxu0 0
  %890 = vmatpush1.bf16.msra.mxu0 %v750
  %891 = vmatprep.subr.bf16.mxu0 0
  %892 = vmatpush1.bf16.msra.mxu0 %v751
  %893 = vmatprep.subr.bf16.mxu0 0
  %894 = vmatpush1.bf16.msra.mxu0 %v752
  %895 = vmatprep.subr.bf16.mxu0 0
  %896 = vmatpush1.bf16.msra.mxu0 %v753
  %897 = vmatprep.subr.bf16.mxu0 0
  %898 = vmatpush1.bf16.msra.mxu0 %v754
  %899 = vmatprep.subr.bf16.mxu0 0
  %900 = vmatpush1.bf16.msra.mxu0 %v755
  %901 = vmatprep.subr.bf16.mxu0 0
  %902 = vmatpush1.bf16.msra.mxu0 %v756
  %903 = vmatprep.subr.bf16.mxu0 0
  %904 = vmatpush1.bf16.msra.mxu0 %v757
  %905 = vmatprep.subr.bf16.mxu0 0
  %906 = vmatpush1.bf16.msra.mxu0 %v758
  %907 = vmatprep.subr.bf16.mxu0 0
  %908 = vmatpush1.bf16.msra.mxu0 %v759
  %909 = vmatprep.mubr.bf16.mxu0 %v513
  %910 = vmatmul.mubr.bf16.gmra.mrb[0].mxu0 %v512
  %v911 = vpop.f32.mrb[0].mxu0
  %v912 = vadd.f32 %v190, %v911
  %v913 = vpop.f32.mrb[0].mxu0
  %v914 = vpop.f32.mrb[0].mxu0
  %v915 = vadd.f32 %v190, %v914
  %v916 = vpop.f32.mrb[0].mxu0
  %917 = vmatprep.mubr.bf16.mxu0 %v516
  %918 = vmatmul.mubr.bf16.gmra.mrb[0].mxu0 %v515
  %v919 = vpop.f32.mrb[0].mxu0
  %v920 = vadd.f32 %v190, %v919
  %v921 = vpop.f32.mrb[0].mxu0
  %v922 = vpop.f32.mrb[0].mxu0
  %v923 = vadd.f32 %v190, %v922
  %v924 = vpop.f32.mrb[0].mxu0
  %925 = vmatprep.mubr.bf16.mxu0 %v519
  %926 = vmatmul.mubr.bf16.gmra.mrb[0].mxu0 %v518
  %v927 = vpop.f32.mrb[0].mxu0
  %v928 = vadd.f32 %v190, %v927
  %v929 = vpop.f32.mrb[0].mxu0
  %v930 = vpop.f32.mrb[0].mxu0
  %v931 = vadd.f32 %v190, %v930
  %v932 = vpop.f32.mrb[0].mxu0
  %933 = vmatprep.mubr.bf16.mxu0 %v522
  %934 = vmatmul.mubr.bf16.gmra.mrb[0].mxu0 %v521
  %v935 = vpop.f32.mrb[0].mxu0
  %v936 = vadd.f32 %v190, %v935
  %v937 = vpop.f32.mrb[0].mxu0
  %v938 = vpop.f32.mrb[0].mxu0
  %v939 = vadd.f32 %v190, %v938
  %v940 = vpop.f32.mrb[0].mxu0
  %941 = vmatprep.mubr.bf16.mxu0 %v525
  %942 = vmatmul.mubr.bf16.gmra.mrb[0].mxu0 %v524
  %v943 = vpop.f32.mrb[0].mxu0
  %v944 = vadd.f32 %v190, %v943
  %v945 = vpop.f32.mrb[0].mxu0
  %v946 = vpop.f32.mrb[0].mxu0
  %v947 = vadd.f32 %v190, %v946
  %v948 = vpop.f32.mrb[0].mxu0
  %949 = vmatprep.mubr.bf16.mxu0 %v528
  %950 = vmatmul.mubr.bf16.gmra.mrb[0].mxu0 %v527
  %v951 = vpop.f32.mrb[0].mxu0
  %v952 = vadd.f32 %v190, %v951
  %v953 = vpop.f32.mrb[0].mxu0
  %v954 = vpop.f32.mrb[0].mxu0
  %v955 = vadd.f32 %v190, %v954
  %v956 = vpop.f32.mrb[0].mxu0
  %957 = vmatprep.mubr.bf16.mxu0 %v531
  %958 = vmatmul.mubr.bf16.gmra.mrb[0].mxu0 %v530
  %v959 = vpop.f32.mrb[0].mxu0
  %v960 = vadd.f32 %v190, %v959
  %v961 = vpop.f32.mrb[0].mxu0
  %v962 = vpop.f32.mrb[0].mxu0
  %v963 = vadd.f32 %v190, %v962
  %v964 = vpop.f32.mrb[0].mxu0
  %965 = vmatprep.mubr.bf16.mxu0 %v534
  %966 = vmatmul.mubr.bf16.gmra.mrb[0].mxu0 %v533
  %v967 = vpop.f32.mrb[0].mxu0
  %v968 = vadd.f32 %v190, %v967
  %v969 = vpop.f32.mrb[0].mxu0
  %v970 = vpop.f32.mrb[0].mxu0
  %v971 = vadd.f32 %v190, %v970
  %v972 = vpop.f32.mrb[0].mxu0
  %973 = vmatprep.mubr.bf16.mxu0 %v537
  %974 = vmatmul.mubr.bf16.gmra.mrb[0].mxu0 %v536
  %v975 = vpop.f32.mrb[0].mxu0
  %v976 = vadd.f32 %v190, %v975
  %v977 = vpop.f32.mrb[0].mxu0
  %v978 = vpop.f32.mrb[0].mxu0
  %v979 = vadd.f32 %v190, %v978
  %v980 = vpop.f32.mrb[0].mxu0
  %981 = vmatprep.mubr.bf16.mxu0 %v540
  %982 = vmatmul.mubr.bf16.gmra.mrb[0].mxu0 %v539
  %v983 = vpop.f32.mrb[0].mxu0
  %v984 = vadd.f32 %v190, %v983
  %v985 = vpop.f32.mrb[0].mxu0
  %v986 = vpop.f32.mrb[0].mxu0
  %v987 = vadd.f32 %v190, %v986
  %v988 = vpop.f32.mrb[0].mxu0
  %989 = vmatprep.mubr.bf16.mxu0 %v543
  %990 = vmatmul.mubr.bf16.gmra.mrb[0].mxu0 %v542
  %v991 = vpop.f32.mrb[0].mxu0
  %v992 = vadd.f32 %v190, %v991
  %v993 = vpop.f32.mrb[0].mxu0
  %v994 = vpop.f32.mrb[0].mxu0
  %v995 = vadd.f32 %v190, %v994
  %v996 = vpop.f32.mrb[0].mxu0
  %997 = vmatprep.mubr.bf16.mxu0 %v546
  %998 = vmatmul.mubr.bf16.gmra.mrb[0].mxu0 %v545
  %v999 = vpop.f32.mrb[0].mxu0
  %v1000 = vadd.f32 %v190, %v999
  %v1001 = vpop.f32.mrb[0].mxu0
  %v1002 = vpop.f32.mrb[0].mxu0
  %v1003 = vadd.f32 %v190, %v1002
  %v1004 = vpop.f32.mrb[0].mxu0
  %1005 = vmatprep.mubr.bf16.mxu0 %v549
  %1006 = vmatmul.mubr.bf16.gmra.mrb[0].mxu0 %v548
  %v1007 = vpop.f32.mrb[0].mxu0
  %v1008 = vadd.f32 %v190, %v1007
  %v1009 = vpop.f32.mrb[0].mxu0
  %v1010 = vpop.f32.mrb[0].mxu0
  %v1011 = vadd.f32 %v190, %v1010
  %v1012 = vpop.f32.mrb[0].mxu0
  %1013 = vmatprep.mubr.bf16.mxu0 %v552
  %1014 = vmatmul.mubr.bf16.gmra.mrb[0].mxu0 %v551
  %v1015 = vpop.f32.mrb[0].mxu0
  %v1016 = vadd.f32 %v190, %v1015
  %v1017 = vpop.f32.mrb[0].mxu0
  %v1018 = vpop.f32.mrb[0].mxu0
  %v1019 = vadd.f32 %v190, %v1018
  %v1020 = vpop.f32.mrb[0].mxu0
  %1021 = vmatprep.mubr.bf16.mxu0 %v555
  %1022 = vmatmul.mubr.bf16.gmra.mrb[0].mxu0 %v554
  %v1023 = vpop.f32.mrb[0].mxu0
  %v1024 = vadd.f32 %v190, %v1023
  %v1025 = vpop.f32.mrb[0].mxu0
  %v1026 = vpop.f32.mrb[0].mxu0
  %v1027 = vadd.f32 %v190, %v1026
  %v1028 = vpop.f32.mrb[0].mxu0
  %1029 = vmatprep.mubr.bf16.mxu0 %v558
  %1030 = vmatmul.mubr.bf16.gmra.mrb[0].mxu0 %v557
  %v1031 = vpop.f32.mrb[0].mxu0
  %v1032 = vadd.f32 %v190, %v1031
  %v1033 = vpop.f32.mrb[0].mxu0
  %v1034 = vpop.f32.mrb[0].mxu0
  %v1035 = vadd.f32 %v190, %v1034
  %v1036 = vpop.f32.mrb[0].mxu0
  %1037 = vmatprep.mubr.bf16.mxu0 %v561
  %1038 = vmatmul.mubr.bf16.gmra.mrb[0].mxu0 %v560
  %v1039 = vpop.f32.mrb[0].mxu0
  %v1040 = vadd.f32 %v190, %v1039
  %v1041 = vpop.f32.mrb[0].mxu0
  %v1042 = vpop.f32.mrb[0].mxu0
  %v1043 = vadd.f32 %v190, %v1042
  %v1044 = vpop.f32.mrb[0].mxu0
  %1045 = vmatprep.mubr.bf16.mxu0 %v564
  %1046 = vmatmul.mubr.bf16.gmra.mrb[0].mxu0 %v563
  %v1047 = vpop.f32.mrb[0].mxu0
  %v1048 = vadd.f32 %v190, %v1047
  %v1049 = vpop.f32.mrb[0].mxu0
  %v1050 = vpop.f32.mrb[0].mxu0
  %v1051 = vadd.f32 %v190, %v1050
  %v1052 = vpop.f32.mrb[0].mxu0
  %1053 = vmatprep.mubr.bf16.mxu0 %v567
  %1054 = vmatmul.mubr.bf16.gmra.mrb[0].mxu0 %v566
  %v1055 = vpop.f32.mrb[0].mxu0
  %v1056 = vadd.f32 %v190, %v1055
  %v1057 = vpop.f32.mrb[0].mxu0
  %v1058 = vpop.f32.mrb[0].mxu0
  %v1059 = vadd.f32 %v190, %v1058
  %v1060 = vpop.f32.mrb[0].mxu0
  %1061 = vmatprep.mubr.bf16.mxu0 %v570
  %1062 = vmatmul.mubr.bf16.gmra.mrb[0].mxu0 %v569
  %v1063 = vpop.f32.mrb[0].mxu0
  %v1064 = vadd.f32 %v190, %v1063
  %v1065 = vpop.f32.mrb[0].mxu0
  %v1066 = vpop.f32.mrb[0].mxu0
  %v1067 = vadd.f32 %v190, %v1066
  %v1068 = vpop.f32.mrb[0].mxu0
  %1069 = vmatprep.mubr.bf16.mxu0 %v573
  %1070 = vmatmul.mubr.bf16.gmra.mrb[0].mxu0 %v572
  %v1071 = vpop.f32.mrb[0].mxu0
  %v1072 = vadd.f32 %v190, %v1071
  %v1073 = vpop.f32.mrb[0].mxu0
  %v1074 = vpop.f32.mrb[0].mxu0
  %v1075 = vadd.f32 %v190, %v1074
  %v1076 = vpop.f32.mrb[0].mxu0
  %1077 = vmatprep.mubr.bf16.mxu0 %v576
  %1078 = vmatmul.mubr.bf16.gmra.mrb[0].mxu0 %v575
  %v1079 = vpop.f32.mrb[0].mxu0
  %v1080 = vadd.f32 %v190, %v1079
  %v1081 = vpop.f32.mrb[0].mxu0
  %v1082 = vpop.f32.mrb[0].mxu0
  %v1083 = vadd.f32 %v190, %v1082
  %v1084 = vpop.f32.mrb[0].mxu0
  %1085 = vmatprep.mubr.bf16.mxu0 %v579
  %1086 = vmatmul.mubr.bf16.gmra.mrb[0].mxu0 %v578
  %v1087 = vpop.f32.mrb[0].mxu0
  %v1088 = vadd.f32 %v190, %v1087
  %v1089 = vpop.f32.mrb[0].mxu0
  %v1090 = vpop.f32.mrb[0].mxu0
  %v1091 = vadd.f32 %v190, %v1090
  %v1092 = vpop.f32.mrb[0].mxu0
  %1093 = vmatprep.mubr.bf16.mxu0 %v582
  %1094 = vmatmul.mubr.bf16.gmra.mrb[0].mxu0 %v581
  %v1095 = vpop.f32.mrb[0].mxu0
  %v1096 = vadd.f32 %v190, %v1095
  %v1097 = vpop.f32.mrb[0].mxu0
  %v1098 = vpop.f32.mrb[0].mxu0
  %v1099 = vadd.f32 %v190, %v1098
  %v1100 = vpop.f32.mrb[0].mxu0
  %1101 = vmatprep.mubr.bf16.mxu0 %v585
  %1102 = vmatmul.mubr.bf16.gmra.mrb[0].mxu0 %v584
  %v1103 = vpop.f32.mrb[0].mxu0
  %v1104 = vadd.f32 %v190, %v1103
  %v1105 = vpop.f32.mrb[0].mxu0
  %v1106 = vpop.f32.mrb[0].mxu0
  %v1107 = vadd.f32 %v190, %v1106
  %v1108 = vpop.f32.mrb[0].mxu0
  %1109 = vmatprep.mubr.bf16.mxu0 %v588
  %1110 = vmatmul.mubr.bf16.gmra.mrb[0].mxu0 %v587
  %v1111 = vpop.f32.mrb[0].mxu0
  %v1112 = vadd.f32 %v190, %v1111
  %v1113 = vpop.f32.mrb[0].mxu0
  %v1114 = vpop.f32.mrb[0].mxu0
  %v1115 = vadd.f32 %v190, %v1114
  %v1116 = vpop.f32.mrb[0].mxu0
  %1117 = vmatprep.mubr.bf16.mxu0 %v591
  %1118 = vmatmul.mubr.bf16.gmra.mrb[0].mxu0 %v590
  %v1119 = vpop.f32.mrb[0].mxu0
  %v1120 = vadd.f32 %v190, %v1119
  %v1121 = vpop.f32.mrb[0].mxu0
  %v1122 = vpop.f32.mrb[0].mxu0
  %v1123 = vadd.f32 %v190, %v1122
  %v1124 = vpop.f32.mrb[0].mxu0
  %1125 = vmatprep.mubr.bf16.mxu0 %v594
  %1126 = vmatmul.mubr.bf16.gmra.mrb[0].mxu0 %v593
  %v1127 = vpop.f32.mrb[0].mxu0
  %v1128 = vadd.f32 %v190, %v1127
  %v1129 = vpop.f32.mrb[0].mxu0
  %v1130 = vpop.f32.mrb[0].mxu0
  %v1131 = vadd.f32 %v190, %v1130
  %v1132 = vpop.f32.mrb[0].mxu0
  %1133 = vmatprep.mubr.bf16.mxu0 %v597
  %1134 = vmatmul.mubr.bf16.gmra.mrb[0].mxu0 %v596
  %v1135 = vpop.f32.mrb[0].mxu0
  %v1136 = vadd.f32 %v190, %v1135
  %v1137 = vpop.f32.mrb[0].mxu0
  %v1138 = vpop.f32.mrb[0].mxu0
  %v1139 = vadd.f32 %v190, %v1138
  %v1140 = vpop.f32.mrb[0].mxu0
  %1141 = vmatprep.mubr.bf16.mxu0 %v600
  %1142 = vmatmul.mubr.bf16.gmra.mrb[0].mxu0 %v599
  %v1143 = vpop.f32.mrb[0].mxu0
  %v1144 = vadd.f32 %v190, %v1143
  %v1145 = vpop.f32.mrb[0].mxu0
  %v1146 = vpop.f32.mrb[0].mxu0
  %v1147 = vadd.f32 %v190, %v1146
  %v1148 = vpop.f32.mrb[0].mxu0
  %1149 = vmatprep.mubr.bf16.mxu0 %v603
  %1150 = vmatmul.mubr.bf16.gmra.mrb[0].mxu0 %v602
  %v1151 = vpop.f32.mrb[0].mxu0
  %v1152 = vadd.f32 %v190, %v1151
  %v1153 = vpop.f32.mrb[0].mxu0
  %v1154 = vpop.f32.mrb[0].mxu0
  %v1155 = vadd.f32 %v190, %v1154
  %v1156 = vpop.f32.mrb[0].mxu0
  %1157 = vmatprep.mubr.bf16.mxu0 %v606
  %1158 = vmatmul.mubr.bf16.gmra.mrb[0].mxu0 %v605
  %v1159 = vpop.f32.mrb[0].mxu0
  %v1160 = vadd.f32 %v190, %v1159
  %v1161 = vpop.f32.mrb[0].mxu0
  %v1162 = vpop.f32.mrb[0].mxu0
  %v1163 = vadd.f32 %v190, %v1162
  %v1164 = vpop.f32.mrb[0].mxu0
  %1165 = vdwg.mxu0
  %1166 = vmatprep.subr.bf16.mxu0 0
  %1167 = vmatpush1.bf16.msra.mxu0 %v760
  %1168 = vmatprep.subr.bf16.mxu0 0
  %1169 = vmatpush1.bf16.msra.mxu0 %v761
  %1170 = vmatprep.subr.bf16.mxu0 0
  %1171 = vmatpush1.bf16.msra.mxu0 0
  %1172 = vmatprep.subr.bf16.mxu0 0
  %1173 = vmatpush1.bf16.msra.mxu0 0
  %1174 = vmatprep.subr.bf16.mxu0 0
  %1175 = vmatpush1.bf16.msra.mxu0 0
  %1176 = vmatprep.subr.bf16.mxu0 0
  %1177 = vmatpush1.bf16.msra.mxu0 0
  %1178 = vmatprep.subr.bf16.mxu0 0
  %1179 = vmatpush1.bf16.msra.mxu0 0
  %1180 = vmatprep.subr.bf16.mxu0 0
  %1181 = vmatpush1.bf16.msra.mxu0 0
  %1182 = vmatprep.subr.bf16.mxu0 0
  %1183 = vmatpush1.bf16.msra.mxu0 0
  %1184 = vmatprep.subr.bf16.mxu0 0
  %1185 = vmatpush1.bf16.msra.mxu0 0
  %1186 = vmatprep.subr.bf16.mxu0 0
  %1187 = vmatpush1.bf16.msra.mxu0 0
  %1188 = vmatprep.subr.bf16.mxu0 0
  %1189 = vmatpush1.bf16.msra.mxu0 0
  %1190 = vmatprep.subr.bf16.mxu0 0
  %1191 = vmatpush1.bf16.msra.mxu0 0
  %1192 = vmatprep.subr.bf16.mxu0 0
  %1193 = vmatpush1.bf16.msra.mxu0 0
  %1194 = vmatprep.subr.bf16.mxu0 0
  %1195 = vmatpush1.bf16.msra.mxu0 0
  %1196 = vmatprep.subr.bf16.mxu0 0
  %1197 = vmatpush1.bf16.msra.mxu0 0
  %1198 = vmatprep.mubr.bf16.mxu0 0
  %1199 = vmatmul.mubr.bf16.gmra.mrb[0].mxu0 %v782
  %v1200 = vpop.f32.mrb[0].mxu0
  %v1201 = vadd.f32 %v912, %v1200
  %v1202 = vpop.f32.mrb[0].mxu0
  %v1203 = vpop.f32.mrb[0].mxu0
  %v1204 = vadd.f32 %v915, %v1203
  %v1205 = vpop.f32.mrb[0].mxu0
  %1206 = vmatprep.mubr.bf16.mxu0 0
  %1207 = vmatmul.mubr.bf16.gmra.mrb[0].mxu0 %v785
  %v1208 = vpop.f32.mrb[0].mxu0
  %v1209 = vadd.f32 %v920, %v1208
  %v1210 = vpop.f32.mrb[0].mxu0
  %v1211 = vpop.f32.mrb[0].mxu0
  %v1212 = vadd.f32 %v923, %v1211
  %v1213 = vpop.f32.mrb[0].mxu0
  %1214 = vmatprep.mubr.bf16.mxu0 0
  %1215 = vmatmul.mubr.bf16.gmra.mrb[0].mxu0 %v788
  %v1216 = vpop.f32.mrb[0].mxu0
  %v1217 = vadd.f32 %v928, %v1216
  %v1218 = vpop.f32.mrb[0].mxu0
  %v1219 = vpop.f32.mrb[0].mxu0
  %v1220 = vadd.f32 %v931, %v1219
  %v1221 = vpop.f32.mrb[0].mxu0
  %1222 = vmatprep.mubr.bf16.mxu0 0
  %1223 = vmatmul.mubr.bf16.gmra.mrb[0].mxu0 %v791
  %v1224 = vpop.f32.mrb[0].mxu0
  %v1225 = vadd.f32 %v936, %v1224
  %v1226 = vpop.f32.mrb[0].mxu0
  %v1227 = vpop.f32.mrb[0].mxu0
  %v1228 = vadd.f32 %v939, %v1227
  %v1229 = vpop.f32.mrb[0].mxu0
  %1230 = vmatprep.mubr.bf16.mxu0 0
  %1231 = vmatmul.mubr.bf16.gmra.mrb[0].mxu0 %v794
  %v1232 = vpop.f32.mrb[0].mxu0
  %v1233 = vadd.f32 %v944, %v1232
  %v1234 = vpop.f32.mrb[0].mxu0
  %v1235 = vpop.f32.mrb[0].mxu0
  %v1236 = vadd.f32 %v947, %v1235
  %v1237 = vpop.f32.mrb[0].mxu0
  %1238 = vmatprep.mubr.bf16.mxu0 0
  %1239 = vmatmul.mubr.bf16.gmra.mrb[0].mxu0 %v797
  %v1240 = vpop.f32.mrb[0].mxu0
  %v1241 = vadd.f32 %v952, %v1240
  %v1242 = vpop.f32.mrb[0].mxu0
  %v1243 = vpop.f32.mrb[0].mxu0
  %v1244 = vadd.f32 %v955, %v1243
  %v1245 = vpop.f32.mrb[0].mxu0
  %1246 = vmatprep.mubr.bf16.mxu0 0
  %1247 = vmatmul.mubr.bf16.gmra.mrb[0].mxu0 %v800
  %v1248 = vpop.f32.mrb[0].mxu0
  %v1249 = vadd.f32 %v960, %v1248
  %v1250 = vpop.f32.mrb[0].mxu0
  %v1251 = vpop.f32.mrb[0].mxu0
  %v1252 = vadd.f32 %v963, %v1251
  %v1253 = vpop.f32.mrb[0].mxu0
  %1254 = vmatprep.mubr.bf16.mxu0 0
  %1255 = vmatmul.mubr.bf16.gmra.mrb[0].mxu0 %v803
  %v1256 = vpop.f32.mrb[0].mxu0
  %v1257 = vadd.f32 %v968, %v1256
  %v1258 = vpop.f32.mrb[0].mxu0
  %v1259 = vpop.f32.mrb[0].mxu0
  %v1260 = vadd.f32 %v971, %v1259
  %v1261 = vpop.f32.mrb[0].mxu0
  %1262 = vmatprep.mubr.bf16.mxu0 0
  %1263 = vmatmul.mubr.bf16.gmra.mrb[0].mxu0 %v806
  %v1264 = vpop.f32.mrb[0].mxu0
  %v1265 = vadd.f32 %v976, %v1264
  %v1266 = vpop.f32.mrb[0].mxu0
  %v1267 = vpop.f32.mrb[0].mxu0
  %v1268 = vadd.f32 %v979, %v1267
  %v1269 = vpop.f32.mrb[0].mxu0
  %1270 = vmatprep.mubr.bf16.mxu0 0
  %1271 = vmatmul.mubr.bf16.gmra.mrb[0].mxu0 %v809
  %v1272 = vpop.f32.mrb[0].mxu0
  %v1273 = vadd.f32 %v984, %v1272
  %v1274 = vpop.f32.mrb[0].mxu0
  %v1275 = vpop.f32.mrb[0].mxu0
  %v1276 = vadd.f32 %v987, %v1275
  %v1277 = vpop.f32.mrb[0].mxu0
  %1278 = vmatprep.mubr.bf16.mxu0 0
  %1279 = vmatmul.mubr.bf16.gmra.mrb[0].mxu0 %v812
  %v1280 = vpop.f32.mrb[0].mxu0
  %v1281 = vadd.f32 %v992, %v1280
  %v1282 = vpop.f32.mrb[0].mxu0
  %v1283 = vpop.f32.mrb[0].mxu0
  %v1284 = vadd.f32 %v995, %v1283
  %v1285 = vpop.f32.mrb[0].mxu0
  %1286 = vmatprep.mubr.bf16.mxu0 0
  %1287 = vmatmul.mubr.bf16.gmra.mrb[0].mxu0 %v815
  %v1288 = vpop.f32.mrb[0].mxu0
  %v1289 = vadd.f32 %v1000, %v1288
  %v1290 = vpop.f32.mrb[0].mxu0
  %v1291 = vpop.f32.mrb[0].mxu0
  %v1292 = vadd.f32 %v1003, %v1291
  %v1293 = vpop.f32.mrb[0].mxu0
  %1294 = vmatprep.mubr.bf16.mxu0 0
  %1295 = vmatmul.mubr.bf16.gmra.mrb[0].mxu0 %v818
  %v1296 = vpop.f32.mrb[0].mxu0
  %v1297 = vadd.f32 %v1008, %v1296
  %v1298 = vpop.f32.mrb[0].mxu0
  %v1299 = vpop.f32.mrb[0].mxu0
  %v1300 = vadd.f32 %v1011, %v1299
  %v1301 = vpop.f32.mrb[0].mxu0
  %1302 = vmatprep.mubr.bf16.mxu0 0
  %1303 = vmatmul.mubr.bf16.gmra.mrb[0].mxu0 %v821
  %v1304 = vpop.f32.mrb[0].mxu0
  %v1305 = vadd.f32 %v1016, %v1304
  %v1306 = vpop.f32.mrb[0].mxu0
  %v1307 = vpop.f32.mrb[0].mxu0
  %v1308 = vadd.f32 %v1019, %v1307
  %v1309 = vpop.f32.mrb[0].mxu0
  %1310 = vmatprep.mubr.bf16.mxu0 0
  %1311 = vmatmul.mubr.bf16.gmra.mrb[0].mxu0 %v824
  %v1312 = vpop.f32.mrb[0].mxu0
  %v1313 = vadd.f32 %v1024, %v1312
  %v1314 = vpop.f32.mrb[0].mxu0
  %v1315 = vpop.f32.mrb[0].mxu0
  %v1316 = vadd.f32 %v1027, %v1315
  %v1317 = vpop.f32.mrb[0].mxu0
  %1318 = vmatprep.mubr.bf16.mxu0 0
  %1319 = vmatmul.mubr.bf16.gmra.mrb[0].mxu0 %v827
  %v1320 = vpop.f32.mrb[0].mxu0
  %v1321 = vadd.f32 %v1032, %v1320
  %v1322 = vpop.f32.mrb[0].mxu0
  %v1323 = vpop.f32.mrb[0].mxu0
  %v1324 = vadd.f32 %v1035, %v1323
  %v1325 = vpop.f32.mrb[0].mxu0
  %1326 = vmatprep.mubr.bf16.mxu0 0
  %1327 = vmatmul.mubr.bf16.gmra.mrb[0].mxu0 %v830
  %v1328 = vpop.f32.mrb[0].mxu0
  %v1329 = vadd.f32 %v1040, %v1328
  %v1330 = vpop.f32.mrb[0].mxu0
  %v1331 = vpop.f32.mrb[0].mxu0
  %v1332 = vadd.f32 %v1043, %v1331
  %v1333 = vpop.f32.mrb[0].mxu0
  %1334 = vmatprep.mubr.bf16.mxu0 0
  %1335 = vmatmul.mubr.bf16.gmra.mrb[0].mxu0 %v833
  %v1336 = vpop.f32.mrb[0].mxu0
  %v1337 = vadd.f32 %v1048, %v1336
  %v1338 = vpop.f32.mrb[0].mxu0
  %v1339 = vpop.f32.mrb[0].mxu0
  %v1340 = vadd.f32 %v1051, %v1339
  %v1341 = vpop.f32.mrb[0].mxu0
  %1342 = vmatprep.mubr.bf16.mxu0 0
  %1343 = vmatmul.mubr.bf16.gmra.mrb[0].mxu0 %v836
  %v1344 = vpop.f32.mrb[0].mxu0
  %v1345 = vadd.f32 %v1056, %v1344
  %v1346 = vpop.f32.mrb[0].mxu0
  %v1347 = vpop.f32.mrb[0].mxu0
  %v1348 = vadd.f32 %v1059, %v1347
  %v1349 = vpop.f32.mrb[0].mxu0
  %1350 = vmatprep.mubr.bf16.mxu0 0
  %1351 = vmatmul.mubr.bf16.gmra.mrb[0].mxu0 %v839
  %v1352 = vpop.f32.mrb[0].mxu0
  %v1353 = vadd.f32 %v1064, %v1352
  %v1354 = vpop.f32.mrb[0].mxu0
  %v1355 = vpop.f32.mrb[0].mxu0
  %v1356 = vadd.f32 %v1067, %v1355
  %v1357 = vpop.f32.mrb[0].mxu0
  %1358 = vmatprep.mubr.bf16.mxu0 0
  %1359 = vmatmul.mubr.bf16.gmra.mrb[0].mxu0 %v842
  %v1360 = vpop.f32.mrb[0].mxu0
  %v1361 = vadd.f32 %v1072, %v1360
  %v1362 = vpop.f32.mrb[0].mxu0
  %v1363 = vpop.f32.mrb[0].mxu0
  %v1364 = vadd.f32 %v1075, %v1363
  %v1365 = vpop.f32.mrb[0].mxu0
  %1366 = vmatprep.mubr.bf16.mxu0 0
  %1367 = vmatmul.mubr.bf16.gmra.mrb[0].mxu0 %v845
  %v1368 = vpop.f32.mrb[0].mxu0
  %v1369 = vadd.f32 %v1080, %v1368
  %v1370 = vpop.f32.mrb[0].mxu0
  %v1371 = vpop.f32.mrb[0].mxu0
  %v1372 = vadd.f32 %v1083, %v1371
  %v1373 = vpop.f32.mrb[0].mxu0
  %1374 = vmatprep.mubr.bf16.mxu0 0
  %1375 = vmatmul.mubr.bf16.gmra.mrb[0].mxu0 %v848
  %v1376 = vpop.f32.mrb[0].mxu0
  %v1377 = vadd.f32 %v1088, %v1376
  %v1378 = vpop.f32.mrb[0].mxu0
  %v1379 = vpop.f32.mrb[0].mxu0
  %v1380 = vadd.f32 %v1091, %v1379
  %v1381 = vpop.f32.mrb[0].mxu0
  %1382 = vmatprep.mubr.bf16.mxu0 0
  %1383 = vmatmul.mubr.bf16.gmra.mrb[0].mxu0 %v851
  %v1384 = vpop.f32.mrb[0].mxu0
  %v1385 = vadd.f32 %v1096, %v1384
  %v1386 = vpop.f32.mrb[0].mxu0
  %v1387 = vpop.f32.mrb[0].mxu0
  %v1388 = vadd.f32 %v1099, %v1387
  %v1389 = vpop.f32.mrb[0].mxu0
  %1390 = vmatprep.mubr.bf16.mxu0 0
  %1391 = vmatmul.mubr.bf16.gmra.mrb[0].mxu0 %v854
  %v1392 = vpop.f32.mrb[0].mxu0
  %v1393 = vadd.f32 %v1104, %v1392
  %v1394 = vpop.f32.mrb[0].mxu0
  %v1395 = vpop.f32.mrb[0].mxu0
  %v1396 = vadd.f32 %v1107, %v1395
  %v1397 = vpop.f32.mrb[0].mxu0
  %1398 = vmatprep.mubr.bf16.mxu0 0
  %1399 = vmatmul.mubr.bf16.gmra.mrb[0].mxu0 %v857
  %v1400 = vpop.f32.mrb[0].mxu0
  %v1401 = vadd.f32 %v1112, %v1400
  %v1402 = vpop.f32.mrb[0].mxu0
  %v1403 = vpop.f32.mrb[0].mxu0
  %v1404 = vadd.f32 %v1115, %v1403
  %v1405 = vpop.f32.mrb[0].mxu0
  %1406 = vmatprep.mubr.bf16.mxu0 0
  %1407 = vmatmul.mubr.bf16.gmra.mrb[0].mxu0 %v860
  %v1408 = vpop.f32.mrb[0].mxu0
  %v1409 = vadd.f32 %v1120, %v1408
  %v1410 = vpop.f32.mrb[0].mxu0
  %v1411 = vpop.f32.mrb[0].mxu0
  %v1412 = vadd.f32 %v1123, %v1411
  %v1413 = vpop.f32.mrb[0].mxu0
  %1414 = vmatprep.mubr.bf16.mxu0 0
  %1415 = vmatmul.mubr.bf16.gmra.mrb[0].mxu0 %v863
  %v1416 = vpop.f32.mrb[0].mxu0
  %v1417 = vadd.f32 %v1128, %v1416
  %v1418 = vpop.f32.mrb[0].mxu0
  %v1419 = vpop.f32.mrb[0].mxu0
  %v1420 = vadd.f32 %v1131, %v1419
  %v1421 = vpop.f32.mrb[0].mxu0
  %1422 = vmatprep.mubr.bf16.mxu0 0
  %1423 = vmatmul.mubr.bf16.gmra.mrb[0].mxu0 %v866
  %v1424 = vpop.f32.mrb[0].mxu0
  %v1425 = vadd.f32 %v1136, %v1424
  %v1426 = vpop.f32.mrb[0].mxu0
  %v1427 = vpop.f32.mrb[0].mxu0
  %v1428 = vadd.f32 %v1139, %v1427
  %v1429 = vpop.f32.mrb[0].mxu0
  %1430 = vmatprep.mubr.bf16.mxu0 0
  %1431 = vmatmul.mubr.bf16.gmra.mrb[0].mxu0 %v869
  %v1432 = vpop.f32.mrb[0].mxu0
  %v1433 = vadd.f32 %v1144, %v1432
  %v1434 = vpop.f32.mrb[0].mxu0
  %v1435 = vpop.f32.mrb[0].mxu0
  %v1436 = vadd.f32 %v1147, %v1435
  %v1437 = vpop.f32.mrb[0].mxu0
  %1438 = vmatprep.mubr.bf16.mxu0 0
  %1439 = vmatmul.mubr.bf16.gmra.mrb[0].mxu0 %v872
  %v1440 = vpop.f32.mrb[0].mxu0
  %v1441 = vadd.f32 %v1152, %v1440
  %v1442 = vpop.f32.mrb[0].mxu0
  %v1443 = vpop.f32.mrb[0].mxu0
  %v1444 = vadd.f32 %v1155, %v1443
  %v1445 = vpop.f32.mrb[0].mxu0
  %1446 = vmatprep.mubr.bf16.mxu0 0
  %1447 = vmatmul.mubr.bf16.gmra.mrb[0].mxu0 %v875
  %v1448 = vpop.f32.mrb[0].mxu0
  %v1449 = vadd.f32 %v1160, %v1448
  %v1450 = vpop.f32.mrb[0].mxu0
  %v1451 = vpop.f32.mrb[0].mxu0
  %v1452 = vadd.f32 %v1163, %v1451
  %v1453 = vpop.f32.mrb[0].mxu0
  %1454 = vdwg.mxu0
  %v1455 = vadd.f32 %v1201, %v1204
  %v1456 = vadd.f32 %v1455, %v1209
  %v1457 = vadd.f32 %v1456, %v1212
  %v1458 = vadd.f32 %v1457, %v1217
  %v1459 = vadd.f32 %v1458, %v1220
  %v1460 = vadd.f32 %v1459, %v1225
  %v1461 = vadd.f32 %v1460, %v1228
  %v1462 = vadd.f32 %v1461, %v1233
  %v1463 = vadd.f32 %v1462, %v1236
  %v1464 = vadd.f32 %v1463, %v1241
  %v1465 = vadd.f32 %v1464, %v1244
  %v1466 = vadd.f32 %v1465, %v1249
  %v1467 = vadd.f32 %v1466, %v1252
  %v1468 = vadd.f32 %v1467, %v1257
  %v1469 = vadd.f32 %v1468, %v1260
  %v1470 = vadd.f32 %v1469, %v1265
  %v1471 = vadd.f32 %v1470, %v1268
  %v1472 = vadd.f32 %v1471, %v1273
  %v1473 = vadd.f32 %v1472, %v1276
  %v1474 = vadd.f32 %v1473, %v1281
  %v1475 = vadd.f32 %v1474, %v1284
  %v1476 = vadd.f32 %v1475, %v1289
  %v1477 = vadd.f32 %v1476, %v1292
  %v1478 = vadd.f32 %v1477, %v1297
  %v1479 = vadd.f32 %v1478, %v1300
  %v1480 = vadd.f32 %v1479, %v1305
  %v1481 = vadd.f32 %v1480, %v1308
  %v1482 = vadd.f32 %v1481, %v1313
  %v1483 = vadd.f32 %v1482, %v1316
  %v1484 = vadd.f32 %v1483, %v1321
  %v1485 = vadd.f32 %v1484, %v1324
  %v1486 = vadd.f32 %v1485, %v1329
  %v1487 = vadd.f32 %v1486, %v1332
  %v1488 = vadd.f32 %v1487, %v1337
  %v1489 = vadd.f32 %v1488, %v1340
  %v1490 = vadd.f32 %v1489, %v1345
  %v1491 = vadd.f32 %v1490, %v1348
  %v1492 = vadd.f32 %v1491, %v1353
  %v1493 = vadd.f32 %v1492, %v1356
  %v1494 = vadd.f32 %v1493, %v1361
  %v1495 = vadd.f32 %v1494, %v1364
  %v1496 = vadd.f32 %v1495, %v1369
  %v1497 = vadd.f32 %v1496, %v1372
  %v1498 = vadd.f32 %v1497, %v1377
  %v1499 = vadd.f32 %v1498, %v1380
  %v1500 = vadd.f32 %v1499, %v1385
  %v1501 = vadd.f32 %v1500, %v1388
  %v1502 = vadd.f32 %v1501, %v1393
  %v1503 = vadd.f32 %v1502, %v1396
  %v1504 = vadd.f32 %v1503, %v1401
  %v1505 = vadd.f32 %v1504, %v1404
  %v1506 = vadd.f32 %v1505, %v1409
  %v1507 = vadd.f32 %v1506, %v1412
  %v1508 = vadd.f32 %v1507, %v1417
  %v1509 = vadd.f32 %v1508, %v1420
  %v1510 = vadd.f32 %v1509, %v1425
  %v1511 = vadd.f32 %v1510, %v1428
  %v1512 = vadd.f32 %v1511, %v1433
  %v1513 = vadd.f32 %v1512, %v1436
  %v1514 = vadd.f32 %v1513, %v1441
  %v1515 = vadd.f32 %v1514, %v1444
  %v1516 = vadd.f32 %v1515, %v1449
  %v1517 = vadd.f32 %v1516, %v1452
  %v1518 = vrot.slane %v1517, 4
  %v1519 = vadd.f32 %v1517, %v1518
  %v1520 = vrot.slane %v1519, 2
  %v1521 = vadd.f32 %v1519, %v1520
  %v1522 = vrot.slane %v1521, 1
  %v1523 = vadd.f32 %v1521, %v1522
  %v1524 = vrcp.pop 512.0
  %v1525 = vmul.f32 %v1523, %v1524
  %v1526 = vsub.f32 %v1201, %v1525
  %v1527 = vsub.f32 %v1204, %v1525
  %v1528 = vsub.f32 %v1209, %v1525
  %v1529 = vsub.f32 %v1212, %v1525
  %v1530 = vsub.f32 %v1217, %v1525
  %v1531 = vsub.f32 %v1220, %v1525
  %v1532 = vsub.f32 %v1225, %v1525
  %v1533 = vsub.f32 %v1228, %v1525
  %v1534 = vsub.f32 %v1233, %v1525
  %v1535 = vsub.f32 %v1236, %v1525
  %v1536 = vsub.f32 %v1241, %v1525
  %v1537 = vsub.f32 %v1244, %v1525
  %v1538 = vsub.f32 %v1249, %v1525
  %v1539 = vsub.f32 %v1252, %v1525
  %v1540 = vsub.f32 %v1257, %v1525
  %v1541 = vsub.f32 %v1260, %v1525
  %v1542 = vsub.f32 %v1265, %v1525
  %v1543 = vsub.f32 %v1268, %v1525
  %v1544 = vsub.f32 %v1273, %v1525
  %v1545 = vsub.f32 %v1276, %v1525
  %v1546 = vsub.f32 %v1281, %v1525
  %v1547 = vsub.f32 %v1284, %v1525
  %v1548 = vsub.f32 %v1289, %v1525
  %v1549 = vsub.f32 %v1292, %v1525
  %v1550 = vsub.f32 %v1297, %v1525
  %v1551 = vsub.f32 %v1300, %v1525
  %v1552 = vsub.f32 %v1305, %v1525
  %v1553 = vsub.f32 %v1308, %v1525
  %v1554 = vsub.f32 %v1313, %v1525
  %v1555 = vsub.f32 %v1316, %v1525
  %v1556 = vsub.f32 %v1321, %v1525
  %v1557 = vsub.f32 %v1324, %v1525
  %v1558 = vsub.f32 %v1329, %v1525
  %v1559 = vsub.f32 %v1332, %v1525
  %v1560 = vsub.f32 %v1337, %v1525
  %v1561 = vsub.f32 %v1340, %v1525
  %v1562 = vsub.f32 %v1345, %v1525
  %v1563 = vsub.f32 %v1348, %v1525
  %v1564 = vsub.f32 %v1353, %v1525
  %v1565 = vsub.f32 %v1356, %v1525
  %v1566 = vsub.f32 %v1361, %v1525
  %v1567 = vsub.f32 %v1364, %v1525
  %v1568 = vsub.f32 %v1369, %v1525
  %v1569 = vsub.f32 %v1372, %v1525
  %v1570 = vsub.f32 %v1377, %v1525
  %v1571 = vsub.f32 %v1380, %v1525
  %v1572 = vsub.f32 %v1385, %v1525
  %v1573 = vsub.f32 %v1388, %v1525
  %v1574 = vsub.f32 %v1393, %v1525
  %v1575 = vsub.f32 %v1396, %v1525
  %v1576 = vsub.f32 %v1401, %v1525
  %v1577 = vsub.f32 %v1404, %v1525
  %v1578 = vsub.f32 %v1409, %v1525
  %v1579 = vsub.f32 %v1412, %v1525
  %v1580 = vsub.f32 %v1417, %v1525
  %v1581 = vsub.f32 %v1420, %v1525
  %v1582 = vsub.f32 %v1425, %v1525
  %v1583 = vsub.f32 %v1428, %v1525
  %v1584 = vsub.f32 %v1433, %v1525
  %v1585 = vsub.f32 %v1436, %v1525
  %v1586 = vsub.f32 %v1441, %v1525
  %v1587 = vsub.f32 %v1444, %v1525
  %v1588 = vsub.f32 %v1449, %v1525
  %v1589 = vsub.f32 %v1452, %v1525
  %v1590 = vmul.f32 %v1526, %v1526
  %v1591 = vmul.f32 %v1527, %v1527
  %v1592 = vmul.f32 %v1528, %v1528
  %v1593 = vmul.f32 %v1529, %v1529
  %v1594 = vmul.f32 %v1530, %v1530
  %v1595 = vmul.f32 %v1531, %v1531
  %v1596 = vmul.f32 %v1532, %v1532
  %v1597 = vmul.f32 %v1533, %v1533
  %v1598 = vmul.f32 %v1534, %v1534
  %v1599 = vmul.f32 %v1535, %v1535
  %v1600 = vmul.f32 %v1536, %v1536
  %v1601 = vmul.f32 %v1537, %v1537
  %v1602 = vmul.f32 %v1538, %v1538
  %v1603 = vmul.f32 %v1539, %v1539
  %v1604 = vmul.f32 %v1540, %v1540
  %v1605 = vmul.f32 %v1541, %v1541
  %v1606 = vmul.f32 %v1542, %v1542
  %v1607 = vmul.f32 %v1543, %v1543
  %v1608 = vmul.f32 %v1544, %v1544
  %v1609 = vmul.f32 %v1545, %v1545
  %v1610 = vmul.f32 %v1546, %v1546
  %v1611 = vmul.f32 %v1547, %v1547
  %v1612 = vmul.f32 %v1548, %v1548
  %v1613 = vmul.f32 %v1549, %v1549
  %v1614 = vmul.f32 %v1550, %v1550
  %v1615 = vmul.f32 %v1551, %v1551
  %v1616 = vmul.f32 %v1552, %v1552
  %v1617 = vmul.f32 %v1553, %v1553
  %v1618 = vmul.f32 %v1554, %v1554
  %v1619 = vmul.f32 %v1555, %v1555
  %v1620 = vmul.f32 %v1556, %v1556
  %v1621 = vmul.f32 %v1557, %v1557
  %v1622 = vmul.f32 %v1558, %v1558
  %v1623 = vmul.f32 %v1559, %v1559
  %v1624 = vmul.f32 %v1560, %v1560
  %v1625 = vmul.f32 %v1561, %v1561
  %v1626 = vmul.f32 %v1562, %v1562
  %v1627 = vmul.f32 %v1563, %v1563
  %v1628 = vmul.f32 %v1564, %v1564
  %v1629 = vmul.f32 %v1565, %v1565
  %v1630 = vmul.f32 %v1566, %v1566
  %v1631 = vmul.f32 %v1567, %v1567
  %v1632 = vmul.f32 %v1568, %v1568
  %v1633 = vmul.f32 %v1569, %v1569
  %v1634 = vmul.f32 %v1570, %v1570
  %v1635 = vmul.f32 %v1571, %v1571
  %v1636 = vmul.f32 %v1572, %v1572
  %v1637 = vmul.f32 %v1573, %v1573
  %v1638 = vmul.f32 %v1574, %v1574
  %v1639 = vmul.f32 %v1575, %v1575
  %v1640 = vmul.f32 %v1576, %v1576
  %v1641 = vmul.f32 %v1577, %v1577
  %v1642 = vmul.f32 %v1578, %v1578
  %v1643 = vmul.f32 %v1579, %v1579
  %v1644 = vmul.f32 %v1580, %v1580
  %v1645 = vmul.f32 %v1581, %v1581
  %v1646 = vmul.f32 %v1582, %v1582
  %v1647 = vmul.f32 %v1583, %v1583
  %v1648 = vmul.f32 %v1584, %v1584
  %v1649 = vmul.f32 %v1585, %v1585
  %v1650 = vmul.f32 %v1586, %v1586
  %v1651 = vmul.f32 %v1587, %v1587
  %v1652 = vmul.f32 %v1588, %v1588
  %v1653 = vmul.f32 %v1589, %v1589
  %v1654 = vadd.f32 %v1590, %v1591
  %v1655 = vadd.f32 %v1654, %v1592
  %v1656 = vadd.f32 %v1655, %v1593
  %v1657 = vadd.f32 %v1656, %v1594
  %v1658 = vadd.f32 %v1657, %v1595
  %v1659 = vadd.f32 %v1658, %v1596
  %v1660 = vadd.f32 %v1659, %v1597
  %v1661 = vadd.f32 %v1660, %v1598
  %v1662 = vadd.f32 %v1661, %v1599
  %v1663 = vadd.f32 %v1662, %v1600
  %v1664 = vadd.f32 %v1663, %v1601
  %v1665 = vadd.f32 %v1664, %v1602
  %v1666 = vadd.f32 %v1665, %v1603
  %v1667 = vadd.f32 %v1666, %v1604
  %v1668 = vadd.f32 %v1667, %v1605
  %v1669 = vadd.f32 %v1668, %v1606
  %v1670 = vadd.f32 %v1669, %v1607
  %v1671 = vadd.f32 %v1670, %v1608
  %v1672 = vadd.f32 %v1671, %v1609
  %v1673 = vadd.f32 %v1672, %v1610
  %v1674 = vadd.f32 %v1673, %v1611
  %v1675 = vadd.f32 %v1674, %v1612
  %v1676 = vadd.f32 %v1675, %v1613
  %v1677 = vadd.f32 %v1676, %v1614
  %v1678 = vadd.f32 %v1677, %v1615
  %v1679 = vadd.f32 %v1678, %v1616
  %v1680 = vadd.f32 %v1679, %v1617
  %v1681 = vadd.f32 %v1680, %v1618
  %v1682 = vadd.f32 %v1681, %v1619
  %v1683 = vadd.f32 %v1682, %v1620
  %v1684 = vadd.f32 %v1683, %v1621
  %v1685 = vadd.f32 %v1684, %v1622
  %v1686 = vadd.f32 %v1685, %v1623
  %v1687 = vadd.f32 %v1686, %v1624
  %v1688 = vadd.f32 %v1687, %v1625
  %v1689 = vadd.f32 %v1688, %v1626
  %v1690 = vadd.f32 %v1689, %v1627
  %v1691 = vadd.f32 %v1690, %v1628
  %v1692 = vadd.f32 %v1691, %v1629
  %v1693 = vadd.f32 %v1692, %v1630
  %v1694 = vadd.f32 %v1693, %v1631
  %v1695 = vadd.f32 %v1694, %v1632
  %v1696 = vadd.f32 %v1695, %v1633
  %v1697 = vadd.f32 %v1696, %v1634
  %v1698 = vadd.f32 %v1697, %v1635
  %v1699 = vadd.f32 %v1698, %v1636
  %v1700 = vadd.f32 %v1699, %v1637
  %v1701 = vadd.f32 %v1700, %v1638
  %v1702 = vadd.f32 %v1701, %v1639
  %v1703 = vadd.f32 %v1702, %v1640
  %v1704 = vadd.f32 %v1703, %v1641
  %v1705 = vadd.f32 %v1704, %v1642
  %v1706 = vadd.f32 %v1705, %v1643
  %v1707 = vadd.f32 %v1706, %v1644
  %v1708 = vadd.f32 %v1707, %v1645
  %v1709 = vadd.f32 %v1708, %v1646
  %v1710 = vadd.f32 %v1709, %v1647
  %v1711 = vadd.f32 %v1710, %v1648
  %v1712 = vadd.f32 %v1711, %v1649
  %v1713 = vadd.f32 %v1712, %v1650
  %v1714 = vadd.f32 %v1713, %v1651
  %v1715 = vadd.f32 %v1714, %v1652
  %v1716 = vadd.f32 %v1715, %v1653
  %v1717 = vrot.slane %v1716, 4
  %v1718 = vadd.f32 %v1716, %v1717
  %v1719 = vrot.slane %v1718, 2
  %v1720 = vadd.f32 %v1718, %v1719
  %v1721 = vrot.slane %v1720, 1
  %v1722 = vadd.f32 %v1720, %v1721
  %v1723 = vmul.f32 %v1722, %v1524
  %v1724 = vadd.f32 %v1723, 1e-05
  %v1725 = vrsqrt.pop %v1724
  %v1726 = vmul.f32 %v1526, %v1725
  %v1727 = vmul.f32 %v1527, %v1725
  %v1728 = vmul.f32 %v1528, %v1725
  %v1729 = vmul.f32 %v1529, %v1725
  %v1730 = vmul.f32 %v1530, %v1725
  %v1731 = vmul.f32 %v1531, %v1725
  %v1732 = vmul.f32 %v1532, %v1725
  %v1733 = vmul.f32 %v1533, %v1725
  %v1734 = vmul.f32 %v1534, %v1725
  %v1735 = vmul.f32 %v1535, %v1725
  %v1736 = vmul.f32 %v1536, %v1725
  %v1737 = vmul.f32 %v1537, %v1725
  %v1738 = vmul.f32 %v1538, %v1725
  %v1739 = vmul.f32 %v1539, %v1725
  %v1740 = vmul.f32 %v1540, %v1725
  %v1741 = vmul.f32 %v1541, %v1725
  %v1742 = vmul.f32 %v1542, %v1725
  %v1743 = vmul.f32 %v1543, %v1725
  %v1744 = vmul.f32 %v1544, %v1725
  %v1745 = vmul.f32 %v1545, %v1725
  %v1746 = vmul.f32 %v1546, %v1725
  %v1747 = vmul.f32 %v1547, %v1725
  %v1748 = vmul.f32 %v1548, %v1725
  %v1749 = vmul.f32 %v1549, %v1725
  %v1750 = vmul.f32 %v1550, %v1725
  %v1751 = vmul.f32 %v1551, %v1725
  %v1752 = vmul.f32 %v1552, %v1725
  %v1753 = vmul.f32 %v1553, %v1725
  %v1754 = vmul.f32 %v1554, %v1725
  %v1755 = vmul.f32 %v1555, %v1725
  %v1756 = vmul.f32 %v1556, %v1725
  %v1757 = vmul.f32 %v1557, %v1725
  %v1758 = vmul.f32 %v1558, %v1725
  %v1759 = vmul.f32 %v1559, %v1725
  %v1760 = vmul.f32 %v1560, %v1725
  %v1761 = vmul.f32 %v1561, %v1725
  %v1762 = vmul.f32 %v1562, %v1725
  %v1763 = vmul.f32 %v1563, %v1725
  %v1764 = vmul.f32 %v1564, %v1725
  %v1765 = vmul.f32 %v1565, %v1725
  %v1766 = vmul.f32 %v1566, %v1725
  %v1767 = vmul.f32 %v1567, %v1725
  %v1768 = vmul.f32 %v1568, %v1725
  %v1769 = vmul.f32 %v1569, %v1725
  %v1770 = vmul.f32 %v1570, %v1725
  %v1771 = vmul.f32 %v1571, %v1725
  %v1772 = vmul.f32 %v1572, %v1725
  %v1773 = vmul.f32 %v1573, %v1725
  %v1774 = vmul.f32 %v1574, %v1725
  %v1775 = vmul.f32 %v1575, %v1725
  %v1776 = vmul.f32 %v1576, %v1725
  %v1777 = vmul.f32 %v1577, %v1725
  %v1778 = vmul.f32 %v1578, %v1725
  %v1779 = vmul.f32 %v1579, %v1725
  %v1780 = vmul.f32 %v1580, %v1725
  %v1781 = vmul.f32 %v1581, %v1725
  %v1782 = vmul.f32 %v1582, %v1725
  %v1783 = vmul.f32 %v1583, %v1725
  %v1784 = vmul.f32 %v1584, %v1725
  %v1785 = vmul.f32 %v1585, %v1725
  %v1786 = vmul.f32 %v1586, %v1725
  %v1787 = vmul.f32 %v1587, %v1725
  %v1788 = vmul.f32 %v1588, %v1725
  %v1789 = vmul.f32 %v1589, %v1725
  %v1790 = vld [vmem:[%s3] sm:$0x1]
  %v1792 = vlaneseq
  %v1793 = vshrl.u32 %v1792, 7
  %v1794 = vsub.s32 0, %v1793
  %v1795 = vrot.slane %v1790, %v1794
  %v1797 = vmul.f32 %v1726, %v1795
  %v1798 = vmul.f32 %v1727, %v1795
  %v1799 = vmul.f32 %v1728, %v1795
  %v1800 = vmul.f32 %v1729, %v1795
  %v1801 = vmul.f32 %v1730, %v1795
  %v1802 = vmul.f32 %v1731, %v1795
  %v1803 = vmul.f32 %v1732, %v1795
  %v1804 = vmul.f32 %v1733, %v1795
  %v1805 = vmul.f32 %v1734, %v1795
  %v1806 = vmul.f32 %v1735, %v1795
  %v1807 = vmul.f32 %v1736, %v1795
  %v1808 = vmul.f32 %v1737, %v1795
  %v1809 = vmul.f32 %v1738, %v1795
  %v1810 = vmul.f32 %v1739, %v1795
  %v1811 = vmul.f32 %v1740, %v1795
  %v1812 = vmul.f32 %v1741, %v1795
  %v1813 = vmul.f32 %v1742, %v1795
  %v1814 = vmul.f32 %v1743, %v1795
  %v1815 = vmul.f32 %v1744, %v1795
  %v1816 = vmul.f32 %v1745, %v1795
  %v1817 = vmul.f32 %v1746, %v1795
  %v1818 = vmul.f32 %v1747, %v1795
  %v1819 = vmul.f32 %v1748, %v1795
  %v1820 = vmul.f32 %v1749, %v1795
  %v1821 = vmul.f32 %v1750, %v1795
  %v1822 = vmul.f32 %v1751, %v1795
  %v1823 = vmul.f32 %v1752, %v1795
  %v1824 = vmul.f32 %v1753, %v1795
  %v1825 = vmul.f32 %v1754, %v1795
  %v1826 = vmul.f32 %v1755, %v1795
  %v1827 = vmul.f32 %v1756, %v1795
  %v1828 = vmul.f32 %v1757, %v1795
  %v1829 = vmul.f32 %v1758, %v1795
  %v1830 = vmul.f32 %v1759, %v1795
  %v1831 = vmul.f32 %v1760, %v1795
  %v1832 = vmul.f32 %v1761, %v1795
  %v1833 = vmul.f32 %v1762, %v1795
  %v1834 = vmul.f32 %v1763, %v1795
  %v1835 = vmul.f32 %v1764, %v1795
  %v1836 = vmul.f32 %v1765, %v1795
  %v1837 = vmul.f32 %v1766, %v1795
  %v1838 = vmul.f32 %v1767, %v1795
  %v1839 = vmul.f32 %v1768, %v1795
  %v1840 = vmul.f32 %v1769, %v1795
  %v1841 = vmul.f32 %v1770, %v1795
  %v1842 = vmul.f32 %v1771, %v1795
  %v1843 = vmul.f32 %v1772, %v1795
  %v1844 = vmul.f32 %v1773, %v1795
  %v1845 = vmul.f32 %v1774, %v1795
  %v1846 = vmul.f32 %v1775, %v1795
  %v1847 = vmul.f32 %v1776, %v1795
  %v1848 = vmul.f32 %v1777, %v1795
  %v1849 = vmul.f32 %v1778, %v1795
  %v1850 = vmul.f32 %v1779, %v1795
  %v1851 = vmul.f32 %v1780, %v1795
  %v1852 = vmul.f32 %v1781, %v1795
  %v1853 = vmul.f32 %v1782, %v1795
  %v1854 = vmul.f32 %v1783, %v1795
  %v1855 = vmul.f32 %v1784, %v1795
  %v1856 = vmul.f32 %v1785, %v1795
  %v1857 = vmul.f32 %v1786, %v1795
  %v1858 = vmul.f32 %v1787, %v1795
  %v1859 = vmul.f32 %v1788, %v1795
  %v1860 = vmul.f32 %v1789, %v1795
  %v1861 = vld [vmem:[%s4] sm:$0x1]
  %v1863 = vlaneseq
  %v1864 = vshrl.u32 %v1863, 7
  %v1865 = vsub.s32 0, %v1864
  %v1866 = vrot.slane %v1861, %v1865
  %v1868 = vadd.f32 %v1797, %v1866
  %v1869 = vadd.f32 %v1798, %v1866
  %v1870 = vadd.f32 %v1799, %v1866
  %v1871 = vadd.f32 %v1800, %v1866
  %v1872 = vadd.f32 %v1801, %v1866
  %v1873 = vadd.f32 %v1802, %v1866
  %v1874 = vadd.f32 %v1803, %v1866
  %v1875 = vadd.f32 %v1804, %v1866
  %v1876 = vadd.f32 %v1805, %v1866
  %v1877 = vadd.f32 %v1806, %v1866
  %v1878 = vadd.f32 %v1807, %v1866
  %v1879 = vadd.f32 %v1808, %v1866
  %v1880 = vadd.f32 %v1809, %v1866
  %v1881 = vadd.f32 %v1810, %v1866
  %v1882 = vadd.f32 %v1811, %v1866
  %v1883 = vadd.f32 %v1812, %v1866
  %v1884 = vadd.f32 %v1813, %v1866
  %v1885 = vadd.f32 %v1814, %v1866
  %v1886 = vadd.f32 %v1815, %v1866
  %v1887 = vadd.f32 %v1816, %v1866
  %v1888 = vadd.f32 %v1817, %v1866
  %v1889 = vadd.f32 %v1818, %v1866
  %v1890 = vadd.f32 %v1819, %v1866
  %v1891 = vadd.f32 %v1820, %v1866
  %v1892 = vadd.f32 %v1821, %v1866
  %v1893 = vadd.f32 %v1822, %v1866
  %v1894 = vadd.f32 %v1823, %v1866
  %v1895 = vadd.f32 %v1824, %v1866
  %v1896 = vadd.f32 %v1825, %v1866
  %v1897 = vadd.f32 %v1826, %v1866
  %v1898 = vadd.f32 %v1827, %v1866
  %v1899 = vadd.f32 %v1828, %v1866
  %v1900 = vadd.f32 %v1829, %v1866
  %v1901 = vadd.f32 %v1830, %v1866
  %v1902 = vadd.f32 %v1831, %v1866
  %v1903 = vadd.f32 %v1832, %v1866
  %v1904 = vadd.f32 %v1833, %v1866
  %v1905 = vadd.f32 %v1834, %v1866
  %v1906 = vadd.f32 %v1835, %v1866
  %v1907 = vadd.f32 %v1836, %v1866
  %v1908 = vadd.f32 %v1837, %v1866
  %v1909 = vadd.f32 %v1838, %v1866
  %v1910 = vadd.f32 %v1839, %v1866
  %v1911 = vadd.f32 %v1840, %v1866
  %v1912 = vadd.f32 %v1841, %v1866
  %v1913 = vadd.f32 %v1842, %v1866
  %v1914 = vadd.f32 %v1843, %v1866
  %v1915 = vadd.f32 %v1844, %v1866
  %v1916 = vadd.f32 %v1845, %v1866
  %v1917 = vadd.f32 %v1846, %v1866
  %v1918 = vadd.f32 %v1847, %v1866
  %v1919 = vadd.f32 %v1848, %v1866
  %v1920 = vadd.f32 %v1849, %v1866
  %v1921 = vadd.f32 %v1850, %v1866
  %v1922 = vadd.f32 %v1851, %v1866
  %v1923 = vadd.f32 %v1852, %v1866
  %v1924 = vadd.f32 %v1853, %v1866
  %v1925 = vadd.f32 %v1854, %v1866
  %v1926 = vadd.f32 %v1855, %v1866
  %v1927 = vadd.f32 %v1856, %v1866
  %v1928 = vadd.f32 %v1857, %v1866
  %v1929 = vadd.f32 %v1858, %v1866
  %v1930 = vadd.f32 %v1859, %v1866
  %v1931 = vadd.f32 %v1860, %v1866
  %vm1932 = vcmp.gt.f32.partialorder %v1868, 0.0
  %vm1933 = vcmp.gt.f32.partialorder %v1869, 0.0
  %vm1934 = vcmp.gt.f32.partialorder %v1870, 0.0
  %vm1935 = vcmp.gt.f32.partialorder %v1871, 0.0
  %vm1936 = vcmp.gt.f32.partialorder %v1872, 0.0
  %vm1937 = vcmp.gt.f32.partialorder %v1873, 0.0
  %vm1938 = vcmp.gt.f32.partialorder %v1874, 0.0
  %vm1939 = vcmp.gt.f32.partialorder %v1875, 0.0
  %vm1940 = vcmp.gt.f32.partialorder %v1876, 0.0
  %vm1941 = vcmp.gt.f32.partialorder %v1877, 0.0
  %vm1942 = vcmp.gt.f32.partialorder %v1878, 0.0
  %vm1943 = vcmp.gt.f32.partialorder %v1879, 0.0
  %vm1944 = vcmp.gt.f32.partialorder %v1880, 0.0
  %vm1945 = vcmp.gt.f32.partialorder %v1881, 0.0
  %vm1946 = vcmp.gt.f32.partialorder %v1882, 0.0
  %vm1947 = vcmp.gt.f32.partialorder %v1883, 0.0
  %vm1948 = vcmp.gt.f32.partialorder %v1884, 0.0
  %vm1949 = vcmp.gt.f32.partialorder %v1885, 0.0
  %vm1950 = vcmp.gt.f32.partialorder %v1886, 0.0
  %vm1951 = vcmp.gt.f32.partialorder %v1887, 0.0
  %vm1952 = vcmp.gt.f32.partialorder %v1888, 0.0
  %vm1953 = vcmp.gt.f32.partialorder %v1889, 0.0
  %vm1954 = vcmp.gt.f32.partialorder %v1890, 0.0
  %vm1955 = vcmp.gt.f32.partialorder %v1891, 0.0
  %vm1956 = vcmp.gt.f32.partialorder %v1892, 0.0
  %vm1957 = vcmp.gt.f32.partialorder %v1893, 0.0
  %vm1958 = vcmp.gt.f32.partialorder %v1894, 0.0
  %vm1959 = vcmp.gt.f32.partialorder %v1895, 0.0
  %vm1960 = vcmp.gt.f32.partialorder %v1896, 0.0
  %vm1961 = vcmp.gt.f32.partialorder %v1897, 0.0
  %vm1962 = vcmp.gt.f32.partialorder %v1898, 0.0
  %vm1963 = vcmp.gt.f32.partialorder %v1899, 0.0
  %vm1964 = vcmp.gt.f32.partialorder %v1900, 0.0
  %vm1965 = vcmp.gt.f32.partialorder %v1901, 0.0
  %vm1966 = vcmp.gt.f32.partialorder %v1902, 0.0
  %vm1967 = vcmp.gt.f32.partialorder %v1903, 0.0
  %vm1968 = vcmp.gt.f32.partialorder %v1904, 0.0
  %vm1969 = vcmp.gt.f32.partialorder %v1905, 0.0
  %vm1970 = vcmp.gt.f32.partialorder %v1906, 0.0
  %vm1971 = vcmp.gt.f32.partialorder %v1907, 0.0
  %vm1972 = vcmp.gt.f32.partialorder %v1908, 0.0
  %vm1973 = vcmp.gt.f32.partialorder %v1909, 0.0
  %vm1974 = vcmp.gt.f32.partialorder %v1910, 0.0
  %vm1975 = vcmp.gt.f32.partialorder %v1911, 0.0
  %vm1976 = vcmp.gt.f32.partialorder %v1912, 0.0
  %vm1977 = vcmp.gt.f32.partialorder %v1913, 0.0
  %vm1978 = vcmp.gt.f32.partialorder %v1914, 0.0
  %vm1979 = vcmp.gt.f32.partialorder %v1915, 0.0
  %vm1980 = vcmp.gt.f32.partialorder %v1916, 0.0
  %vm1981 = vcmp.gt.f32.partialorder %v1917, 0.0
  %vm1982 = vcmp.gt.f32.partialorder %v1918, 0.0
  %vm1983 = vcmp.gt.f32.partialorder %v1919, 0.0
  %vm1984 = vcmp.gt.f32.partialorder %v1920, 0.0
  %vm1985 = vcmp.gt.f32.partialorder %v1921, 0.0
  %vm1986 = vcmp.gt.f32.partialorder %v1922, 0.0
  %vm1987 = vcmp.gt.f32.partialorder %v1923, 0.0
  %vm1988 = vcmp.gt.f32.partialorder %v1924, 0.0
  %vm1989 = vcmp.gt.f32.partialorder %v1925, 0.0
  %vm1990 = vcmp.gt.f32.partialorder %v1926, 0.0
  %vm1991 = vcmp.gt.f32.partialorder %v1927, 0.0
  %vm1992 = vcmp.gt.f32.partialorder %v1928, 0.0
  %vm1993 = vcmp.gt.f32.partialorder %v1929, 0.0
  %vm1994 = vcmp.gt.f32.partialorder %v1930, 0.0
  %vm1995 = vcmp.gt.f32.partialorder %v1931, 0.0
  %v1996 = vmul.f32 %v1868, 0.2
  %v1997 = vmul.f32 %v1869, 0.2
  %v1998 = vmul.f32 %v1870, 0.2
  %v1999 = vmul.f32 %v1871, 0.2
  %v2000 = vmul.f32 %v1872, 0.2
  %v2001 = vmul.f32 %v1873, 0.2
  %v2002 = vmul.f32 %v1874, 0.2
  %v2003 = vmul.f32 %v1875, 0.2
  %v2004 = vmul.f32 %v1876, 0.2
  %v2005 = vmul.f32 %v1877, 0.2
  %v2006 = vmul.f32 %v1878, 0.2
  %v2007 = vmul.f32 %v1879, 0.2
  %v2008 = vmul.f32 %v1880, 0.2
  %v2009 = vmul.f32 %v1881, 0.2
  %v2010 = vmul.f32 %v1882, 0.2
  %v2011 = vmul.f32 %v1883, 0.2
  %v2012 = vmul.f32 %v1884, 0.2
  %v2013 = vmul.f32 %v1885, 0.2
  %v2014 = vmul.f32 %v1886, 0.2
  %v2015 = vmul.f32 %v1887, 0.2
  %v2016 = vmul.f32 %v1888, 0.2
  %v2017 = vmul.f32 %v1889, 0.2
  %v2018 = vmul.f32 %v1890, 0.2
  %v2019 = vmul.f32 %v1891, 0.2
  %v2020 = vmul.f32 %v1892, 0.2
  %v2021 = vmul.f32 %v1893, 0.2
  %v2022 = vmul.f32 %v1894, 0.2
  %v2023 = vmul.f32 %v1895, 0.2
  %v2024 = vmul.f32 %v1896, 0.2
  %v2025 = vmul.f32 %v1897, 0.2
  %v2026 = vmul.f32 %v1898, 0.2
  %v2027 = vmul.f32 %v1899, 0.2
  %v2028 = vmul.f32 %v1900, 0.2
  %v2029 = vmul.f32 %v1901, 0.2
  %v2030 = vmul.f32 %v1902, 0.2
  %v2031 = vmul.f32 %v1903, 0.2
  %v2032 = vmul.f32 %v1904, 0.2
  %v2033 = vmul.f32 %v1905, 0.2
  %v2034 = vmul.f32 %v1906, 0.2
  %v2035 = vmul.f32 %v1907, 0.2
  %v2036 = vmul.f32 %v1908, 0.2
  %v2037 = vmul.f32 %v1909, 0.2
  %v2038 = vmul.f32 %v1910, 0.2
  %v2039 = vmul.f32 %v1911, 0.2
  %v2040 = vmul.f32 %v1912, 0.2
  %v2041 = vmul.f32 %v1913, 0.2
  %v2042 = vmul.f32 %v1914, 0.2
  %v2043 = vmul.f32 %v1915, 0.2
  %v2044 = vmul.f32 %v1916, 0.2
  %v2045 = vmul.f32 %v1917, 0.2
  %v2046 = vmul.f32 %v1918, 0.2
  %v2047 = vmul.f32 %v1919, 0.2
  %v2048 = vmul.f32 %v1920, 0.2
  %v2049 = vmul.f32 %v1921, 0.2
  %v2050 = vmul.f32 %v1922, 0.2
  %v2051 = vmul.f32 %v1923, 0.2
  %v2052 = vmul.f32 %v1924, 0.2
  %v2053 = vmul.f32 %v1925, 0.2
  %v2054 = vmul.f32 %v1926, 0.2
  %v2055 = vmul.f32 %v1927, 0.2
  %v2056 = vmul.f32 %v1928, 0.2
  %v2057 = vmul.f32 %v1929, 0.2
  %v2058 = vmul.f32 %v1930, 0.2
  %v2059 = vmul.f32 %v1931, 0.2
  %v2060 = vsel %vm1932, %v1868, %v1996
  %v2061 = vsel %vm1933, %v1869, %v1997
  %v2062 = vsel %vm1934, %v1870, %v1998
  %v2063 = vsel %vm1935, %v1871, %v1999
  %v2064 = vsel %vm1936, %v1872, %v2000
  %v2065 = vsel %vm1937, %v1873, %v2001
  %v2066 = vsel %vm1938, %v1874, %v2002
  %v2067 = vsel %vm1939, %v1875, %v2003
  %v2068 = vsel %vm1940, %v1876, %v2004
  %v2069 = vsel %vm1941, %v1877, %v2005
  %v2070 = vsel %vm1942, %v1878, %v2006
  %v2071 = vsel %vm1943, %v1879, %v2007
  %v2072 = vsel %vm1944, %v1880, %v2008
  %v2073 = vsel %vm1945, %v1881, %v2009
  %v2074 = vsel %vm1946, %v1882, %v2010
  %v2075 = vsel %vm1947, %v1883, %v2011
  %v2076 = vsel %vm1948, %v1884, %v2012
  %v2077 = vsel %vm1949, %v1885, %v2013
  %v2078 = vsel %vm1950, %v1886, %v2014
  %v2079 = vsel %vm1951, %v1887, %v2015
  %v2080 = vsel %vm1952, %v1888, %v2016
  %v2081 = vsel %vm1953, %v1889, %v2017
  %v2082 = vsel %vm1954, %v1890, %v2018
  %v2083 = vsel %vm1955, %v1891, %v2019
  %v2084 = vsel %vm1956, %v1892, %v2020
  %v2085 = vsel %vm1957, %v1893, %v2021
  %v2086 = vsel %vm1958, %v1894, %v2022
  %v2087 = vsel %vm1959, %v1895, %v2023
  %v2088 = vsel %vm1960, %v1896, %v2024
  %v2089 = vsel %vm1961, %v1897, %v2025
  %v2090 = vsel %vm1962, %v1898, %v2026
  %v2091 = vsel %vm1963, %v1899, %v2027
  %v2092 = vsel %vm1964, %v1900, %v2028
  %v2093 = vsel %vm1965, %v1901, %v2029
  %v2094 = vsel %vm1966, %v1902, %v2030
  %v2095 = vsel %vm1967, %v1903, %v2031
  %v2096 = vsel %vm1968, %v1904, %v2032
  %v2097 = vsel %vm1969, %v1905, %v2033
  %v2098 = vsel %vm1970, %v1906, %v2034
  %v2099 = vsel %vm1971, %v1907, %v2035
  %v2100 = vsel %vm1972, %v1908, %v2036
  %v2101 = vsel %vm1973, %v1909, %v2037
  %v2102 = vsel %vm1974, %v1910, %v2038
  %v2103 = vsel %vm1975, %v1911, %v2039
  %v2104 = vsel %vm1976, %v1912, %v2040
  %v2105 = vsel %vm1977, %v1913, %v2041
  %v2106 = vsel %vm1978, %v1914, %v2042
  %v2107 = vsel %vm1979, %v1915, %v2043
  %v2108 = vsel %vm1980, %v1916, %v2044
  %v2109 = vsel %vm1981, %v1917, %v2045
  %v2110 = vsel %vm1982, %v1918, %v2046
  %v2111 = vsel %vm1983, %v1919, %v2047
  %v2112 = vsel %vm1984, %v1920, %v2048
  %v2113 = vsel %vm1985, %v1921, %v2049
  %v2114 = vsel %vm1986, %v1922, %v2050
  %v2115 = vsel %vm1987, %v1923, %v2051
  %v2116 = vsel %vm1988, %v1924, %v2052
  %v2117 = vsel %vm1989, %v1925, %v2053
  %v2118 = vsel %vm1990, %v1926, %v2054
  %v2119 = vsel %vm1991, %v1927, %v2055
  %v2120 = vsel %vm1992, %v1928, %v2056
  %v2121 = vsel %vm1993, %v1929, %v2057
  %v2122 = vsel %vm1994, %v1930, %v2058
  %v2123 = vsel %vm1995, %v1931, %v2059
  %v2124 = vpack.c.bf16 %v2061, %v2060
  %v2125 = vpack.c.bf16 %v2063, %v2062
  %v2126 = vpack.c.bf16 %v2065, %v2064
  %v2127 = vpack.c.bf16 %v2067, %v2066
  %v2128 = vpack.c.bf16 %v2069, %v2068
  %v2129 = vpack.c.bf16 %v2071, %v2070
  %v2130 = vpack.c.bf16 %v2073, %v2072
  %v2131 = vpack.c.bf16 %v2075, %v2074
  %v2132 = vpack.c.bf16 %v2077, %v2076
  %v2133 = vpack.c.bf16 %v2079, %v2078
  %v2134 = vpack.c.bf16 %v2081, %v2080
  %v2135 = vpack.c.bf16 %v2083, %v2082
  %v2136 = vpack.c.bf16 %v2085, %v2084
  %v2137 = vpack.c.bf16 %v2087, %v2086
  %v2138 = vpack.c.bf16 %v2089, %v2088
  %v2139 = vpack.c.bf16 %v2091, %v2090
  %v2140 = vpack.c.bf16 %v2093, %v2092
  %v2141 = vpack.c.bf16 %v2095, %v2094
  %v2142 = vpack.c.bf16 %v2097, %v2096
  %v2143 = vpack.c.bf16 %v2099, %v2098
  %v2144 = vpack.c.bf16 %v2101, %v2100
  %v2145 = vpack.c.bf16 %v2103, %v2102
  %v2146 = vpack.c.bf16 %v2105, %v2104
  %v2147 = vpack.c.bf16 %v2107, %v2106
  %v2148 = vpack.c.bf16 %v2109, %v2108
  %v2149 = vpack.c.bf16 %v2111, %v2110
  %v2150 = vpack.c.bf16 %v2113, %v2112
  %v2151 = vpack.c.bf16 %v2115, %v2114
  %v2152 = vpack.c.bf16 %v2117, %v2116
  %v2153 = vpack.c.bf16 %v2119, %v2118
  %v2154 = vpack.c.bf16 %v2121, %v2120
  %v2155 = vpack.c.bf16 %v2123, %v2122
  %v2188 = vunpack.c.l.b16 %v2124
  %v2189 = vunpack.c.h.b16 %v2124
  %v2190 = vunpack.c.l.b16 %v2125
  %v2191 = vunpack.c.h.b16 %v2125
  %v2192 = vunpack.c.l.b16 %v2126
  %v2193 = vunpack.c.h.b16 %v2126
  %v2194 = vunpack.c.l.b16 %v2127
  %v2195 = vunpack.c.h.b16 %v2127
  %v2196 = vunpack.c.l.b16 %v2128
  %v2197 = vunpack.c.h.b16 %v2128
  %v2198 = vunpack.c.l.b16 %v2129
  %v2199 = vunpack.c.h.b16 %v2129
  %v2200 = vunpack.c.l.b16 %v2130
  %v2201 = vunpack.c.h.b16 %v2130
  %v2202 = vunpack.c.l.b16 %v2131
  %v2203 = vunpack.c.h.b16 %v2131
  %v2204 = vunpack.c.l.b16 %v2132
  %v2205 = vunpack.c.h.b16 %v2132
  %v2206 = vunpack.c.l.b16 %v2133
  %v2207 = vunpack.c.h.b16 %v2133
  %v2208 = vunpack.c.l.b16 %v2134
  %v2209 = vunpack.c.h.b16 %v2134
  %v2210 = vunpack.c.l.b16 %v2135
  %v2211 = vunpack.c.h.b16 %v2135
  %v2212 = vunpack.c.l.b16 %v2136
  %v2213 = vunpack.c.h.b16 %v2136
  %v2214 = vunpack.c.l.b16 %v2137
  %v2215 = vunpack.c.h.b16 %v2137
  %v2216 = vunpack.c.l.b16 %v2138
  %v2217 = vunpack.c.h.b16 %v2138
  %v2218 = vunpack.c.l.b16 %v2139
  %v2219 = vunpack.c.h.b16 %v2139
  %v2220 = vunpack.c.l.b16 %v2140
  %v2221 = vunpack.c.h.b16 %v2140
  %v2222 = vunpack.c.l.b16 %v2141
  %v2223 = vunpack.c.h.b16 %v2141
  %v2224 = vunpack.c.l.b16 %v2142
  %v2225 = vunpack.c.h.b16 %v2142
  %v2226 = vunpack.c.l.b16 %v2143
  %v2227 = vunpack.c.h.b16 %v2143
  %v2228 = vunpack.c.l.b16 %v2144
  %v2229 = vunpack.c.h.b16 %v2144
  %v2230 = vunpack.c.l.b16 %v2145
  %v2231 = vunpack.c.h.b16 %v2145
  %v2232 = vunpack.c.l.b16 %v2146
  %v2233 = vunpack.c.h.b16 %v2146
  %v2234 = vunpack.c.l.b16 %v2147
  %v2235 = vunpack.c.h.b16 %v2147
  %v2236 = vunpack.c.l.b16 %v2148
  %v2237 = vunpack.c.h.b16 %v2148
  %v2238 = vunpack.c.l.b16 %v2149
  %v2239 = vunpack.c.h.b16 %v2149
  %v2240 = vunpack.c.l.b16 %v2150
  %v2241 = vunpack.c.h.b16 %v2150
  %v2242 = vunpack.c.l.b16 %v2151
  %v2243 = vunpack.c.h.b16 %v2151
  %v2244 = vunpack.c.l.b16 %v2152
  %v2245 = vunpack.c.h.b16 %v2152
  %v2246 = vunpack.c.l.b16 %v2153
  %v2247 = vunpack.c.h.b16 %v2153
  %v2248 = vunpack.c.l.b16 %v2154
  %v2249 = vunpack.c.h.b16 %v2154
  %v2250 = vunpack.c.l.b16 %v2155
  %v2251 = vunpack.c.h.b16 %v2155
  %v2252 = vpack.c.b16 %v2188, %v2188
  %v2253 = vpack.c.b16 %v2189, %v2189
  %v2254 = vpack.c.b16 %v2190, %v2190
  %v2255 = vpack.c.b16 %v2191, %v2191
  %v2256 = vpack.c.b16 %v2192, %v2192
  %v2257 = vpack.c.b16 %v2193, %v2193
  %v2258 = vpack.c.b16 %v2194, %v2194
  %v2259 = vpack.c.b16 %v2195, %v2195
  %v2260 = vpack.c.b16 %v2196, %v2196
  %v2261 = vpack.c.b16 %v2197, %v2197
  %v2262 = vpack.c.b16 %v2198, %v2198
  %v2263 = vpack.c.b16 %v2199, %v2199
  %v2264 = vpack.c.b16 %v2200, %v2200
  %v2265 = vpack.c.b16 %v2201, %v2201
  %v2266 = vpack.c.b16 %v2202, %v2202
  %v2267 = vpack.c.b16 %v2203, %v2203
  %v2268 = vpack.c.b16 %v2204, %v2204
  %v2269 = vpack.c.b16 %v2205, %v2205
  %v2270 = vpack.c.b16 %v2206, %v2206
  %v2271 = vpack.c.b16 %v2207, %v2207
  %v2272 = vpack.c.b16 %v2208, %v2208
  %v2273 = vpack.c.b16 %v2209, %v2209
  %v2274 = vpack.c.b16 %v2210, %v2210
  %v2275 = vpack.c.b16 %v2211, %v2211
  %v2276 = vpack.c.b16 %v2212, %v2212
  %v2277 = vpack.c.b16 %v2213, %v2213
  %v2278 = vpack.c.b16 %v2214, %v2214
  %v2279 = vpack.c.b16 %v2215, %v2215
  %v2280 = vpack.c.b16 %v2216, %v2216
  %v2281 = vpack.c.b16 %v2217, %v2217
  %v2282 = vpack.c.b16 %v2218, %v2218
  %v2283 = vpack.c.b16 %v2219, %v2219
  %v2284 = vpack.c.b16 %v2220, %v2220
  %v2285 = vpack.c.b16 %v2221, %v2221
  %v2286 = vpack.c.b16 %v2222, %v2222
  %v2287 = vpack.c.b16 %v2223, %v2223
  %v2288 = vpack.c.b16 %v2224, %v2224
  %v2289 = vpack.c.b16 %v2225, %v2225
  %v2290 = vpack.c.b16 %v2226, %v2226
  %v2291 = vpack.c.b16 %v2227, %v2227
  %v2292 = vpack.c.b16 %v2228, %v2228
  %v2293 = vpack.c.b16 %v2229, %v2229
  %v2294 = vpack.c.b16 %v2230, %v2230
  %v2295 = vpack.c.b16 %v2231, %v2231
  %v2296 = vpack.c.b16 %v2232, %v2232
  %v2297 = vpack.c.b16 %v2233, %v2233
  %v2298 = vpack.c.b16 %v2234, %v2234
  %v2299 = vpack.c.b16 %v2235, %v2235
  %v2300 = vpack.c.b16 %v2236, %v2236
  %v2301 = vpack.c.b16 %v2237, %v2237
  %v2302 = vpack.c.b16 %v2238, %v2238
  %v2303 = vpack.c.b16 %v2239, %v2239
  %v2304 = vpack.c.b16 %v2240, %v2240
  %v2305 = vpack.c.b16 %v2241, %v2241
  %v2306 = vpack.c.b16 %v2242, %v2242
  %v2307 = vpack.c.b16 %v2243, %v2243
  %v2308 = vpack.c.b16 %v2244, %v2244
  %v2309 = vpack.c.b16 %v2245, %v2245
  %v2310 = vpack.c.b16 %v2246, %v2246
  %v2311 = vpack.c.b16 %v2247, %v2247
  %v2312 = vpack.c.b16 %v2248, %v2248
  %v2313 = vpack.c.b16 %v2249, %v2249
  %v2314 = vpack.c.b16 %v2250, %v2250
  %v2315 = vpack.c.b16 %v2251, %v2251
  %2380 = vst [vmem:[%s5] sm:$0xf] %v2252
  %2381 = vst [vmem:[%s5 + $0x4] sm:$0xf] %v2253
  %2382 = vst [vmem:[%s5 + $0x8] sm:$0xf] %v2254
  %2383 = vst [vmem:[%s5 + $0xc] sm:$0xf] %v2255
  %2384 = vst [vmem:[%s5 + $0x10] sm:$0xf] %v2256
  %2385 = vst [vmem:[%s5 + $0x14] sm:$0xf] %v2257
  %2386 = vst [vmem:[%s5 + $0x18] sm:$0xf] %v2258
  %2387 = vst [vmem:[%s5 + $0x1c] sm:$0xf] %v2259
  %2388 = vst [vmem:[%s5 + $0x20] sm:$0xf] %v2260
  %2389 = vst [vmem:[%s5 + $0x24] sm:$0xf] %v2261
  %2390 = vst [vmem:[%s5 + $0x28] sm:$0xf] %v2262
  %2391 = vst [vmem:[%s5 + $0x2c] sm:$0xf] %v2263
  %2392 = vst [vmem:[%s5 + $0x30] sm:$0xf] %v2264
  %2393 = vst [vmem:[%s5 + $0x34] sm:$0xf] %v2265
  %2394 = vst [vmem:[%s5 + $0x38] sm:$0xf] %v2266
  %2395 = vst [vmem:[%s5 + $0x3c] sm:$0xf] %v2267
  %2396 = vst [vmem:[%s5 + $0x40] sm:$0xf] %v2268
  %2397 = vst [vmem:[%s5 + $0x44] sm:$0xf] %v2269
  %2398 = vst [vmem:[%s5 + $0x48] sm:$0xf] %v2270
  %2399 = vst [vmem:[%s5 + $0x4c] sm:$0xf] %v2271
  %2400 = vst [vmem:[%s5 + $0x50] sm:$0xf] %v2272
  %2401 = vst [vmem:[%s5 + $0x54] sm:$0xf] %v2273
  %2402 = vst [vmem:[%s5 + $0x58] sm:$0xf] %v2274
  %2403 = vst [vmem:[%s5 + $0x5c] sm:$0xf] %v2275
  %2404 = vst [vmem:[%s5 + $0x60] sm:$0xf] %v2276
  %2405 = vst [vmem:[%s5 + $0x64] sm:$0xf] %v2277
  %2406 = vst [vmem:[%s5 + $0x68] sm:$0xf] %v2278
  %2407 = vst [vmem:[%s5 + $0x6c] sm:$0xf] %v2279
  %2408 = vst [vmem:[%s5 + $0x70] sm:$0xf] %v2280
  %2409 = vst [vmem:[%s5 + $0x74] sm:$0xf] %v2281
  %2410 = vst [vmem:[%s5 + $0x78] sm:$0xf] %v2282
  %2411 = vst [vmem:[%s5 + $0x7c] sm:$0xf] %v2283
  %2412 = vst [vmem:[%s5 + $0x80] sm:$0xf] %v2284
  %2413 = vst [vmem:[%s5 + $0x84] sm:$0xf] %v2285
  %2414 = vst [vmem:[%s5 + $0x88] sm:$0xf] %v2286
  %2415 = vst [vmem:[%s5 + $0x8c] sm:$0xf] %v2287
  %2416 = vst [vmem:[%s5 + $0x90] sm:$0xf] %v2288
  %2417 = vst [vmem:[%s5 + $0x94] sm:$0xf] %v2289
  %2418 = vst [vmem:[%s5 + $0x98] sm:$0xf] %v2290
  %2419 = vst [vmem:[%s5 + $0x9c] sm:$0xf] %v2291
  %2420 = vst [vmem:[%s5 + $0xa0] sm:$0xf] %v2292
  %2421 = vst [vmem:[%s5 + $0xa4] sm:$0xf] %v2293
  %2422 = vst [vmem:[%s5 + $0xa8] sm:$0xf] %v2294
  %2423 = vst [vmem:[%s5 + $0xac] sm:$0xf] %v2295
  %2424 = vst [vmem:[%s5 + $0xb0] sm:$0xf] %v2296
  %2425 = vst [vmem:[%s5 + $0xb4] sm:$0xf] %v2297
  %2426 = vst [vmem:[%s5 + $0xb8] sm:$0xf] %v2298
  %2427 = vst [vmem:[%s5 + $0xbc] sm:$0xf] %v2299
  %2428 = vst [vmem:[%s5 + $0xc0] sm:$0xf] %v2300
  %2429 = vst [vmem:[%s5 + $0xc4] sm:$0xf] %v2301
  %2430 = vst [vmem:[%s5 + $0xc8] sm:$0xf] %v2302
  %2431 = vst [vmem:[%s5 + $0xcc] sm:$0xf] %v2303
  %2432 = vst [vmem:[%s5 + $0xd0] sm:$0xf] %v2304
  %2433 = vst [vmem:[%s5 + $0xd4] sm:$0xf] %v2305
  %2434 = vst [vmem:[%s5 + $0xd8] sm:$0xf] %v2306
  %2435 = vst [vmem:[%s5 + $0xdc] sm:$0xf] %v2307
  %2436 = vst [vmem:[%s5 + $0xe0] sm:$0xf] %v2308
  %2437 = vst [vmem:[%s5 + $0xe4] sm:$0xf] %v2309
  %2438 = vst [vmem:[%s5 + $0xe8] sm:$0xf] %v2310
  %2439 = vst [vmem:[%s5 + $0xec] sm:$0xf] %v2311
  %2440 = vst [vmem:[%s5 + $0xf0] sm:$0xf] %v2312
  %2441 = vst [vmem:[%s5 + $0xf4] sm:$0xf] %v2313
  %2442 = vst [vmem:[%s5 + $0xf8] sm:$0xf] %v2314
  %2443 = vst [vmem:[%s5 + $0xfc] sm:$0xf] %v2315
  // Predicated region
  $region22: #{discriminator_forward.5} parent=0 // pred_check
    _
  $region23: #{discriminator_forward.5} parent=0 // pred_check_branch
    %2445 = sbr.rel (0) target = $region25
  $region24: #{discriminator_forward.5} parent=0 // pred_region
    _
  $region25: #{discriminator_forward.5} parent=0 // pred_fallthru
    _
  // Predicated region
  $region26: #{discriminator_forward.5} parent=0 // pred_check
    _
  $region27: #{discriminator_forward.5} parent=0 // pred_check_branch
    %2447 = sbr.rel (0) target = $region29
  $region28: #{discriminator_forward.5} parent=0 // pred_region
    _
  $region29: #{discriminator_forward.5} parent=0 // pred_fallthru
    _

// kernel: discriminator_forward.6
$region0: #{discriminator_forward.6}
  #allocation0 [shape = 'u32[]', space=smem, size = 0x4, offset = 0x4, fixed_abs, tag = 'smem constant byte address 0x4 - core index']
  #allocation1 [shape = 'u32[144,128]{1,0:T(1,128)}', space=vmem, size = 0x12000, scoped, tag = 'internal scratch']
  %s0 = inlined_call_operand.vmem [shape: bf16[32,576], index: 0, kind: input, shape index: {}]
  %s1 = inlined_call_operand.vmem [shape: bf16[576,128], index: 1, kind: input, shape index: {}]
  %s2 = inlined_call_operand.vmem [shape: f32[1,128], index: 2, kind: input, shape index: {}]
  %s3 = inlined_call_operand.vmem [shape: f32[1,128], index: 3, kind: input, shape index: {}]
  %s4 = inlined_call_operand.vmem [shape: f32[1,128], index: 4, kind: input, shape index: {}]
  %s5 = inlined_call_operand.vmem [shape: bf16[32,128], index: 5, kind: output, shape index: {}]
  %s6 = sld [smem:[#allocation0]]
  $region30: #{discriminator_forward.6} parent=0
    _
  %s8 = ssub.s32 1, %s6
  %s9 = scalar_select 0, %s8, %s6
  // Predicated region
  $region2: #{discriminator_forward.6} parent=0 // pred_check
    _
  $region3: #{discriminator_forward.6} parent=0 // pred_check_branch
    %11 = sbr.rel (0) target = $region5
  $region4: #{discriminator_forward.6} parent=0 // pred_region
    _
  $region5: #{discriminator_forward.6} parent=0 // pred_fallthru
    _
  // Predicated region
  $region6: #{discriminator_forward.6} parent=0 // pred_check
    _
  $region7: #{discriminator_forward.6} parent=0 // pred_check_branch
    %13 = sbr.rel (0) target = $region9
  $region8: #{discriminator_forward.6} parent=0 // pred_region
    _
  $region9: #{discriminator_forward.6} parent=0 // pred_fallthru
    _
  // Predicated region
  $region10: #{discriminator_forward.6} parent=0 // pred_check
    _
  $region11: #{discriminator_forward.6} parent=0 // pred_check_branch
    %15 = sbr.rel (0) target = $region13
  $region12: #{discriminator_forward.6} parent=0 // pred_region
    _
  $region13: #{discriminator_forward.6} parent=0 // pred_fallthru
    _
  // Predicated region
  $region14: #{discriminator_forward.6} parent=0 // pred_check
    _
  $region15: #{discriminator_forward.6} parent=0 // pred_check_branch
    %17 = sbr.rel (0) target = $region17
  $region16: #{discriminator_forward.6} parent=0 // pred_region
    _
  $region17: #{discriminator_forward.6} parent=0 // pred_fallthru
    _
  // Predicated region
  $region18: #{discriminator_forward.6} parent=0 // pred_check
    _
  $region19: #{discriminator_forward.6} parent=0 // pred_check_branch
    %19 = sbr.rel (0) target = $region21
  $region20: #{discriminator_forward.6} parent=0 // pred_region
    _
  $region21: #{discriminator_forward.6} parent=0 // pred_fallthru
    _
  %v21 = vld [vmem:[%s0] sm:$0xff]
  %v22 = vld [vmem:[%s0 + $0x8] sm:$0xff]
  %v23 = vld [vmem:[%s0 + $0x10] sm:$0xf]
  %v24 = vld [vmem:[%s0 + $0x14] sm:$0xff]
  %v25 = vld [vmem:[%s0 + $0x1c] sm:$0xff]
  %v26 = vld [vmem:[%s0 + $0x24] sm:$0xf]
  %v27 = vld [vmem:[%s0 + $0x28] sm:$0xff]
  %v28 = vld [vmem:[%s0 + $0x30] sm:$0xff]
  %v29 = vld [vmem:[%s0 + $0x38] sm:$0xf]
  %v30 = vld [vmem:[%s0 + $0x3c] sm:$0xff]
  %v31 = vld [vmem:[%s0 + $0x44] sm:$0xff]
  %v32 = vld [vmem:[%s0 + $0x4c] sm:$0xf]
  %v33 = vld [vmem:[%s1] sm:$0xf]
  %v34 = vld [vmem:[%s1 + $0x4] sm:$0xf]
  %v35 = vld [vmem:[%s1 + $0x8] sm:$0xf]
  %v36 = vld [vmem:[%s1 + $0xc] sm:$0xf]
  %v37 = vld [vmem:[%s1 + $0x10] sm:$0xf]
  %v38 = vld [vmem:[%s1 + $0x14] sm:$0xf]
  %v39 = vld [vmem:[%s1 + $0x18] sm:$0xf]
  %v40 = vld [vmem:[%s1 + $0x1c] sm:$0xf]
  %v41 = vld [vmem:[%s1 + $0x20] sm:$0xf]
  %v42 = vld [vmem:[%s1 + $0x24] sm:$0xf]
  %v43 = vld [vmem:[%s1 + $0x28] sm:$0xf]
  %v44 = vld [vmem:[%s1 + $0x2c] sm:$0xf]
  %v45 = vld [vmem:[%s1 + $0x30] sm:$0xf]
  %v46 = vld [vmem:[%s1 + $0x34] sm:$0xf]
  %v47 = vld [vmem:[%s1 + $0x38] sm:$0xf]
  %v48 = vld [vmem:[%s1 + $0x3c] sm:$0xf]
  %v49 = vld [vmem:[%s1 + $0x40] sm:$0xf]
  %v50 = vld [vmem:[%s1 + $0x44] sm:$0xf]
  %v51 = vld [vmem:[%s1 + $0x48] sm:$0xf]
  %v52 = vld [vmem:[%s1 + $0x4c] sm:$0xf]
  %v53 = vld [vmem:[%s1 + $0x50] sm:$0xf]
  %v54 = vld [vmem:[%s1 + $0x54] sm:$0xf]
  %v55 = vld [vmem:[%s1 + $0x58] sm:$0xf]
  %v56 = vld [vmem:[%s1 + $0x5c] sm:$0xf]
  %v57 = vld [vmem:[%s1 + $0x60] sm:$0xf]
  %v58 = vld [vmem:[%s1 + $0x64] sm:$0xf]
  %v59 = vld [vmem:[%s1 + $0x68] sm:$0xf]
  %v60 = vld [vmem:[%s1 + $0x6c] sm:$0xf]
  %v61 = vld [vmem:[%s1 + $0x70] sm:$0xf]
  %v62 = vld [vmem:[%s1 + $0x74] sm:$0xf]
  %v63 = vld [vmem:[%s1 + $0x78] sm:$0xf]
  %v64 = vld [vmem:[%s1 + $0x7c] sm:$0xf]
  %v65 = vld [vmem:[%s1 + $0x80] sm:$0xf]
  %v66 = vld [vmem:[%s1 + $0x84] sm:$0xf]
  %v67 = vld [vmem:[%s1 + $0x88] sm:$0xf]
  %v68 = vld [vmem:[%s1 + $0x8c] sm:$0xf]
  %v69 = vld [vmem:[%s1 + $0x90] sm:$0xf]
  %v70 = vld [vmem:[%s1 + $0x94] sm:$0xf]
  %v71 = vld [vmem:[%s1 + $0x98] sm:$0xf]
  %v72 = vld [vmem:[%s1 + $0x9c] sm:$0xf]
  %v73 = vld [vmem:[%s1 + $0xa0] sm:$0xf]
  %v74 = vld [vmem:[%s1 + $0xa4] sm:$0xf]
  %v75 = vld [vmem:[%s1 + $0xa8] sm:$0xf]
  %v76 = vld [vmem:[%s1 + $0xac] sm:$0xf]
  %v77 = vld [vmem:[%s1 + $0xb0] sm:$0xf]
  %v78 = vld [vmem:[%s1 + $0xb4] sm:$0xf]
  %v79 = vld [vmem:[%s1 + $0xb8] sm:$0xf]
  %v80 = vld [vmem:[%s1 + $0xbc] sm:$0xf]
  %v81 = vld [vmem:[%s1 + $0xc0] sm:$0xf]
  %v82 = vld [vmem:[%s1 + $0xc4] sm:$0xf]
  %v83 = vld [vmem:[%s1 + $0xc8] sm:$0xf]
  %v84 = vld [vmem:[%s1 + $0xcc] sm:$0xf]
  %v85 = vld [vmem:[%s1 + $0xd0] sm:$0xf]
  %v86 = vld [vmem:[%s1 + $0xd4] sm:$0xf]
  %v87 = vld [vmem:[%s1 + $0xd8] sm:$0xf]
  %v88 = vld [vmem:[%s1 + $0xdc] sm:$0xf]
  %v89 = vld [vmem:[%s1 + $0xe0] sm:$0xf]
  %v90 = vld [vmem:[%s1 + $0xe4] sm:$0xf]
  %v91 = vld [vmem:[%s1 + $0xe8] sm:$0xf]
  %v92 = vld [vmem:[%s1 + $0xec] sm:$0xf]
  %v93 = vld [vmem:[%s1 + $0xf0] sm:$0xf]
  %v94 = vld [vmem:[%s1 + $0xf4] sm:$0xf]
  %v95 = vld [vmem:[%s1 + $0xf8] sm:$0xf]
  %v96 = vld [vmem:[%s1 + $0xfc] sm:$0xf]
  %v97 = vld [vmem:[%s1 + $0x100] sm:$0xf]
  %v98 = vld [vmem:[%s1 + $0x104] sm:$0xf]
  %v99 = vld [vmem:[%s1 + $0x108] sm:$0xf]
  %v100 = vld [vmem:[%s1 + $0x10c] sm:$0xf]
  %v101 = vld [vmem:[%s1 + $0x110] sm:$0xf]
  %v102 = vld [vmem:[%s1 + $0x114] sm:$0xf]
  %v103 = vld [vmem:[%s1 + $0x118] sm:$0xf]
  %v104 = vld [vmem:[%s1 + $0x11c] sm:$0xf]
  %v105 = vld [vmem:[%s2] sm:$0x1]
  %v107 = vlaneseq
  %v108 = vshrl.u32 %v107, 7
  %v109 = vsub.s32 0, %v108
  %v110 = vrot.slane %v105, %v109
  %v124 = vunpack.c.l.b16 %v21
  %v125 = vunpack.c.h.b16 %v21
  %v126 = vunpack.c.l.b16 %v22
  %v127 = vunpack.c.h.b16 %v22
  %v128 = vunpack.c.l.b16 %v23
  %v129 = vunpack.c.l.b16 %v24
  %v130 = vunpack.c.h.b16 %v24
  %v131 = vunpack.c.l.b16 %v25
  %v132 = vunpack.c.h.b16 %v25
  %v133 = vunpack.c.l.b16 %v26
  %v134 = vunpack.c.l.b16 %v27
  %v135 = vunpack.c.h.b16 %v27
  %v136 = vunpack.c.l.b16 %v28
  %v137 = vunpack.c.h.b16 %v28
  %v138 = vunpack.c.l.b16 %v29
  %v139 = vunpack.c.l.b16 %v30
  %v140 = vunpack.c.h.b16 %v30
  %v141 = vunpack.c.l.b16 %v31
  %v142 = vunpack.c.h.b16 %v31
  %v143 = vunpack.c.l.b16 %v32
  %v144 = vpack.c.b16 %v129, %v124
  %v145 = vpack.c.b16 %v130, %v125
  %v146 = vpack.c.b16 %v131, %v126
  %v147 = vpack.c.b16 %v132, %v127
  %v148 = vpack.c.b16 %v133, %v128
  %v149 = vpack.c.b16 %v139, %v134
  %v150 = vpack.c.b16 %v140, %v135
  %v151 = vpack.c.b16 %v141, %v136
  %v152 = vpack.c.b16 %v142, %v137
  %v153 = vpack.c.b16 %v143, %v138
  %v234 = vunpack.c.l.b16 %v33
  %v235 = vunpack.c.l.b16 %v34
  %v236 = vunpack.c.l.b16 %v35
  %v237 = vunpack.c.l.b16 %v36
  %v238 = vunpack.c.l.b16 %v37
  %v239 = vunpack.c.l.b16 %v38
  %v240 = vunpack.c.l.b16 %v39
  %v241 = vunpack.c.l.b16 %v40
  %v242 = vunpack.c.l.b16 %v41
  %v243 = vunpack.c.l.b16 %v42
  %v244 = vunpack.c.l.b16 %v43
  %v245 = vunpack.c.l.b16 %v44
  %v246 = vunpack.c.l.b16 %v45
  %v247 = vunpack.c.l.b16 %v46
  %v248 = vunpack.c.l.b16 %v47
  %v249 = vunpack.c.l.b16 %v48
  %v250 = vunpack.c.l.b16 %v49
  %v251 = vunpack.c.l.b16 %v50
  %v252 = vunpack.c.l.b16 %v51
  %v253 = vunpack.c.l.b16 %v52
  %v254 = vunpack.c.l.b16 %v53
  %v255 = vunpack.c.l.b16 %v54
  %v256 = vunpack.c.l.b16 %v55
  %v257 = vunpack.c.l.b16 %v56
  %v258 = vunpack.c.l.b16 %v57
  %v259 = vunpack.c.l.b16 %v58
  %v260 = vunpack.c.l.b16 %v59
  %v261 = vunpack.c.l.b16 %v60
  %v262 = vunpack.c.l.b16 %v61
  %v263 = vunpack.c.l.b16 %v62
  %v264 = vunpack.c.l.b16 %v63
  %v265 = vunpack.c.l.b16 %v64
  %v266 = vunpack.c.l.b16 %v65
  %v267 = vunpack.c.l.b16 %v66
  %v268 = vunpack.c.l.b16 %v67
  %v269 = vunpack.c.l.b16 %v68
  %v270 = vunpack.c.l.b16 %v69
  %v271 = vunpack.c.l.b16 %v70
  %v272 = vunpack.c.l.b16 %v71
  %v273 = vunpack.c.l.b16 %v72
  %v274 = vunpack.c.l.b16 %v73
  %v275 = vunpack.c.l.b16 %v74
  %v276 = vunpack.c.l.b16 %v75
  %v277 = vunpack.c.l.b16 %v76
  %v278 = vunpack.c.l.b16 %v77
  %v279 = vunpack.c.l.b16 %v78
  %v280 = vunpack.c.l.b16 %v79
  %v281 = vunpack.c.l.b16 %v80
  %v282 = vunpack.c.l.b16 %v81
  %v283 = vunpack.c.l.b16 %v82
  %v284 = vunpack.c.l.b16 %v83
  %v285 = vunpack.c.l.b16 %v84
  %v286 = vunpack.c.l.b16 %v85
  %v287 = vunpack.c.l.b16 %v86
  %v288 = vunpack.c.l.b16 %v87
  %v289 = vunpack.c.l.b16 %v88
  %v290 = vunpack.c.l.b16 %v89
  %v291 = vunpack.c.l.b16 %v90
  %v292 = vunpack.c.l.b16 %v91
  %v293 = vunpack.c.l.b16 %v92
  %v294 = vunpack.c.l.b16 %v93
  %v295 = vunpack.c.l.b16 %v94
  %v296 = vunpack.c.l.b16 %v95
  %v297 = vunpack.c.l.b16 %v96
  %v298 = vunpack.c.l.b16 %v97
  %v299 = vunpack.c.l.b16 %v98
  %v300 = vunpack.c.l.b16 %v99
  %v301 = vunpack.c.l.b16 %v100
  %v302 = vunpack.c.l.b16 %v101
  %v303 = vunpack.c.l.b16 %v102
  %v304 = vunpack.c.l.b16 %v103
  %v305 = vunpack.c.l.b16 %v104
  %v306 = vpack.c.b16 %v235, %v234
  %v307 = vpack.c.b16 %v237, %v236
  %v308 = vpack.c.b16 %v239, %v238
  %v309 = vpack.c.b16 %v241, %v240
  %v310 = vpack.c.b16 %v243, %v242
  %v311 = vpack.c.b16 %v245, %v244
  %v312 = vpack.c.b16 %v247, %v246
  %v313 = vpack.c.b16 %v249, %v248
  %v314 = vpack.c.b16 %v251, %v250
  %v315 = vpack.c.b16 %v253, %v252
  %v316 = vpack.c.b16 %v255, %v254
  %v317 = vpack.c.b16 %v257, %v256
  %v318 = vpack.c.b16 %v259, %v258
  %v319 = vpack.c.b16 %v261, %v260
  %v320 = vpack.c.b16 %v263, %v262
  %v321 = vpack.c.b16 %v265, %v264
  %v322 = vpack.c.b16 %v267, %v266
  %v323 = vpack.c.b16 %v269, %v268
  %v324 = vpack.c.b16 %v271, %v270
  %v325 = vpack.c.b16 %v273, %v272
  %v326 = vpack.c.b16 %v275, %v274
  %v327 = vpack.c.b16 %v277, %v276
  %v328 = vpack.c.b16 %v279, %v278
  %v329 = vpack.c.b16 %v281, %v280
  %v330 = vpack.c.b16 %v283, %v282
  %v331 = vpack.c.b16 %v285, %v284
  %v332 = vpack.c.b16 %v287, %v286
  %v333 = vpack.c.b16 %v289, %v288
  %v334 = vpack.c.b16 %v291, %v290
  %v335 = vpack.c.b16 %v293, %v292
  %v336 = vpack.c.b16 %v295, %v294
  %v337 = vpack.c.b16 %v297, %v296
  %v338 = vpack.c.b16 %v299, %v298
  %v339 = vpack.c.b16 %v301, %v300
  %v340 = vpack.c.b16 %v303, %v302
  %v341 = vpack.c.b16 %v305, %v304
  %vm378 = vcmask 523264
  %v380 = vsel %vm378, %v148, 0
  %v383 = vsel %vm378, %v153, 0
  %385 = vmatprep.subr.bf16.mxu0 0
  %386 = vmatpush1.bf16.msra.mxu0 %v306
  %387 = vmatprep.subr.bf16.mxu0 0
  %388 = vmatpush1.bf16.msra.mxu0 %v307
  %389 = vmatprep.subr.bf16.mxu0 0
  %390 = vmatpush1.bf16.msra.mxu0 %v308
  %391 = vmatprep.subr.bf16.mxu0 0
  %392 = vmatpush1.bf16.msra.mxu0 %v309
  %393 = vmatprep.subr.bf16.mxu0 0
  %394 = vmatpush1.bf16.msra.mxu0 %v310
  %395 = vmatprep.subr.bf16.mxu0 0
  %396 = vmatpush1.bf16.msra.mxu0 %v311
  %397 = vmatprep.subr.bf16.mxu0 0
  %398 = vmatpush1.bf16.msra.mxu0 %v312
  %399 = vmatprep.subr.bf16.mxu0 0
  %400 = vmatpush1.bf16.msra.mxu0 %v313
  %401 = vmatprep.subr.bf16.mxu0 0
  %402 = vmatpush1.bf16.msra.mxu0 %v314
  %403 = vmatprep.subr.bf16.mxu0 0
  %404 = vmatpush1.bf16.msra.mxu0 %v315
  %405 = vmatprep.subr.bf16.mxu0 0
  %406 = vmatpush1.bf16.msra.mxu0 %v316
  %407 = vmatprep.subr.bf16.mxu0 0
  %408 = vmatpush1.bf16.msra.mxu0 %v317
  %409 = vmatprep.subr.bf16.mxu0 0
  %410 = vmatpush1.bf16.msra.mxu0 %v318
  %411 = vmatprep.subr.bf16.mxu0 0
  %412 = vmatpush1.bf16.msra.mxu0 %v319
  %413 = vmatprep.subr.bf16.mxu0 0
  %414 = vmatpush1.bf16.msra.mxu0 %v320
  %415 = vmatprep.subr.bf16.mxu0 0
  %416 = vmatpush1.bf16.msra.mxu0 %v321
  %417 = vmatprep.mubr.bf16.mxu0 %v145
  %418 = vmatmul.mubr.bf16.gmra.mrb[0].mxu0 %v144
  %v419 = vpop.f32.mrb[0].mxu0
  %v420 = vadd.f32 %v110, %v419
  %v421 = vpop.f32.mrb[0].mxu0
  %v422 = vpop.f32.mrb[0].mxu0
  %v423 = vadd.f32 %v110, %v422
  %v424 = vpop.f32.mrb[0].mxu0
  %425 = vmatprep.mubr.bf16.mxu0 %v150
  %426 = vmatmul.mubr.bf16.gmra.mrb[0].mxu0 %v149
  %v427 = vpop.f32.mrb[0].mxu0
  %v428 = vadd.f32 %v110, %v427
  %v429 = vpop.f32.mrb[0].mxu0
  %v430 = vpop.f32.mrb[0].mxu0
  %v431 = vadd.f32 %v110, %v430
  %v432 = vpop.f32.mrb[0].mxu0
  %433 = vdwg.mxu0
  %434 = vmatprep.subr.bf16.mxu0 0
  %435 = vmatpush1.bf16.msra.mxu0 %v322
  %436 = vmatprep.subr.bf16.mxu0 0
  %437 = vmatpush1.bf16.msra.mxu0 %v323
  %438 = vmatprep.subr.bf16.mxu0 0
  %439 = vmatpush1.bf16.msra.mxu0 %v324
  %440 = vmatprep.subr.bf16.mxu0 0
  %441 = vmatpush1.bf16.msra.mxu0 %v325
  %442 = vmatprep.subr.bf16.mxu0 0
  %443 = vmatpush1.bf16.msra.mxu0 %v326
  %444 = vmatprep.subr.bf16.mxu0 0
  %445 = vmatpush1.bf16.msra.mxu0 %v327
  %446 = vmatprep.subr.bf16.mxu0 0
  %447 = vmatpush1.bf16.msra.mxu0 %v328
  %448 = vmatprep.subr.bf16.mxu0 0
  %449 = vmatpush1.bf16.msra.mxu0 %v329
  %450 = vmatprep.subr.bf16.mxu0 0
  %451 = vmatpush1.bf16.msra.mxu0 %v330
  %452 = vmatprep.subr.bf16.mxu0 0
  %453 = vmatpush1.bf16.msra.mxu0 %v331
  %454 = vmatprep.subr.bf16.mxu0 0
  %455 = vmatpush1.bf16.msra.mxu0 %v332
  %456 = vmatprep.subr.bf16.mxu0 0
  %457 = vmatpush1.bf16.msra.mxu0 %v333
  %458 = vmatprep.subr.bf16.mxu0 0
  %459 = vmatpush1.bf16.msra.mxu0 %v334
  %460 = vmatprep.subr.bf16.mxu0 0
  %461 = vmatpush1.bf16.msra.mxu0 %v335
  %462 = vmatprep.subr.bf16.mxu0 0
  %463 = vmatpush1.bf16.msra.mxu0 %v336
  %464 = vmatprep.subr.bf16.mxu0 0
  %465 = vmatpush1.bf16.msra.mxu0 %v337
  %466 = vmatprep.mubr.bf16.mxu0 %v147
  %467 = vmatmul.mubr.bf16.gmra.mrb[0].mxu0 %v146
  %v468 = vpop.f32.mrb[0].mxu0
  %v469 = vadd.f32 %v420, %v468
  %v470 = vpop.f32.mrb[0].mxu0
  %v471 = vpop.f32.mrb[0].mxu0
  %v472 = vadd.f32 %v423, %v471
  %v473 = vpop.f32.mrb[0].mxu0
  %474 = vmatprep.mubr.bf16.mxu0 %v152
  %475 = vmatmul.mubr.bf16.gmra.mrb[0].mxu0 %v151
  %v476 = vpop.f32.mrb[0].mxu0
  %v477 = vadd.f32 %v428, %v476
  %v478 = vpop.f32.mrb[0].mxu0
  %v479 = vpop.f32.mrb[0].mxu0
  %v480 = vadd.f32 %v431, %v479
  %v481 = vpop.f32.mrb[0].mxu0
  %482 = vdwg.mxu0
  %483 = vmatprep.subr.bf16.mxu0 0
  %484 = vmatpush1.bf16.msra.mxu0 %v338
  %485 = vmatprep.subr.bf16.mxu0 0
  %486 = vmatpush1.bf16.msra.mxu0 %v339
  %487 = vmatprep.subr.bf16.mxu0 0
  %488 = vmatpush1.bf16.msra.mxu0 %v340
  %489 = vmatprep.subr.bf16.mxu0 0
  %490 = vmatpush1.bf16.msra.mxu0 %v341
  %491 = vmatprep.subr.bf16.mxu0 0
  %492 = vmatpush1.bf16.msra.mxu0 0
  %493 = vmatprep.subr.bf16.mxu0 0
  %494 = vmatpush1.bf16.msra.mxu0 0
  %495 = vmatprep.subr.bf16.mxu0 0
  %496 = vmatpush1.bf16.msra.mxu0 0
  %497 = vmatprep.subr.bf16.mxu0 0
  %498 = vmatpush1.bf16.msra.mxu0 0
  %499 = vmatprep.subr.bf16.mxu0 0
  %500 = vmatpush1.bf16.msra.mxu0 0
  %501 = vmatprep.subr.bf16.mxu0 0
  %502 = vmatpush1.bf16.msra.mxu0 0
  %503 = vmatprep.subr.bf16.mxu0 0
  %504 = vmatpush1.bf16.msra.mxu0 0
  %505 = vmatprep.subr.bf16.mxu0 0
  %506 = vmatpush1.bf16.msra.mxu0 0
  %507 = vmatprep.subr.bf16.mxu0 0
  %508 = vmatpush1.bf16.msra.mxu0 0
  %509 = vmatprep.subr.bf16.mxu0 0
  %510 = vmatpush1.bf16.msra.mxu0 0
  %511 = vmatprep.subr.bf16.mxu0 0
  %512 = vmatpush1.bf16.msra.mxu0 0
  %513 = vmatprep.subr.bf16.mxu0 0
  %514 = vmatpush1.bf16.msra.mxu0 0
  %515 = vmatprep.mubr.bf16.mxu0 0
  %516 = vmatmul.mubr.bf16.gmra.mrb[0].mxu0 %v380
  %v517 = vpop.f32.mrb[0].mxu0
  %v518 = vadd.f32 %v469, %v517
  %v519 = vpop.f32.mrb[0].mxu0
  %v520 = vpop.f32.mrb[0].mxu0
  %v521 = vadd.f32 %v472, %v520
  %v522 = vpop.f32.mrb[0].mxu0
  %523 = vmatprep.mubr.bf16.mxu0 0
  %524 = vmatmul.mubr.bf16.gmra.mrb[0].mxu0 %v383
  %v525 = vpop.f32.mrb[0].mxu0
  %v526 = vadd.f32 %v477, %v525
  %v527 = vpop.f32.mrb[0].mxu0
  %v528 = vpop.f32.mrb[0].mxu0
  %v529 = vadd.f32 %v480, %v528
  %v530 = vpop.f32.mrb[0].mxu0
  %531 = vdwg.mxu0
  %v532 = vadd.f32 %v518, %v521
  %v533 = vadd.f32 %v532, %v526
  %v534 = vadd.f32 %v533, %v529
  %v535 = vrot.slane %v534, 4
  %v536 = vadd.f32 %v534, %v535
  %v537 = vrot.slane %v536, 2
  %v538 = vadd.f32 %v536, %v537
  %v539 = vrot.slane %v538, 1
  %v540 = vadd.f32 %v538, %v539
  %v541 = vrcp.pop 32.0
  %v542 = vmul.f32 %v540, %v541
  %v543 = vsub.f32 %v518, %v542
  %v544 = vsub.f32 %v521, %v542
  %v545 = vsub.f32 %v526, %v542
  %v546 = vsub.f32 %v529, %v542
  %v547 = vmul.f32 %v543, %v543
  %v548 = vmul.f32 %v544, %v544
  %v549 = vmul.f32 %v545, %v545
  %v550 = vmul.f32 %v546, %v546
  %v551 = vadd.f32 %v547, %v548
  %v552 = vadd.f32 %v551, %v549
  %v553 = vadd.f32 %v552, %v550
  %v554 = vrot.slane %v553, 4
  %v555 = vadd.f32 %v553, %v554
  %v556 = vrot.slane %v555, 2
  %v557 = vadd.f32 %v555, %v556
  %v558 = vrot.slane %v557, 1
  %v559 = vadd.f32 %v557, %v558
  %v560 = vmul.f32 %v559, %v541
  %v561 = vadd.f32 %v560, 1e-05
  %v562 = vrsqrt.pop %v561
  %v563 = vmul.f32 %v543, %v562
  %v564 = vmul.f32 %v544, %v562
  %v565 = vmul.f32 %v545, %v562
  %v566 = vmul.f32 %v546, %v562
  %v567 = vld [vmem:[%s3] sm:$0x1]
  %v569 = vlaneseq
  %v570 = vshrl.u32 %v569, 7
  %v571 = vsub.s32 0, %v570
  %v572 = vrot.slane %v567, %v571
  %v574 = vmul.f32 %v563, %v572
  %v575 = vmul.f32 %v564, %v572
  %v576 = vmul.f32 %v565, %v572
  %v577 = vmul.f32 %v566, %v572
  %v578 = vld [vmem:[%s4] sm:$0x1]
  %v580 = vlaneseq
  %v581 = vshrl.u32 %v580, 7
  %v582 = vsub.s32 0, %v581
  %v583 = vrot.slane %v578, %v582
  %v585 = vadd.f32 %v574, %v583
  %v586 = vadd.f32 %v575, %v583
  %v587 = vadd.f32 %v576, %v583
  %v588 = vadd.f32 %v577, %v583
  %vm589 = vcmp.gt.f32.partialorder %v585, 0.0
  %vm590 = vcmp.gt.f32.partialorder %v586, 0.0
  %vm591 = vcmp.gt.f32.partialorder %v587, 0.0
  %vm592 = vcmp.gt.f32.partialorder %v588, 0.0
  %v593 = vmul.f32 %v585, 0.2
  %v594 = vmul.f32 %v586, 0.2
  %v595 = vmul.f32 %v587, 0.2
  %v596 = vmul.f32 %v588, 0.2
  %v597 = vsel %vm589, %v585, %v593
  %v598 = vsel %vm590, %v586, %v594
  %v599 = vsel %vm591, %v587, %v595
  %v600 = vsel %vm592, %v588, %v596
  %v601 = vpack.c.bf16 %v598, %v597
  %v602 = vpack.c.bf16 %v600, %v599
  %v605 = vunpack.c.l.b16 %v601
  %v606 = vunpack.c.h.b16 %v601
  %v607 = vunpack.c.l.b16 %v602
  %v608 = vunpack.c.h.b16 %v602
  %v609 = vpack.c.b16 %v605, %v605
  %v610 = vpack.c.b16 %v606, %v606
  %v611 = vpack.c.b16 %v607, %v607
  %v612 = vpack.c.b16 %v608, %v608
  %617 = vst [vmem:[%s5] sm:$0xf] %v609
  %618 = vst [vmem:[%s5 + $0x4] sm:$0xf] %v610
  %619 = vst [vmem:[%s5 + $0x8] sm:$0xf] %v611
  %620 = vst [vmem:[%s5 + $0xc] sm:$0xf] %v612
  // Predicated region
  $region22: #{discriminator_forward.6} parent=0 // pred_check
    _
  $region23: #{discriminator_forward.6} parent=0 // pred_check_branch
    %622 = sbr.rel (0) target = $region25
  $region24: #{discriminator_forward.6} parent=0 // pred_region
    _
  $region25: #{discriminator_forward.6} parent=0 // pred_fallthru
    _
  // Predicated region
  $region26: #{discriminator_forward.6} parent=0 // pred_check
    _
  $region27: #{discriminator_forward.6} parent=0 // pred_check_branch
    %624 = sbr.rel (0) target = $region29
  $region28: #{discriminator_forward.6} parent=0 // pred_region
    _
  $region29: #{discriminator_forward.6} parent=0 // pred_fallthru
    _

// kernel: discriminator_forward.7
$region0: #{discriminator_forward.7}
  #allocation0 [shape = 'u32[]', space=smem, size = 0x4, offset = 0x4, fixed_abs, tag = 'smem constant byte address 0x4 - core index']
  #allocation1 [shape = 'u32[144,128]{1,0:T(1,128)}', space=vmem, size = 0x12000, scoped, tag = 'internal scratch']
  %s0 = inlined_call_operand.vmem [shape: bf16[2,1024], index: 0, kind: input, shape index: {}]
  %s1 = inlined_call_operand.vmem [shape: bf16[1024,128], index: 1, kind: input, shape index: {}]
  %s2 = inlined_call_operand.vmem [shape: f32[1,128], index: 2, kind: input, shape index: {}]
  %s3 = inlined_call_operand.vmem [shape: bf16[128,128], index: 3, kind: input, shape index: {}]
  %s4 = inlined_call_operand.vmem [shape: f32[1,128], index: 4, kind: input, shape index: {}]
  %s5 = inlined_call_operand.vmem [shape: f32[2,128], index: 5, kind: output, shape index: {}]
  %s6 = sld [smem:[#allocation0]]
  $region30: #{discriminator_forward.7} parent=0
    _
  %s8 = ssub.s32 1, %s6
  %s9 = scalar_select 0, %s8, %s6
  // Predicated region
  $region2: #{discriminator_forward.7} parent=0 // pred_check
    _
  $region3: #{discriminator_forward.7} parent=0 // pred_check_branch
    %11 = sbr.rel (0) target = $region5
  $region4: #{discriminator_forward.7} parent=0 // pred_region
    _
  $region5: #{discriminator_forward.7} parent=0 // pred_fallthru
    _
  // Predicated region
  $region6: #{discriminator_forward.7} parent=0 // pred_check
    _
  $region7: #{discriminator_forward.7} parent=0 // pred_check_branch
    %13 = sbr.rel (0) target = $region9
  $region8: #{discriminator_forward.7} parent=0 // pred_region
    _
  $region9: #{discriminator_forward.7} parent=0 // pred_fallthru
    _
  // Predicated region
  $region10: #{discriminator_forward.7} parent=0 // pred_check
    _
  $region11: #{discriminator_forward.7} parent=0 // pred_check_branch
    %15 = sbr.rel (0) target = $region13
  $region12: #{discriminator_forward.7} parent=0 // pred_region
    _
  $region13: #{discriminator_forward.7} parent=0 // pred_fallthru
    _
  // Predicated region
  $region14: #{discriminator_forward.7} parent=0 // pred_check
    _
  $region15: #{discriminator_forward.7} parent=0 // pred_check_branch
    %17 = sbr.rel (0) target = $region17
  $region16: #{discriminator_forward.7} parent=0 // pred_region
    _
  $region17: #{discriminator_forward.7} parent=0 // pred_fallthru
    _
  // Predicated region
  $region18: #{discriminator_forward.7} parent=0 // pred_check
    _
  $region19: #{discriminator_forward.7} parent=0 // pred_check_branch
    %19 = sbr.rel (0) target = $region21
  $region20: #{discriminator_forward.7} parent=0 // pred_region
    _
  $region21: #{discriminator_forward.7} parent=0 // pred_fallthru
    _
  %v21 = vld [vmem:[%s0] sm:$0xff]
  %v22 = vld [vmem:[%s1] sm:$0xf]
  %v23 = vld [vmem:[%s1 + $0x4] sm:$0xf]
  %v24 = vld [vmem:[%s1 + $0x8] sm:$0xf]
  %v25 = vld [vmem:[%s1 + $0xc] sm:$0xf]
  %v26 = vld [vmem:[%s1 + $0x10] sm:$0xf]
  %v27 = vld [vmem:[%s1 + $0x14] sm:$0xf]
  %v28 = vld [vmem:[%s1 + $0x18] sm:$0xf]
  %v29 = vld [vmem:[%s1 + $0x1c] sm:$0xf]
  %v30 = vld [vmem:[%s1 + $0x20] sm:$0xf]
  %v31 = vld [vmem:[%s1 + $0x24] sm:$0xf]
  %v32 = vld [vmem:[%s1 + $0x28] sm:$0xf]
  %v33 = vld [vmem:[%s1 + $0x2c] sm:$0xf]
  %v34 = vld [vmem:[%s1 + $0x30] sm:$0xf]
  %v35 = vld [vmem:[%s1 + $0x34] sm:$0xf]
  %v36 = vld [vmem:[%s1 + $0x38] sm:$0xf]
  %v37 = vld [vmem:[%s1 + $0x3c] sm:$0xf]
  %v38 = vld [vmem:[%s1 + $0x40] sm:$0xf]
  %v39 = vld [vmem:[%s1 + $0x44] sm:$0xf]
  %v40 = vld [vmem:[%s1 + $0x48] sm:$0xf]
  %v41 = vld [vmem:[%s1 + $0x4c] sm:$0xf]
  %v42 = vld [vmem:[%s1 + $0x50] sm:$0xf]
  %v43 = vld [vmem:[%s1 + $0x54] sm:$0xf]
  %v44 = vld [vmem:[%s1 + $0x58] sm:$0xf]
  %v45 = vld [vmem:[%s1 + $0x5c] sm:$0xf]
  %v46 = vld [vmem:[%s1 + $0x60] sm:$0xf]
  %v47 = vld [vmem:[%s1 + $0x64] sm:$0xf]
  %v48 = vld [vmem:[%s1 + $0x68] sm:$0xf]
  %v49 = vld [vmem:[%s1 + $0x6c] sm:$0xf]
  %v50 = vld [vmem:[%s1 + $0x70] sm:$0xf]
  %v51 = vld [vmem:[%s1 + $0x74] sm:$0xf]
  %v52 = vld [vmem:[%s1 + $0x78] sm:$0xf]
  %v53 = vld [vmem:[%s1 + $0x7c] sm:$0xf]
  %v54 = vld [vmem:[%s1 + $0x80] sm:$0xf]
  %v55 = vld [vmem:[%s1 + $0x84] sm:$0xf]
  %v56 = vld [vmem:[%s1 + $0x88] sm:$0xf]
  %v57 = vld [vmem:[%s1 + $0x8c] sm:$0xf]
  %v58 = vld [vmem:[%s1 + $0x90] sm:$0xf]
  %v59 = vld [vmem:[%s1 + $0x94] sm:$0xf]
  %v60 = vld [vmem:[%s1 + $0x98] sm:$0xf]
  %v61 = vld [vmem:[%s1 + $0x9c] sm:$0xf]
  %v62 = vld [vmem:[%s1 + $0xa0] sm:$0xf]
  %v63 = vld [vmem:[%s1 + $0xa4] sm:$0xf]
  %v64 = vld [vmem:[%s1 + $0xa8] sm:$0xf]
  %v65 = vld [vmem:[%s1 + $0xac] sm:$0xf]
  %v66 = vld [vmem:[%s1 + $0xb0] sm:$0xf]
  %v67 = vld [vmem:[%s1 + $0xb4] sm:$0xf]
  %v68 = vld [vmem:[%s1 + $0xb8] sm:$0xf]
  %v69 = vld [vmem:[%s1 + $0xbc] sm:$0xf]
  %v70 = vld [vmem:[%s1 + $0xc0] sm:$0xf]
  %v71 = vld [vmem:[%s1 + $0xc4] sm:$0xf]
  %v72 = vld [vmem:[%s1 + $0xc8] sm:$0xf]
  %v73 = vld [vmem:[%s1 + $0xcc] sm:$0xf]
  %v74 = vld [vmem:[%s1 + $0xd0] sm:$0xf]
  %v75 = vld [vmem:[%s1 + $0xd4] sm:$0xf]
  %v76 = vld [vmem:[%s1 + $0xd8] sm:$0xf]
  %v77 = vld [vmem:[%s1 + $0xdc] sm:$0xf]
  %v78 = vld [vmem:[%s1 + $0xe0] sm:$0xf]
  %v79 = vld [vmem:[%s1 + $0xe4] sm:$0xf]
  %v80 = vld [vmem:[%s1 + $0xe8] sm:$0xf]
  %v81 = vld [vmem:[%s1 + $0xec] sm:$0xf]
  %v82 = vld [vmem:[%s1 + $0xf0] sm:$0xf]
  %v83 = vld [vmem:[%s1 + $0xf4] sm:$0xf]
  %v84 = vld [vmem:[%s1 + $0xf8] sm:$0xf]
  %v85 = vld [vmem:[%s1 + $0xfc] sm:$0xf]
  %v86 = vld [vmem:[%s1 + $0x100] sm:$0xf]
  %v87 = vld [vmem:[%s1 + $0x104] sm:$0xf]
  %v88 = vld [vmem:[%s1 + $0x108] sm:$0xf]
  %v89 = vld [vmem:[%s1 + $0x10c] sm:$0xf]
  %v90 = vld [vmem:[%s1 + $0x110] sm:$0xf]
  %v91 = vld [vmem:[%s1 + $0x114] sm:$0xf]
  %v92 = vld [vmem:[%s1 + $0x118] sm:$0xf]
  %v93 = vld [vmem:[%s1 + $0x11c] sm:$0xf]
  %v94 = vld [vmem:[%s1 + $0x120] sm:$0xf]
  %v95 = vld [vmem:[%s1 + $0x124] sm:$0xf]
  %v96 = vld [vmem:[%s1 + $0x128] sm:$0xf]
  %v97 = vld [vmem:[%s1 + $0x12c] sm:$0xf]
  %v98 = vld [vmem:[%s1 + $0x130] sm:$0xf]
  %v99 = vld [vmem:[%s1 + $0x134] sm:$0xf]
  %v100 = vld [vmem:[%s1 + $0x138] sm:$0xf]
  %v101 = vld [vmem:[%s1 + $0x13c] sm:$0xf]
  %v102 = vld [vmem:[%s1 + $0x140] sm:$0xf]
  %v103 = vld [vmem:[%s1 + $0x144] sm:$0xf]
  %v104 = vld [vmem:[%s1 + $0x148] sm:$0xf]
  %v105 = vld [vmem:[%s1 + $0x14c] sm:$0xf]
  %v106 = vld [vmem:[%s1 + $0x150] sm:$0xf]
  %v107 = vld [vmem:[%s1 + $0x154] sm:$0xf]
  %v108 = vld [vmem:[%s1 + $0x158] sm:$0xf]
  %v109 = vld [vmem:[%s1 + $0x15c] sm:$0xf]
  %v110 = vld [vmem:[%s1 + $0x160] sm:$0xf]
  %v111 = vld [vmem:[%s1 + $0x164] sm:$0xf]
  %v112 = vld [vmem:[%s1 + $0x168] sm:$0xf]
  %v113 = vld [vmem:[%s1 + $0x16c] sm:$0xf]
  %v114 = vld [vmem:[%s1 + $0x170] sm:$0xf]
  %v115 = vld [vmem:[%s1 + $0x174] sm:$0xf]
  %v116 = vld [vmem:[%s1 + $0x178] sm:$0xf]
  %v117 = vld [vmem:[%s1 + $0x17c] sm:$0xf]
  %v118 = vld [vmem:[%s1 + $0x180] sm:$0xf]
  %v119 = vld [vmem:[%s1 + $0x184] sm:$0xf]
  %v120 = vld [vmem:[%s1 + $0x188] sm:$0xf]
  %v121 = vld [vmem:[%s1 + $0x18c] sm:$0xf]
  %v122 = vld [vmem:[%s1 + $0x190] sm:$0xf]
  %v123 = vld [vmem:[%s1 + $0x194] sm:$0xf]
  %v124 = vld [vmem:[%s1 + $0x198] sm:$0xf]
  %v125 = vld [vmem:[%s1 + $0x19c] sm:$0xf]
  %v126 = vld [vmem:[%s1 + $0x1a0] sm:$0xf]
  %v127 = vld [vmem:[%s1 + $0x1a4] sm:$0xf]
  %v128 = vld [vmem:[%s1 + $0x1a8] sm:$0xf]
  %v129 = vld [vmem:[%s1 + $0x1ac] sm:$0xf]
  %v130 = vld [vmem:[%s1 + $0x1b0] sm:$0xf]
  %v131 = vld [vmem:[%s1 + $0x1b4] sm:$0xf]
  %v132 = vld [vmem:[%s1 + $0x1b8] sm:$0xf]
  %v133 = vld [vmem:[%s1 + $0x1bc] sm:$0xf]
  %v134 = vld [vmem:[%s1 + $0x1c0] sm:$0xf]
  %v135 = vld [vmem:[%s1 + $0x1c4] sm:$0xf]
  %v136 = vld [vmem:[%s1 + $0x1c8] sm:$0xf]
  %v137 = vld [vmem:[%s1 + $0x1cc] sm:$0xf]
  %v138 = vld [vmem:[%s1 + $0x1d0] sm:$0xf]
  %v139 = vld [vmem:[%s1 + $0x1d4] sm:$0xf]
  %v140 = vld [vmem:[%s1 + $0x1d8] sm:$0xf]
  %v141 = vld [vmem:[%s1 + $0x1dc] sm:$0xf]
  %v142 = vld [vmem:[%s1 + $0x1e0] sm:$0xf]
  %v143 = vld [vmem:[%s1 + $0x1e4] sm:$0xf]
  %v144 = vld [vmem:[%s1 + $0x1e8] sm:$0xf]
  %v145 = vld [vmem:[%s1 + $0x1ec] sm:$0xf]
  %v146 = vld [vmem:[%s1 + $0x1f0] sm:$0xf]
  %v147 = vld [vmem:[%s1 + $0x1f4] sm:$0xf]
  %v148 = vld [vmem:[%s1 + $0x1f8] sm:$0xf]
  %v149 = vld [vmem:[%s1 + $0x1fc] sm:$0xf]
  %v150 = vld [vmem:[%s2] sm:$0x1]
  %v152 = vlaneseq
  %v153 = vshrl.u32 %v152, 7
  %v154 = vsub.s32 0, %v153
  %v155 = vrot.slane %v150, %v154
  %v158 = vcombine.high %v21, %v21
  %v160 = vunpack.c.l.s4 1966171168
  %v161 = vunpack.c.0.s8 %v160
  %v162 = vlaneseq
  %v163 = vshrl.u32 %v162, 7
  %v164 = vsub.s32 %v161, %v163
  %v165 = vrot.slane %v21, %v164
  %v167 = vunpack.c.l.s4 1966171168
  %v168 = vunpack.c.0.s8 %v167
  %v169 = vlaneseq
  %v170 = vshrl.u32 %v169, 7
  %v171 = vsub.s32 %v168, %v170
  %v172 = vrot.slane %v158, %v171
  %v173 = vcombine.high %v165, %v165
  %v174 = vcombine.high %v172, %v172
  %v176 = vunpack.c.l.s4 1966171168
  %v177 = vunpack.c.0.s8 %v176
  %v178 = vlaneseq
  %v179 = vshrl.u32 %v178, 7
  %v180 = vsub.s32 %v177, %v179
  %v181 = vrot.slane %v165, %v180
  %v183 = vunpack.c.l.s4 1966171168
  %v184 = vunpack.c.0.s8 %v183
  %v185 = vlaneseq
  %v186 = vshrl.u32 %v185, 7
  %v187 = vsub.s32 %v184, %v186
  %v188 = vrot.slane %v172, %v187
  %v190 = vunpack.c.l.s4 1966171168
  %v191 = vunpack.c.0.s8 %v190
  %v192 = vlaneseq
  %v193 = vshrl.u32 %v192, 7
  %v194 = vsub.s32 %v191, %v193
  %v195 = vrot.slane %v173, %v194
  %v197 = vunpack.c.l.s4 1966171168
  %v198 = vunpack.c.0.s8 %v197
  %v199 = vlaneseq
  %v200 = vshrl.u32 %v199, 7
  %v201 = vsub.s32 %v198, %v200
  %v202 = vrot.slane %v174, %v201
  %v203 = vcombine.high %v181, %v181
  %v204 = vcombine.high %v188, %v188
  %v205 = vcombine.high %v195, %v195
  %v206 = vcombine.high %v202, %v202
  %v343 = vunpack.c.l.b16 %v22
  %v344 = vunpack.c.l.b16 %v23
  %v345 = vunpack.c.l.b16 %v24
  %v346 = vunpack.c.l.b16 %v25
  %v347 = vunpack.c.l.b16 %v26
  %v348 = vunpack.c.l.b16 %v27
  %v349 = vunpack.c.l.b16 %v28
  %v350 = vunpack.c.l.b16 %v29
  %v351 = vunpack.c.l.b16 %v30
  %v352 = vunpack.c.l.b16 %v31
  %v353 = vunpack.c.l.b16 %v32
  %v354 = vunpack.c.l.b16 %v33
  %v355 = vunpack.c.l.b16 %v34
  %v356 = vunpack.c.l.b16 %v35
  %v357 = vunpack.c.l.b16 %v36
  %v358 = vunpack.c.l.b16 %v37
  %v359 = vunpack.c.l.b16 %v38
  %v360 = vunpack.c.l.b16 %v39
  %v361 = vunpack.c.l.b16 %v40
  %v362 = vunpack.c.l.b16 %v41
  %v363 = vunpack.c.l.b16 %v42
  %v364 = vunpack.c.l.b16 %v43
  %v365 = vunpack.c.l.b16 %v44
  %v366 = vunpack.c.l.b16 %v45
  %v367 = vunpack.c.l.b16 %v46
  %v368 = vunpack.c.l.b16 %v47
  %v369 = vunpack.c.l.b16 %v48
  %v370 = vunpack.c.l.b16 %v49
  %v371 = vunpack.c.l.b16 %v50
  %v372 = vunpack.c.l.b16 %v51
  %v373 = vunpack.c.l.b16 %v52
  %v374 = vunpack.c.l.b16 %v53
  %v375 = vunpack.c.l.b16 %v54
  %v376 = vunpack.c.l.b16 %v55
  %v377 = vunpack.c.l.b16 %v56
  %v378 = vunpack.c.l.b16 %v57
  %v379 = vunpack.c.l.b16 %v58
  %v380 = vunpack.c.l.b16 %v59
  %v381 = vunpack.c.l.b16 %v60
  %v382 = vunpack.c.l.b16 %v61
  %v383 = vunpack.c.l.b16 %v62
  %v384 = vunpack.c.l.b16 %v63
  %v385 = vunpack.c.l.b16 %v64
  %v386 = vunpack.c.l.b16 %v65
  %v387 = vunpack.c.l.b16 %v66
  %v388 = vunpack.c.l.b16 %v67
  %v389 = vunpack.c.l.b16 %v68
  %v390 = vunpack.c.l.b16 %v69
  %v391 = vunpack.c.l.b16 %v70
  %v392 = vunpack.c.l.b16 %v71
  %v393 = vunpack.c.l.b16 %v72
  %v394 = vunpack.c.l.b16 %v73
  %v395 = vunpack.c.l.b16 %v74
  %v396 = vunpack.c.l.b16 %v75
  %v397 = vunpack.c.l.b16 %v76
  %v398 = vunpack.c.l.b16 %v77
  %v399 = vunpack.c.l.b16 %v78
  %v400 = vunpack.c.l.b16 %v79
  %v401 = vunpack.c.l.b16 %v80
  %v402 = vunpack.c.l.b16 %v81
  %v403 = vunpack.c.l.b16 %v82
  %v404 = vunpack.c.l.b16 %v83
  %v405 = vunpack.c.l.b16 %v84
  %v406 = vunpack.c.l.b16 %v85
  %v407 = vunpack.c.l.b16 %v86
  %v408 = vunpack.c.l.b16 %v87
  %v409 = vunpack.c.l.b16 %v88
  %v410 = vunpack.c.l.b16 %v89
  %v411 = vunpack.c.l.b16 %v90
  %v412 = vunpack.c.l.b16 %v91
  %v413 = vunpack.c.l.b16 %v92
  %v414 = vunpack.c.l.b16 %v93
  %v415 = vunpack.c.l.b16 %v94
  %v416 = vunpack.c.l.b16 %v95
  %v417 = vunpack.c.l.b16 %v96
  %v418 = vunpack.c.l.b16 %v97
  %v419 = vunpack.c.l.b16 %v98
  %v420 = vunpack.c.l.b16 %v99
  %v421 = vunpack.c.l.b16 %v100
  %v422 = vunpack.c.l.b16 %v101
  %v423 = vunpack.c.l.b16 %v102
  %v424 = vunpack.c.l.b16 %v103
  %v425 = vunpack.c.l.b16 %v104
  %v426 = vunpack.c.l.b16 %v105
  %v427 = vunpack.c.l.b16 %v106
  %v428 = vunpack.c.l.b16 %v107
  %v429 = vunpack.c.l.b16 %v108
  %v430 = vunpack.c.l.b16 %v109
  %v431 = vunpack.c.l.b16 %v110
  %v432 = vunpack.c.l.b16 %v111
  %v433 = vunpack.c.l.b16 %v112
  %v434 = vunpack.c.l.b16 %v113
  %v435 = vunpack.c.l.b16 %v114
  %v436 = vunpack.c.l.b16 %v115
  %v437 = vunpack.c.l.b16 %v116
  %v438 = vunpack.c.l.b16 %v117
  %v439 = vunpack.c.l.b16 %v118
  %v440 = vunpack.c.l.b16 %v119
  %v441 = vunpack.c.l.b16 %v120
  %v442 = vunpack.c.l.b16 %v121
  %v443 = vunpack.c.l.b16 %v122
  %v444 = vunpack.c.l.b16 %v123
  %v445 = vunpack.c.l.b16 %v124
  %v446 = vunpack.c.l.b16 %v125
  %v447 = vunpack.c.l.b16 %v126
  %v448 = vunpack.c.l.b16 %v127
  %v449 = vunpack.c.l.b16 %v128
  %v450 = vunpack.c.l.b16 %v129
  %v451 = vunpack.c.l.b16 %v130
  %v452 = vunpack.c.l.b16 %v131
  %v453 = vunpack.c.l.b16 %v132
  %v454 = vunpack.c.l.b16 %v133
  %v455 = vunpack.c.l.b16 %v134
  %v456 = vunpack.c.l.b16 %v135
  %v457 = vunpack.c.l.b16 %v136
  %v458 = vunpack.c.l.b16 %v137
  %v459 = vunpack.c.l.b16 %v138
  %v460 = vunpack.c.l.b16 %v139
  %v461 = vunpack.c.l.b16 %v140
  %v462 = vunpack.c.l.b16 %v141
  %v463 = vunpack.c.l.b16 %v142
  %v464 = vunpack.c.l.b16 %v143
  %v465 = vunpack.c.l.b16 %v144
  %v466 = vunpack.c.l.b16 %v145
  %v467 = vunpack.c.l.b16 %v146
  %v468 = vunpack.c.l.b16 %v147
  %v469 = vunpack.c.l.b16 %v148
  %v470 = vunpack.c.l.b16 %v149
  %v471 = vpack.c.b16 %v344, %v343
  %v472 = vpack.c.b16 %v346, %v345
  %v473 = vpack.c.b16 %v348, %v347
  %v474 = vpack.c.b16 %v350, %v349
  %v475 = vpack.c.b16 %v352, %v351
  %v476 = vpack.c.b16 %v354, %v353
  %v477 = vpack.c.b16 %v356, %v355
  %v478 = vpack.c.b16 %v358, %v357
  %v479 = vpack.c.b16 %v360, %v359
  %v480 = vpack.c.b16 %v362, %v361
  %v481 = vpack.c.b16 %v364, %v363
  %v482 = vpack.c.b16 %v366, %v365
  %v483 = vpack.c.b16 %v368, %v367
  %v484 = vpack.c.b16 %v370, %v369
  %v485 = vpack.c.b16 %v372, %v371
  %v486 = vpack.c.b16 %v374, %v373
  %v487 = vpack.c.b16 %v376, %v375
  %v488 = vpack.c.b16 %v378, %v377
  %v489 = vpack.c.b16 %v380, %v379
  %v490 = vpack.c.b16 %v382, %v381
  %v491 = vpack.c.b16 %v384, %v383
  %v492 = vpack.c.b16 %v386, %v385
  %v493 = vpack.c.b16 %v388, %v387
  %v494 = vpack.c.b16 %v390, %v389
  %v495 = vpack.c.b16 %v392, %v391
  %v496 = vpack.c.b16 %v394, %v393
  %v497 = vpack.c.b16 %v396, %v395
  %v498 = vpack.c.b16 %v398, %v397
  %v499 = vpack.c.b16 %v400, %v399
  %v500 = vpack.c.b16 %v402, %v401
  %v501 = vpack.c.b16 %v404, %v403
  %v502 = vpack.c.b16 %v406, %v405
  %v503 = vpack.c.b16 %v408, %v407
  %v504 = vpack.c.b16 %v410, %v409
  %v505 = vpack.c.b16 %v412, %v411
  %v506 = vpack.c.b16 %v414, %v413
  %v507 = vpack.c.b16 %v416, %v415
  %v508 = vpack.c.b16 %v418, %v417
  %v509 = vpack.c.b16 %v420, %v419
  %v510 = vpack.c.b16 %v422, %v421
  %v511 = vpack.c.b16 %v424, %v423
  %v512 = vpack.c.b16 %v426, %v425
  %v513 = vpack.c.b16 %v428, %v427
  %v514 = vpack.c.b16 %v430, %v429
  %v515 = vpack.c.b16 %v432, %v431
  %v516 = vpack.c.b16 %v434, %v433
  %v517 = vpack.c.b16 %v436, %v435
  %v518 = vpack.c.b16 %v438, %v437
  %v519 = vpack.c.b16 %v440, %v439
  %v520 = vpack.c.b16 %v442, %v441
  %v521 = vpack.c.b16 %v444, %v443
  %v522 = vpack.c.b16 %v446, %v445
  %v523 = vpack.c.b16 %v448, %v447
  %v524 = vpack.c.b16 %v450, %v449
  %v525 = vpack.c.b16 %v452, %v451
  %v526 = vpack.c.b16 %v454, %v453
  %v527 = vpack.c.b16 %v456, %v455
  %v528 = vpack.c.b16 %v458, %v457
  %v529 = vpack.c.b16 %v460, %v459
  %v530 = vpack.c.b16 %v462, %v461
  %v531 = vpack.c.b16 %v464, %v463
  %v532 = vpack.c.b16 %v466, %v465
  %v533 = vpack.c.b16 %v468, %v467
  %v534 = vpack.c.b16 %v470, %v469
  %599 = vmatprep.subr.bf16.mxu0 0
  %600 = vmatpush1.bf16.msra.mxu0 %v471
  %601 = vmatprep.subr.bf16.mxu0 0
  %602 = vmatpush1.bf16.msra.mxu0 %v472
  %603 = vmatprep.subr.bf16.mxu0 0
  %604 = vmatpush1.bf16.msra.mxu0 %v473
  %605 = vmatprep.subr.bf16.mxu0 0
  %606 = vmatpush1.bf16.msra.mxu0 %v474
  %607 = vmatprep.subr.bf16.mxu0 0
  %608 = vmatpush1.bf16.msra.mxu0 %v475
  %609 = vmatprep.subr.bf16.mxu0 0
  %610 = vmatpush1.bf16.msra.mxu0 %v476
  %611 = vmatprep.subr.bf16.mxu0 0
  %612 = vmatpush1.bf16.msra.mxu0 %v477
  %613 = vmatprep.subr.bf16.mxu0 0
  %614 = vmatpush1.bf16.msra.mxu0 %v478
  %615 = vmatprep.subr.bf16.mxu0 0
  %616 = vmatpush1.bf16.msra.mxu0 %v479
  %617 = vmatprep.subr.bf16.mxu0 0
  %618 = vmatpush1.bf16.msra.mxu0 %v480
  %619 = vmatprep.subr.bf16.mxu0 0
  %620 = vmatpush1.bf16.msra.mxu0 %v481
  %621 = vmatprep.subr.bf16.mxu0 0
  %622 = vmatpush1.bf16.msra.mxu0 %v482
  %623 = vmatprep.subr.bf16.mxu0 0
  %624 = vmatpush1.bf16.msra.mxu0 %v483
  %625 = vmatprep.subr.bf16.mxu0 0
  %626 = vmatpush1.bf16.msra.mxu0 %v484
  %627 = vmatprep.subr.bf16.mxu0 0
  %628 = vmatpush1.bf16.msra.mxu0 %v485
  %629 = vmatprep.subr.bf16.mxu0 0
  %630 = vmatpush1.bf16.msra.mxu0 %v486
  %631 = vmatprep.mubr.bf16.mxu0 %v195
  %632 = vmatmul.mubr.bf16.gmra.mrb[0].mxu0 %v181
  %v633 = vpop.f32.mrb[0].mxu0
  %v634 = vadd.f32 %v155, %v633
  %v635 = vpop.f32.mrb[0].mxu0
  %v636 = vpop.f32.mrb[0].mxu0
  %v637 = vpop.f32.mrb[0].mxu0
  %638 = vdwg.mxu0
  %639 = vmatprep.subr.bf16.mxu0 0
  %640 = vmatpush1.bf16.msra.mxu0 %v487
  %641 = vmatprep.subr.bf16.mxu0 0
  %642 = vmatpush1.bf16.msra.mxu0 %v488
  %643 = vmatprep.subr.bf16.mxu0 0
  %644 = vmatpush1.bf16.msra.mxu0 %v489
  %645 = vmatprep.subr.bf16.mxu0 0
  %646 = vmatpush1.bf16.msra.mxu0 %v490
  %647 = vmatprep.subr.bf16.mxu0 0
  %648 = vmatpush1.bf16.msra.mxu0 %v491
  %649 = vmatprep.subr.bf16.mxu0 0
  %650 = vmatpush1.bf16.msra.mxu0 %v492
  %651 = vmatprep.subr.bf16.mxu0 0
  %652 = vmatpush1.bf16.msra.mxu0 %v493
  %653 = vmatprep.subr.bf16.mxu0 0
  %654 = vmatpush1.bf16.msra.mxu0 %v494
  %655 = vmatprep.subr.bf16.mxu0 0
  %656 = vmatpush1.bf16.msra.mxu0 %v495
  %657 = vmatprep.subr.bf16.mxu0 0
  %658 = vmatpush1.bf16.msra.mxu0 %v496
  %659 = vmatprep.subr.bf16.mxu0 0
  %660 = vmatpush1.bf16.msra.mxu0 %v497
  %661 = vmatprep.subr.bf16.mxu0 0
  %662 = vmatpush1.bf16.msra.mxu0 %v498
  %663 = vmatprep.subr.bf16.mxu0 0
  %664 = vmatpush1.bf16.msra.mxu0 %v499
  %665 = vmatprep.subr.bf16.mxu0 0
  %666 = vmatpush1.bf16.msra.mxu0 %v500
  %667 = vmatprep.subr.bf16.mxu0 0
  %668 = vmatpush1.bf16.msra.mxu0 %v501
  %669 = vmatprep.subr.bf16.mxu0 0
  %670 = vmatpush1.bf16.msra.mxu0 %v502
  %671 = vmatprep.mubr.bf16.mxu0 %v205
  %672 = vmatmul.mubr.bf16.gmra.mrb[0].mxu0 %v203
  %v673 = vpop.f32.mrb[0].mxu0
  %v674 = vadd.f32 %v634, %v673
  %v675 = vpop.f32.mrb[0].mxu0
  %v676 = vpop.f32.mrb[0].mxu0
  %v677 = vpop.f32.mrb[0].mxu0
  %678 = vdwg.mxu0
  %679 = vmatprep.subr.bf16.mxu0 0
  %680 = vmatpush1.bf16.msra.mxu0 %v503
  %681 = vmatprep.subr.bf16.mxu0 0
  %682 = vmatpush1.bf16.msra.mxu0 %v504
  %683 = vmatprep.subr.bf16.mxu0 0
  %684 = vmatpush1.bf16.msra.mxu0 %v505
  %685 = vmatprep.subr.bf16.mxu0 0
  %686 = vmatpush1.bf16.msra.mxu0 %v506
  %687 = vmatprep.subr.bf16.mxu0 0
  %688 = vmatpush1.bf16.msra.mxu0 %v507
  %689 = vmatprep.subr.bf16.mxu0 0
  %690 = vmatpush1.bf16.msra.mxu0 %v508
  %691 = vmatprep.subr.bf16.mxu0 0
  %692 = vmatpush1.bf16.msra.mxu0 %v509
  %693 = vmatprep.subr.bf16.mxu0 0
  %694 = vmatpush1.bf16.msra.mxu0 %v510
  %695 = vmatprep.subr.bf16.mxu0 0
  %696 = vmatpush1.bf16.msra.mxu0 %v511
  %697 = vmatprep.subr.bf16.mxu0 0
  %698 = vmatpush1.bf16.msra.mxu0 %v512
  %699 = vmatprep.subr.bf16.mxu0 0
  %700 = vmatpush1.bf16.msra.mxu0 %v513
  %701 = vmatprep.subr.bf16.mxu0 0
  %702 = vmatpush1.bf16.msra.mxu0 %v514
  %703 = vmatprep.subr.bf16.mxu0 0
  %704 = vmatpush1.bf16.msra.mxu0 %v515
  %705 = vmatprep.subr.bf16.mxu0 0
  %706 = vmatpush1.bf16.msra.mxu0 %v516
  %707 = vmatprep.subr.bf16.mxu0 0
  %708 = vmatpush1.bf16.msra.mxu0 %v517
  %709 = vmatprep.subr.bf16.mxu0 0
  %710 = vmatpush1.bf16.msra.mxu0 %v518
  %711 = vmatprep.mubr.bf16.mxu0 %v202
  %712 = vmatmul.mubr.bf16.gmra.mrb[0].mxu0 %v188
  %v713 = vpop.f32.mrb[0].mxu0
  %v714 = vadd.f32 %v674, %v713
  %v715 = vpop.f32.mrb[0].mxu0
  %v716 = vpop.f32.mrb[0].mxu0
  %v717 = vpop.f32.mrb[0].mxu0
  %718 = vdwg.mxu0
  %719 = vmatprep.subr.bf16.mxu0 0
  %720 = vmatpush1.bf16.msra.mxu0 %v519
  %721 = vmatprep.subr.bf16.mxu0 0
  %722 = vmatpush1.bf16.msra.mxu0 %v520
  %723 = vmatprep.subr.bf16.mxu0 0
  %724 = vmatpush1.bf16.msra.mxu0 %v521
  %725 = vmatprep.subr.bf16.mxu0 0
  %726 = vmatpush1.bf16.msra.mxu0 %v522
  %727 = vmatprep.subr.bf16.mxu0 0
  %728 = vmatpush1.bf16.msra.mxu0 %v523
  %729 = vmatprep.subr.bf16.mxu0 0
  %730 = vmatpush1.bf16.msra.mxu0 %v524
  %731 = vmatprep.subr.bf16.mxu0 0
  %732 = vmatpush1.bf16.msra.mxu0 %v525
  %733 = vmatprep.subr.bf16.mxu0 0
  %734 = vmatpush1.bf16.msra.mxu0 %v526
  %735 = vmatprep.subr.bf16.mxu0 0
  %736 = vmatpush1.bf16.msra.mxu0 %v527
  %737 = vmatprep.subr.bf16.mxu0 0
  %738 = vmatpush1.bf16.msra.mxu0 %v528
  %739 = vmatprep.subr.bf16.mxu0 0
  %740 = vmatpush1.bf16.msra.mxu0 %v529
  %741 = vmatprep.subr.bf16.mxu0 0
  %742 = vmatpush1.bf16.msra.mxu0 %v530
  %743 = vmatprep.subr.bf16.mxu0 0
  %744 = vmatpush1.bf16.msra.mxu0 %v531
  %745 = vmatprep.subr.bf16.mxu0 0
  %746 = vmatpush1.bf16.msra.mxu0 %v532
  %747 = vmatprep.subr.bf16.mxu0 0
  %748 = vmatpush1.bf16.msra.mxu0 %v533
  %749 = vmatprep.subr.bf16.mxu0 0
  %750 = vmatpush1.bf16.msra.mxu0 %v534
  %751 = vmatprep.mubr.bf16.mxu0 %v206
  %752 = vmatmul.mubr.bf16.gmra.mrb[0].mxu0 %v204
  %v753 = vpop.f32.mrb[0].mxu0
  %v754 = vadd.f32 %v714, %v753
  %v755 = vpop.f32.mrb[0].mxu0
  %v756 = vpop.f32.mrb[0].mxu0
  %v757 = vpop.f32.mrb[0].mxu0
  %758 = vdwg.mxu0
  %vm759 = vcmp.gt.f32.partialorder %v754, 0.0
  %v760 = vmul.f32 %v754, 0.2
  %v761 = vsel %vm759, %v754, %v760
  %v762 = vpack.c.bf16 %v761, %v761
  %v763 = vld [vmem:[%s3] sm:$0xf]
  %v764 = vld [vmem:[%s3 + $0x4] sm:$0xf]
  %v765 = vld [vmem:[%s3 + $0x8] sm:$0xf]
  %v766 = vld [vmem:[%s3 + $0xc] sm:$0xf]
  %v767 = vld [vmem:[%s3 + $0x10] sm:$0xf]
  %v768 = vld [vmem:[%s3 + $0x14] sm:$0xf]
  %v769 = vld [vmem:[%s3 + $0x18] sm:$0xf]
  %v770 = vld [vmem:[%s3 + $0x1c] sm:$0xf]
  %v771 = vld [vmem:[%s3 + $0x20] sm:$0xf]
  %v772 = vld [vmem:[%s3 + $0x24] sm:$0xf]
  %v773 = vld [vmem:[%s3 + $0x28] sm:$0xf]
  %v774 = vld [vmem:[%s3 + $0x2c] sm:$0xf]
  %v775 = vld [vmem:[%s3 + $0x30] sm:$0xf]
  %v776 = vld [vmem:[%s3 + $0x34] sm:$0xf]
  %v777 = vld [vmem:[%s3 + $0x38] sm:$0xf]
  %v778 = vld [vmem:[%s3 + $0x3c] sm:$0xf]
  %v779 = vld [vmem:[%s4] sm:$0x1]
  %v781 = vlaneseq
  %v782 = vshrl.u32 %v781, 7
  %v783 = vsub.s32 0, %v782
  %v784 = vrot.slane %v779, %v783
  %v802 = vunpack.c.l.b16 %v763
  %v803 = vunpack.c.l.b16 %v764
  %v804 = vunpack.c.l.b16 %v765
  %v805 = vunpack.c.l.b16 %v766
  %v806 = vunpack.c.l.b16 %v767
  %v807 = vunpack.c.l.b16 %v768
  %v808 = vunpack.c.l.b16 %v769
  %v809 = vunpack.c.l.b16 %v770
  %v810 = vunpack.c.l.b16 %v771
  %v811 = vunpack.c.l.b16 %v772
  %v812 = vunpack.c.l.b16 %v773
  %v813 = vunpack.c.l.b16 %v774
  %v814 = vunpack.c.l.b16 %v775
  %v815 = vunpack.c.l.b16 %v776
  %v816 = vunpack.c.l.b16 %v777
  %v817 = vunpack.c.l.b16 %v778
  %v818 = vpack.c.b16 %v803, %v802
  %v819 = vpack.c.b16 %v805, %v804
  %v820 = vpack.c.b16 %v807, %v806
  %v821 = vpack.c.b16 %v809, %v808
  %v822 = vpack.c.b16 %v811, %v810
  %v823 = vpack.c.b16 %v813, %v812
  %v824 = vpack.c.b16 %v815, %v814
  %v825 = vpack.c.b16 %v817, %v816
  %834 = vmatprep.subr.bf16.mxu0 0
  %835 = vmatpush1.bf16.msra.mxu0 %v818
  %836 = vmatprep.subr.bf16.mxu0 0
  %837 = vmatpush1.bf16.msra.mxu0 %v819
  %838 = vmatprep.subr.bf16.mxu0 0
  %839 = vmatpush1.bf16.msra.mxu0 %v820
  %840 = vmatprep.subr.bf16.mxu0 0
  %841 = vmatpush1.bf16.msra.mxu0 %v821
  %842 = vmatprep.subr.bf16.mxu0 0
  %843 = vmatpush1.bf16.msra.mxu0 %v822
  %844 = vmatprep.subr.bf16.mxu0 0
  %845 = vmatpush1.bf16.msra.mxu0 %v823
  %846 = vmatprep.subr.bf16.mxu0 0
  %847 = vmatpush1.bf16.msra.mxu0 %v824
  %848 = vmatprep.subr.bf16.mxu0 0
  %849 = vmatpush1.bf16.msra.mxu0 %v825
  %850 = vmatprep.subr.bf16.mxu0 0
  %851 = vmatpush1.bf16.msra.mxu0 0
  %852 = vmatprep.subr.bf16.mxu0 0
  %853 = vmatpush1.bf16.msra.mxu0 0
  %854 = vmatprep.subr.bf16.mxu0 0
  %855 = vmatpush1.bf16.msra.mxu0 0
  %856 = vmatprep.subr.bf16.mxu0 0
  %857 = vmatpush1.bf16.msra.mxu0 0
  %858 = vmatprep.subr.bf16.mxu0 0
  %859 = vmatpush1.bf16.msra.mxu0 0
  %860 = vmatprep.subr.bf16.mxu0 0
  %861 = vmatpush1.bf16.msra.mxu0 0
  %862 = vmatprep.subr.bf16.mxu0 0
  %863 = vmatpush1.bf16.msra.mxu0 0
  %864 = vmatprep.subr.bf16.mxu0 0
  %865 = vmatpush1.bf16.msra.mxu0 0
  %866 = vmatprep.mubr.bf16.mxu0 0
  %867 = vmatmul.mubr.bf16.gmra.mrb[0].mxu0 %v762
  %v868 = vpop.f32.mrb[0].mxu0
  %v869 = vadd.f32 %v784, %v868
  %v870 = vpop.f32.mrb[0].mxu0
  %v871 = vpop.f32.mrb[0].mxu0
  %v872 = vpop.f32.mrb[0].mxu0
  %873 = vdwg.mxu0
  %v874 = vsub.f32 0.0, %v869
  %v875 = vmul.f32 %v874, 1.442695
  %v876 = vpow.pop %v875
  %v877 = vadd.f32 %v876, 1.0
  %v878 = vrcp.pop %v877
  %v879 = vmul.f32 1.0, %v878
  %880 = vst [vmem:[%s5] sm:$0x3] %v879
  // Predicated region
  $region22: #{discriminator_forward.7} parent=0 // pred_check
    _
  $region23: #{discriminator_forward.7} parent=0 // pred_check_branch
    %882 = sbr.rel (0) target = $region25
  $region24: #{discriminator_forward.7} parent=0 // pred_region
    _
  $region25: #{discriminator_forward.7} parent=0 // pred_fallthru
    _
  // Predicated region
  $region26: #{discriminator_forward.7} parent=0 // pred_check
    _
  $region27: #{discriminator_forward.7} parent=0 // pred_check_branch
    %884 = sbr.rel (0) target = $region29
  $region28: #{discriminator_forward.7} parent=0 // pred_region
    _
  $region29: #{discriminator_forward.7} parent=0 // pred_fallthru
    _

</llo_original>
